<compile_context>
chip_gen: v5e
topology: v5e:2x2
jax: 0.10.0
libtpu: 0.0.40
codegen_flags: <defaults>
</compile_context>

<pallas_src>
import math

import jax
import jax.numpy as jnp
from jax.experimental import pallas as pl
from jax.experimental.pallas import tpu as pltpu

_VMEM = pl.BlockSpec(memory_space=pltpu.MemorySpace.VMEM)
_SMEM = pl.BlockSpec(memory_space=pltpu.MemorySpace.SMEM)


def _sigmoid(x):
    return 1.0 / (1.0 + jnp.exp(-x))


def _softmax_last(s):
    s = s - jnp.max(s, axis=-1, keepdims=True)
    e = jnp.exp(s)
    return e / jnp.sum(e, axis=-1, keepdims=True)


def _sdpa(x, wqkv, bqkv):
    """softmax(Q K^T / sqrt(O)) V with a single fused Q/K/V projection matmul.

    x: (B, S, F) value already resident in vregs; wqkv: (F, 3*O); bqkv: (1, 3*O).
    """
    B, S, F = x.shape
    O = wqkv.shape[1] // 3
    qkv = jnp.dot(x.reshape(B * S, F), wqkv,
                  preferred_element_type=jnp.float32) + bqkv            # (B*S, 3O)
    q = qkv[:, 0:O].reshape(B, S, O)
    k = qkv[:, O:2 * O].reshape(B, S, O)
    v = qkv[:, 2 * O:3 * O].reshape(B, S, O)
    s = jnp.einsum('bso,bto->bst', q, k, preferred_element_type=jnp.float32)
    p = _softmax_last(s * jnp.float32(1.0 / math.sqrt(O)))
    return jnp.einsum('bst,bto->bso', p, v, preferred_element_type=jnp.float32)


# --------------------------------------------------------------------------- #
# Single fused kernel: encoder self-attn -> encoder LSTM -> decoder self-attn ->
# decoder LSTM -> top-level self-attn -> head.  Everything stays in VMEM.
# --------------------------------------------------------------------------- #
def _darnn_kernel(
        # inputs
        xp_ref, y_ref,
        esa_w_ref, esa_b_ref, dsa_w_ref, dsa_b_ref, tsa_w_ref, tsa_b_ref,
        e_w1h_ref, e_w1c_ref, e_w1x_ref, e_b1_ref, e_w2_ref, e_b2_ref,
        e_wih_ref, e_whh_ref, e_bl_ref,
        d_w1d_ref, d_w1c_ref, d_w1x_ref, d_b1_ref, d_w2_ref, d_b2_ref,
        d_wfx_ref, d_wfy_ref, d_bf_ref, d_wih_ref, d_whh_ref, d_bl_ref,
        scale_ref, scalex_ref, h_w1_ref, h_b1_ref, h_w2_ref, h_b2_ref,
        # output
        out_ref,
        # scratch
        xenc_scr):
    B, D, T = xp_ref.shape
    He = e_whh_ref.shape[0]
    Hd = d_whh_ref.shape[0]

    # ------------------------------ Encoder ------------------------------- #
    # Input self-attention over the driving-series axis (sequence = D, feat = T);
    # xp is x already permuted to (B, D, T) so no transposes are needed in-kernel.
    xp_att = _sdpa(xp_ref[...], esa_w_ref[...], esa_b_ref[...])          # (B, D, T)

    # t-invariant part of the input-attention energy (bias hoisted out of the loop).
    xx = (jnp.dot(xp_att.reshape(B * D, T), e_w1x_ref[...],
                  preferred_element_type=jnp.float32).reshape(B, D, T)
          + e_b1_ref[...])                                               # (B, D, T)

    e_w1h = e_w1h_ref[...]
    e_w1c = e_w1c_ref[...]
    e_w2 = e_w2_ref[...]
    e_b2 = e_b2_ref[...]
    e_wih = e_wih_ref[...]
    e_whh = e_whh_ref[...]
    e_bl = e_bl_ref[...]
    lane_t = jax.lax.broadcasted_iota(jnp.int32, (B, D, T), 2)

    h = jnp.zeros((B, He), jnp.float32)
    c = jnp.zeros((B, He), jnp.float32)
    for t in range(T):                       # fully unrolled serial recurrence
        hh = jnp.dot(h, e_w1h, preferred_element_type=jnp.float32)       # (B, T)
        cc = jnp.dot(c, e_w1c, preferred_element_type=jnp.float32)       # (B, T)
        z = jnp.tanh(hh[:, None, :] + cc[:, None, :] + xx)               # (B, D, T)
        score = jnp.sum(z * e_w2, axis=-1) + e_b2                        # (B, D)
        alpha = _softmax_last(score)                                     # (B, D)
        # X[:, t, :] == xp_att[:, :, t]; extract via masked lane-reduce (layout-safe).
        x_t = jnp.sum(jnp.where(lane_t == t, xp_att, 0.0), axis=-1)      # (B, D)
        x_tilde = alpha * x_t
        gates = (jnp.dot(x_tilde, e_wih, preferred_element_type=jnp.float32)
                 + jnp.dot(h, e_whh, preferred_element_type=jnp.float32)
                 + e_bl)                                                 # (B, 4He)
        i = _sigmoid(gates[:, 0:He])
        f = _sigmoid(gates[:, He:2 * He])
        g = jnp.tanh(gates[:, 2 * He:3 * He])
        o = _sigmoid(gates[:, 3 * He:4 * He])
        c = f * c + i * g
        h = o * jnp.tanh(c)
        xenc_scr[:, pl.ds(t, 1), :] = h[:, None, :]                      # VMEM only
    x_encoded = xenc_scr[...]                                            # (B, T, He)

    # ------------------------------ Decoder ------------------------------- #
    xe_att = _sdpa(x_encoded, dsa_w_ref[...], dsa_b_ref[...])            # (B, T, He)
    xx_d = (jnp.dot(xe_att.reshape(B * T, He), d_w1x_ref[...],
                    preferred_element_type=jnp.float32).reshape(B, T, He)
            + d_b1_ref[...])                                             # (B, T, He)

    d_w1d = d_w1d_ref[...]
    d_w1c = d_w1c_ref[...]
    d_w2 = d_w2_ref[...]
    d_b2 = d_b2_ref[...]
    d_wfx = d_wfx_ref[...]
    d_wfy = d_wfy_ref[...]
    d_bf = d_bf_ref[...]
    d_wih = d_wih_ref[...]
    d_whh = d_whh_ref[...]
    d_bl = d_bl_ref[...]
    yv = y_ref[...]                                                      # (B, T)

    d = jnp.zeros((B, Hd), jnp.float32)
    c = jnp.zeros((B, Hd), jnp.float32)
    for t in range(T):                       # fully unrolled serial recurrence
        dd = jnp.dot(d, d_w1d, preferred_element_type=jnp.float32)       # (B, He)
        cc = jnp.dot(c, d_w1c, preferred_element_type=jnp.float32)       # (B, He)
        z = jnp.tanh(dd[:, None, :] + cc[:, None, :] + xx_d)             # (B, T, He)
        score = jnp.sum(z * d_w2, axis=-1) + d_b2                        # (B, T)
        beta = _softmax_last(score)                                      # (B, T)
        context = jnp.sum(beta[:, :, None] * xe_att, axis=1)             # (B, He)
        y_t = yv[:, t:t + 1]                                             # (B, 1)
        y_tilde = (jnp.sum(context * d_wfx, axis=-1, keepdims=True)
                   + y_t * d_wfy + d_bf)                                 # (B, 1)
        gates = (y_tilde * d_wih                                         # input_size == 1
                 + jnp.dot(d, d_whh, preferred_element_type=jnp.float32)
                 + d_bl)                                                 # (B, 4Hd)
        i = _sigmoid(gates[:, 0:Hd])
        f = _sigmoid(gates[:, Hd:2 * Hd])
        g = jnp.tanh(gates[:, 2 * Hd:3 * Hd])
        o = _sigmoid(gates[:, 3 * Hd:4 * Hd])
        c = f * c + i * g
        d = o * jnp.tanh(c)

    # -------------------- Top-level attention + head ---------------------- #
    out3 = _sdpa(d[None, :, :], tsa_w_ref[...], tsa_b_ref[...])[0]       # (B, Hd)
    out3 = scale_ref[0, 0] * out3 + scalex_ref[0, 0] * d
    hid = (jnp.dot(out3, h_w1_ref[...], preferred_element_type=jnp.float32)
           + h_b1_ref[...])                                              # (B, Hd)
    logit = jnp.sum(hid * h_w2_ref[...], axis=-1, keepdims=True) + h_b2_ref[...]
    out_ref[...] = _sigmoid(logit)                                       # (B, 1)


def _cost(B, T, D, He, Hd):
    """Rough flop / transcendental counts for the scheduler hint."""
    def sdpa_flops(b, s, f, o):
        return 2 * b * s * f * 3 * o + 4 * b * s * s * o
    flops = (
        sdpa_flops(B, D, T, T) + sdpa_flops(B, T, He, He) + sdpa_flops(1, B, He, Hd)
        + 2 * B * D * T * T
        + T * (4 * B * He * T + 6 * B * D * T
               + 2 * B * D * 4 * He + 2 * B * He * 4 * He + 12 * B * He)
        + 2 * B * T * He * He
        + T * (4 * B * Hd * He + 6 * B * T * He
               + 2 * B * Hd * 4 * Hd + 12 * B * Hd)
        + 2 * B * Hd * Hd + 4 * B * Hd)
    transcendentals = (
        B * D * D + B * T * T + B * B
        + T * B * (D * T + D + 5 * He)
        + T * B * (T * He + T + 5 * Hd)
        + B)
    return int(flops), int(transcendentals)


def darnn_forward(x, y, params):
    B, T, D = x.shape
    He = params['enc']['whh'].shape[0]
    Hd = params['dec']['whh'].shape[0]
    xp = jnp.transpose(x, (0, 2, 1))          # (B, D, T): tiny one-off input permute

    enc = params['enc']
    dec = params['dec']
    head = params['head']
    args = (
        xp, y,
        params['enc_sa'][0], params['enc_sa'][1],
        params['dec_sa'][0], params['dec_sa'][1],
        params['top_sa'][0], params['top_sa'][1],
        enc['w1h'], enc['w1c'], enc['w1x'], enc['b1'], enc['w2'], enc['b2'],
        enc['wih'], enc['whh'], enc['bl'],
        dec['w1d'], dec['w1c'], dec['w1x'], dec['b1'], dec['w2'], dec['b2'],
        dec['wfx'], dec['wfy'], dec['bf'], dec['wih'], dec['whh'], dec['bl'],
        head['scale'], head['scalex'], head['w1'], head['b1'], head['w2'], head['b2'],
    )
    in_specs = [_VMEM] * 29 + [_SMEM, _SMEM] + [_VMEM] * 4
    flops, transcendentals = _cost(B, T, D, He, Hd)
    bytes_accessed = sum(int(a.size) * 4 for a in args) + B * 4

    out = pl.pallas_call(
        _darnn_kernel,
        out_shape=jax.ShapeDtypeStruct((B, 1), jnp.float32),
        in_specs=in_specs,
        out_specs=_VMEM,
        scratch_shapes=[pltpu.VMEM((B, T, He), jnp.float32)],
        cost_estimate=pl.CostEstimate(flops=flops,
                                      transcendentals=transcendentals,
                                      bytes_accessed=bytes_accessed),
    )(*args)
    return out[:, 0]                                                     # (B,)


def _init_params(key, D, T, He, Hd):
    keys = iter(jax.random.split(key, 64))

    def nrm(shape, s=0.1):
        return (s * jax.random.normal(next(keys), shape)).astype(jnp.float32)

    def sa(fin, fout):
        # Fused Q|K|V projection: (fin, 3*fout) weight and (1, 3*fout) bias.
        return (nrm((fin, 3 * fout)), nrm((1, 3 * fout)))

    params = {
        'enc_sa': sa(T, T),
        'dec_sa': sa(He, He),
        'top_sa': sa(He, Hd),
        'enc': dict(
            w1h=nrm((He, T)), w1c=nrm((He, T)), w1x=nrm((T, T)), b1=nrm((1, T)),
            w2=nrm((1, T)), b2=nrm((1, 1)),
            wih=nrm((D, 4 * He)), whh=nrm((He, 4 * He)), bl=nrm((1, 4 * He))),
        'dec': dict(
            w1d=nrm((Hd, He)), w1c=nrm((Hd, He)), w1x=nrm((He, He)), b1=nrm((1, He)),
            w2=nrm((1, He)), b2=nrm((1, 1)),
            wfx=nrm((1, He)), wfy=nrm((1, 1)), bf=nrm((1, 1)),
            wih=nrm((1, 4 * Hd)), whh=nrm((Hd, 4 * Hd)), bl=nrm((1, 4 * Hd))),
        'head': dict(
            scale=nrm((1, 1), 1.0), scalex=nrm((1, 1), 1.0),
            w1=nrm((Hd, Hd)), b1=nrm((1, Hd)), w2=nrm((1, Hd)), b2=nrm((1, 1))),
    }
    return params


if __name__ == "__main__":
    # input_size=4 drivers, T=8 time steps, encoder/decoder hidden = 32
    # (the torch code's top-level attention requires He == Hd).
    B, D, T, He, Hd = 2, 4, 8, 32, 32
    kx, ky, kp = jax.random.split(jax.random.PRNGKey(0), 3)
    x = jax.random.normal(kx, (B, T, D), dtype=jnp.float32)
    y = jax.random.normal(ky, (B, T), dtype=jnp.float32)
    params = _init_params(kp, D, T, He, Hd)

    out = jax.jit(darnn_forward)(x, y, params)
    jax.block_until_ready(out)
    assert out.shape == (B,)
    assert bool(jnp.all(jnp.isfinite(out)))
    print("KERNEL_OK")
</pallas_src>

<mosaic_0001>
module attributes {stable_mosaic.version = 11 : i64} {
  func.func @_darnn_kernel(%arg0: memref<2x4x8xf32, #tpu.memory_space<vmem>>, %arg1: memref<2x8xf32, #tpu.memory_space<vmem>>, %arg2: memref<8x24xf32, #tpu.memory_space<vmem>>, %arg3: memref<1x24xf32, #tpu.memory_space<vmem>>, %arg4: memref<32x96xf32, #tpu.memory_space<vmem>>, %arg5: memref<1x96xf32, #tpu.memory_space<vmem>>, %arg6: memref<32x96xf32, #tpu.memory_space<vmem>>, %arg7: memref<1x96xf32, #tpu.memory_space<vmem>>, %arg8: memref<32x8xf32, #tpu.memory_space<vmem>>, %arg9: memref<32x8xf32, #tpu.memory_space<vmem>>, %arg10: memref<8x8xf32, #tpu.memory_space<vmem>>, %arg11: memref<1x8xf32, #tpu.memory_space<vmem>>, %arg12: memref<1x8xf32, #tpu.memory_space<vmem>>, %arg13: memref<1x1xf32, #tpu.memory_space<vmem>>, %arg14: memref<4x128xf32, #tpu.memory_space<vmem>>, %arg15: memref<32x128xf32, #tpu.memory_space<vmem>>, %arg16: memref<1x128xf32, #tpu.memory_space<vmem>>, %arg17: memref<32x32xf32, #tpu.memory_space<vmem>>, %arg18: memref<32x32xf32, #tpu.memory_space<vmem>>, %arg19: memref<32x32xf32, #tpu.memory_space<vmem>>, %arg20: memref<1x32xf32, #tpu.memory_space<vmem>>, %arg21: memref<1x32xf32, #tpu.memory_space<vmem>>, %arg22: memref<1x1xf32, #tpu.memory_space<vmem>>, %arg23: memref<1x32xf32, #tpu.memory_space<vmem>>, %arg24: memref<1x1xf32, #tpu.memory_space<vmem>>, %arg25: memref<1x1xf32, #tpu.memory_space<vmem>>, %arg26: memref<1x128xf32, #tpu.memory_space<vmem>>, %arg27: memref<32x128xf32, #tpu.memory_space<vmem>>, %arg28: memref<1x128xf32, #tpu.memory_space<vmem>>, %arg29: memref<1x1xf32, #tpu.memory_space<smem>>, %arg30: memref<1x1xf32, #tpu.memory_space<smem>>, %arg31: memref<32x32xf32, #tpu.memory_space<vmem>>, %arg32: memref<1x32xf32, #tpu.memory_space<vmem>>, %arg33: memref<1x32xf32, #tpu.memory_space<vmem>>, %arg34: memref<1x1xf32, #tpu.memory_space<vmem>>, %arg35: memref<2x1xf32, #tpu.memory_space<vmem>>, %arg36: memref<2x8x32xf32, #tpu.memory_space<vmem>>) attributes {dimension_semantics = [], scalar_prefetch = 0 : i64, scratch_operands = 1 : i64, tpu.core_type = #tpu.core_type<tc>} {
    %c0 = arith.constant 0 : index
    %c0_0 = arith.constant 0 : index
    %c0_1 = arith.constant 0 : index
    %0 = vector.load %arg0[%c0, %c0_0, %c0_1] : memref<2x4x8xf32, #tpu.memory_space<vmem>>, vector<2x4x8xf32>
    %c0_2 = arith.constant 0 : index
    %c0_3 = arith.constant 0 : index
    %1 = vector.load %arg2[%c0_2, %c0_3] : memref<8x24xf32, #tpu.memory_space<vmem>>, vector<8x24xf32>
    %c0_4 = arith.constant 0 : index
    %c0_5 = arith.constant 0 : index
    %2 = vector.load %arg3[%c0_4, %c0_5] : memref<1x24xf32, #tpu.memory_space<vmem>>, vector<1x24xf32>
    %3 = vector.shape_cast %0 : vector<2x4x8xf32> to vector<8x8xf32>
    %cst = arith.constant dense<0.000000e+00> : vector<8x24xf32>
    %4 = tpu.matmul %3, %1, %cst {dimension_numbers = #tpu.dot_dimension_numbers<[1], [0], [0], [1], [0, 0, 1, 1], [], []>} : vector<8x8xf32>, vector<8x24xf32>, vector<8x24xf32> -> vector<8x24xf32>
    %5 = vector.broadcast %2 : vector<1x24xf32> to vector<8x24xf32>
    %6 = arith.addf %4, %5 : vector<8x24xf32>
    %7 = vector.extract_strided_slice %6 {offsets = [0, 0], sizes = [8, 8], strides = [1, 1]} : vector<8x24xf32> to vector<8x8xf32>
    %8 = vector.shape_cast %7 : vector<8x8xf32> to vector<2x4x8xf32>
    %9 = vector.extract_strided_slice %6 {offsets = [0, 8], sizes = [8, 8], strides = [1, 1]} : vector<8x24xf32> to vector<8x8xf32>
    %10 = vector.shape_cast %9 : vector<8x8xf32> to vector<2x4x8xf32>
    %11 = vector.extract_strided_slice %6 {offsets = [0, 16], sizes = [8, 8], strides = [1, 1]} : vector<8x24xf32> to vector<8x8xf32>
    %12 = vector.shape_cast %11 : vector<8x8xf32> to vector<2x4x8xf32>
    "tpu.trace_start"() <{level = 10 : i32, message = "bso,bto->bst"}> : () -> ()
    %cst_6 = arith.constant dense<0.000000e+00> : vector<2x4x4xf32>
    %13 = tpu.matmul %8, %10, %cst_6 {dimension_numbers = #tpu.dot_dimension_numbers<[2], [2], [1], [1], [0, 0, 0, 1, 1, 1], [0], [0]>} : vector<2x4x8xf32>, vector<2x4x8xf32>, vector<2x4x4xf32> -> vector<2x4x4xf32>
    "tpu.trace_stop"() : () -> ()
    %cst_7 = arith.constant 0.353553385 : f32
    %14 = vector.broadcast %cst_7 : f32 to vector<2x4x4xf32>
    %15 = arith.mulf %13, %14 : vector<2x4x4xf32>
    %cst_8 = arith.constant dense<0xFF800000> : vector<2x4xf32>
    %16 = vector.multi_reduction <maximumf>, %15, %cst_8 [2] : vector<2x4x4xf32> to vector<2x4xf32>
    %17 = vector.shape_cast %16 : vector<2x4xf32> to vector<2x4x1xf32>
    %18 = vector.broadcast %17 : vector<2x4x1xf32> to vector<2x4x4xf32>
    %19 = arith.subf %15, %18 : vector<2x4x4xf32>
    %20 = math.exp %19 : vector<2x4x4xf32>
    %cst_9 = arith.constant dense<0.000000e+00> : vector<2x4xf32>
    %21 = vector.multi_reduction <add>, %20, %cst_9 [2] : vector<2x4x4xf32> to vector<2x4xf32>
    %22 = vector.shape_cast %21 : vector<2x4xf32> to vector<2x4x1xf32>
    %23 = vector.broadcast %22 : vector<2x4x1xf32> to vector<2x4x4xf32>
    %24 = arith.divf %20, %23 : vector<2x4x4xf32>
    "tpu.trace_start"() <{level = 10 : i32, message = "bst,bto->bso"}> : () -> ()
    %cst_10 = arith.constant dense<0.000000e+00> : vector<2x4x8xf32>
    %25 = tpu.matmul %24, %12, %cst_10 {dimension_numbers = #tpu.dot_dimension_numbers<[2], [1], [1], [2], [0, 0, 0, 1, 1, 2], [0], [0]>} : vector<2x4x4xf32>, vector<2x4x8xf32>, vector<2x4x8xf32> -> vector<2x4x8xf32>
    "tpu.trace_stop"() : () -> ()
    %26 = vector.shape_cast %25 : vector<2x4x8xf32> to vector<8x8xf32>
    %c0_11 = arith.constant 0 : index
    %c0_12 = arith.constant 0 : index
    %27 = vector.load %arg10[%c0_11, %c0_12] : memref<8x8xf32, #tpu.memory_space<vmem>>, vector<8x8xf32>
    %cst_13 = arith.constant dense<0.000000e+00> : vector<8x8xf32>
    %28 = tpu.matmul %26, %27, %cst_13 {dimension_numbers = #tpu.dot_dimension_numbers<[1], [0], [0], [1], [0, 0, 1, 1], [], []>} : vector<8x8xf32>, vector<8x8xf32>, vector<8x8xf32> -> vector<8x8xf32>
    %29 = vector.shape_cast %28 : vector<8x8xf32> to vector<2x4x8xf32>
    %c0_14 = arith.constant 0 : index
    %c0_15 = arith.constant 0 : index
    %30 = vector.load %arg11[%c0_14, %c0_15] : memref<1x8xf32, #tpu.memory_space<vmem>>, vector<1x8xf32>
    %31 = vector.shape_cast %30 : vector<1x8xf32> to vector<1x1x8xf32>
    %32 = vector.broadcast %31 : vector<1x1x8xf32> to vector<2x4x8xf32>
    %33 = arith.addf %29, %32 : vector<2x4x8xf32>
    %c0_16 = arith.constant 0 : index
    %c0_17 = arith.constant 0 : index
    %34 = vector.load %arg8[%c0_16, %c0_17] : memref<32x8xf32, #tpu.memory_space<vmem>>, vector<32x8xf32>
    %c0_18 = arith.constant 0 : index
    %c0_19 = arith.constant 0 : index
    %35 = vector.load %arg9[%c0_18, %c0_19] : memref<32x8xf32, #tpu.memory_space<vmem>>, vector<32x8xf32>
    %c0_20 = arith.constant 0 : index
    %c0_21 = arith.constant 0 : index
    %36 = vector.load %arg12[%c0_20, %c0_21] : memref<1x8xf32, #tpu.memory_space<vmem>>, vector<1x8xf32>
    %c0_22 = arith.constant 0 : index
    %c0_23 = arith.constant 0 : index
    %37 = vector.load %arg13[%c0_22, %c0_23] : memref<1x1xf32, #tpu.memory_space<vmem>>, vector<1x1xf32>
    %c0_24 = arith.constant 0 : index
    %c0_25 = arith.constant 0 : index
    %38 = vector.load %arg14[%c0_24, %c0_25] : memref<4x128xf32, #tpu.memory_space<vmem>>, vector<4x128xf32>
    %c0_26 = arith.constant 0 : index
    %c0_27 = arith.constant 0 : index
    %39 = vector.load %arg15[%c0_26, %c0_27] : memref<32x128xf32, #tpu.memory_space<vmem>>, vector<32x128xf32>
    %c0_28 = arith.constant 0 : index
    %c0_29 = arith.constant 0 : index
    %40 = vector.load %arg16[%c0_28, %c0_29] : memref<1x128xf32, #tpu.memory_space<vmem>>, vector<1x128xf32>
    %41 = tpu.iota {dimensions = array<i32: 2>} : vector<2x4x8xi32>
    %cst_30 = arith.constant 0.000000e+00 : f32
    %42 = vector.broadcast %cst_30 : f32 to vector<2x32xf32>
    %cst_31 = arith.constant 0.000000e+00 : f32
    %43 = vector.broadcast %cst_31 : f32 to vector<2x32xf32>
    %cst_32 = arith.constant dense<0.000000e+00> : vector<2x8xf32>
    %44 = tpu.matmul %42, %34, %cst_32 {dimension_numbers = #tpu.dot_dimension_numbers<[1], [0], [0], [1], [0, 0, 1, 1], [], []>} : vector<2x32xf32>, vector<32x8xf32>, vector<2x8xf32> -> vector<2x8xf32>
    %cst_33 = arith.constant dense<0.000000e+00> : vector<2x8xf32>
    %45 = tpu.matmul %43, %35, %cst_33 {dimension_numbers = #tpu.dot_dimension_numbers<[1], [0], [0], [1], [0, 0, 1, 1], [], []>} : vector<2x32xf32>, vector<32x8xf32>, vector<2x8xf32> -> vector<2x8xf32>
    %46 = vector.shape_cast %44 : vector<2x8xf32> to vector<2x1x8xf32>
    %47 = vector.shape_cast %45 : vector<2x8xf32> to vector<2x1x8xf32>
    %48 = arith.addf %46, %47 : vector<2x1x8xf32>
    %49 = vector.broadcast %48 : vector<2x1x8xf32> to vector<2x4x8xf32>
    %50 = arith.addf %49, %33 : vector<2x4x8xf32>
    %51 = math.tanh %50 : vector<2x4x8xf32>
    %52 = vector.shape_cast %36 : vector<1x8xf32> to vector<1x1x8xf32>
    %53 = vector.broadcast %52 : vector<1x1x8xf32> to vector<2x4x8xf32>
    %54 = arith.mulf %51, %53 : vector<2x4x8xf32>
    %cst_34 = arith.constant dense<0.000000e+00> : vector<2x4xf32>
    %55 = vector.multi_reduction <add>, %54, %cst_34 [2] : vector<2x4x8xf32> to vector<2x4xf32>
    %56 = vector.broadcast %37 : vector<1x1xf32> to vector<2x4xf32>
    %57 = arith.addf %55, %56 : vector<2x4xf32>
    %cst_35 = arith.constant dense<0xFF800000> : vector<2xf32>
    %58 = vector.multi_reduction <maximumf>, %57, %cst_35 [1] : vector<2x4xf32> to vector<2xf32>
    %59 = vector.shape_cast %58 : vector<2xf32> to vector<2x1xf32>
    %60 = vector.broadcast %59 : vector<2x1xf32> to vector<2x4xf32>
    %61 = arith.subf %57, %60 : vector<2x4xf32>
    %62 = math.exp %61 : vector<2x4xf32>
    %cst_36 = arith.constant dense<0.000000e+00> : vector<2xf32>
    %63 = vector.multi_reduction <add>, %62, %cst_36 [1] : vector<2x4xf32> to vector<2xf32>
    %64 = vector.shape_cast %63 : vector<2xf32> to vector<2x1xf32>
    %65 = vector.broadcast %64 : vector<2x1xf32> to vector<2x4xf32>
    %66 = arith.divf %62, %65 : vector<2x4xf32>
    %c0_i32 = arith.constant 0 : i32
    %67 = vector.broadcast %c0_i32 : i32 to vector<2x4x8xi32>
    %68 = arith.cmpi eq, %41, %67 : vector<2x4x8xi32>
    %cst_37 = arith.constant 0.000000e+00 : f32
    %69 = vector.broadcast %cst_37 : f32 to vector<2x4x8xf32>
    %70 = arith.select %68, %25, %69 : vector<2x4x8xi1>, vector<2x4x8xf32>
    %cst_38 = arith.constant dense<0.000000e+00> : vector<2x4xf32>
    %71 = vector.multi_reduction <add>, %70, %cst_38 [2] : vector<2x4x8xf32> to vector<2x4xf32>
    %72 = arith.mulf %66, %71 : vector<2x4xf32>
    %cst_39 = arith.constant dense<0.000000e+00> : vector<2x128xf32>
    %73 = tpu.matmul %72, %38, %cst_39 {dimension_numbers = #tpu.dot_dimension_numbers<[1], [0], [0], [1], [0, 0, 1, 1], [], []>} : vector<2x4xf32>, vector<4x128xf32>, vector<2x128xf32> -> vector<2x128xf32>
    %cst_40 = arith.constant dense<0.000000e+00> : vector<2x128xf32>
    %74 = tpu.matmul %42, %39, %cst_40 {dimension_numbers = #tpu.dot_dimension_numbers<[1], [0], [0], [1], [0, 0, 1, 1], [], []>} : vector<2x32xf32>, vector<32x128xf32>, vector<2x128xf32> -> vector<2x128xf32>
    %75 = arith.addf %73, %74 : vector<2x128xf32>
    %76 = vector.broadcast %40 : vector<1x128xf32> to vector<2x128xf32>
    %77 = arith.addf %75, %76 : vector<2x128xf32>
    %78 = vector.extract_strided_slice %77 {offsets = [0, 0], sizes = [2, 32], strides = [1, 1]} : vector<2x128xf32> to vector<2x32xf32>
    %cst_41 = arith.constant 0.000000e+00 : f32
    %79 = vector.broadcast %cst_41 : f32 to vector<2x32xf32>
    %80 = arith.subf %79, %78 : vector<2x32xf32>
    %81 = math.exp %80 : vector<2x32xf32>
    %cst_42 = arith.constant 1.000000e+00 : f32
    %82 = vector.broadcast %cst_42 : f32 to vector<2x32xf32>
    %83 = arith.addf %82, %81 : vector<2x32xf32>
    %cst_43 = arith.constant 1.000000e+00 : f32
    %84 = vector.broadcast %cst_43 : f32 to vector<2x32xf32>
    %85 = arith.divf %84, %83 : vector<2x32xf32>
    %86 = vector.extract_strided_slice %77 {offsets = [0, 32], sizes = [2, 32], strides = [1, 1]} : vector<2x128xf32> to vector<2x32xf32>
    %cst_44 = arith.constant 0.000000e+00 : f32
    %87 = vector.broadcast %cst_44 : f32 to vector<2x32xf32>
    %88 = arith.subf %87, %86 : vector<2x32xf32>
    %89 = math.exp %88 : vector<2x32xf32>
    %cst_45 = arith.constant 1.000000e+00 : f32
    %90 = vector.broadcast %cst_45 : f32 to vector<2x32xf32>
    %91 = arith.addf %90, %89 : vector<2x32xf32>
    %cst_46 = arith.constant 1.000000e+00 : f32
    %92 = vector.broadcast %cst_46 : f32 to vector<2x32xf32>
    %93 = arith.divf %92, %91 : vector<2x32xf32>
    %94 = vector.extract_strided_slice %77 {offsets = [0, 64], sizes = [2, 32], strides = [1, 1]} : vector<2x128xf32> to vector<2x32xf32>
    %95 = math.tanh %94 : vector<2x32xf32>
    %96 = vector.extract_strided_slice %77 {offsets = [0, 96], sizes = [2, 32], strides = [1, 1]} : vector<2x128xf32> to vector<2x32xf32>
    %cst_47 = arith.constant 0.000000e+00 : f32
    %97 = vector.broadcast %cst_47 : f32 to vector<2x32xf32>
    %98 = arith.subf %97, %96 : vector<2x32xf32>
    %99 = math.exp %98 : vector<2x32xf32>
    %cst_48 = arith.constant 1.000000e+00 : f32
    %100 = vector.broadcast %cst_48 : f32 to vector<2x32xf32>
    %101 = arith.addf %100, %99 : vector<2x32xf32>
    %cst_49 = arith.constant 1.000000e+00 : f32
    %102 = vector.broadcast %cst_49 : f32 to vector<2x32xf32>
    %103 = arith.divf %102, %101 : vector<2x32xf32>
    %104 = arith.mulf %93, %43 : vector<2x32xf32>
    %105 = arith.mulf %85, %95 : vector<2x32xf32>
    %106 = arith.addf %104, %105 : vector<2x32xf32>
    %107 = math.tanh %106 : vector<2x32xf32>
    %108 = arith.mulf %103, %107 : vector<2x32xf32>
    %109 = vector.shape_cast %108 : vector<2x32xf32> to vector<2x1x32xf32>
    %c0_50 = arith.constant 0 : index
    %c0_51 = arith.constant 0 : index
    %c0_52 = arith.constant 0 : index
    %110 = vector.load %arg36[%c0_50, %c0_51, %c0_52] : memref<2x8x32xf32, #tpu.memory_space<vmem>>, vector<2x1x32xf32>
    tpu.vector_store %arg36[%c0_50, %c0_51, %c0_52], %109 {strides = array<i32>} : memref<2x8x32xf32, #tpu.memory_space<vmem>>, vector<2x1x32xf32>,
    %cst_53 = arith.constant dense<0.000000e+00> : vector<2x8xf32>
    %111 = tpu.matmul %108, %34, %cst_53 {dimension_numbers = #tpu.dot_dimension_numbers<[1], [0], [0], [1], [0, 0, 1, 1], [], []>} : vector<2x32xf32>, vector<32x8xf32>, vector<2x8xf32> -> vector<2x8xf32>
    %cst_54 = arith.constant dense<0.000000e+00> : vector<2x8xf32>
    %112 = tpu.matmul %106, %35, %cst_54 {dimension_numbers = #tpu.dot_dimension_numbers<[1], [0], [0], [1], [0, 0, 1, 1], [], []>} : vector<2x32xf32>, vector<32x8xf32>, vector<2x8xf32> -> vector<2x8xf32>
    %113 = vector.shape_cast %111 : vector<2x8xf32> to vector<2x1x8xf32>
    %114 = vector.shape_cast %112 : vector<2x8xf32> to vector<2x1x8xf32>
    %115 = arith.addf %113, %114 : vector<2x1x8xf32>
    %116 = vector.broadcast %115 : vector<2x1x8xf32> to vector<2x4x8xf32>
    %117 = arith.addf %116, %33 : vector<2x4x8xf32>
    %118 = math.tanh %117 : vector<2x4x8xf32>
    %119 = vector.shape_cast %36 : vector<1x8xf32> to vector<1x1x8xf32>
    %120 = vector.broadcast %119 : vector<1x1x8xf32> to vector<2x4x8xf32>
    %121 = arith.mulf %118, %120 : vector<2x4x8xf32>
    %cst_55 = arith.constant dense<0.000000e+00> : vector<2x4xf32>
    %122 = vector.multi_reduction <add>, %121, %cst_55 [2] : vector<2x4x8xf32> to vector<2x4xf32>
    %123 = vector.broadcast %37 : vector<1x1xf32> to vector<2x4xf32>
    %124 = arith.addf %122, %123 : vector<2x4xf32>
    %cst_56 = arith.constant dense<0xFF800000> : vector<2xf32>
    %125 = vector.multi_reduction <maximumf>, %124, %cst_56 [1] : vector<2x4xf32> to vector<2xf32>
    %126 = vector.shape_cast %125 : vector<2xf32> to vector<2x1xf32>
    %127 = vector.broadcast %126 : vector<2x1xf32> to vector<2x4xf32>
    %128 = arith.subf %124, %127 : vector<2x4xf32>
    %129 = math.exp %128 : vector<2x4xf32>
    %cst_57 = arith.constant dense<0.000000e+00> : vector<2xf32>
    %130 = vector.multi_reduction <add>, %129, %cst_57 [1] : vector<2x4xf32> to vector<2xf32>
    %131 = vector.shape_cast %130 : vector<2xf32> to vector<2x1xf32>
    %132 = vector.broadcast %131 : vector<2x1xf32> to vector<2x4xf32>
    %133 = arith.divf %129, %132 : vector<2x4xf32>
    %c1_i32 = arith.constant 1 : i32
    %134 = vector.broadcast %c1_i32 : i32 to vector<2x4x8xi32>
    %135 = arith.cmpi eq, %41, %134 : vector<2x4x8xi32>
    %cst_58 = arith.constant 0.000000e+00 : f32
    %136 = vector.broadcast %cst_58 : f32 to vector<2x4x8xf32>
    %137 = arith.select %135, %25, %136 : vector<2x4x8xi1>, vector<2x4x8xf32>
    %cst_59 = arith.constant dense<0.000000e+00> : vector<2x4xf32>
    %138 = vector.multi_reduction <add>, %137, %cst_59 [2] : vector<2x4x8xf32> to vector<2x4xf32>
    %139 = arith.mulf %133, %138 : vector<2x4xf32>
    %cst_60 = arith.constant dense<0.000000e+00> : vector<2x128xf32>
    %140 = tpu.matmul %139, %38, %cst_60 {dimension_numbers = #tpu.dot_dimension_numbers<[1], [0], [0], [1], [0, 0, 1, 1], [], []>} : vector<2x4xf32>, vector<4x128xf32>, vector<2x128xf32> -> vector<2x128xf32>
    %cst_61 = arith.constant dense<0.000000e+00> : vector<2x128xf32>
    %141 = tpu.matmul %108, %39, %cst_61 {dimension_numbers = #tpu.dot_dimension_numbers<[1], [0], [0], [1], [0, 0, 1, 1], [], []>} : vector<2x32xf32>, vector<32x128xf32>, vector<2x128xf32> -> vector<2x128xf32>
    %142 = arith.addf %140, %141 : vector<2x128xf32>
    %143 = vector.broadcast %40 : vector<1x128xf32> to vector<2x128xf32>
    %144 = arith.addf %142, %143 : vector<2x128xf32>
    %145 = vector.extract_strided_slice %144 {offsets = [0, 0], sizes = [2, 32], strides = [1, 1]} : vector<2x128xf32> to vector<2x32xf32>
    %cst_62 = arith.constant 0.000000e+00 : f32
    %146 = vector.broadcast %cst_62 : f32 to vector<2x32xf32>
    %147 = arith.subf %146, %145 : vector<2x32xf32>
    %148 = math.exp %147 : vector<2x32xf32>
    %cst_63 = arith.constant 1.000000e+00 : f32
    %149 = vector.broadcast %cst_63 : f32 to vector<2x32xf32>
    %150 = arith.addf %149, %148 : vector<2x32xf32>
    %cst_64 = arith.constant 1.000000e+00 : f32
    %151 = vector.broadcast %cst_64 : f32 to vector<2x32xf32>
    %152 = arith.divf %151, %150 : vector<2x32xf32>
    %153 = vector.extract_strided_slice %144 {offsets = [0, 32], sizes = [2, 32], strides = [1, 1]} : vector<2x128xf32> to vector<2x32xf32>
    %cst_65 = arith.constant 0.000000e+00 : f32
    %154 = vector.broadcast %cst_65 : f32 to vector<2x32xf32>
    %155 = arith.subf %154, %153 : vector<2x32xf32>
    %156 = math.exp %155 : vector<2x32xf32>
    %cst_66 = arith.constant 1.000000e+00 : f32
    %157 = vector.broadcast %cst_66 : f32 to vector<2x32xf32>
    %158 = arith.addf %157, %156 : vector<2x32xf32>
    %cst_67 = arith.constant 1.000000e+00 : f32
    %159 = vector.broadcast %cst_67 : f32 to vector<2x32xf32>
    %160 = arith.divf %159, %158 : vector<2x32xf32>
    %161 = vector.extract_strided_slice %144 {offsets = [0, 64], sizes = [2, 32], strides = [1, 1]} : vector<2x128xf32> to vector<2x32xf32>
    %162 = math.tanh %161 : vector<2x32xf32>
    %163 = vector.extract_strided_slice %144 {offsets = [0, 96], sizes = [2, 32], strides = [1, 1]} : vector<2x128xf32> to vector<2x32xf32>
    %cst_68 = arith.constant 0.000000e+00 : f32
    %164 = vector.broadcast %cst_68 : f32 to vector<2x32xf32>
    %165 = arith.subf %164, %163 : vector<2x32xf32>
    %166 = math.exp %165 : vector<2x32xf32>
    %cst_69 = arith.constant 1.000000e+00 : f32
    %167 = vector.broadcast %cst_69 : f32 to vector<2x32xf32>
    %168 = arith.addf %167, %166 : vector<2x32xf32>
    %cst_70 = arith.constant 1.000000e+00 : f32
    %169 = vector.broadcast %cst_70 : f32 to vector<2x32xf32>
    %170 = arith.divf %169, %168 : vector<2x32xf32>
    %171 = arith.mulf %160, %106 : vector<2x32xf32>
    %172 = arith.mulf %152, %162 : vector<2x32xf32>
    %173 = arith.addf %171, %172 : vector<2x32xf32>
    %174 = math.tanh %173 : vector<2x32xf32>
    %175 = arith.mulf %170, %174 : vector<2x32xf32>
    %176 = vector.shape_cast %175 : vector<2x32xf32> to vector<2x1x32xf32>
    %c0_71 = arith.constant 0 : index
    %c1 = arith.constant 1 : index
    %c0_72 = arith.constant 0 : index
    %177 = vector.load %arg36[%c0_71, %c1, %c0_72] : memref<2x8x32xf32, #tpu.memory_space<vmem>>, vector<2x1x32xf32>
    tpu.vector_store %arg36[%c0_71, %c1, %c0_72], %176 {strides = array<i32>} : memref<2x8x32xf32, #tpu.memory_space<vmem>>, vector<2x1x32xf32>,
    %cst_73 = arith.constant dense<0.000000e+00> : vector<2x8xf32>
    %178 = tpu.matmul %175, %34, %cst_73 {dimension_numbers = #tpu.dot_dimension_numbers<[1], [0], [0], [1], [0, 0, 1, 1], [], []>} : vector<2x32xf32>, vector<32x8xf32>, vector<2x8xf32> -> vector<2x8xf32>
    %cst_74 = arith.constant dense<0.000000e+00> : vector<2x8xf32>
    %179 = tpu.matmul %173, %35, %cst_74 {dimension_numbers = #tpu.dot_dimension_numbers<[1], [0], [0], [1], [0, 0, 1, 1], [], []>} : vector<2x32xf32>, vector<32x8xf32>, vector<2x8xf32> -> vector<2x8xf32>
    %180 = vector.shape_cast %178 : vector<2x8xf32> to vector<2x1x8xf32>
    %181 = vector.shape_cast %179 : vector<2x8xf32> to vector<2x1x8xf32>
    %182 = arith.addf %180, %181 : vector<2x1x8xf32>
    %183 = vector.broadcast %182 : vector<2x1x8xf32> to vector<2x4x8xf32>
    %184 = arith.addf %183, %33 : vector<2x4x8xf32>
    %185 = math.tanh %184 : vector<2x4x8xf32>
    %186 = vector.shape_cast %36 : vector<1x8xf32> to vector<1x1x8xf32>
    %187 = vector.broadcast %186 : vector<1x1x8xf32> to vector<2x4x8xf32>
    %188 = arith.mulf %185, %187 : vector<2x4x8xf32>
    %cst_75 = arith.constant dense<0.000000e+00> : vector<2x4xf32>
    %189 = vector.multi_reduction <add>, %188, %cst_75 [2] : vector<2x4x8xf32> to vector<2x4xf32>
    %190 = vector.broadcast %37 : vector<1x1xf32> to vector<2x4xf32>
    %191 = arith.addf %189, %190 : vector<2x4xf32>
    %cst_76 = arith.constant dense<0xFF800000> : vector<2xf32>
    %192 = vector.multi_reduction <maximumf>, %191, %cst_76 [1] : vector<2x4xf32> to vector<2xf32>
    %193 = vector.shape_cast %192 : vector<2xf32> to vector<2x1xf32>
    %194 = vector.broadcast %193 : vector<2x1xf32> to vector<2x4xf32>
    %195 = arith.subf %191, %194 : vector<2x4xf32>
    %196 = math.exp %195 : vector<2x4xf32>
    %cst_77 = arith.constant dense<0.000000e+00> : vector<2xf32>
    %197 = vector.multi_reduction <add>, %196, %cst_77 [1] : vector<2x4xf32> to vector<2xf32>
    %198 = vector.shape_cast %197 : vector<2xf32> to vector<2x1xf32>
    %199 = vector.broadcast %198 : vector<2x1xf32> to vector<2x4xf32>
    %200 = arith.divf %196, %199 : vector<2x4xf32>
    %c2_i32 = arith.constant 2 : i32
    %201 = vector.broadcast %c2_i32 : i32 to vector<2x4x8xi32>
    %202 = arith.cmpi eq, %41, %201 : vector<2x4x8xi32>
    %cst_78 = arith.constant 0.000000e+00 : f32
    %203 = vector.broadcast %cst_78 : f32 to vector<2x4x8xf32>
    %204 = arith.select %202, %25, %203 : vector<2x4x8xi1>, vector<2x4x8xf32>
    %cst_79 = arith.constant dense<0.000000e+00> : vector<2x4xf32>
    %205 = vector.multi_reduction <add>, %204, %cst_79 [2] : vector<2x4x8xf32> to vector<2x4xf32>
    %206 = arith.mulf %200, %205 : vector<2x4xf32>
    %cst_80 = arith.constant dense<0.000000e+00> : vector<2x128xf32>
    %207 = tpu.matmul %206, %38, %cst_80 {dimension_numbers = #tpu.dot_dimension_numbers<[1], [0], [0], [1], [0, 0, 1, 1], [], []>} : vector<2x4xf32>, vector<4x128xf32>, vector<2x128xf32> -> vector<2x128xf32>
    %cst_81 = arith.constant dense<0.000000e+00> : vector<2x128xf32>
    %208 = tpu.matmul %175, %39, %cst_81 {dimension_numbers = #tpu.dot_dimension_numbers<[1], [0], [0], [1], [0, 0, 1, 1], [], []>} : vector<2x32xf32>, vector<32x128xf32>, vector<2x128xf32> -> vector<2x128xf32>
    %209 = arith.addf %207, %208 : vector<2x128xf32>
    %210 = vector.broadcast %40 : vector<1x128xf32> to vector<2x128xf32>
    %211 = arith.addf %209, %210 : vector<2x128xf32>
    %212 = vector.extract_strided_slice %211 {offsets = [0, 0], sizes = [2, 32], strides = [1, 1]} : vector<2x128xf32> to vector<2x32xf32>
    %cst_82 = arith.constant 0.000000e+00 : f32
    %213 = vector.broadcast %cst_82 : f32 to vector<2x32xf32>
    %214 = arith.subf %213, %212 : vector<2x32xf32>
    %215 = math.exp %214 : vector<2x32xf32>
    %cst_83 = arith.constant 1.000000e+00 : f32
    %216 = vector.broadcast %cst_83 : f32 to vector<2x32xf32>
    %217 = arith.addf %216, %215 : vector<2x32xf32>
    %cst_84 = arith.constant 1.000000e+00 : f32
    %218 = vector.broadcast %cst_84 : f32 to vector<2x32xf32>
    %219 = arith.divf %218, %217 : vector<2x32xf32>
    %220 = vector.extract_strided_slice %211 {offsets = [0, 32], sizes = [2, 32], strides = [1, 1]} : vector<2x128xf32> to vector<2x32xf32>
    %cst_85 = arith.constant 0.000000e+00 : f32
    %221 = vector.broadcast %cst_85 : f32 to vector<2x32xf32>
    %222 = arith.subf %221, %220 : vector<2x32xf32>
    %223 = math.exp %222 : vector<2x32xf32>
    %cst_86 = arith.constant 1.000000e+00 : f32
    %224 = vector.broadcast %cst_86 : f32 to vector<2x32xf32>
    %225 = arith.addf %224, %223 : vector<2x32xf32>
    %cst_87 = arith.constant 1.000000e+00 : f32
    %226 = vector.broadcast %cst_87 : f32 to vector<2x32xf32>
    %227 = arith.divf %226, %225 : vector<2x32xf32>
    %228 = vector.extract_strided_slice %211 {offsets = [0, 64], sizes = [2, 32], strides = [1, 1]} : vector<2x128xf32> to vector<2x32xf32>
    %229 = math.tanh %228 : vector<2x32xf32>
    %230 = vector.extract_strided_slice %211 {offsets = [0, 96], sizes = [2, 32], strides = [1, 1]} : vector<2x128xf32> to vector<2x32xf32>
    %cst_88 = arith.constant 0.000000e+00 : f32
    %231 = vector.broadcast %cst_88 : f32 to vector<2x32xf32>
    %232 = arith.subf %231, %230 : vector<2x32xf32>
    %233 = math.exp %232 : vector<2x32xf32>
    %cst_89 = arith.constant 1.000000e+00 : f32
    %234 = vector.broadcast %cst_89 : f32 to vector<2x32xf32>
    %235 = arith.addf %234, %233 : vector<2x32xf32>
    %cst_90 = arith.constant 1.000000e+00 : f32
    %236 = vector.broadcast %cst_90 : f32 to vector<2x32xf32>
    %237 = arith.divf %236, %235 : vector<2x32xf32>
    %238 = arith.mulf %227, %173 : vector<2x32xf32>
    %239 = arith.mulf %219, %229 : vector<2x32xf32>
    %240 = arith.addf %238, %239 : vector<2x32xf32>
    %241 = math.tanh %240 : vector<2x32xf32>
    %242 = arith.mulf %237, %241 : vector<2x32xf32>
    %243 = vector.shape_cast %242 : vector<2x32xf32> to vector<2x1x32xf32>
    %c0_91 = arith.constant 0 : index
    %c2 = arith.constant 2 : index
    %c0_92 = arith.constant 0 : index
    %244 = vector.load %arg36[%c0_91, %c2, %c0_92] : memref<2x8x32xf32, #tpu.memory_space<vmem>>, vector<2x1x32xf32>
    tpu.vector_store %arg36[%c0_91, %c2, %c0_92], %243 {strides = array<i32>} : memref<2x8x32xf32, #tpu.memory_space<vmem>>, vector<2x1x32xf32>,
    %cst_93 = arith.constant dense<0.000000e+00> : vector<2x8xf32>
    %245 = tpu.matmul %242, %34, %cst_93 {dimension_numbers = #tpu.dot_dimension_numbers<[1], [0], [0], [1], [0, 0, 1, 1], [], []>} : vector<2x32xf32>, vector<32x8xf32>, vector<2x8xf32> -> vector<2x8xf32>
    %cst_94 = arith.constant dense<0.000000e+00> : vector<2x8xf32>
    %246 = tpu.matmul %240, %35, %cst_94 {dimension_numbers = #tpu.dot_dimension_numbers<[1], [0], [0], [1], [0, 0, 1, 1], [], []>} : vector<2x32xf32>, vector<32x8xf32>, vector<2x8xf32> -> vector<2x8xf32>
    %247 = vector.shape_cast %245 : vector<2x8xf32> to vector<2x1x8xf32>
    %248 = vector.shape_cast %246 : vector<2x8xf32> to vector<2x1x8xf32>
    %249 = arith.addf %247, %248 : vector<2x1x8xf32>
    %250 = vector.broadcast %249 : vector<2x1x8xf32> to vector<2x4x8xf32>
    %251 = arith.addf %250, %33 : vector<2x4x8xf32>
    %252 = math.tanh %251 : vector<2x4x8xf32>
    %253 = vector.shape_cast %36 : vector<1x8xf32> to vector<1x1x8xf32>
    %254 = vector.broadcast %253 : vector<1x1x8xf32> to vector<2x4x8xf32>
    %255 = arith.mulf %252, %254 : vector<2x4x8xf32>
    %cst_95 = arith.constant dense<0.000000e+00> : vector<2x4xf32>
    %256 = vector.multi_reduction <add>, %255, %cst_95 [2] : vector<2x4x8xf32> to vector<2x4xf32>
    %257 = vector.broadcast %37 : vector<1x1xf32> to vector<2x4xf32>
    %258 = arith.addf %256, %257 : vector<2x4xf32>
    %cst_96 = arith.constant dense<0xFF800000> : vector<2xf32>
    %259 = vector.multi_reduction <maximumf>, %258, %cst_96 [1] : vector<2x4xf32> to vector<2xf32>
    %260 = vector.shape_cast %259 : vector<2xf32> to vector<2x1xf32>
    %261 = vector.broadcast %260 : vector<2x1xf32> to vector<2x4xf32>
    %262 = arith.subf %258, %261 : vector<2x4xf32>
    %263 = math.exp %262 : vector<2x4xf32>
    %cst_97 = arith.constant dense<0.000000e+00> : vector<2xf32>
    %264 = vector.multi_reduction <add>, %263, %cst_97 [1] : vector<2x4xf32> to vector<2xf32>
    %265 = vector.shape_cast %264 : vector<2xf32> to vector<2x1xf32>
    %266 = vector.broadcast %265 : vector<2x1xf32> to vector<2x4xf32>
    %267 = arith.divf %263, %266 : vector<2x4xf32>
    %c3_i32 = arith.constant 3 : i32
    %268 = vector.broadcast %c3_i32 : i32 to vector<2x4x8xi32>
    %269 = arith.cmpi eq, %41, %268 : vector<2x4x8xi32>
    %cst_98 = arith.constant 0.000000e+00 : f32
    %270 = vector.broadcast %cst_98 : f32 to vector<2x4x8xf32>
    %271 = arith.select %269, %25, %270 : vector<2x4x8xi1>, vector<2x4x8xf32>
    %cst_99 = arith.constant dense<0.000000e+00> : vector<2x4xf32>
    %272 = vector.multi_reduction <add>, %271, %cst_99 [2] : vector<2x4x8xf32> to vector<2x4xf32>
    %273 = arith.mulf %267, %272 : vector<2x4xf32>
    %cst_100 = arith.constant dense<0.000000e+00> : vector<2x128xf32>
    %274 = tpu.matmul %273, %38, %cst_100 {dimension_numbers = #tpu.dot_dimension_numbers<[1], [0], [0], [1], [0, 0, 1, 1], [], []>} : vector<2x4xf32>, vector<4x128xf32>, vector<2x128xf32> -> vector<2x128xf32>
    %cst_101 = arith.constant dense<0.000000e+00> : vector<2x128xf32>
    %275 = tpu.matmul %242, %39, %cst_101 {dimension_numbers = #tpu.dot_dimension_numbers<[1], [0], [0], [1], [0, 0, 1, 1], [], []>} : vector<2x32xf32>, vector<32x128xf32>, vector<2x128xf32> -> vector<2x128xf32>
    %276 = arith.addf %274, %275 : vector<2x128xf32>
    %277 = vector.broadcast %40 : vector<1x128xf32> to vector<2x128xf32>
    %278 = arith.addf %276, %277 : vector<2x128xf32>
    %279 = vector.extract_strided_slice %278 {offsets = [0, 0], sizes = [2, 32], strides = [1, 1]} : vector<2x128xf32> to vector<2x32xf32>
    %cst_102 = arith.constant 0.000000e+00 : f32
    %280 = vector.broadcast %cst_102 : f32 to vector<2x32xf32>
    %281 = arith.subf %280, %279 : vector<2x32xf32>
    %282 = math.exp %281 : vector<2x32xf32>
    %cst_103 = arith.constant 1.000000e+00 : f32
    %283 = vector.broadcast %cst_103 : f32 to vector<2x32xf32>
    %284 = arith.addf %283, %282 : vector<2x32xf32>
    %cst_104 = arith.constant 1.000000e+00 : f32
    %285 = vector.broadcast %cst_104 : f32 to vector<2x32xf32>
    %286 = arith.divf %285, %284 : vector<2x32xf32>
    %287 = vector.extract_strided_slice %278 {offsets = [0, 32], sizes = [2, 32], strides = [1, 1]} : vector<2x128xf32> to vector<2x32xf32>
    %cst_105 = arith.constant 0.000000e+00 : f32
    %288 = vector.broadcast %cst_105 : f32 to vector<2x32xf32>
    %289 = arith.subf %288, %287 : vector<2x32xf32>
    %290 = math.exp %289 : vector<2x32xf32>
    %cst_106 = arith.constant 1.000000e+00 : f32
    %291 = vector.broadcast %cst_106 : f32 to vector<2x32xf32>
    %292 = arith.addf %291, %290 : vector<2x32xf32>
    %cst_107 = arith.constant 1.000000e+00 : f32
    %293 = vector.broadcast %cst_107 : f32 to vector<2x32xf32>
    %294 = arith.divf %293, %292 : vector<2x32xf32>
    %295 = vector.extract_strided_slice %278 {offsets = [0, 64], sizes = [2, 32], strides = [1, 1]} : vector<2x128xf32> to vector<2x32xf32>
    %296 = math.tanh %295 : vector<2x32xf32>
    %297 = vector.extract_strided_slice %278 {offsets = [0, 96], sizes = [2, 32], strides = [1, 1]} : vector<2x128xf32> to vector<2x32xf32>
    %cst_108 = arith.constant 0.000000e+00 : f32
    %298 = vector.broadcast %cst_108 : f32 to vector<2x32xf32>
    %299 = arith.subf %298, %297 : vector<2x32xf32>
    %300 = math.exp %299 : vector<2x32xf32>
    %cst_109 = arith.constant 1.000000e+00 : f32
    %301 = vector.broadcast %cst_109 : f32 to vector<2x32xf32>
    %302 = arith.addf %301, %300 : vector<2x32xf32>
    %cst_110 = arith.constant 1.000000e+00 : f32
    %303 = vector.broadcast %cst_110 : f32 to vector<2x32xf32>
    %304 = arith.divf %303, %302 : vector<2x32xf32>
    %305 = arith.mulf %294, %240 : vector<2x32xf32>
    %306 = arith.mulf %286, %296 : vector<2x32xf32>
    %307 = arith.addf %305, %306 : vector<2x32xf32>
    %308 = math.tanh %307 : vector<2x32xf32>
    %309 = arith.mulf %304, %308 : vector<2x32xf32>
    %310 = vector.shape_cast %309 : vector<2x32xf32> to vector<2x1x32xf32>
    %c0_111 = arith.constant 0 : index
    %c3 = arith.constant 3 : index
    %c0_112 = arith.constant 0 : index
    %311 = vector.load %arg36[%c0_111, %c3, %c0_112] : memref<2x8x32xf32, #tpu.memory_space<vmem>>, vector<2x1x32xf32>
    tpu.vector_store %arg36[%c0_111, %c3, %c0_112], %310 {strides = array<i32>} : memref<2x8x32xf32, #tpu.memory_space<vmem>>, vector<2x1x32xf32>,
    %cst_113 = arith.constant dense<0.000000e+00> : vector<2x8xf32>
    %312 = tpu.matmul %309, %34, %cst_113 {dimension_numbers = #tpu.dot_dimension_numbers<[1], [0], [0], [1], [0, 0, 1, 1], [], []>} : vector<2x32xf32>, vector<32x8xf32>, vector<2x8xf32> -> vector<2x8xf32>
    %cst_114 = arith.constant dense<0.000000e+00> : vector<2x8xf32>
    %313 = tpu.matmul %307, %35, %cst_114 {dimension_numbers = #tpu.dot_dimension_numbers<[1], [0], [0], [1], [0, 0, 1, 1], [], []>} : vector<2x32xf32>, vector<32x8xf32>, vector<2x8xf32> -> vector<2x8xf32>
    %314 = vector.shape_cast %312 : vector<2x8xf32> to vector<2x1x8xf32>
    %315 = vector.shape_cast %313 : vector<2x8xf32> to vector<2x1x8xf32>
    %316 = arith.addf %314, %315 : vector<2x1x8xf32>
    %317 = vector.broadcast %316 : vector<2x1x8xf32> to vector<2x4x8xf32>
    %318 = arith.addf %317, %33 : vector<2x4x8xf32>
    %319 = math.tanh %318 : vector<2x4x8xf32>
    %320 = vector.shape_cast %36 : vector<1x8xf32> to vector<1x1x8xf32>
    %321 = vector.broadcast %320 : vector<1x1x8xf32> to vector<2x4x8xf32>
    %322 = arith.mulf %319, %321 : vector<2x4x8xf32>
    %cst_115 = arith.constant dense<0.000000e+00> : vector<2x4xf32>
    %323 = vector.multi_reduction <add>, %322, %cst_115 [2] : vector<2x4x8xf32> to vector<2x4xf32>
    %324 = vector.broadcast %37 : vector<1x1xf32> to vector<2x4xf32>
    %325 = arith.addf %323, %324 : vector<2x4xf32>
    %cst_116 = arith.constant dense<0xFF800000> : vector<2xf32>
    %326 = vector.multi_reduction <maximumf>, %325, %cst_116 [1] : vector<2x4xf32> to vector<2xf32>
    %327 = vector.shape_cast %326 : vector<2xf32> to vector<2x1xf32>
    %328 = vector.broadcast %327 : vector<2x1xf32> to vector<2x4xf32>
    %329 = arith.subf %325, %328 : vector<2x4xf32>
    %330 = math.exp %329 : vector<2x4xf32>
    %cst_117 = arith.constant dense<0.000000e+00> : vector<2xf32>
    %331 = vector.multi_reduction <add>, %330, %cst_117 [1] : vector<2x4xf32> to vector<2xf32>
    %332 = vector.shape_cast %331 : vector<2xf32> to vector<2x1xf32>
    %333 = vector.broadcast %332 : vector<2x1xf32> to vector<2x4xf32>
    %334 = arith.divf %330, %333 : vector<2x4xf32>
    %c4_i32 = arith.constant 4 : i32
    %335 = vector.broadcast %c4_i32 : i32 to vector<2x4x8xi32>
    %336 = arith.cmpi eq, %41, %335 : vector<2x4x8xi32>
    %cst_118 = arith.constant 0.000000e+00 : f32
    %337 = vector.broadcast %cst_118 : f32 to vector<2x4x8xf32>
    %338 = arith.select %336, %25, %337 : vector<2x4x8xi1>, vector<2x4x8xf32>
    %cst_119 = arith.constant dense<0.000000e+00> : vector<2x4xf32>
    %339 = vector.multi_reduction <add>, %338, %cst_119 [2] : vector<2x4x8xf32> to vector<2x4xf32>
    %340 = arith.mulf %334, %339 : vector<2x4xf32>
    %cst_120 = arith.constant dense<0.000000e+00> : vector<2x128xf32>
    %341 = tpu.matmul %340, %38, %cst_120 {dimension_numbers = #tpu.dot_dimension_numbers<[1], [0], [0], [1], [0, 0, 1, 1], [], []>} : vector<2x4xf32>, vector<4x128xf32>, vector<2x128xf32> -> vector<2x128xf32>
    %cst_121 = arith.constant dense<0.000000e+00> : vector<2x128xf32>
    %342 = tpu.matmul %309, %39, %cst_121 {dimension_numbers = #tpu.dot_dimension_numbers<[1], [0], [0], [1], [0, 0, 1, 1], [], []>} : vector<2x32xf32>, vector<32x128xf32>, vector<2x128xf32> -> vector<2x128xf32>
    %343 = arith.addf %341, %342 : vector<2x128xf32>
    %344 = vector.broadcast %40 : vector<1x128xf32> to vector<2x128xf32>
    %345 = arith.addf %343, %344 : vector<2x128xf32>
    %346 = vector.extract_strided_slice %345 {offsets = [0, 0], sizes = [2, 32], strides = [1, 1]} : vector<2x128xf32> to vector<2x32xf32>
    %cst_122 = arith.constant 0.000000e+00 : f32
    %347 = vector.broadcast %cst_122 : f32 to vector<2x32xf32>
    %348 = arith.subf %347, %346 : vector<2x32xf32>
    %349 = math.exp %348 : vector<2x32xf32>
    %cst_123 = arith.constant 1.000000e+00 : f32
    %350 = vector.broadcast %cst_123 : f32 to vector<2x32xf32>
    %351 = arith.addf %350, %349 : vector<2x32xf32>
    %cst_124 = arith.constant 1.000000e+00 : f32
    %352 = vector.broadcast %cst_124 : f32 to vector<2x32xf32>
    %353 = arith.divf %352, %351 : vector<2x32xf32>
    %354 = vector.extract_strided_slice %345 {offsets = [0, 32], sizes = [2, 32], strides = [1, 1]} : vector<2x128xf32> to vector<2x32xf32>
    %cst_125 = arith.constant 0.000000e+00 : f32
    %355 = vector.broadcast %cst_125 : f32 to vector<2x32xf32>
    %356 = arith.subf %355, %354 : vector<2x32xf32>
    %357 = math.exp %356 : vector<2x32xf32>
    %cst_126 = arith.constant 1.000000e+00 : f32
    %358 = vector.broadcast %cst_126 : f32 to vector<2x32xf32>
    %359 = arith.addf %358, %357 : vector<2x32xf32>
    %cst_127 = arith.constant 1.000000e+00 : f32
    %360 = vector.broadcast %cst_127 : f32 to vector<2x32xf32>
    %361 = arith.divf %360, %359 : vector<2x32xf32>
    %362 = vector.extract_strided_slice %345 {offsets = [0, 64], sizes = [2, 32], strides = [1, 1]} : vector<2x128xf32> to vector<2x32xf32>
    %363 = math.tanh %362 : vector<2x32xf32>
    %364 = vector.extract_strided_slice %345 {offsets = [0, 96], sizes = [2, 32], strides = [1, 1]} : vector<2x128xf32> to vector<2x32xf32>
    %cst_128 = arith.constant 0.000000e+00 : f32
    %365 = vector.broadcast %cst_128 : f32 to vector<2x32xf32>
    %366 = arith.subf %365, %364 : vector<2x32xf32>
    %367 = math.exp %366 : vector<2x32xf32>
    %cst_129 = arith.constant 1.000000e+00 : f32
    %368 = vector.broadcast %cst_129 : f32 to vector<2x32xf32>
    %369 = arith.addf %368, %367 : vector<2x32xf32>
    %cst_130 = arith.constant 1.000000e+00 : f32
    %370 = vector.broadcast %cst_130 : f32 to vector<2x32xf32>
    %371 = arith.divf %370, %369 : vector<2x32xf32>
    %372 = arith.mulf %361, %307 : vector<2x32xf32>
    %373 = arith.mulf %353, %363 : vector<2x32xf32>
    %374 = arith.addf %372, %373 : vector<2x32xf32>
    %375 = math.tanh %374 : vector<2x32xf32>
    %376 = arith.mulf %371, %375 : vector<2x32xf32>
    %377 = vector.shape_cast %376 : vector<2x32xf32> to vector<2x1x32xf32>
    %c0_131 = arith.constant 0 : index
    %c4 = arith.constant 4 : index
    %c0_132 = arith.constant 0 : index
    %378 = vector.load %arg36[%c0_131, %c4, %c0_132] : memref<2x8x32xf32, #tpu.memory_space<vmem>>, vector<2x1x32xf32>
    tpu.vector_store %arg36[%c0_131, %c4, %c0_132], %377 {strides = array<i32>} : memref<2x8x32xf32, #tpu.memory_space<vmem>>, vector<2x1x32xf32>,
    %cst_133 = arith.constant dense<0.000000e+00> : vector<2x8xf32>
    %379 = tpu.matmul %376, %34, %cst_133 {dimension_numbers = #tpu.dot_dimension_numbers<[1], [0], [0], [1], [0, 0, 1, 1], [], []>} : vector<2x32xf32>, vector<32x8xf32>, vector<2x8xf32> -> vector<2x8xf32>
    %cst_134 = arith.constant dense<0.000000e+00> : vector<2x8xf32>
    %380 = tpu.matmul %374, %35, %cst_134 {dimension_numbers = #tpu.dot_dimension_numbers<[1], [0], [0], [1], [0, 0, 1, 1], [], []>} : vector<2x32xf32>, vector<32x8xf32>, vector<2x8xf32> -> vector<2x8xf32>
    %381 = vector.shape_cast %379 : vector<2x8xf32> to vector<2x1x8xf32>
    %382 = vector.shape_cast %380 : vector<2x8xf32> to vector<2x1x8xf32>
    %383 = arith.addf %381, %382 : vector<2x1x8xf32>
    %384 = vector.broadcast %383 : vector<2x1x8xf32> to vector<2x4x8xf32>
    %385 = arith.addf %384, %33 : vector<2x4x8xf32>
    %386 = math.tanh %385 : vector<2x4x8xf32>
    %387 = vector.shape_cast %36 : vector<1x8xf32> to vector<1x1x8xf32>
    %388 = vector.broadcast %387 : vector<1x1x8xf32> to vector<2x4x8xf32>
    %389 = arith.mulf %386, %388 : vector<2x4x8xf32>
    %cst_135 = arith.constant dense<0.000000e+00> : vector<2x4xf32>
    %390 = vector.multi_reduction <add>, %389, %cst_135 [2] : vector<2x4x8xf32> to vector<2x4xf32>
    %391 = vector.broadcast %37 : vector<1x1xf32> to vector<2x4xf32>
    %392 = arith.addf %390, %391 : vector<2x4xf32>
    %cst_136 = arith.constant dense<0xFF800000> : vector<2xf32>
    %393 = vector.multi_reduction <maximumf>, %392, %cst_136 [1] : vector<2x4xf32> to vector<2xf32>
    %394 = vector.shape_cast %393 : vector<2xf32> to vector<2x1xf32>
    %395 = vector.broadcast %394 : vector<2x1xf32> to vector<2x4xf32>
    %396 = arith.subf %392, %395 : vector<2x4xf32>
    %397 = math.exp %396 : vector<2x4xf32>
    %cst_137 = arith.constant dense<0.000000e+00> : vector<2xf32>
    %398 = vector.multi_reduction <add>, %397, %cst_137 [1] : vector<2x4xf32> to vector<2xf32>
    %399 = vector.shape_cast %398 : vector<2xf32> to vector<2x1xf32>
    %400 = vector.broadcast %399 : vector<2x1xf32> to vector<2x4xf32>
    %401 = arith.divf %397, %400 : vector<2x4xf32>
    %c5_i32 = arith.constant 5 : i32
    %402 = vector.broadcast %c5_i32 : i32 to vector<2x4x8xi32>
    %403 = arith.cmpi eq, %41, %402 : vector<2x4x8xi32>
    %cst_138 = arith.constant 0.000000e+00 : f32
    %404 = vector.broadcast %cst_138 : f32 to vector<2x4x8xf32>
    %405 = arith.select %403, %25, %404 : vector<2x4x8xi1>, vector<2x4x8xf32>
    %cst_139 = arith.constant dense<0.000000e+00> : vector<2x4xf32>
    %406 = vector.multi_reduction <add>, %405, %cst_139 [2] : vector<2x4x8xf32> to vector<2x4xf32>
    %407 = arith.mulf %401, %406 : vector<2x4xf32>
    %cst_140 = arith.constant dense<0.000000e+00> : vector<2x128xf32>
    %408 = tpu.matmul %407, %38, %cst_140 {dimension_numbers = #tpu.dot_dimension_numbers<[1], [0], [0], [1], [0, 0, 1, 1], [], []>} : vector<2x4xf32>, vector<4x128xf32>, vector<2x128xf32> -> vector<2x128xf32>
    %cst_141 = arith.constant dense<0.000000e+00> : vector<2x128xf32>
    %409 = tpu.matmul %376, %39, %cst_141 {dimension_numbers = #tpu.dot_dimension_numbers<[1], [0], [0], [1], [0, 0, 1, 1], [], []>} : vector<2x32xf32>, vector<32x128xf32>, vector<2x128xf32> -> vector<2x128xf32>
    %410 = arith.addf %408, %409 : vector<2x128xf32>
    %411 = vector.broadcast %40 : vector<1x128xf32> to vector<2x128xf32>
    %412 = arith.addf %410, %411 : vector<2x128xf32>
    %413 = vector.extract_strided_slice %412 {offsets = [0, 0], sizes = [2, 32], strides = [1, 1]} : vector<2x128xf32> to vector<2x32xf32>
    %cst_142 = arith.constant 0.000000e+00 : f32
    %414 = vector.broadcast %cst_142 : f32 to vector<2x32xf32>
    %415 = arith.subf %414, %413 : vector<2x32xf32>
    %416 = math.exp %415 : vector<2x32xf32>
    %cst_143 = arith.constant 1.000000e+00 : f32
    %417 = vector.broadcast %cst_143 : f32 to vector<2x32xf32>
    %418 = arith.addf %417, %416 : vector<2x32xf32>
    %cst_144 = arith.constant 1.000000e+00 : f32
    %419 = vector.broadcast %cst_144 : f32 to vector<2x32xf32>
    %420 = arith.divf %419, %418 : vector<2x32xf32>
    %421 = vector.extract_strided_slice %412 {offsets = [0, 32], sizes = [2, 32], strides = [1, 1]} : vector<2x128xf32> to vector<2x32xf32>
    %cst_145 = arith.constant 0.000000e+00 : f32
    %422 = vector.broadcast %cst_145 : f32 to vector<2x32xf32>
    %423 = arith.subf %422, %421 : vector<2x32xf32>
    %424 = math.exp %423 : vector<2x32xf32>
    %cst_146 = arith.constant 1.000000e+00 : f32
    %425 = vector.broadcast %cst_146 : f32 to vector<2x32xf32>
    %426 = arith.addf %425, %424 : vector<2x32xf32>
    %cst_147 = arith.constant 1.000000e+00 : f32
    %427 = vector.broadcast %cst_147 : f32 to vector<2x32xf32>
    %428 = arith.divf %427, %426 : vector<2x32xf32>
    %429 = vector.extract_strided_slice %412 {offsets = [0, 64], sizes = [2, 32], strides = [1, 1]} : vector<2x128xf32> to vector<2x32xf32>
    %430 = math.tanh %429 : vector<2x32xf32>
    %431 = vector.extract_strided_slice %412 {offsets = [0, 96], sizes = [2, 32], strides = [1, 1]} : vector<2x128xf32> to vector<2x32xf32>
    %cst_148 = arith.constant 0.000000e+00 : f32
    %432 = vector.broadcast %cst_148 : f32 to vector<2x32xf32>
    %433 = arith.subf %432, %431 : vector<2x32xf32>
    %434 = math.exp %433 : vector<2x32xf32>
    %cst_149 = arith.constant 1.000000e+00 : f32
    %435 = vector.broadcast %cst_149 : f32 to vector<2x32xf32>
    %436 = arith.addf %435, %434 : vector<2x32xf32>
    %cst_150 = arith.constant 1.000000e+00 : f32
    %437 = vector.broadcast %cst_150 : f32 to vector<2x32xf32>
    %438 = arith.divf %437, %436 : vector<2x32xf32>
    %439 = arith.mulf %428, %374 : vector<2x32xf32>
    %440 = arith.mulf %420, %430 : vector<2x32xf32>
    %441 = arith.addf %439, %440 : vector<2x32xf32>
    %442 = math.tanh %441 : vector<2x32xf32>
    %443 = arith.mulf %438, %442 : vector<2x32xf32>
    %444 = vector.shape_cast %443 : vector<2x32xf32> to vector<2x1x32xf32>
    %c0_151 = arith.constant 0 : index
    %c5 = arith.constant 5 : index
    %c0_152 = arith.constant 0 : index
    %445 = vector.load %arg36[%c0_151, %c5, %c0_152] : memref<2x8x32xf32, #tpu.memory_space<vmem>>, vector<2x1x32xf32>
    tpu.vector_store %arg36[%c0_151, %c5, %c0_152], %444 {strides = array<i32>} : memref<2x8x32xf32, #tpu.memory_space<vmem>>, vector<2x1x32xf32>,
    %cst_153 = arith.constant dense<0.000000e+00> : vector<2x8xf32>
    %446 = tpu.matmul %443, %34, %cst_153 {dimension_numbers = #tpu.dot_dimension_numbers<[1], [0], [0], [1], [0, 0, 1, 1], [], []>} : vector<2x32xf32>, vector<32x8xf32>, vector<2x8xf32> -> vector<2x8xf32>
    %cst_154 = arith.constant dense<0.000000e+00> : vector<2x8xf32>
    %447 = tpu.matmul %441, %35, %cst_154 {dimension_numbers = #tpu.dot_dimension_numbers<[1], [0], [0], [1], [0, 0, 1, 1], [], []>} : vector<2x32xf32>, vector<32x8xf32>, vector<2x8xf32> -> vector<2x8xf32>
    %448 = vector.shape_cast %446 : vector<2x8xf32> to vector<2x1x8xf32>
    %449 = vector.shape_cast %447 : vector<2x8xf32> to vector<2x1x8xf32>
    %450 = arith.addf %448, %449 : vector<2x1x8xf32>
    %451 = vector.broadcast %450 : vector<2x1x8xf32> to vector<2x4x8xf32>
    %452 = arith.addf %451, %33 : vector<2x4x8xf32>
    %453 = math.tanh %452 : vector<2x4x8xf32>
    %454 = vector.shape_cast %36 : vector<1x8xf32> to vector<1x1x8xf32>
    %455 = vector.broadcast %454 : vector<1x1x8xf32> to vector<2x4x8xf32>
    %456 = arith.mulf %453, %455 : vector<2x4x8xf32>
    %cst_155 = arith.constant dense<0.000000e+00> : vector<2x4xf32>
    %457 = vector.multi_reduction <add>, %456, %cst_155 [2] : vector<2x4x8xf32> to vector<2x4xf32>
    %458 = vector.broadcast %37 : vector<1x1xf32> to vector<2x4xf32>
    %459 = arith.addf %457, %458 : vector<2x4xf32>
    %cst_156 = arith.constant dense<0xFF800000> : vector<2xf32>
    %460 = vector.multi_reduction <maximumf>, %459, %cst_156 [1] : vector<2x4xf32> to vector<2xf32>
    %461 = vector.shape_cast %460 : vector<2xf32> to vector<2x1xf32>
    %462 = vector.broadcast %461 : vector<2x1xf32> to vector<2x4xf32>
    %463 = arith.subf %459, %462 : vector<2x4xf32>
    %464 = math.exp %463 : vector<2x4xf32>
    %cst_157 = arith.constant dense<0.000000e+00> : vector<2xf32>
    %465 = vector.multi_reduction <add>, %464, %cst_157 [1] : vector<2x4xf32> to vector<2xf32>
    %466 = vector.shape_cast %465 : vector<2xf32> to vector<2x1xf32>
    %467 = vector.broadcast %466 : vector<2x1xf32> to vector<2x4xf32>
    %468 = arith.divf %464, %467 : vector<2x4xf32>
    %c6_i32 = arith.constant 6 : i32
    %469 = vector.broadcast %c6_i32 : i32 to vector<2x4x8xi32>
    %470 = arith.cmpi eq, %41, %469 : vector<2x4x8xi32>
    %cst_158 = arith.constant 0.000000e+00 : f32
    %471 = vector.broadcast %cst_158 : f32 to vector<2x4x8xf32>
    %472 = arith.select %470, %25, %471 : vector<2x4x8xi1>, vector<2x4x8xf32>
    %cst_159 = arith.constant dense<0.000000e+00> : vector<2x4xf32>
    %473 = vector.multi_reduction <add>, %472, %cst_159 [2] : vector<2x4x8xf32> to vector<2x4xf32>
    %474 = arith.mulf %468, %473 : vector<2x4xf32>
    %cst_160 = arith.constant dense<0.000000e+00> : vector<2x128xf32>
    %475 = tpu.matmul %474, %38, %cst_160 {dimension_numbers = #tpu.dot_dimension_numbers<[1], [0], [0], [1], [0, 0, 1, 1], [], []>} : vector<2x4xf32>, vector<4x128xf32>, vector<2x128xf32> -> vector<2x128xf32>
    %cst_161 = arith.constant dense<0.000000e+00> : vector<2x128xf32>
    %476 = tpu.matmul %443, %39, %cst_161 {dimension_numbers = #tpu.dot_dimension_numbers<[1], [0], [0], [1], [0, 0, 1, 1], [], []>} : vector<2x32xf32>, vector<32x128xf32>, vector<2x128xf32> -> vector<2x128xf32>
    %477 = arith.addf %475, %476 : vector<2x128xf32>
    %478 = vector.broadcast %40 : vector<1x128xf32> to vector<2x128xf32>
    %479 = arith.addf %477, %478 : vector<2x128xf32>
    %480 = vector.extract_strided_slice %479 {offsets = [0, 0], sizes = [2, 32], strides = [1, 1]} : vector<2x128xf32> to vector<2x32xf32>
    %cst_162 = arith.constant 0.000000e+00 : f32
    %481 = vector.broadcast %cst_162 : f32 to vector<2x32xf32>
    %482 = arith.subf %481, %480 : vector<2x32xf32>
    %483 = math.exp %482 : vector<2x32xf32>
    %cst_163 = arith.constant 1.000000e+00 : f32
    %484 = vector.broadcast %cst_163 : f32 to vector<2x32xf32>
    %485 = arith.addf %484, %483 : vector<2x32xf32>
    %cst_164 = arith.constant 1.000000e+00 : f32
    %486 = vector.broadcast %cst_164 : f32 to vector<2x32xf32>
    %487 = arith.divf %486, %485 : vector<2x32xf32>
    %488 = vector.extract_strided_slice %479 {offsets = [0, 32], sizes = [2, 32], strides = [1, 1]} : vector<2x128xf32> to vector<2x32xf32>
    %cst_165 = arith.constant 0.000000e+00 : f32
    %489 = vector.broadcast %cst_165 : f32 to vector<2x32xf32>
    %490 = arith.subf %489, %488 : vector<2x32xf32>
    %491 = math.exp %490 : vector<2x32xf32>
    %cst_166 = arith.constant 1.000000e+00 : f32
    %492 = vector.broadcast %cst_166 : f32 to vector<2x32xf32>
    %493 = arith.addf %492, %491 : vector<2x32xf32>
    %cst_167 = arith.constant 1.000000e+00 : f32
    %494 = vector.broadcast %cst_167 : f32 to vector<2x32xf32>
    %495 = arith.divf %494, %493 : vector<2x32xf32>
    %496 = vector.extract_strided_slice %479 {offsets = [0, 64], sizes = [2, 32], strides = [1, 1]} : vector<2x128xf32> to vector<2x32xf32>
    %497 = math.tanh %496 : vector<2x32xf32>
    %498 = vector.extract_strided_slice %479 {offsets = [0, 96], sizes = [2, 32], strides = [1, 1]} : vector<2x128xf32> to vector<2x32xf32>
    %cst_168 = arith.constant 0.000000e+00 : f32
    %499 = vector.broadcast %cst_168 : f32 to vector<2x32xf32>
    %500 = arith.subf %499, %498 : vector<2x32xf32>
    %501 = math.exp %500 : vector<2x32xf32>
    %cst_169 = arith.constant 1.000000e+00 : f32
    %502 = vector.broadcast %cst_169 : f32 to vector<2x32xf32>
    %503 = arith.addf %502, %501 : vector<2x32xf32>
    %cst_170 = arith.constant 1.000000e+00 : f32
    %504 = vector.broadcast %cst_170 : f32 to vector<2x32xf32>
    %505 = arith.divf %504, %503 : vector<2x32xf32>
    %506 = arith.mulf %495, %441 : vector<2x32xf32>
    %507 = arith.mulf %487, %497 : vector<2x32xf32>
    %508 = arith.addf %506, %507 : vector<2x32xf32>
    %509 = math.tanh %508 : vector<2x32xf32>
    %510 = arith.mulf %505, %509 : vector<2x32xf32>
    %511 = vector.shape_cast %510 : vector<2x32xf32> to vector<2x1x32xf32>
    %c0_171 = arith.constant 0 : index
    %c6 = arith.constant 6 : index
    %c0_172 = arith.constant 0 : index
    %512 = vector.load %arg36[%c0_171, %c6, %c0_172] : memref<2x8x32xf32, #tpu.memory_space<vmem>>, vector<2x1x32xf32>
    tpu.vector_store %arg36[%c0_171, %c6, %c0_172], %511 {strides = array<i32>} : memref<2x8x32xf32, #tpu.memory_space<vmem>>, vector<2x1x32xf32>,
    %cst_173 = arith.constant dense<0.000000e+00> : vector<2x8xf32>
    %513 = tpu.matmul %510, %34, %cst_173 {dimension_numbers = #tpu.dot_dimension_numbers<[1], [0], [0], [1], [0, 0, 1, 1], [], []>} : vector<2x32xf32>, vector<32x8xf32>, vector<2x8xf32> -> vector<2x8xf32>
    %cst_174 = arith.constant dense<0.000000e+00> : vector<2x8xf32>
    %514 = tpu.matmul %508, %35, %cst_174 {dimension_numbers = #tpu.dot_dimension_numbers<[1], [0], [0], [1], [0, 0, 1, 1], [], []>} : vector<2x32xf32>, vector<32x8xf32>, vector<2x8xf32> -> vector<2x8xf32>
    %515 = vector.shape_cast %513 : vector<2x8xf32> to vector<2x1x8xf32>
    %516 = vector.shape_cast %514 : vector<2x8xf32> to vector<2x1x8xf32>
    %517 = arith.addf %515, %516 : vector<2x1x8xf32>
    %518 = vector.broadcast %517 : vector<2x1x8xf32> to vector<2x4x8xf32>
    %519 = arith.addf %518, %33 : vector<2x4x8xf32>
    %520 = math.tanh %519 : vector<2x4x8xf32>
    %521 = vector.shape_cast %36 : vector<1x8xf32> to vector<1x1x8xf32>
    %522 = vector.broadcast %521 : vector<1x1x8xf32> to vector<2x4x8xf32>
    %523 = arith.mulf %520, %522 : vector<2x4x8xf32>
    %cst_175 = arith.constant dense<0.000000e+00> : vector<2x4xf32>
    %524 = vector.multi_reduction <add>, %523, %cst_175 [2] : vector<2x4x8xf32> to vector<2x4xf32>
    %525 = vector.broadcast %37 : vector<1x1xf32> to vector<2x4xf32>
    %526 = arith.addf %524, %525 : vector<2x4xf32>
    %cst_176 = arith.constant dense<0xFF800000> : vector<2xf32>
    %527 = vector.multi_reduction <maximumf>, %526, %cst_176 [1] : vector<2x4xf32> to vector<2xf32>
    %528 = vector.shape_cast %527 : vector<2xf32> to vector<2x1xf32>
    %529 = vector.broadcast %528 : vector<2x1xf32> to vector<2x4xf32>
    %530 = arith.subf %526, %529 : vector<2x4xf32>
    %531 = math.exp %530 : vector<2x4xf32>
    %cst_177 = arith.constant dense<0.000000e+00> : vector<2xf32>
    %532 = vector.multi_reduction <add>, %531, %cst_177 [1] : vector<2x4xf32> to vector<2xf32>
    %533 = vector.shape_cast %532 : vector<2xf32> to vector<2x1xf32>
    %534 = vector.broadcast %533 : vector<2x1xf32> to vector<2x4xf32>
    %535 = arith.divf %531, %534 : vector<2x4xf32>
    %c7_i32 = arith.constant 7 : i32
    %536 = vector.broadcast %c7_i32 : i32 to vector<2x4x8xi32>
    %537 = arith.cmpi eq, %41, %536 : vector<2x4x8xi32>
    %cst_178 = arith.constant 0.000000e+00 : f32
    %538 = vector.broadcast %cst_178 : f32 to vector<2x4x8xf32>
    %539 = arith.select %537, %25, %538 : vector<2x4x8xi1>, vector<2x4x8xf32>
    %cst_179 = arith.constant dense<0.000000e+00> : vector<2x4xf32>
    %540 = vector.multi_reduction <add>, %539, %cst_179 [2] : vector<2x4x8xf32> to vector<2x4xf32>
    %541 = arith.mulf %535, %540 : vector<2x4xf32>
    %cst_180 = arith.constant dense<0.000000e+00> : vector<2x128xf32>
    %542 = tpu.matmul %541, %38, %cst_180 {dimension_numbers = #tpu.dot_dimension_numbers<[1], [0], [0], [1], [0, 0, 1, 1], [], []>} : vector<2x4xf32>, vector<4x128xf32>, vector<2x128xf32> -> vector<2x128xf32>
    %cst_181 = arith.constant dense<0.000000e+00> : vector<2x128xf32>
    %543 = tpu.matmul %510, %39, %cst_181 {dimension_numbers = #tpu.dot_dimension_numbers<[1], [0], [0], [1], [0, 0, 1, 1], [], []>} : vector<2x32xf32>, vector<32x128xf32>, vector<2x128xf32> -> vector<2x128xf32>
    %544 = arith.addf %542, %543 : vector<2x128xf32>
    %545 = vector.broadcast %40 : vector<1x128xf32> to vector<2x128xf32>
    %546 = arith.addf %544, %545 : vector<2x128xf32>
    %547 = vector.extract_strided_slice %546 {offsets = [0, 0], sizes = [2, 32], strides = [1, 1]} : vector<2x128xf32> to vector<2x32xf32>
    %cst_182 = arith.constant 0.000000e+00 : f32
    %548 = vector.broadcast %cst_182 : f32 to vector<2x32xf32>
    %549 = arith.subf %548, %547 : vector<2x32xf32>
    %550 = math.exp %549 : vector<2x32xf32>
    %cst_183 = arith.constant 1.000000e+00 : f32
    %551 = vector.broadcast %cst_183 : f32 to vector<2x32xf32>
    %552 = arith.addf %551, %550 : vector<2x32xf32>
    %cst_184 = arith.constant 1.000000e+00 : f32
    %553 = vector.broadcast %cst_184 : f32 to vector<2x32xf32>
    %554 = arith.divf %553, %552 : vector<2x32xf32>
    %555 = vector.extract_strided_slice %546 {offsets = [0, 32], sizes = [2, 32], strides = [1, 1]} : vector<2x128xf32> to vector<2x32xf32>
    %cst_185 = arith.constant 0.000000e+00 : f32
    %556 = vector.broadcast %cst_185 : f32 to vector<2x32xf32>
    %557 = arith.subf %556, %555 : vector<2x32xf32>
    %558 = math.exp %557 : vector<2x32xf32>
    %cst_186 = arith.constant 1.000000e+00 : f32
    %559 = vector.broadcast %cst_186 : f32 to vector<2x32xf32>
    %560 = arith.addf %559, %558 : vector<2x32xf32>
    %cst_187 = arith.constant 1.000000e+00 : f32
    %561 = vector.broadcast %cst_187 : f32 to vector<2x32xf32>
    %562 = arith.divf %561, %560 : vector<2x32xf32>
    %563 = vector.extract_strided_slice %546 {offsets = [0, 64], sizes = [2, 32], strides = [1, 1]} : vector<2x128xf32> to vector<2x32xf32>
    %564 = math.tanh %563 : vector<2x32xf32>
    %565 = vector.extract_strided_slice %546 {offsets = [0, 96], sizes = [2, 32], strides = [1, 1]} : vector<2x128xf32> to vector<2x32xf32>
    %cst_188 = arith.constant 0.000000e+00 : f32
    %566 = vector.broadcast %cst_188 : f32 to vector<2x32xf32>
    %567 = arith.subf %566, %565 : vector<2x32xf32>
    %568 = math.exp %567 : vector<2x32xf32>
    %cst_189 = arith.constant 1.000000e+00 : f32
    %569 = vector.broadcast %cst_189 : f32 to vector<2x32xf32>
    %570 = arith.addf %569, %568 : vector<2x32xf32>
    %cst_190 = arith.constant 1.000000e+00 : f32
    %571 = vector.broadcast %cst_190 : f32 to vector<2x32xf32>
    %572 = arith.divf %571, %570 : vector<2x32xf32>
    %573 = arith.mulf %562, %508 : vector<2x32xf32>
    %574 = arith.mulf %554, %564 : vector<2x32xf32>
    %575 = arith.addf %573, %574 : vector<2x32xf32>
    %576 = math.tanh %575 : vector<2x32xf32>
    %577 = arith.mulf %572, %576 : vector<2x32xf32>
    %578 = vector.shape_cast %577 : vector<2x32xf32> to vector<2x1x32xf32>
    %c0_191 = arith.constant 0 : index
    %c7 = arith.constant 7 : index
    %c0_192 = arith.constant 0 : index
    %579 = vector.load %arg36[%c0_191, %c7, %c0_192] : memref<2x8x32xf32, #tpu.memory_space<vmem>>, vector<2x1x32xf32>
    tpu.vector_store %arg36[%c0_191, %c7, %c0_192], %578 {strides = array<i32>} : memref<2x8x32xf32, #tpu.memory_space<vmem>>, vector<2x1x32xf32>,
    %c0_193 = arith.constant 0 : index
    %c0_194 = arith.constant 0 : index
    %c0_195 = arith.constant 0 : index
    %580 = vector.load %arg36[%c0_193, %c0_194, %c0_195] : memref<2x8x32xf32, #tpu.memory_space<vmem>>, vector<2x8x32xf32>
    %c0_196 = arith.constant 0 : index
    %c0_197 = arith.constant 0 : index
    %581 = vector.load %arg4[%c0_196, %c0_197] : memref<32x96xf32, #tpu.memory_space<vmem>>, vector<32x96xf32>
    %c0_198 = arith.constant 0 : index
    %c0_199 = arith.constant 0 : index
    %582 = vector.load %arg5[%c0_198, %c0_199] : memref<1x96xf32, #tpu.memory_space<vmem>>, vector<1x96xf32>
    %583 = vector.shape_cast %580 : vector<2x8x32xf32> to vector<16x32xf32>
    %cst_200 = arith.constant dense<0.000000e+00> : vector<16x96xf32>
    %584 = tpu.matmul %583, %581, %cst_200 {dimension_numbers = #tpu.dot_dimension_numbers<[1], [0], [0], [1], [0, 0, 1, 1], [], []>} : vector<16x32xf32>, vector<32x96xf32>, vector<16x96xf32> -> vector<16x96xf32>
    %585 = vector.broadcast %582 : vector<1x96xf32> to vector<16x96xf32>
    %586 = arith.addf %584, %585 : vector<16x96xf32>
    %587 = vector.extract_strided_slice %586 {offsets = [0, 0], sizes = [16, 32], strides = [1, 1]} : vector<16x96xf32> to vector<16x32xf32>
    %588 = vector.shape_cast %587 : vector<16x32xf32> to vector<2x8x32xf32>
    %589 = vector.extract_strided_slice %586 {offsets = [0, 32], sizes = [16, 32], strides = [1, 1]} : vector<16x96xf32> to vector<16x32xf32>
    %590 = vector.shape_cast %589 : vector<16x32xf32> to vector<2x8x32xf32>
    %591 = vector.extract_strided_slice %586 {offsets = [0, 64], sizes = [16, 32], strides = [1, 1]} : vector<16x96xf32> to vector<16x32xf32>
    %592 = vector.shape_cast %591 : vector<16x32xf32> to vector<2x8x32xf32>
    "tpu.trace_start"() <{level = 10 : i32, message = "bso,bto->bst"}> : () -> ()
    %cst_201 = arith.constant dense<0.000000e+00> : vector<2x8x8xf32>
    %593 = tpu.matmul %588, %590, %cst_201 {dimension_numbers = #tpu.dot_dimension_numbers<[2], [2], [1], [1], [0, 0, 0, 1, 1, 1], [0], [0]>} : vector<2x8x32xf32>, vector<2x8x32xf32>, vector<2x8x8xf32> -> vector<2x8x8xf32>
    "tpu.trace_stop"() : () -> ()
    %cst_202 = arith.constant 0.176776692 : f32
    %594 = vector.broadcast %cst_202 : f32 to vector<2x8x8xf32>
    %595 = arith.mulf %593, %594 : vector<2x8x8xf32>
    %cst_203 = arith.constant dense<0xFF800000> : vector<2x8xf32>
    %596 = vector.multi_reduction <maximumf>, %595, %cst_203 [2] : vector<2x8x8xf32> to vector<2x8xf32>
    %597 = vector.shape_cast %596 : vector<2x8xf32> to vector<2x8x1xf32>
    %598 = vector.broadcast %597 : vector<2x8x1xf32> to vector<2x8x8xf32>
    %599 = arith.subf %595, %598 : vector<2x8x8xf32>
    %600 = math.exp %599 : vector<2x8x8xf32>
    %cst_204 = arith.constant dense<0.000000e+00> : vector<2x8xf32>
    %601 = vector.multi_reduction <add>, %600, %cst_204 [2] : vector<2x8x8xf32> to vector<2x8xf32>
    %602 = vector.shape_cast %601 : vector<2x8xf32> to vector<2x8x1xf32>
    %603 = vector.broadcast %602 : vector<2x8x1xf32> to vector<2x8x8xf32>
    %604 = arith.divf %600, %603 : vector<2x8x8xf32>
    "tpu.trace_start"() <{level = 10 : i32, message = "bst,bto->bso"}> : () -> ()
    %cst_205 = arith.constant dense<0.000000e+00> : vector<2x8x32xf32>
    %605 = tpu.matmul %604, %592, %cst_205 {dimension_numbers = #tpu.dot_dimension_numbers<[2], [1], [1], [2], [0, 0, 0, 1, 1, 2], [0], [0]>} : vector<2x8x8xf32>, vector<2x8x32xf32>, vector<2x8x32xf32> -> vector<2x8x32xf32>
    "tpu.trace_stop"() : () -> ()
    %606 = vector.shape_cast %605 : vector<2x8x32xf32> to vector<16x32xf32>
    %c0_206 = arith.constant 0 : index
    %c0_207 = arith.constant 0 : index
    %607 = vector.load %arg19[%c0_206, %c0_207] : memref<32x32xf32, #tpu.memory_space<vmem>>, vector<32x32xf32>
    %cst_208 = arith.constant dense<0.000000e+00> : vector<16x32xf32>
    %608 = tpu.matmul %606, %607, %cst_208 {dimension_numbers = #tpu.dot_dimension_numbers<[1], [0], [0], [1], [0, 0, 1, 1], [], []>} : vector<16x32xf32>, vector<32x32xf32>, vector<16x32xf32> -> vector<16x32xf32>
    %609 = vector.shape_cast %608 : vector<16x32xf32> to vector<2x8x32xf32>
    %c0_209 = arith.constant 0 : index
    %c0_210 = arith.constant 0 : index
    %610 = vector.load %arg20[%c0_209, %c0_210] : memref<1x32xf32, #tpu.memory_space<vmem>>, vector<1x32xf32>
    %611 = vector.shape_cast %610 : vector<1x32xf32> to vector<1x1x32xf32>
    %612 = vector.broadcast %611 : vector<1x1x32xf32> to vector<2x8x32xf32>
    %613 = arith.addf %609, %612 : vector<2x8x32xf32>
    %c0_211 = arith.constant 0 : index
    %c0_212 = arith.constant 0 : index
    %614 = vector.load %arg17[%c0_211, %c0_212] : memref<32x32xf32, #tpu.memory_space<vmem>>, vector<32x32xf32>
    %c0_213 = arith.constant 0 : index
    %c0_214 = arith.constant 0 : index
    %615 = vector.load %arg18[%c0_213, %c0_214] : memref<32x32xf32, #tpu.memory_space<vmem>>, vector<32x32xf32>
    %c0_215 = arith.constant 0 : index
    %c0_216 = arith.constant 0 : index
    %616 = vector.load %arg21[%c0_215, %c0_216] : memref<1x32xf32, #tpu.memory_space<vmem>>, vector<1x32xf32>
    %c0_217 = arith.constant 0 : index
    %c0_218 = arith.constant 0 : index
    %617 = vector.load %arg22[%c0_217, %c0_218] : memref<1x1xf32, #tpu.memory_space<vmem>>, vector<1x1xf32>
    %c0_219 = arith.constant 0 : index
    %c0_220 = arith.constant 0 : index
    %618 = vector.load %arg23[%c0_219, %c0_220] : memref<1x32xf32, #tpu.memory_space<vmem>>, vector<1x32xf32>
    %c0_221 = arith.constant 0 : index
    %c0_222 = arith.constant 0 : index
    %619 = vector.load %arg24[%c0_221, %c0_222] : memref<1x1xf32, #tpu.memory_space<vmem>>, vector<1x1xf32>
    %c0_223 = arith.constant 0 : index
    %c0_224 = arith.constant 0 : index
    %620 = vector.load %arg25[%c0_223, %c0_224] : memref<1x1xf32, #tpu.memory_space<vmem>>, vector<1x1xf32>
    %c0_225 = arith.constant 0 : index
    %c0_226 = arith.constant 0 : index
    %621 = vector.load %arg26[%c0_225, %c0_226] : memref<1x128xf32, #tpu.memory_space<vmem>>, vector<1x128xf32>
    %c0_227 = arith.constant 0 : index
    %c0_228 = arith.constant 0 : index
    %622 = vector.load %arg27[%c0_227, %c0_228] : memref<32x128xf32, #tpu.memory_space<vmem>>, vector<32x128xf32>
    %c0_229 = arith.constant 0 : index
    %c0_230 = arith.constant 0 : index
    %623 = vector.load %arg28[%c0_229, %c0_230] : memref<1x128xf32, #tpu.memory_space<vmem>>, vector<1x128xf32>
    %c0_231 = arith.constant 0 : index
    %c0_232 = arith.constant 0 : index
    %624 = vector.load %arg1[%c0_231, %c0_232] : memref<2x8xf32, #tpu.memory_space<vmem>>, vector<2x8xf32>
    %cst_233 = arith.constant 0.000000e+00 : f32
    %625 = vector.broadcast %cst_233 : f32 to vector<2x32xf32>
    %cst_234 = arith.constant 0.000000e+00 : f32
    %626 = vector.broadcast %cst_234 : f32 to vector<2x32xf32>
    %cst_235 = arith.constant dense<0.000000e+00> : vector<2x32xf32>
    %627 = tpu.matmul %625, %614, %cst_235 {dimension_numbers = #tpu.dot_dimension_numbers<[1], [0], [0], [1], [0, 0, 1, 1], [], []>} : vector<2x32xf32>, vector<32x32xf32>, vector<2x32xf32> -> vector<2x32xf32>
    %cst_236 = arith.constant dense<0.000000e+00> : vector<2x32xf32>
    %628 = tpu.matmul %626, %615, %cst_236 {dimension_numbers = #tpu.dot_dimension_numbers<[1], [0], [0], [1], [0, 0, 1, 1], [], []>} : vector<2x32xf32>, vector<32x32xf32>, vector<2x32xf32> -> vector<2x32xf32>
    %629 = vector.shape_cast %627 : vector<2x32xf32> to vector<2x1x32xf32>
    %630 = vector.shape_cast %628 : vector<2x32xf32> to vector<2x1x32xf32>
    %631 = arith.addf %629, %630 : vector<2x1x32xf32>
    %632 = vector.broadcast %631 : vector<2x1x32xf32> to vector<2x8x32xf32>
    %633 = arith.addf %632, %613 : vector<2x8x32xf32>
    %634 = math.tanh %633 : vector<2x8x32xf32>
    %635 = vector.shape_cast %616 : vector<1x32xf32> to vector<1x1x32xf32>
    %636 = vector.broadcast %635 : vector<1x1x32xf32> to vector<2x8x32xf32>
    %637 = arith.mulf %634, %636 : vector<2x8x32xf32>
    %cst_237 = arith.constant dense<0.000000e+00> : vector<2x8xf32>
    %638 = vector.multi_reduction <add>, %637, %cst_237 [2] : vector<2x8x32xf32> to vector<2x8xf32>
    %639 = vector.broadcast %617 : vector<1x1xf32> to vector<2x8xf32>
    %640 = arith.addf %638, %639 : vector<2x8xf32>
    %cst_238 = arith.constant dense<0xFF800000> : vector<2xf32>
    %641 = vector.multi_reduction <maximumf>, %640, %cst_238 [1] : vector<2x8xf32> to vector<2xf32>
    %642 = vector.shape_cast %641 : vector<2xf32> to vector<2x1xf32>
    %643 = vector.broadcast %642 : vector<2x1xf32> to vector<2x8xf32>
    %644 = arith.subf %640, %643 : vector<2x8xf32>
    %645 = math.exp %644 : vector<2x8xf32>
    %cst_239 = arith.constant dense<0.000000e+00> : vector<2xf32>
    %646 = vector.multi_reduction <add>, %645, %cst_239 [1] : vector<2x8xf32> to vector<2xf32>
    %647 = vector.shape_cast %646 : vector<2xf32> to vector<2x1xf32>
    %648 = vector.broadcast %647 : vector<2x1xf32> to vector<2x8xf32>
    %649 = arith.divf %645, %648 : vector<2x8xf32>
    %650 = vector.shape_cast %649 : vector<2x8xf32> to vector<2x8x1xf32>
    %651 = vector.broadcast %650 : vector<2x8x1xf32> to vector<2x8x32xf32>
    %652 = arith.mulf %651, %605 : vector<2x8x32xf32>
    %cst_240 = arith.constant dense<0.000000e+00> : vector<2x32xf32>
    %653 = vector.multi_reduction <add>, %652, %cst_240 [1] : vector<2x8x32xf32> to vector<2x32xf32>
    %654 = vector.extract_strided_slice %624 {offsets = [0, 0], sizes = [2, 1], strides = [1, 1]} : vector<2x8xf32> to vector<2x1xf32>
    %655 = vector.broadcast %618 : vector<1x32xf32> to vector<2x32xf32>
    %656 = arith.mulf %653, %655 : vector<2x32xf32>
    %cst_241 = arith.constant dense<0.000000e+00> : vector<2xf32>
    %657 = vector.multi_reduction <add>, %656, %cst_241 [1] : vector<2x32xf32> to vector<2xf32>
    %658 = vector.shape_cast %657 : vector<2xf32> to vector<2x1xf32>
    %659 = vector.broadcast %619 : vector<1x1xf32> to vector<2x1xf32>
    %660 = arith.mulf %654, %659 : vector<2x1xf32>
    %661 = arith.addf %658, %660 : vector<2x1xf32>
    %662 = vector.broadcast %620 : vector<1x1xf32> to vector<2x1xf32>
    %663 = arith.addf %661, %662 : vector<2x1xf32>
    %664 = vector.broadcast %663 : vector<2x1xf32> to vector<2x128xf32>
    %665 = vector.broadcast %621 : vector<1x128xf32> to vector<2x128xf32>
    %666 = arith.mulf %664, %665 : vector<2x128xf32>
    %cst_242 = arith.constant dense<0.000000e+00> : vector<2x128xf32>
    %667 = tpu.matmul %625, %622, %cst_242 {dimension_numbers = #tpu.dot_dimension_numbers<[1], [0], [0], [1], [0, 0, 1, 1], [], []>} : vector<2x32xf32>, vector<32x128xf32>, vector<2x128xf32> -> vector<2x128xf32>
    %668 = arith.addf %666, %667 : vector<2x128xf32>
    %669 = vector.broadcast %623 : vector<1x128xf32> to vector<2x128xf32>
    %670 = arith.addf %668, %669 : vector<2x128xf32>
    %671 = vector.extract_strided_slice %670 {offsets = [0, 0], sizes = [2, 32], strides = [1, 1]} : vector<2x128xf32> to vector<2x32xf32>
    %cst_243 = arith.constant 0.000000e+00 : f32
    %672 = vector.broadcast %cst_243 : f32 to vector<2x32xf32>
    %673 = arith.subf %672, %671 : vector<2x32xf32>
    %674 = math.exp %673 : vector<2x32xf32>
    %cst_244 = arith.constant 1.000000e+00 : f32
    %675 = vector.broadcast %cst_244 : f32 to vector<2x32xf32>
    %676 = arith.addf %675, %674 : vector<2x32xf32>
    %cst_245 = arith.constant 1.000000e+00 : f32
    %677 = vector.broadcast %cst_245 : f32 to vector<2x32xf32>
    %678 = arith.divf %677, %676 : vector<2x32xf32>
    %679 = vector.extract_strided_slice %670 {offsets = [0, 32], sizes = [2, 32], strides = [1, 1]} : vector<2x128xf32> to vector<2x32xf32>
    %cst_246 = arith.constant 0.000000e+00 : f32
    %680 = vector.broadcast %cst_246 : f32 to vector<2x32xf32>
    %681 = arith.subf %680, %679 : vector<2x32xf32>
    %682 = math.exp %681 : vector<2x32xf32>
    %cst_247 = arith.constant 1.000000e+00 : f32
    %683 = vector.broadcast %cst_247 : f32 to vector<2x32xf32>
    %684 = arith.addf %683, %682 : vector<2x32xf32>
    %cst_248 = arith.constant 1.000000e+00 : f32
    %685 = vector.broadcast %cst_248 : f32 to vector<2x32xf32>
    %686 = arith.divf %685, %684 : vector<2x32xf32>
    %687 = vector.extract_strided_slice %670 {offsets = [0, 64], sizes = [2, 32], strides = [1, 1]} : vector<2x128xf32> to vector<2x32xf32>
    %688 = math.tanh %687 : vector<2x32xf32>
    %689 = vector.extract_strided_slice %670 {offsets = [0, 96], sizes = [2, 32], strides = [1, 1]} : vector<2x128xf32> to vector<2x32xf32>
    %cst_249 = arith.constant 0.000000e+00 : f32
    %690 = vector.broadcast %cst_249 : f32 to vector<2x32xf32>
    %691 = arith.subf %690, %689 : vector<2x32xf32>
    %692 = math.exp %691 : vector<2x32xf32>
    %cst_250 = arith.constant 1.000000e+00 : f32
    %693 = vector.broadcast %cst_250 : f32 to vector<2x32xf32>
    %694 = arith.addf %693, %692 : vector<2x32xf32>
    %cst_251 = arith.constant 1.000000e+00 : f32
    %695 = vector.broadcast %cst_251 : f32 to vector<2x32xf32>
    %696 = arith.divf %695, %694 : vector<2x32xf32>
    %697 = arith.mulf %686, %626 : vector<2x32xf32>
    %698 = arith.mulf %678, %688 : vector<2x32xf32>
    %699 = arith.addf %697, %698 : vector<2x32xf32>
    %700 = math.tanh %699 : vector<2x32xf32>
    %701 = arith.mulf %696, %700 : vector<2x32xf32>
    %cst_252 = arith.constant dense<0.000000e+00> : vector<2x32xf32>
    %702 = tpu.matmul %701, %614, %cst_252 {dimension_numbers = #tpu.dot_dimension_numbers<[1], [0], [0], [1], [0, 0, 1, 1], [], []>} : vector<2x32xf32>, vector<32x32xf32>, vector<2x32xf32> -> vector<2x32xf32>
    %cst_253 = arith.constant dense<0.000000e+00> : vector<2x32xf32>
    %703 = tpu.matmul %699, %615, %cst_253 {dimension_numbers = #tpu.dot_dimension_numbers<[1], [0], [0], [1], [0, 0, 1, 1], [], []>} : vector<2x32xf32>, vector<32x32xf32>, vector<2x32xf32> -> vector<2x32xf32>
    %704 = vector.shape_cast %702 : vector<2x32xf32> to vector<2x1x32xf32>
    %705 = vector.shape_cast %703 : vector<2x32xf32> to vector<2x1x32xf32>
    %706 = arith.addf %704, %705 : vector<2x1x32xf32>
    %707 = vector.broadcast %706 : vector<2x1x32xf32> to vector<2x8x32xf32>
    %708 = arith.addf %707, %613 : vector<2x8x32xf32>
    %709 = math.tanh %708 : vector<2x8x32xf32>
    %710 = vector.shape_cast %616 : vector<1x32xf32> to vector<1x1x32xf32>
    %711 = vector.broadcast %710 : vector<1x1x32xf32> to vector<2x8x32xf32>
    %712 = arith.mulf %709, %711 : vector<2x8x32xf32>
    %cst_254 = arith.constant dense<0.000000e+00> : vector<2x8xf32>
    %713 = vector.multi_reduction <add>, %712, %cst_254 [2] : vector<2x8x32xf32> to vector<2x8xf32>
    %714 = vector.broadcast %617 : vector<1x1xf32> to vector<2x8xf32>
    %715 = arith.addf %713, %714 : vector<2x8xf32>
    %cst_255 = arith.constant dense<0xFF800000> : vector<2xf32>
    %716 = vector.multi_reduction <maximumf>, %715, %cst_255 [1] : vector<2x8xf32> to vector<2xf32>
    %717 = vector.shape_cast %716 : vector<2xf32> to vector<2x1xf32>
    %718 = vector.broadcast %717 : vector<2x1xf32> to vector<2x8xf32>
    %719 = arith.subf %715, %718 : vector<2x8xf32>
    %720 = math.exp %719 : vector<2x8xf32>
    %cst_256 = arith.constant dense<0.000000e+00> : vector<2xf32>
    %721 = vector.multi_reduction <add>, %720, %cst_256 [1] : vector<2x8xf32> to vector<2xf32>
    %722 = vector.shape_cast %721 : vector<2xf32> to vector<2x1xf32>
    %723 = vector.broadcast %722 : vector<2x1xf32> to vector<2x8xf32>
    %724 = arith.divf %720, %723 : vector<2x8xf32>
    %725 = vector.shape_cast %724 : vector<2x8xf32> to vector<2x8x1xf32>
    %726 = vector.broadcast %725 : vector<2x8x1xf32> to vector<2x8x32xf32>
    %727 = arith.mulf %726, %605 : vector<2x8x32xf32>
    %cst_257 = arith.constant dense<0.000000e+00> : vector<2x32xf32>
    %728 = vector.multi_reduction <add>, %727, %cst_257 [1] : vector<2x8x32xf32> to vector<2x32xf32>
    %729 = vector.extract_strided_slice %624 {offsets = [0, 1], sizes = [2, 1], strides = [1, 1]} : vector<2x8xf32> to vector<2x1xf32>
    %730 = vector.broadcast %618 : vector<1x32xf32> to vector<2x32xf32>
    %731 = arith.mulf %728, %730 : vector<2x32xf32>
    %cst_258 = arith.constant dense<0.000000e+00> : vector<2xf32>
    %732 = vector.multi_reduction <add>, %731, %cst_258 [1] : vector<2x32xf32> to vector<2xf32>
    %733 = vector.shape_cast %732 : vector<2xf32> to vector<2x1xf32>
    %734 = vector.broadcast %619 : vector<1x1xf32> to vector<2x1xf32>
    %735 = arith.mulf %729, %734 : vector<2x1xf32>
    %736 = arith.addf %733, %735 : vector<2x1xf32>
    %737 = vector.broadcast %620 : vector<1x1xf32> to vector<2x1xf32>
    %738 = arith.addf %736, %737 : vector<2x1xf32>
    %739 = vector.broadcast %738 : vector<2x1xf32> to vector<2x128xf32>
    %740 = vector.broadcast %621 : vector<1x128xf32> to vector<2x128xf32>
    %741 = arith.mulf %739, %740 : vector<2x128xf32>
    %cst_259 = arith.constant dense<0.000000e+00> : vector<2x128xf32>
    %742 = tpu.matmul %701, %622, %cst_259 {dimension_numbers = #tpu.dot_dimension_numbers<[1], [0], [0], [1], [0, 0, 1, 1], [], []>} : vector<2x32xf32>, vector<32x128xf32>, vector<2x128xf32> -> vector<2x128xf32>
    %743 = arith.addf %741, %742 : vector<2x128xf32>
    %744 = vector.broadcast %623 : vector<1x128xf32> to vector<2x128xf32>
    %745 = arith.addf %743, %744 : vector<2x128xf32>
    %746 = vector.extract_strided_slice %745 {offsets = [0, 0], sizes = [2, 32], strides = [1, 1]} : vector<2x128xf32> to vector<2x32xf32>
    %cst_260 = arith.constant 0.000000e+00 : f32
    %747 = vector.broadcast %cst_260 : f32 to vector<2x32xf32>
    %748 = arith.subf %747, %746 : vector<2x32xf32>
    %749 = math.exp %748 : vector<2x32xf32>
    %cst_261 = arith.constant 1.000000e+00 : f32
    %750 = vector.broadcast %cst_261 : f32 to vector<2x32xf32>
    %751 = arith.addf %750, %749 : vector<2x32xf32>
    %cst_262 = arith.constant 1.000000e+00 : f32
    %752 = vector.broadcast %cst_262 : f32 to vector<2x32xf32>
    %753 = arith.divf %752, %751 : vector<2x32xf32>
    %754 = vector.extract_strided_slice %745 {offsets = [0, 32], sizes = [2, 32], strides = [1, 1]} : vector<2x128xf32> to vector<2x32xf32>
    %cst_263 = arith.constant 0.000000e+00 : f32
    %755 = vector.broadcast %cst_263 : f32 to vector<2x32xf32>
    %756 = arith.subf %755, %754 : vector<2x32xf32>
    %757 = math.exp %756 : vector<2x32xf32>
    %cst_264 = arith.constant 1.000000e+00 : f32
    %758 = vector.broadcast %cst_264 : f32 to vector<2x32xf32>
    %759 = arith.addf %758, %757 : vector<2x32xf32>
    %cst_265 = arith.constant 1.000000e+00 : f32
    %760 = vector.broadcast %cst_265 : f32 to vector<2x32xf32>
    %761 = arith.divf %760, %759 : vector<2x32xf32>
    %762 = vector.extract_strided_slice %745 {offsets = [0, 64], sizes = [2, 32], strides = [1, 1]} : vector<2x128xf32> to vector<2x32xf32>
    %763 = math.tanh %762 : vector<2x32xf32>
    %764 = vector.extract_strided_slice %745 {offsets = [0, 96], sizes = [2, 32], strides = [1, 1]} : vector<2x128xf32> to vector<2x32xf32>
    %cst_266 = arith.constant 0.000000e+00 : f32
    %765 = vector.broadcast %cst_266 : f32 to vector<2x32xf32>
    %766 = arith.subf %765, %764 : vector<2x32xf32>
    %767 = math.exp %766 : vector<2x32xf32>
    %cst_267 = arith.constant 1.000000e+00 : f32
    %768 = vector.broadcast %cst_267 : f32 to vector<2x32xf32>
    %769 = arith.addf %768, %767 : vector<2x32xf32>
    %cst_268 = arith.constant 1.000000e+00 : f32
    %770 = vector.broadcast %cst_268 : f32 to vector<2x32xf32>
    %771 = arith.divf %770, %769 : vector<2x32xf32>
    %772 = arith.mulf %761, %699 : vector<2x32xf32>
    %773 = arith.mulf %753, %763 : vector<2x32xf32>
    %774 = arith.addf %772, %773 : vector<2x32xf32>
    %775 = math.tanh %774 : vector<2x32xf32>
    %776 = arith.mulf %771, %775 : vector<2x32xf32>
    %cst_269 = arith.constant dense<0.000000e+00> : vector<2x32xf32>
    %777 = tpu.matmul %776, %614, %cst_269 {dimension_numbers = #tpu.dot_dimension_numbers<[1], [0], [0], [1], [0, 0, 1, 1], [], []>} : vector<2x32xf32>, vector<32x32xf32>, vector<2x32xf32> -> vector<2x32xf32>
    %cst_270 = arith.constant dense<0.000000e+00> : vector<2x32xf32>
    %778 = tpu.matmul %774, %615, %cst_270 {dimension_numbers = #tpu.dot_dimension_numbers<[1], [0], [0], [1], [0, 0, 1, 1], [], []>} : vector<2x32xf32>, vector<32x32xf32>, vector<2x32xf32> -> vector<2x32xf32>
    %779 = vector.shape_cast %777 : vector<2x32xf32> to vector<2x1x32xf32>
    %780 = vector.shape_cast %778 : vector<2x32xf32> to vector<2x1x32xf32>
    %781 = arith.addf %779, %780 : vector<2x1x32xf32>
    %782 = vector.broadcast %781 : vector<2x1x32xf32> to vector<2x8x32xf32>
    %783 = arith.addf %782, %613 : vector<2x8x32xf32>
    %784 = math.tanh %783 : vector<2x8x32xf32>
    %785 = vector.shape_cast %616 : vector<1x32xf32> to vector<1x1x32xf32>
    %786 = vector.broadcast %785 : vector<1x1x32xf32> to vector<2x8x32xf32>
    %787 = arith.mulf %784, %786 : vector<2x8x32xf32>
    %cst_271 = arith.constant dense<0.000000e+00> : vector<2x8xf32>
    %788 = vector.multi_reduction <add>, %787, %cst_271 [2] : vector<2x8x32xf32> to vector<2x8xf32>
    %789 = vector.broadcast %617 : vector<1x1xf32> to vector<2x8xf32>
    %790 = arith.addf %788, %789 : vector<2x8xf32>
    %cst_272 = arith.constant dense<0xFF800000> : vector<2xf32>
    %791 = vector.multi_reduction <maximumf>, %790, %cst_272 [1] : vector<2x8xf32> to vector<2xf32>
    %792 = vector.shape_cast %791 : vector<2xf32> to vector<2x1xf32>
    %793 = vector.broadcast %792 : vector<2x1xf32> to vector<2x8xf32>
    %794 = arith.subf %790, %793 : vector<2x8xf32>
    %795 = math.exp %794 : vector<2x8xf32>
    %cst_273 = arith.constant dense<0.000000e+00> : vector<2xf32>
    %796 = vector.multi_reduction <add>, %795, %cst_273 [1] : vector<2x8xf32> to vector<2xf32>
    %797 = vector.shape_cast %796 : vector<2xf32> to vector<2x1xf32>
    %798 = vector.broadcast %797 : vector<2x1xf32> to vector<2x8xf32>
    %799 = arith.divf %795, %798 : vector<2x8xf32>
    %800 = vector.shape_cast %799 : vector<2x8xf32> to vector<2x8x1xf32>
    %801 = vector.broadcast %800 : vector<2x8x1xf32> to vector<2x8x32xf32>
    %802 = arith.mulf %801, %605 : vector<2x8x32xf32>
    %cst_274 = arith.constant dense<0.000000e+00> : vector<2x32xf32>
    %803 = vector.multi_reduction <add>, %802, %cst_274 [1] : vector<2x8x32xf32> to vector<2x32xf32>
    %804 = vector.extract_strided_slice %624 {offsets = [0, 2], sizes = [2, 1], strides = [1, 1]} : vector<2x8xf32> to vector<2x1xf32>
    %805 = vector.broadcast %618 : vector<1x32xf32> to vector<2x32xf32>
    %806 = arith.mulf %803, %805 : vector<2x32xf32>
    %cst_275 = arith.constant dense<0.000000e+00> : vector<2xf32>
    %807 = vector.multi_reduction <add>, %806, %cst_275 [1] : vector<2x32xf32> to vector<2xf32>
    %808 = vector.shape_cast %807 : vector<2xf32> to vector<2x1xf32>
    %809 = vector.broadcast %619 : vector<1x1xf32> to vector<2x1xf32>
    %810 = arith.mulf %804, %809 : vector<2x1xf32>
    %811 = arith.addf %808, %810 : vector<2x1xf32>
    %812 = vector.broadcast %620 : vector<1x1xf32> to vector<2x1xf32>
    %813 = arith.addf %811, %812 : vector<2x1xf32>
    %814 = vector.broadcast %813 : vector<2x1xf32> to vector<2x128xf32>
    %815 = vector.broadcast %621 : vector<1x128xf32> to vector<2x128xf32>
    %816 = arith.mulf %814, %815 : vector<2x128xf32>
    %cst_276 = arith.constant dense<0.000000e+00> : vector<2x128xf32>
    %817 = tpu.matmul %776, %622, %cst_276 {dimension_numbers = #tpu.dot_dimension_numbers<[1], [0], [0], [1], [0, 0, 1, 1], [], []>} : vector<2x32xf32>, vector<32x128xf32>, vector<2x128xf32> -> vector<2x128xf32>
    %818 = arith.addf %816, %817 : vector<2x128xf32>
    %819 = vector.broadcast %623 : vector<1x128xf32> to vector<2x128xf32>
    %820 = arith.addf %818, %819 : vector<2x128xf32>
    %821 = vector.extract_strided_slice %820 {offsets = [0, 0], sizes = [2, 32], strides = [1, 1]} : vector<2x128xf32> to vector<2x32xf32>
    %cst_277 = arith.constant 0.000000e+00 : f32
    %822 = vector.broadcast %cst_277 : f32 to vector<2x32xf32>
    %823 = arith.subf %822, %821 : vector<2x32xf32>
    %824 = math.exp %823 : vector<2x32xf32>
    %cst_278 = arith.constant 1.000000e+00 : f32
    %825 = vector.broadcast %cst_278 : f32 to vector<2x32xf32>
    %826 = arith.addf %825, %824 : vector<2x32xf32>
    %cst_279 = arith.constant 1.000000e+00 : f32
    %827 = vector.broadcast %cst_279 : f32 to vector<2x32xf32>
    %828 = arith.divf %827, %826 : vector<2x32xf32>
    %829 = vector.extract_strided_slice %820 {offsets = [0, 32], sizes = [2, 32], strides = [1, 1]} : vector<2x128xf32> to vector<2x32xf32>
    %cst_280 = arith.constant 0.000000e+00 : f32
    %830 = vector.broadcast %cst_280 : f32 to vector<2x32xf32>
    %831 = arith.subf %830, %829 : vector<2x32xf32>
    %832 = math.exp %831 : vector<2x32xf32>
    %cst_281 = arith.constant 1.000000e+00 : f32
    %833 = vector.broadcast %cst_281 : f32 to vector<2x32xf32>
    %834 = arith.addf %833, %832 : vector<2x32xf32>
    %cst_282 = arith.constant 1.000000e+00 : f32
    %835 = vector.broadcast %cst_282 : f32 to vector<2x32xf32>
    %836 = arith.divf %835, %834 : vector<2x32xf32>
    %837 = vector.extract_strided_slice %820 {offsets = [0, 64], sizes = [2, 32], strides = [1, 1]} : vector<2x128xf32> to vector<2x32xf32>
    %838 = math.tanh %837 : vector<2x32xf32>
    %839 = vector.extract_strided_slice %820 {offsets = [0, 96], sizes = [2, 32], strides = [1, 1]} : vector<2x128xf32> to vector<2x32xf32>
    %cst_283 = arith.constant 0.000000e+00 : f32
    %840 = vector.broadcast %cst_283 : f32 to vector<2x32xf32>
    %841 = arith.subf %840, %839 : vector<2x32xf32>
    %842 = math.exp %841 : vector<2x32xf32>
    %cst_284 = arith.constant 1.000000e+00 : f32
    %843 = vector.broadcast %cst_284 : f32 to vector<2x32xf32>
    %844 = arith.addf %843, %842 : vector<2x32xf32>
    %cst_285 = arith.constant 1.000000e+00 : f32
    %845 = vector.broadcast %cst_285 : f32 to vector<2x32xf32>
    %846 = arith.divf %845, %844 : vector<2x32xf32>
    %847 = arith.mulf %836, %774 : vector<2x32xf32>
    %848 = arith.mulf %828, %838 : vector<2x32xf32>
    %849 = arith.addf %847, %848 : vector<2x32xf32>
    %850 = math.tanh %849 : vector<2x32xf32>
    %851 = arith.mulf %846, %850 : vector<2x32xf32>
    %cst_286 = arith.constant dense<0.000000e+00> : vector<2x32xf32>
    %852 = tpu.matmul %851, %614, %cst_286 {dimension_numbers = #tpu.dot_dimension_numbers<[1], [0], [0], [1], [0, 0, 1, 1], [], []>} : vector<2x32xf32>, vector<32x32xf32>, vector<2x32xf32> -> vector<2x32xf32>
    %cst_287 = arith.constant dense<0.000000e+00> : vector<2x32xf32>
    %853 = tpu.matmul %849, %615, %cst_287 {dimension_numbers = #tpu.dot_dimension_numbers<[1], [0], [0], [1], [0, 0, 1, 1], [], []>} : vector<2x32xf32>, vector<32x32xf32>, vector<2x32xf32> -> vector<2x32xf32>
    %854 = vector.shape_cast %852 : vector<2x32xf32> to vector<2x1x32xf32>
    %855 = vector.shape_cast %853 : vector<2x32xf32> to vector<2x1x32xf32>
    %856 = arith.addf %854, %855 : vector<2x1x32xf32>
    %857 = vector.broadcast %856 : vector<2x1x32xf32> to vector<2x8x32xf32>
    %858 = arith.addf %857, %613 : vector<2x8x32xf32>
    %859 = math.tanh %858 : vector<2x8x32xf32>
    %860 = vector.shape_cast %616 : vector<1x32xf32> to vector<1x1x32xf32>
    %861 = vector.broadcast %860 : vector<1x1x32xf32> to vector<2x8x32xf32>
    %862 = arith.mulf %859, %861 : vector<2x8x32xf32>
    %cst_288 = arith.constant dense<0.000000e+00> : vector<2x8xf32>
    %863 = vector.multi_reduction <add>, %862, %cst_288 [2] : vector<2x8x32xf32> to vector<2x8xf32>
    %864 = vector.broadcast %617 : vector<1x1xf32> to vector<2x8xf32>
    %865 = arith.addf %863, %864 : vector<2x8xf32>
    %cst_289 = arith.constant dense<0xFF800000> : vector<2xf32>
    %866 = vector.multi_reduction <maximumf>, %865, %cst_289 [1] : vector<2x8xf32> to vector<2xf32>
    %867 = vector.shape_cast %866 : vector<2xf32> to vector<2x1xf32>
    %868 = vector.broadcast %867 : vector<2x1xf32> to vector<2x8xf32>
    %869 = arith.subf %865, %868 : vector<2x8xf32>
    %870 = math.exp %869 : vector<2x8xf32>
    %cst_290 = arith.constant dense<0.000000e+00> : vector<2xf32>
    %871 = vector.multi_reduction <add>, %870, %cst_290 [1] : vector<2x8xf32> to vector<2xf32>
    %872 = vector.shape_cast %871 : vector<2xf32> to vector<2x1xf32>
    %873 = vector.broadcast %872 : vector<2x1xf32> to vector<2x8xf32>
    %874 = arith.divf %870, %873 : vector<2x8xf32>
    %875 = vector.shape_cast %874 : vector<2x8xf32> to vector<2x8x1xf32>
    %876 = vector.broadcast %875 : vector<2x8x1xf32> to vector<2x8x32xf32>
    %877 = arith.mulf %876, %605 : vector<2x8x32xf32>
    %cst_291 = arith.constant dense<0.000000e+00> : vector<2x32xf32>
    %878 = vector.multi_reduction <add>, %877, %cst_291 [1] : vector<2x8x32xf32> to vector<2x32xf32>
    %879 = vector.extract_strided_slice %624 {offsets = [0, 3], sizes = [2, 1], strides = [1, 1]} : vector<2x8xf32> to vector<2x1xf32>
    %880 = vector.broadcast %618 : vector<1x32xf32> to vector<2x32xf32>
    %881 = arith.mulf %878, %880 : vector<2x32xf32>
    %cst_292 = arith.constant dense<0.000000e+00> : vector<2xf32>
    %882 = vector.multi_reduction <add>, %881, %cst_292 [1] : vector<2x32xf32> to vector<2xf32>
    %883 = vector.shape_cast %882 : vector<2xf32> to vector<2x1xf32>
    %884 = vector.broadcast %619 : vector<1x1xf32> to vector<2x1xf32>
    %885 = arith.mulf %879, %884 : vector<2x1xf32>
    %886 = arith.addf %883, %885 : vector<2x1xf32>
    %887 = vector.broadcast %620 : vector<1x1xf32> to vector<2x1xf32>
    %888 = arith.addf %886, %887 : vector<2x1xf32>
    %889 = vector.broadcast %888 : vector<2x1xf32> to vector<2x128xf32>
    %890 = vector.broadcast %621 : vector<1x128xf32> to vector<2x128xf32>
    %891 = arith.mulf %889, %890 : vector<2x128xf32>
    %cst_293 = arith.constant dense<0.000000e+00> : vector<2x128xf32>
    %892 = tpu.matmul %851, %622, %cst_293 {dimension_numbers = #tpu.dot_dimension_numbers<[1], [0], [0], [1], [0, 0, 1, 1], [], []>} : vector<2x32xf32>, vector<32x128xf32>, vector<2x128xf32> -> vector<2x128xf32>
    %893 = arith.addf %891, %892 : vector<2x128xf32>
    %894 = vector.broadcast %623 : vector<1x128xf32> to vector<2x128xf32>
    %895 = arith.addf %893, %894 : vector<2x128xf32>
    %896 = vector.extract_strided_slice %895 {offsets = [0, 0], sizes = [2, 32], strides = [1, 1]} : vector<2x128xf32> to vector<2x32xf32>
    %cst_294 = arith.constant 0.000000e+00 : f32
    %897 = vector.broadcast %cst_294 : f32 to vector<2x32xf32>
    %898 = arith.subf %897, %896 : vector<2x32xf32>
    %899 = math.exp %898 : vector<2x32xf32>
    %cst_295 = arith.constant 1.000000e+00 : f32
    %900 = vector.broadcast %cst_295 : f32 to vector<2x32xf32>
    %901 = arith.addf %900, %899 : vector<2x32xf32>
    %cst_296 = arith.constant 1.000000e+00 : f32
    %902 = vector.broadcast %cst_296 : f32 to vector<2x32xf32>
    %903 = arith.divf %902, %901 : vector<2x32xf32>
    %904 = vector.extract_strided_slice %895 {offsets = [0, 32], sizes = [2, 32], strides = [1, 1]} : vector<2x128xf32> to vector<2x32xf32>
    %cst_297 = arith.constant 0.000000e+00 : f32
    %905 = vector.broadcast %cst_297 : f32 to vector<2x32xf32>
    %906 = arith.subf %905, %904 : vector<2x32xf32>
    %907 = math.exp %906 : vector<2x32xf32>
    %cst_298 = arith.constant 1.000000e+00 : f32
    %908 = vector.broadcast %cst_298 : f32 to vector<2x32xf32>
    %909 = arith.addf %908, %907 : vector<2x32xf32>
    %cst_299 = arith.constant 1.000000e+00 : f32
    %910 = vector.broadcast %cst_299 : f32 to vector<2x32xf32>
    %911 = arith.divf %910, %909 : vector<2x32xf32>
    %912 = vector.extract_strided_slice %895 {offsets = [0, 64], sizes = [2, 32], strides = [1, 1]} : vector<2x128xf32> to vector<2x32xf32>
    %913 = math.tanh %912 : vector<2x32xf32>
    %914 = vector.extract_strided_slice %895 {offsets = [0, 96], sizes = [2, 32], strides = [1, 1]} : vector<2x128xf32> to vector<2x32xf32>
    %cst_300 = arith.constant 0.000000e+00 : f32
    %915 = vector.broadcast %cst_300 : f32 to vector<2x32xf32>
    %916 = arith.subf %915, %914 : vector<2x32xf32>
    %917 = math.exp %916 : vector<2x32xf32>
    %cst_301 = arith.constant 1.000000e+00 : f32
    %918 = vector.broadcast %cst_301 : f32 to vector<2x32xf32>
    %919 = arith.addf %918, %917 : vector<2x32xf32>
    %cst_302 = arith.constant 1.000000e+00 : f32
    %920 = vector.broadcast %cst_302 : f32 to vector<2x32xf32>
    %921 = arith.divf %920, %919 : vector<2x32xf32>
    %922 = arith.mulf %911, %849 : vector<2x32xf32>
    %923 = arith.mulf %903, %913 : vector<2x32xf32>
    %924 = arith.addf %922, %923 : vector<2x32xf32>
    %925 = math.tanh %924 : vector<2x32xf32>
    %926 = arith.mulf %921, %925 : vector<2x32xf32>
    %cst_303 = arith.constant dense<0.000000e+00> : vector<2x32xf32>
    %927 = tpu.matmul %926, %614, %cst_303 {dimension_numbers = #tpu.dot_dimension_numbers<[1], [0], [0], [1], [0, 0, 1, 1], [], []>} : vector<2x32xf32>, vector<32x32xf32>, vector<2x32xf32> -> vector<2x32xf32>
    %cst_304 = arith.constant dense<0.000000e+00> : vector<2x32xf32>
    %928 = tpu.matmul %924, %615, %cst_304 {dimension_numbers = #tpu.dot_dimension_numbers<[1], [0], [0], [1], [0, 0, 1, 1], [], []>} : vector<2x32xf32>, vector<32x32xf32>, vector<2x32xf32> -> vector<2x32xf32>
    %929 = vector.shape_cast %927 : vector<2x32xf32> to vector<2x1x32xf32>
    %930 = vector.shape_cast %928 : vector<2x32xf32> to vector<2x1x32xf32>
    %931 = arith.addf %929, %930 : vector<2x1x32xf32>
    %932 = vector.broadcast %931 : vector<2x1x32xf32> to vector<2x8x32xf32>
    %933 = arith.addf %932, %613 : vector<2x8x32xf32>
    %934 = math.tanh %933 : vector<2x8x32xf32>
    %935 = vector.shape_cast %616 : vector<1x32xf32> to vector<1x1x32xf32>
    %936 = vector.broadcast %935 : vector<1x1x32xf32> to vector<2x8x32xf32>
    %937 = arith.mulf %934, %936 : vector<2x8x32xf32>
    %cst_305 = arith.constant dense<0.000000e+00> : vector<2x8xf32>
    %938 = vector.multi_reduction <add>, %937, %cst_305 [2] : vector<2x8x32xf32> to vector<2x8xf32>
    %939 = vector.broadcast %617 : vector<1x1xf32> to vector<2x8xf32>
    %940 = arith.addf %938, %939 : vector<2x8xf32>
    %cst_306 = arith.constant dense<0xFF800000> : vector<2xf32>
    %941 = vector.multi_reduction <maximumf>, %940, %cst_306 [1] : vector<2x8xf32> to vector<2xf32>
    %942 = vector.shape_cast %941 : vector<2xf32> to vector<2x1xf32>
    %943 = vector.broadcast %942 : vector<2x1xf32> to vector<2x8xf32>
    %944 = arith.subf %940, %943 : vector<2x8xf32>
    %945 = math.exp %944 : vector<2x8xf32>
    %cst_307 = arith.constant dense<0.000000e+00> : vector<2xf32>
    %946 = vector.multi_reduction <add>, %945, %cst_307 [1] : vector<2x8xf32> to vector<2xf32>
    %947 = vector.shape_cast %946 : vector<2xf32> to vector<2x1xf32>
    %948 = vector.broadcast %947 : vector<2x1xf32> to vector<2x8xf32>
    %949 = arith.divf %945, %948 : vector<2x8xf32>
    %950 = vector.shape_cast %949 : vector<2x8xf32> to vector<2x8x1xf32>
    %951 = vector.broadcast %950 : vector<2x8x1xf32> to vector<2x8x32xf32>
    %952 = arith.mulf %951, %605 : vector<2x8x32xf32>
    %cst_308 = arith.constant dense<0.000000e+00> : vector<2x32xf32>
    %953 = vector.multi_reduction <add>, %952, %cst_308 [1] : vector<2x8x32xf32> to vector<2x32xf32>
    %954 = vector.extract_strided_slice %624 {offsets = [0, 4], sizes = [2, 1], strides = [1, 1]} : vector<2x8xf32> to vector<2x1xf32>
    %955 = vector.broadcast %618 : vector<1x32xf32> to vector<2x32xf32>
    %956 = arith.mulf %953, %955 : vector<2x32xf32>
    %cst_309 = arith.constant dense<0.000000e+00> : vector<2xf32>
    %957 = vector.multi_reduction <add>, %956, %cst_309 [1] : vector<2x32xf32> to vector<2xf32>
    %958 = vector.shape_cast %957 : vector<2xf32> to vector<2x1xf32>
    %959 = vector.broadcast %619 : vector<1x1xf32> to vector<2x1xf32>
    %960 = arith.mulf %954, %959 : vector<2x1xf32>
    %961 = arith.addf %958, %960 : vector<2x1xf32>
    %962 = vector.broadcast %620 : vector<1x1xf32> to vector<2x1xf32>
    %963 = arith.addf %961, %962 : vector<2x1xf32>
    %964 = vector.broadcast %963 : vector<2x1xf32> to vector<2x128xf32>
    %965 = vector.broadcast %621 : vector<1x128xf32> to vector<2x128xf32>
    %966 = arith.mulf %964, %965 : vector<2x128xf32>
    %cst_310 = arith.constant dense<0.000000e+00> : vector<2x128xf32>
    %967 = tpu.matmul %926, %622, %cst_310 {dimension_numbers = #tpu.dot_dimension_numbers<[1], [0], [0], [1], [0, 0, 1, 1], [], []>} : vector<2x32xf32>, vector<32x128xf32>, vector<2x128xf32> -> vector<2x128xf32>
    %968 = arith.addf %966, %967 : vector<2x128xf32>
    %969 = vector.broadcast %623 : vector<1x128xf32> to vector<2x128xf32>
    %970 = arith.addf %968, %969 : vector<2x128xf32>
    %971 = vector.extract_strided_slice %970 {offsets = [0, 0], sizes = [2, 32], strides = [1, 1]} : vector<2x128xf32> to vector<2x32xf32>
    %cst_311 = arith.constant 0.000000e+00 : f32
    %972 = vector.broadcast %cst_311 : f32 to vector<2x32xf32>
    %973 = arith.subf %972, %971 : vector<2x32xf32>
    %974 = math.exp %973 : vector<2x32xf32>
    %cst_312 = arith.constant 1.000000e+00 : f32
    %975 = vector.broadcast %cst_312 : f32 to vector<2x32xf32>
    %976 = arith.addf %975, %974 : vector<2x32xf32>
    %cst_313 = arith.constant 1.000000e+00 : f32
    %977 = vector.broadcast %cst_313 : f32 to vector<2x32xf32>
    %978 = arith.divf %977, %976 : vector<2x32xf32>
    %979 = vector.extract_strided_slice %970 {offsets = [0, 32], sizes = [2, 32], strides = [1, 1]} : vector<2x128xf32> to vector<2x32xf32>
    %cst_314 = arith.constant 0.000000e+00 : f32
    %980 = vector.broadcast %cst_314 : f32 to vector<2x32xf32>
    %981 = arith.subf %980, %979 : vector<2x32xf32>
    %982 = math.exp %981 : vector<2x32xf32>
    %cst_315 = arith.constant 1.000000e+00 : f32
    %983 = vector.broadcast %cst_315 : f32 to vector<2x32xf32>
    %984 = arith.addf %983, %982 : vector<2x32xf32>
    %cst_316 = arith.constant 1.000000e+00 : f32
    %985 = vector.broadcast %cst_316 : f32 to vector<2x32xf32>
    %986 = arith.divf %985, %984 : vector<2x32xf32>
    %987 = vector.extract_strided_slice %970 {offsets = [0, 64], sizes = [2, 32], strides = [1, 1]} : vector<2x128xf32> to vector<2x32xf32>
    %988 = math.tanh %987 : vector<2x32xf32>
    %989 = vector.extract_strided_slice %970 {offsets = [0, 96], sizes = [2, 32], strides = [1, 1]} : vector<2x128xf32> to vector<2x32xf32>
    %cst_317 = arith.constant 0.000000e+00 : f32
    %990 = vector.broadcast %cst_317 : f32 to vector<2x32xf32>
    %991 = arith.subf %990, %989 : vector<2x32xf32>
    %992 = math.exp %991 : vector<2x32xf32>
    %cst_318 = arith.constant 1.000000e+00 : f32
    %993 = vector.broadcast %cst_318 : f32 to vector<2x32xf32>
    %994 = arith.addf %993, %992 : vector<2x32xf32>
    %cst_319 = arith.constant 1.000000e+00 : f32
    %995 = vector.broadcast %cst_319 : f32 to vector<2x32xf32>
    %996 = arith.divf %995, %994 : vector<2x32xf32>
    %997 = arith.mulf %986, %924 : vector<2x32xf32>
    %998 = arith.mulf %978, %988 : vector<2x32xf32>
    %999 = arith.addf %997, %998 : vector<2x32xf32>
    %1000 = math.tanh %999 : vector<2x32xf32>
    %1001 = arith.mulf %996, %1000 : vector<2x32xf32>
    %cst_320 = arith.constant dense<0.000000e+00> : vector<2x32xf32>
    %1002 = tpu.matmul %1001, %614, %cst_320 {dimension_numbers = #tpu.dot_dimension_numbers<[1], [0], [0], [1], [0, 0, 1, 1], [], []>} : vector<2x32xf32>, vector<32x32xf32>, vector<2x32xf32> -> vector<2x32xf32>
    %cst_321 = arith.constant dense<0.000000e+00> : vector<2x32xf32>
    %1003 = tpu.matmul %999, %615, %cst_321 {dimension_numbers = #tpu.dot_dimension_numbers<[1], [0], [0], [1], [0, 0, 1, 1], [], []>} : vector<2x32xf32>, vector<32x32xf32>, vector<2x32xf32> -> vector<2x32xf32>
    %1004 = vector.shape_cast %1002 : vector<2x32xf32> to vector<2x1x32xf32>
    %1005 = vector.shape_cast %1003 : vector<2x32xf32> to vector<2x1x32xf32>
    %1006 = arith.addf %1004, %1005 : vector<2x1x32xf32>
    %1007 = vector.broadcast %1006 : vector<2x1x32xf32> to vector<2x8x32xf32>
    %1008 = arith.addf %1007, %613 : vector<2x8x32xf32>
    %1009 = math.tanh %1008 : vector<2x8x32xf32>
    %1010 = vector.shape_cast %616 : vector<1x32xf32> to vector<1x1x32xf32>
    %1011 = vector.broadcast %1010 : vector<1x1x32xf32> to vector<2x8x32xf32>
    %1012 = arith.mulf %1009, %1011 : vector<2x8x32xf32>
    %cst_322 = arith.constant dense<0.000000e+00> : vector<2x8xf32>
    %1013 = vector.multi_reduction <add>, %1012, %cst_322 [2] : vector<2x8x32xf32> to vector<2x8xf32>
    %1014 = vector.broadcast %617 : vector<1x1xf32> to vector<2x8xf32>
    %1015 = arith.addf %1013, %1014 : vector<2x8xf32>
    %cst_323 = arith.constant dense<0xFF800000> : vector<2xf32>
    %1016 = vector.multi_reduction <maximumf>, %1015, %cst_323 [1] : vector<2x8xf32> to vector<2xf32>
    %1017 = vector.shape_cast %1016 : vector<2xf32> to vector<2x1xf32>
    %1018 = vector.broadcast %1017 : vector<2x1xf32> to vector<2x8xf32>
    %1019 = arith.subf %1015, %1018 : vector<2x8xf32>
    %1020 = math.exp %1019 : vector<2x8xf32>
    %cst_324 = arith.constant dense<0.000000e+00> : vector<2xf32>
    %1021 = vector.multi_reduction <add>, %1020, %cst_324 [1] : vector<2x8xf32> to vector<2xf32>
    %1022 = vector.shape_cast %1021 : vector<2xf32> to vector<2x1xf32>
    %1023 = vector.broadcast %1022 : vector<2x1xf32> to vector<2x8xf32>
    %1024 = arith.divf %1020, %1023 : vector<2x8xf32>
    %1025 = vector.shape_cast %1024 : vector<2x8xf32> to vector<2x8x1xf32>
    %1026 = vector.broadcast %1025 : vector<2x8x1xf32> to vector<2x8x32xf32>
    %1027 = arith.mulf %1026, %605 : vector<2x8x32xf32>
    %cst_325 = arith.constant dense<0.000000e+00> : vector<2x32xf32>
    %1028 = vector.multi_reduction <add>, %1027, %cst_325 [1] : vector<2x8x32xf32> to vector<2x32xf32>
    %1029 = vector.extract_strided_slice %624 {offsets = [0, 5], sizes = [2, 1], strides = [1, 1]} : vector<2x8xf32> to vector<2x1xf32>
    %1030 = vector.broadcast %618 : vector<1x32xf32> to vector<2x32xf32>
    %1031 = arith.mulf %1028, %1030 : vector<2x32xf32>
    %cst_326 = arith.constant dense<0.000000e+00> : vector<2xf32>
    %1032 = vector.multi_reduction <add>, %1031, %cst_326 [1] : vector<2x32xf32> to vector<2xf32>
    %1033 = vector.shape_cast %1032 : vector<2xf32> to vector<2x1xf32>
    %1034 = vector.broadcast %619 : vector<1x1xf32> to vector<2x1xf32>
    %1035 = arith.mulf %1029, %1034 : vector<2x1xf32>
    %1036 = arith.addf %1033, %1035 : vector<2x1xf32>
    %1037 = vector.broadcast %620 : vector<1x1xf32> to vector<2x1xf32>
    %1038 = arith.addf %1036, %1037 : vector<2x1xf32>
    %1039 = vector.broadcast %1038 : vector<2x1xf32> to vector<2x128xf32>
    %1040 = vector.broadcast %621 : vector<1x128xf32> to vector<2x128xf32>
    %1041 = arith.mulf %1039, %1040 : vector<2x128xf32>
    %cst_327 = arith.constant dense<0.000000e+00> : vector<2x128xf32>
    %1042 = tpu.matmul %1001, %622, %cst_327 {dimension_numbers = #tpu.dot_dimension_numbers<[1], [0], [0], [1], [0, 0, 1, 1], [], []>} : vector<2x32xf32>, vector<32x128xf32>, vector<2x128xf32> -> vector<2x128xf32>
    %1043 = arith.addf %1041, %1042 : vector<2x128xf32>
    %1044 = vector.broadcast %623 : vector<1x128xf32> to vector<2x128xf32>
    %1045 = arith.addf %1043, %1044 : vector<2x128xf32>
    %1046 = vector.extract_strided_slice %1045 {offsets = [0, 0], sizes = [2, 32], strides = [1, 1]} : vector<2x128xf32> to vector<2x32xf32>
    %cst_328 = arith.constant 0.000000e+00 : f32
    %1047 = vector.broadcast %cst_328 : f32 to vector<2x32xf32>
    %1048 = arith.subf %1047, %1046 : vector<2x32xf32>
    %1049 = math.exp %1048 : vector<2x32xf32>
    %cst_329 = arith.constant 1.000000e+00 : f32
    %1050 = vector.broadcast %cst_329 : f32 to vector<2x32xf32>
    %1051 = arith.addf %1050, %1049 : vector<2x32xf32>
    %cst_330 = arith.constant 1.000000e+00 : f32
    %1052 = vector.broadcast %cst_330 : f32 to vector<2x32xf32>
    %1053 = arith.divf %1052, %1051 : vector<2x32xf32>
    %1054 = vector.extract_strided_slice %1045 {offsets = [0, 32], sizes = [2, 32], strides = [1, 1]} : vector<2x128xf32> to vector<2x32xf32>
    %cst_331 = arith.constant 0.000000e+00 : f32
    %1055 = vector.broadcast %cst_331 : f32 to vector<2x32xf32>
    %1056 = arith.subf %1055, %1054 : vector<2x32xf32>
    %1057 = math.exp %1056 : vector<2x32xf32>
    %cst_332 = arith.constant 1.000000e+00 : f32
    %1058 = vector.broadcast %cst_332 : f32 to vector<2x32xf32>
    %1059 = arith.addf %1058, %1057 : vector<2x32xf32>
    %cst_333 = arith.constant 1.000000e+00 : f32
    %1060 = vector.broadcast %cst_333 : f32 to vector<2x32xf32>
    %1061 = arith.divf %1060, %1059 : vector<2x32xf32>
    %1062 = vector.extract_strided_slice %1045 {offsets = [0, 64], sizes = [2, 32], strides = [1, 1]} : vector<2x128xf32> to vector<2x32xf32>
    %1063 = math.tanh %1062 : vector<2x32xf32>
    %1064 = vector.extract_strided_slice %1045 {offsets = [0, 96], sizes = [2, 32], strides = [1, 1]} : vector<2x128xf32> to vector<2x32xf32>
    %cst_334 = arith.constant 0.000000e+00 : f32
    %1065 = vector.broadcast %cst_334 : f32 to vector<2x32xf32>
    %1066 = arith.subf %1065, %1064 : vector<2x32xf32>
    %1067 = math.exp %1066 : vector<2x32xf32>
    %cst_335 = arith.constant 1.000000e+00 : f32
    %1068 = vector.broadcast %cst_335 : f32 to vector<2x32xf32>
    %1069 = arith.addf %1068, %1067 : vector<2x32xf32>
    %cst_336 = arith.constant 1.000000e+00 : f32
    %1070 = vector.broadcast %cst_336 : f32 to vector<2x32xf32>
    %1071 = arith.divf %1070, %1069 : vector<2x32xf32>
    %1072 = arith.mulf %1061, %999 : vector<2x32xf32>
    %1073 = arith.mulf %1053, %1063 : vector<2x32xf32>
    %1074 = arith.addf %1072, %1073 : vector<2x32xf32>
    %1075 = math.tanh %1074 : vector<2x32xf32>
    %1076 = arith.mulf %1071, %1075 : vector<2x32xf32>
    %cst_337 = arith.constant dense<0.000000e+00> : vector<2x32xf32>
    %1077 = tpu.matmul %1076, %614, %cst_337 {dimension_numbers = #tpu.dot_dimension_numbers<[1], [0], [0], [1], [0, 0, 1, 1], [], []>} : vector<2x32xf32>, vector<32x32xf32>, vector<2x32xf32> -> vector<2x32xf32>
    %cst_338 = arith.constant dense<0.000000e+00> : vector<2x32xf32>
    %1078 = tpu.matmul %1074, %615, %cst_338 {dimension_numbers = #tpu.dot_dimension_numbers<[1], [0], [0], [1], [0, 0, 1, 1], [], []>} : vector<2x32xf32>, vector<32x32xf32>, vector<2x32xf32> -> vector<2x32xf32>
    %1079 = vector.shape_cast %1077 : vector<2x32xf32> to vector<2x1x32xf32>
    %1080 = vector.shape_cast %1078 : vector<2x32xf32> to vector<2x1x32xf32>
    %1081 = arith.addf %1079, %1080 : vector<2x1x32xf32>
    %1082 = vector.broadcast %1081 : vector<2x1x32xf32> to vector<2x8x32xf32>
    %1083 = arith.addf %1082, %613 : vector<2x8x32xf32>
    %1084 = math.tanh %1083 : vector<2x8x32xf32>
    %1085 = vector.shape_cast %616 : vector<1x32xf32> to vector<1x1x32xf32>
    %1086 = vector.broadcast %1085 : vector<1x1x32xf32> to vector<2x8x32xf32>
    %1087 = arith.mulf %1084, %1086 : vector<2x8x32xf32>
    %cst_339 = arith.constant dense<0.000000e+00> : vector<2x8xf32>
    %1088 = vector.multi_reduction <add>, %1087, %cst_339 [2] : vector<2x8x32xf32> to vector<2x8xf32>
    %1089 = vector.broadcast %617 : vector<1x1xf32> to vector<2x8xf32>
    %1090 = arith.addf %1088, %1089 : vector<2x8xf32>
    %cst_340 = arith.constant dense<0xFF800000> : vector<2xf32>
    %1091 = vector.multi_reduction <maximumf>, %1090, %cst_340 [1] : vector<2x8xf32> to vector<2xf32>
    %1092 = vector.shape_cast %1091 : vector<2xf32> to vector<2x1xf32>
    %1093 = vector.broadcast %1092 : vector<2x1xf32> to vector<2x8xf32>
    %1094 = arith.subf %1090, %1093 : vector<2x8xf32>
    %1095 = math.exp %1094 : vector<2x8xf32>
    %cst_341 = arith.constant dense<0.000000e+00> : vector<2xf32>
    %1096 = vector.multi_reduction <add>, %1095, %cst_341 [1] : vector<2x8xf32> to vector<2xf32>
    %1097 = vector.shape_cast %1096 : vector<2xf32> to vector<2x1xf32>
    %1098 = vector.broadcast %1097 : vector<2x1xf32> to vector<2x8xf32>
    %1099 = arith.divf %1095, %1098 : vector<2x8xf32>
    %1100 = vector.shape_cast %1099 : vector<2x8xf32> to vector<2x8x1xf32>
    %1101 = vector.broadcast %1100 : vector<2x8x1xf32> to vector<2x8x32xf32>
    %1102 = arith.mulf %1101, %605 : vector<2x8x32xf32>
    %cst_342 = arith.constant dense<0.000000e+00> : vector<2x32xf32>
    %1103 = vector.multi_reduction <add>, %1102, %cst_342 [1] : vector<2x8x32xf32> to vector<2x32xf32>
    %1104 = vector.extract_strided_slice %624 {offsets = [0, 6], sizes = [2, 1], strides = [1, 1]} : vector<2x8xf32> to vector<2x1xf32>
    %1105 = vector.broadcast %618 : vector<1x32xf32> to vector<2x32xf32>
    %1106 = arith.mulf %1103, %1105 : vector<2x32xf32>
    %cst_343 = arith.constant dense<0.000000e+00> : vector<2xf32>
    %1107 = vector.multi_reduction <add>, %1106, %cst_343 [1] : vector<2x32xf32> to vector<2xf32>
    %1108 = vector.shape_cast %1107 : vector<2xf32> to vector<2x1xf32>
    %1109 = vector.broadcast %619 : vector<1x1xf32> to vector<2x1xf32>
    %1110 = arith.mulf %1104, %1109 : vector<2x1xf32>
    %1111 = arith.addf %1108, %1110 : vector<2x1xf32>
    %1112 = vector.broadcast %620 : vector<1x1xf32> to vector<2x1xf32>
    %1113 = arith.addf %1111, %1112 : vector<2x1xf32>
    %1114 = vector.broadcast %1113 : vector<2x1xf32> to vector<2x128xf32>
    %1115 = vector.broadcast %621 : vector<1x128xf32> to vector<2x128xf32>
    %1116 = arith.mulf %1114, %1115 : vector<2x128xf32>
    %cst_344 = arith.constant dense<0.000000e+00> : vector<2x128xf32>
    %1117 = tpu.matmul %1076, %622, %cst_344 {dimension_numbers = #tpu.dot_dimension_numbers<[1], [0], [0], [1], [0, 0, 1, 1], [], []>} : vector<2x32xf32>, vector<32x128xf32>, vector<2x128xf32> -> vector<2x128xf32>
    %1118 = arith.addf %1116, %1117 : vector<2x128xf32>
    %1119 = vector.broadcast %623 : vector<1x128xf32> to vector<2x128xf32>
    %1120 = arith.addf %1118, %1119 : vector<2x128xf32>
    %1121 = vector.extract_strided_slice %1120 {offsets = [0, 0], sizes = [2, 32], strides = [1, 1]} : vector<2x128xf32> to vector<2x32xf32>
    %cst_345 = arith.constant 0.000000e+00 : f32
    %1122 = vector.broadcast %cst_345 : f32 to vector<2x32xf32>
    %1123 = arith.subf %1122, %1121 : vector<2x32xf32>
    %1124 = math.exp %1123 : vector<2x32xf32>
    %cst_346 = arith.constant 1.000000e+00 : f32
    %1125 = vector.broadcast %cst_346 : f32 to vector<2x32xf32>
    %1126 = arith.addf %1125, %1124 : vector<2x32xf32>
    %cst_347 = arith.constant 1.000000e+00 : f32
    %1127 = vector.broadcast %cst_347 : f32 to vector<2x32xf32>
    %1128 = arith.divf %1127, %1126 : vector<2x32xf32>
    %1129 = vector.extract_strided_slice %1120 {offsets = [0, 32], sizes = [2, 32], strides = [1, 1]} : vector<2x128xf32> to vector<2x32xf32>
    %cst_348 = arith.constant 0.000000e+00 : f32
    %1130 = vector.broadcast %cst_348 : f32 to vector<2x32xf32>
    %1131 = arith.subf %1130, %1129 : vector<2x32xf32>
    %1132 = math.exp %1131 : vector<2x32xf32>
    %cst_349 = arith.constant 1.000000e+00 : f32
    %1133 = vector.broadcast %cst_349 : f32 to vector<2x32xf32>
    %1134 = arith.addf %1133, %1132 : vector<2x32xf32>
    %cst_350 = arith.constant 1.000000e+00 : f32
    %1135 = vector.broadcast %cst_350 : f32 to vector<2x32xf32>
    %1136 = arith.divf %1135, %1134 : vector<2x32xf32>
    %1137 = vector.extract_strided_slice %1120 {offsets = [0, 64], sizes = [2, 32], strides = [1, 1]} : vector<2x128xf32> to vector<2x32xf32>
    %1138 = math.tanh %1137 : vector<2x32xf32>
    %1139 = vector.extract_strided_slice %1120 {offsets = [0, 96], sizes = [2, 32], strides = [1, 1]} : vector<2x128xf32> to vector<2x32xf32>
    %cst_351 = arith.constant 0.000000e+00 : f32
    %1140 = vector.broadcast %cst_351 : f32 to vector<2x32xf32>
    %1141 = arith.subf %1140, %1139 : vector<2x32xf32>
    %1142 = math.exp %1141 : vector<2x32xf32>
    %cst_352 = arith.constant 1.000000e+00 : f32
    %1143 = vector.broadcast %cst_352 : f32 to vector<2x32xf32>
    %1144 = arith.addf %1143, %1142 : vector<2x32xf32>
    %cst_353 = arith.constant 1.000000e+00 : f32
    %1145 = vector.broadcast %cst_353 : f32 to vector<2x32xf32>
    %1146 = arith.divf %1145, %1144 : vector<2x32xf32>
    %1147 = arith.mulf %1136, %1074 : vector<2x32xf32>
    %1148 = arith.mulf %1128, %1138 : vector<2x32xf32>
    %1149 = arith.addf %1147, %1148 : vector<2x32xf32>
    %1150 = math.tanh %1149 : vector<2x32xf32>
    %1151 = arith.mulf %1146, %1150 : vector<2x32xf32>
    %cst_354 = arith.constant dense<0.000000e+00> : vector<2x32xf32>
    %1152 = tpu.matmul %1151, %614, %cst_354 {dimension_numbers = #tpu.dot_dimension_numbers<[1], [0], [0], [1], [0, 0, 1, 1], [], []>} : vector<2x32xf32>, vector<32x32xf32>, vector<2x32xf32> -> vector<2x32xf32>
    %cst_355 = arith.constant dense<0.000000e+00> : vector<2x32xf32>
    %1153 = tpu.matmul %1149, %615, %cst_355 {dimension_numbers = #tpu.dot_dimension_numbers<[1], [0], [0], [1], [0, 0, 1, 1], [], []>} : vector<2x32xf32>, vector<32x32xf32>, vector<2x32xf32> -> vector<2x32xf32>
    %1154 = vector.shape_cast %1152 : vector<2x32xf32> to vector<2x1x32xf32>
    %1155 = vector.shape_cast %1153 : vector<2x32xf32> to vector<2x1x32xf32>
    %1156 = arith.addf %1154, %1155 : vector<2x1x32xf32>
    %1157 = vector.broadcast %1156 : vector<2x1x32xf32> to vector<2x8x32xf32>
    %1158 = arith.addf %1157, %613 : vector<2x8x32xf32>
    %1159 = math.tanh %1158 : vector<2x8x32xf32>
    %1160 = vector.shape_cast %616 : vector<1x32xf32> to vector<1x1x32xf32>
    %1161 = vector.broadcast %1160 : vector<1x1x32xf32> to vector<2x8x32xf32>
    %1162 = arith.mulf %1159, %1161 : vector<2x8x32xf32>
    %cst_356 = arith.constant dense<0.000000e+00> : vector<2x8xf32>
    %1163 = vector.multi_reduction <add>, %1162, %cst_356 [2] : vector<2x8x32xf32> to vector<2x8xf32>
    %1164 = vector.broadcast %617 : vector<1x1xf32> to vector<2x8xf32>
    %1165 = arith.addf %1163, %1164 : vector<2x8xf32>
    %cst_357 = arith.constant dense<0xFF800000> : vector<2xf32>
    %1166 = vector.multi_reduction <maximumf>, %1165, %cst_357 [1] : vector<2x8xf32> to vector<2xf32>
    %1167 = vector.shape_cast %1166 : vector<2xf32> to vector<2x1xf32>
    %1168 = vector.broadcast %1167 : vector<2x1xf32> to vector<2x8xf32>
    %1169 = arith.subf %1165, %1168 : vector<2x8xf32>
    %1170 = math.exp %1169 : vector<2x8xf32>
    %cst_358 = arith.constant dense<0.000000e+00> : vector<2xf32>
    %1171 = vector.multi_reduction <add>, %1170, %cst_358 [1] : vector<2x8xf32> to vector<2xf32>
    %1172 = vector.shape_cast %1171 : vector<2xf32> to vector<2x1xf32>
    %1173 = vector.broadcast %1172 : vector<2x1xf32> to vector<2x8xf32>
    %1174 = arith.divf %1170, %1173 : vector<2x8xf32>
    %1175 = vector.shape_cast %1174 : vector<2x8xf32> to vector<2x8x1xf32>
    %1176 = vector.broadcast %1175 : vector<2x8x1xf32> to vector<2x8x32xf32>
    %1177 = arith.mulf %1176, %605 : vector<2x8x32xf32>
    %cst_359 = arith.constant dense<0.000000e+00> : vector<2x32xf32>
    %1178 = vector.multi_reduction <add>, %1177, %cst_359 [1] : vector<2x8x32xf32> to vector<2x32xf32>
    %1179 = vector.extract_strided_slice %624 {offsets = [0, 7], sizes = [2, 1], strides = [1, 1]} : vector<2x8xf32> to vector<2x1xf32>
    %1180 = vector.broadcast %618 : vector<1x32xf32> to vector<2x32xf32>
    %1181 = arith.mulf %1178, %1180 : vector<2x32xf32>
    %cst_360 = arith.constant dense<0.000000e+00> : vector<2xf32>
    %1182 = vector.multi_reduction <add>, %1181, %cst_360 [1] : vector<2x32xf32> to vector<2xf32>
    %1183 = vector.shape_cast %1182 : vector<2xf32> to vector<2x1xf32>
    %1184 = vector.broadcast %619 : vector<1x1xf32> to vector<2x1xf32>
    %1185 = arith.mulf %1179, %1184 : vector<2x1xf32>
    %1186 = arith.addf %1183, %1185 : vector<2x1xf32>
    %1187 = vector.broadcast %620 : vector<1x1xf32> to vector<2x1xf32>
    %1188 = arith.addf %1186, %1187 : vector<2x1xf32>
    %1189 = vector.broadcast %1188 : vector<2x1xf32> to vector<2x128xf32>
    %1190 = vector.broadcast %621 : vector<1x128xf32> to vector<2x128xf32>
    %1191 = arith.mulf %1189, %1190 : vector<2x128xf32>
    %cst_361 = arith.constant dense<0.000000e+00> : vector<2x128xf32>
    %1192 = tpu.matmul %1151, %622, %cst_361 {dimension_numbers = #tpu.dot_dimension_numbers<[1], [0], [0], [1], [0, 0, 1, 1], [], []>} : vector<2x32xf32>, vector<32x128xf32>, vector<2x128xf32> -> vector<2x128xf32>
    %1193 = arith.addf %1191, %1192 : vector<2x128xf32>
    %1194 = vector.broadcast %623 : vector<1x128xf32> to vector<2x128xf32>
    %1195 = arith.addf %1193, %1194 : vector<2x128xf32>
    %1196 = vector.extract_strided_slice %1195 {offsets = [0, 0], sizes = [2, 32], strides = [1, 1]} : vector<2x128xf32> to vector<2x32xf32>
    %cst_362 = arith.constant 0.000000e+00 : f32
    %1197 = vector.broadcast %cst_362 : f32 to vector<2x32xf32>
    %1198 = arith.subf %1197, %1196 : vector<2x32xf32>
    %1199 = math.exp %1198 : vector<2x32xf32>
    %cst_363 = arith.constant 1.000000e+00 : f32
    %1200 = vector.broadcast %cst_363 : f32 to vector<2x32xf32>
    %1201 = arith.addf %1200, %1199 : vector<2x32xf32>
    %cst_364 = arith.constant 1.000000e+00 : f32
    %1202 = vector.broadcast %cst_364 : f32 to vector<2x32xf32>
    %1203 = arith.divf %1202, %1201 : vector<2x32xf32>
    %1204 = vector.extract_strided_slice %1195 {offsets = [0, 32], sizes = [2, 32], strides = [1, 1]} : vector<2x128xf32> to vector<2x32xf32>
    %cst_365 = arith.constant 0.000000e+00 : f32
    %1205 = vector.broadcast %cst_365 : f32 to vector<2x32xf32>
    %1206 = arith.subf %1205, %1204 : vector<2x32xf32>
    %1207 = math.exp %1206 : vector<2x32xf32>
    %cst_366 = arith.constant 1.000000e+00 : f32
    %1208 = vector.broadcast %cst_366 : f32 to vector<2x32xf32>
    %1209 = arith.addf %1208, %1207 : vector<2x32xf32>
    %cst_367 = arith.constant 1.000000e+00 : f32
    %1210 = vector.broadcast %cst_367 : f32 to vector<2x32xf32>
    %1211 = arith.divf %1210, %1209 : vector<2x32xf32>
    %1212 = vector.extract_strided_slice %1195 {offsets = [0, 64], sizes = [2, 32], strides = [1, 1]} : vector<2x128xf32> to vector<2x32xf32>
    %1213 = math.tanh %1212 : vector<2x32xf32>
    %1214 = vector.extract_strided_slice %1195 {offsets = [0, 96], sizes = [2, 32], strides = [1, 1]} : vector<2x128xf32> to vector<2x32xf32>
    %cst_368 = arith.constant 0.000000e+00 : f32
    %1215 = vector.broadcast %cst_368 : f32 to vector<2x32xf32>
    %1216 = arith.subf %1215, %1214 : vector<2x32xf32>
    %1217 = math.exp %1216 : vector<2x32xf32>
    %cst_369 = arith.constant 1.000000e+00 : f32
    %1218 = vector.broadcast %cst_369 : f32 to vector<2x32xf32>
    %1219 = arith.addf %1218, %1217 : vector<2x32xf32>
    %cst_370 = arith.constant 1.000000e+00 : f32
    %1220 = vector.broadcast %cst_370 : f32 to vector<2x32xf32>
    %1221 = arith.divf %1220, %1219 : vector<2x32xf32>
    %1222 = arith.mulf %1211, %1149 : vector<2x32xf32>
    %1223 = arith.mulf %1203, %1213 : vector<2x32xf32>
    %1224 = arith.addf %1222, %1223 : vector<2x32xf32>
    %1225 = math.tanh %1224 : vector<2x32xf32>
    %1226 = arith.mulf %1221, %1225 : vector<2x32xf32>
    %1227 = vector.shape_cast %1226 : vector<2x32xf32> to vector<1x2x32xf32>
    %c0_371 = arith.constant 0 : index
    %c0_372 = arith.constant 0 : index
    %1228 = vector.load %arg6[%c0_371, %c0_372] : memref<32x96xf32, #tpu.memory_space<vmem>>, vector<32x96xf32>
    %c0_373 = arith.constant 0 : index
    %c0_374 = arith.constant 0 : index
    %1229 = vector.load %arg7[%c0_373, %c0_374] : memref<1x96xf32, #tpu.memory_space<vmem>>, vector<1x96xf32>
    %1230 = vector.shape_cast %1227 : vector<1x2x32xf32> to vector<2x32xf32>
    %cst_375 = arith.constant dense<0.000000e+00> : vector<2x96xf32>
    %1231 = tpu.matmul %1230, %1228, %cst_375 {dimension_numbers = #tpu.dot_dimension_numbers<[1], [0], [0], [1], [0, 0, 1, 1], [], []>} : vector<2x32xf32>, vector<32x96xf32>, vector<2x96xf32> -> vector<2x96xf32>
    %1232 = vector.broadcast %1229 : vector<1x96xf32> to vector<2x96xf32>
    %1233 = arith.addf %1231, %1232 : vector<2x96xf32>
    %1234 = vector.extract_strided_slice %1233 {offsets = [0, 0], sizes = [2, 32], strides = [1, 1]} : vector<2x96xf32> to vector<2x32xf32>
    %1235 = vector.shape_cast %1234 : vector<2x32xf32> to vector<1x2x32xf32>
    %1236 = vector.extract_strided_slice %1233 {offsets = [0, 32], sizes = [2, 32], strides = [1, 1]} : vector<2x96xf32> to vector<2x32xf32>
    %1237 = vector.shape_cast %1236 : vector<2x32xf32> to vector<1x2x32xf32>
    %1238 = vector.extract_strided_slice %1233 {offsets = [0, 64], sizes = [2, 32], strides = [1, 1]} : vector<2x96xf32> to vector<2x32xf32>
    %1239 = vector.shape_cast %1238 : vector<2x32xf32> to vector<1x2x32xf32>
    "tpu.trace_start"() <{level = 10 : i32, message = "bso,bto->bst"}> : () -> ()
    %cst_376 = arith.constant dense<0.000000e+00> : vector<1x2x2xf32>
    %1240 = tpu.matmul %1235, %1237, %cst_376 {dimension_numbers = #tpu.dot_dimension_numbers<[2], [2], [1], [1], [0, 0, 0, 1, 1, 1], [0], [0]>} : vector<1x2x32xf32>, vector<1x2x32xf32>, vector<1x2x2xf32> -> vector<1x2x2xf32>
    "tpu.trace_stop"() : () -> ()
    %cst_377 = arith.constant 0.176776692 : f32
    %1241 = vector.broadcast %cst_377 : f32 to vector<1x2x2xf32>
    %1242 = arith.mulf %1240, %1241 : vector<1x2x2xf32>
    %cst_378 = arith.constant dense<0xFF800000> : vector<1x2xf32>
    %1243 = vector.multi_reduction <maximumf>, %1242, %cst_378 [2] : vector<1x2x2xf32> to vector<1x2xf32>
    %1244 = vector.shape_cast %1243 : vector<1x2xf32> to vector<1x2x1xf32>
    %1245 = vector.broadcast %1244 : vector<1x2x1xf32> to vector<1x2x2xf32>
    %1246 = arith.subf %1242, %1245 : vector<1x2x2xf32>
    %1247 = math.exp %1246 : vector<1x2x2xf32>
    %cst_379 = arith.constant dense<0.000000e+00> : vector<1x2xf32>
    %1248 = vector.multi_reduction <add>, %1247, %cst_379 [2] : vector<1x2x2xf32> to vector<1x2xf32>
    %1249 = vector.shape_cast %1248 : vector<1x2xf32> to vector<1x2x1xf32>
    %1250 = vector.broadcast %1249 : vector<1x2x1xf32> to vector<1x2x2xf32>
    %1251 = arith.divf %1247, %1250 : vector<1x2x2xf32>
    "tpu.trace_start"() <{level = 10 : i32, message = "bst,bto->bso"}> : () -> ()
    %cst_380 = arith.constant dense<0.000000e+00> : vector<1x2x32xf32>
    %1252 = tpu.matmul %1251, %1239, %cst_380 {dimension_numbers = #tpu.dot_dimension_numbers<[2], [1], [1], [2], [0, 0, 0, 1, 1, 2], [0], [0]>} : vector<1x2x2xf32>, vector<1x2x32xf32>, vector<1x2x32xf32> -> vector<1x2x32xf32>
    "tpu.trace_stop"() : () -> ()
    %1253 = vector.shape_cast %1252 : vector<1x2x32xf32> to vector<2x32xf32>
    %c0_381 = arith.constant 0 : index
    %c0_382 = arith.constant 0 : index
    %1254 = memref.load %arg29[%c0_381, %c0_382] : memref<1x1xf32, #tpu.memory_space<smem>>
    %1255 = vector.broadcast %1254 : f32 to vector<2x32xf32>
    %1256 = arith.mulf %1255, %1253 : vector<2x32xf32>
    %c0_383 = arith.constant 0 : index
    %c0_384 = arith.constant 0 : index
    %1257 = memref.load %arg30[%c0_383, %c0_384] : memref<1x1xf32, #tpu.memory_space<smem>>
    %1258 = vector.broadcast %1257 : f32 to vector<2x32xf32>
    %1259 = arith.mulf %1258, %1226 : vector<2x32xf32>
    %1260 = arith.addf %1256, %1259 : vector<2x32xf32>
    %c0_385 = arith.constant 0 : index
    %c0_386 = arith.constant 0 : index
    %1261 = vector.load %arg31[%c0_385, %c0_386] : memref<32x32xf32, #tpu.memory_space<vmem>>, vector<32x32xf32>
    %cst_387 = arith.constant dense<0.000000e+00> : vector<2x32xf32>
    %1262 = tpu.matmul %1260, %1261, %cst_387 {dimension_numbers = #tpu.dot_dimension_numbers<[1], [0], [0], [1], [0, 0, 1, 1], [], []>} : vector<2x32xf32>, vector<32x32xf32>, vector<2x32xf32> -> vector<2x32xf32>
    %c0_388 = arith.constant 0 : index
    %c0_389 = arith.constant 0 : index
    %1263 = vector.load %arg32[%c0_388, %c0_389] : memref<1x32xf32, #tpu.memory_space<vmem>>, vector<1x32xf32>
    %1264 = vector.broadcast %1263 : vector<1x32xf32> to vector<2x32xf32>
    %1265 = arith.addf %1262, %1264 : vector<2x32xf32>
    %c0_390 = arith.constant 0 : index
    %c0_391 = arith.constant 0 : index
    %1266 = vector.load %arg33[%c0_390, %c0_391] : memref<1x32xf32, #tpu.memory_space<vmem>>, vector<1x32xf32>
    %1267 = vector.broadcast %1266 : vector<1x32xf32> to vector<2x32xf32>
    %1268 = arith.mulf %1265, %1267 : vector<2x32xf32>
    %cst_392 = arith.constant dense<0.000000e+00> : vector<2xf32>
    %1269 = vector.multi_reduction <add>, %1268, %cst_392 [1] : vector<2x32xf32> to vector<2xf32>
    %1270 = vector.shape_cast %1269 : vector<2xf32> to vector<2x1xf32>
    %c0_393 = arith.constant 0 : index
    %c0_394 = arith.constant 0 : index
    %1271 = vector.load %arg34[%c0_393, %c0_394] : memref<1x1xf32, #tpu.memory_space<vmem>>, vector<1x1xf32>
    %1272 = vector.broadcast %1271 : vector<1x1xf32> to vector<2x1xf32>
    %1273 = arith.addf %1270, %1272 : vector<2x1xf32>
    %cst_395 = arith.constant 0.000000e+00 : f32
    %1274 = vector.broadcast %cst_395 : f32 to vector<2x1xf32>
    %1275 = arith.subf %1274, %1273 : vector<2x1xf32>
    %1276 = math.exp %1275 : vector<2x1xf32>
    %cst_396 = arith.constant 1.000000e+00 : f32
    %1277 = vector.broadcast %cst_396 : f32 to vector<2x1xf32>
    %1278 = arith.addf %1277, %1276 : vector<2x1xf32>
    %cst_397 = arith.constant 1.000000e+00 : f32
    %1279 = vector.broadcast %cst_397 : f32 to vector<2x1xf32>
    %1280 = arith.divf %1279, %1278 : vector<2x1xf32>
    %c0_398 = arith.constant 0 : index
    %c0_399 = arith.constant 0 : index
    %1281 = vector.load %arg35[%c0_398, %c0_399] : memref<2x1xf32, #tpu.memory_space<vmem>>, vector<2x1xf32>
    tpu.vector_store %arg35[%c0_398, %c0_399], %1280 {strides = array<i32>} : memref<2x1xf32, #tpu.memory_space<vmem>>, vector<2x1xf32>,
    return
  }
}

</mosaic_0001>

<llo_original>
// kernel: darnn_forward.1
$region0: #{darnn_forward.1}
  #allocation0 [shape = 'u32[]', space=smem, size = 0x4, offset = 0x4, fixed_abs, tag = 'smem constant byte address 0x4 - core index']
  #allocation1 [shape = 'u32[72,128]{1,0:T(1,128)}', space=vmem, size = 0x9000, scoped, tag = 'internal scratch']
  #allocation2 [shape = 'f32[2,8,32]{2,1,0:T(8,128)}', space=vmem, size = 0x2000, scoped, tag = 'scratch operand']
  #allocation3 [shape = 'f32[1,1]{1,0:T(1,128)S(1)}', space=vmem, size = 0x200, scoped, tag = 'scoped memory for darnn_forward.1']
  #allocation4 [shape = 'f32[1,1]{1,0:T(1,128)S(1)}', space=vmem, size = 0x200, scoped, tag = 'scoped memory for darnn_forward.1']
  #allocation5 [shape = 'f32[1,1]{1,0:T(1,128)S(1)}', space=vmem, size = 0x200, scoped, tag = 'scoped memory for darnn_forward.1']
  #allocation6 [shape = 'f32[1,1]{1,0:T(1,128)S(1)}', space=vmem, size = 0x200, scoped, tag = 'scoped memory for darnn_forward.1']
  #allocation7 [shape = 'f32[1,1]{1,0:T(1,128)S(6)}', space=smem, size = 0x200, scoped, tag = 'scoped memory for darnn_forward.1']
  #allocation8 [shape = 'f32[1,1]{1,0:T(1,128)S(6)}', space=smem, size = 0x200, scoped, tag = 'scoped memory for darnn_forward.1']
  #allocation9 [shape = 'f32[1,1]{1,0:T(1,128)S(1)}', space=vmem, size = 0x200, scoped, tag = 'scoped memory for darnn_forward.1']
  %s0 = inlined_call_operand.smem [shape: u32[36], index: -1, kind: input, shape index: {}]
  %s1 = sld [smem:[%s0]]
  %s2 = scalar_lea.smem %s0, 1
  %s3 = sld [smem:[%s2]]
  %s4 = scalar_lea.smem %s0, 2
  %s5 = sld [smem:[%s4]]
  %s6 = scalar_lea.smem %s0, 3
  %s7 = sld [smem:[%s6]]
  %s8 = scalar_lea.smem %s0, 4
  %s9 = sld [smem:[%s8]]
  %s10 = scalar_lea.smem %s0, 5
  %s11 = sld [smem:[%s10]]
  %s12 = scalar_lea.smem %s0, 6
  %s13 = sld [smem:[%s12]]
  %s14 = scalar_lea.smem %s0, 7
  %s15 = sld [smem:[%s14]]
  %s16 = scalar_lea.smem %s0, 8
  %s17 = sld [smem:[%s16]]
  %s18 = scalar_lea.smem %s0, 9
  %s19 = sld [smem:[%s18]]
  %s20 = scalar_lea.smem %s0, 10
  %s21 = sld [smem:[%s20]]
  %s22 = scalar_lea.smem %s0, 11
  %s23 = sld [smem:[%s22]]
  %s24 = scalar_lea.smem %s0, 12
  %s25 = sld [smem:[%s24]]
  %s26 = scalar_lea.smem %s0, 13
  %s27 = sld [smem:[%s26]]
  %s28 = scalar_lea.smem %s0, 14
  %s29 = sld [smem:[%s28]]
  %s30 = scalar_lea.smem %s0, 15
  %s31 = sld [smem:[%s30]]
  %s32 = scalar_lea.smem %s0, 16
  %s33 = sld [smem:[%s32]]
  %s34 = scalar_lea.smem %s0, 17
  %s35 = sld [smem:[%s34]]
  %s36 = scalar_lea.smem %s0, 18
  %s37 = sld [smem:[%s36]]
  %s38 = scalar_lea.smem %s0, 19
  %s39 = sld [smem:[%s38]]
  %s40 = scalar_lea.smem %s0, 20
  %s41 = sld [smem:[%s40]]
  %s42 = scalar_lea.smem %s0, 21
  %s43 = sld [smem:[%s42]]
  %s44 = scalar_lea.smem %s0, 22
  %s45 = sld [smem:[%s44]]
  %s46 = scalar_lea.smem %s0, 23
  %s47 = sld [smem:[%s46]]
  %s48 = scalar_lea.smem %s0, 24
  %s49 = sld [smem:[%s48]]
  %s50 = scalar_lea.smem %s0, 25
  %s51 = sld [smem:[%s50]]
  %s52 = scalar_lea.smem %s0, 26
  %s53 = sld [smem:[%s52]]
  %s54 = scalar_lea.smem %s0, 27
  %s55 = sld [smem:[%s54]]
  %s56 = scalar_lea.smem %s0, 28
  %s57 = sld [smem:[%s56]]
  %s58 = scalar_lea.smem %s0, 29
  %s59 = sld [smem:[%s58]]
  %s60 = scalar_lea.smem %s0, 30
  %s61 = sld [smem:[%s60]]
  %s62 = scalar_lea.smem %s0, 31
  %s63 = sld [smem:[%s62]]
  %s64 = scalar_lea.smem %s0, 32
  %s65 = sld [smem:[%s64]]
  %s66 = scalar_lea.smem %s0, 33
  %s67 = sld [smem:[%s66]]
  %s68 = scalar_lea.smem %s0, 34
  %s69 = sld [smem:[%s68]]
  %s70 = scalar_lea.smem %s0, 35
  %s71 = sld [smem:[%s70]]
  %s72 = sld [smem:[#allocation0]]
  $region214: #{darnn_forward.1} parent=0
    _
  %s74 = ssub.s32 1, %s72
  %s75 = scalar_select 0, %s74, %s72
  %v76 = vstv %s27
  %77 = vst [vmem:[#allocation3] sm:$0x1] %v76
  %v78 = vstv %s45
  %79 = vst [vmem:[#allocation4] sm:$0x1] %v78
  %v80 = vstv %s49
  %81 = vst [vmem:[#allocation5] sm:$0x1] %v80
  %v82 = vstv %s51
  %83 = vst [vmem:[#allocation6] sm:$0x1] %v82
  %84 = sst [smem:[#allocation7]] %s59
  %85 = sst [smem:[#allocation8]] %s61
  %v86 = vstv %s69
  %87 = vst [vmem:[#allocation9] sm:$0x1] %v86
  $region1: #{darnn_forward.1} parent=0
    #allocation10 [shape = 'u8[4096]{0}', space=vmem, size = 0x1000, scoped, tag = 'input window, operand 0, single buffered']
    #allocation11 [shape = 's32[1]{0}', space=sflag, size = 0x4, scoped, tag = 'scoped memory for darnn_forward.1']
    #allocation12 [shape = 'u8[1024]{0}', space=vmem, size = 0x400, scoped, tag = 'input window, operand 1, single buffered']
    #allocation13 [shape = 's32[1]{0}', space=sflag, size = 0x4, scoped, tag = 'scoped memory for darnn_forward.1']
    #allocation14 [shape = 'u8[512]{0}', space=vmem, size = 0x400, scoped, tag = 'input window, operand 5, single buffered']
    #allocation15 [shape = 'u8[4096]{0}', space=vmem, size = 0x1000, scoped, tag = 'input window, operand 10, single buffered']
    #allocation16 [shape = 's32[1]{0}', space=sflag, size = 0x4, scoped, tag = 'scoped memory for darnn_forward.1']
    #allocation17 [shape = 'u8[512]{0}', space=vmem, size = 0x400, scoped, tag = 'input window, operand 11, single buffered']
    #allocation18 [shape = 'u8[512]{0}', space=vmem, size = 0x400, scoped, tag = 'input window, operand 16, single buffered']
    #allocation19 [shape = 's32[1]{0}', space=sflag, size = 0x4, scoped, tag = 'scoped memory for darnn_forward.1']
    #allocation20 [shape = 'u8[16384]{0}', space=vmem, size = 0x4000, scoped, tag = 'input window, operand 17, single buffered']
    #allocation21 [shape = 'u8[16384]{0}', space=vmem, size = 0x4000, scoped, tag = 'input window, operand 18, single buffered']
    #allocation22 [shape = 's32[1]{0}', space=sflag, size = 0x4, scoped, tag = 'scoped memory for darnn_forward.1']
    #allocation23 [shape = 'u8[16384]{0}', space=vmem, size = 0x4000, scoped, tag = 'input window, operand 19, single buffered']
    #allocation24 [shape = 'u8[512]{0}', space=vmem, size = 0x400, scoped, tag = 'input window, operand 20, single buffered']
    #allocation25 [shape = 's32[1]{0}', space=sflag, size = 0x4, scoped, tag = 'scoped memory for darnn_forward.1']
    #allocation26 [shape = 'u8[512]{0}', space=vmem, size = 0x400, scoped, tag = 'input window, operand 21, single buffered']
    #allocation27 [shape = 'u8[512]{0}', space=vmem, size = 0x400, scoped, tag = 'input window, operand 23, single buffered']
    #allocation28 [shape = 's32[1]{0}', space=sflag, size = 0x4, scoped, tag = 'scoped memory for darnn_forward.1']
    #allocation29 [shape = 'u8[512]{0}', space=vmem, size = 0x400, scoped, tag = 'input window, operand 26, single buffered']
    #allocation30 [shape = 'u8[16384]{0}', space=vmem, size = 0x4000, scoped, tag = 'input window, operand 27, single buffered']
    #allocation31 [shape = 's32[1]{0}', space=sflag, size = 0x4, scoped, tag = 'scoped memory for darnn_forward.1']
    #allocation32 [shape = 'u8[512]{0}', space=vmem, size = 0x400, scoped, tag = 'input window, operand 28, single buffered']
    #allocation33 [shape = 'u8[16384]{0}', space=vmem, size = 0x4000, scoped, tag = 'input window, operand 31, single buffered']
    #allocation34 [shape = 's32[1]{0}', space=sflag, size = 0x4, scoped, tag = 'scoped memory for darnn_forward.1']
    %88 = vsyncpa [#allocation11], 0
    %89 = vsyncpa [#allocation13], 0
    %90 = vsyncpa [#allocation16], 0
    %91 = vsyncpa [#allocation19], 0
    %92 = vsyncpa [#allocation22], 0
    %93 = vsyncpa [#allocation25], 0
    %94 = vsyncpa [#allocation28], 0
    %95 = vsyncpa [#allocation31], 0
    %96 = vsyncpa [#allocation34], 0
    // Predicated region
    $region2: #{darnn_forward.1} parent=1 // pred_check
      _
    $region3: #{darnn_forward.1} parent=1 // pred_check_branch
      %98 = sbr.rel (0) target = $region5
    $region4: #{darnn_forward.1} parent=1 // pred_region
      %100 = vsyncadd [#allocation11], 0
      %s101 = sshll.u32 %s1, 4
      %s102 = int_to_ptr.hbm [resolvable:$true] %s101
      %s103 = sshll.u32 [#allocation10], 4
      %s104 = int_to_ptr.vmem [resolvable:$true] %s103
      %109 = dma.hbm_to_vmem [thread:$0]  %s102, 128, %s104, [#allocation11], 64, 64, 4
    $region5: #{darnn_forward.1} parent=1 // pred_fallthru
      _
    // Predicated region
    $region6: #{darnn_forward.1} parent=1 // pred_check
      _
    $region7: #{darnn_forward.1} parent=1 // pred_check_branch
      %111 = sbr.rel (0) target = $region9
    $region8: #{darnn_forward.1} parent=1 // pred_region
      %113 = vsyncadd [#allocation13], 0
      %s115 = sshll.u32 %s3, 4
      %s116 = int_to_ptr.hbm [resolvable:$true] %s115
      %s117 = sshll.u32 [#allocation12], 4
      %s118 = int_to_ptr.vmem [resolvable:$true] %s117
      %120 = dma.hbm_to_vmem [thread:$0]  %s116, 32, %s118, [#allocation13]
    $region9: #{darnn_forward.1} parent=1 // pred_fallthru
      _
    // Predicated region
    $region10: #{darnn_forward.1} parent=1 // pred_check
      _
    $region11: #{darnn_forward.1} parent=1 // pred_check_branch
      %122 = sbr.rel (0) target = $region13
    $region12: #{darnn_forward.1} parent=1 // pred_region
      _
    $region13: #{darnn_forward.1} parent=1 // pred_fallthru
      _
    // Predicated region
    $region14: #{darnn_forward.1} parent=1 // pred_check
      _
    $region15: #{darnn_forward.1} parent=1 // pred_check_branch
      %124 = sbr.rel (0) target = $region17
    $region16: #{darnn_forward.1} parent=1 // pred_region
      _
    $region17: #{darnn_forward.1} parent=1 // pred_fallthru
      _
    // Predicated region
    $region18: #{darnn_forward.1} parent=1 // pred_check
      _
    $region19: #{darnn_forward.1} parent=1 // pred_check_branch
      %126 = sbr.rel (0) target = $region21
    $region20: #{darnn_forward.1} parent=1 // pred_region
      _
    $region21: #{darnn_forward.1} parent=1 // pred_fallthru
      _
    // Predicated region
    $region22: #{darnn_forward.1} parent=1 // pred_check
      _
    $region23: #{darnn_forward.1} parent=1 // pred_check_branch
      %128 = sbr.rel (0) target = $region25
    $region24: #{darnn_forward.1} parent=1 // pred_region
      %130 = vsyncadd [#allocation13], 0
      %s132 = sshll.u32 %s11, 4
      %s133 = int_to_ptr.hbm [resolvable:$true] %s132
      %s134 = sshll.u32 [#allocation14], 4
      %s135 = int_to_ptr.vmem [resolvable:$true] %s134
      %137 = dma.hbm_to_vmem [thread:$0]  %s133, 16, %s135, [#allocation13]
    $region25: #{darnn_forward.1} parent=1 // pred_fallthru
      _
    // Predicated region
    $region26: #{darnn_forward.1} parent=1 // pred_check
      _
    $region27: #{darnn_forward.1} parent=1 // pred_check_branch
      %139 = sbr.rel (0) target = $region29
    $region28: #{darnn_forward.1} parent=1 // pred_region
      _
    $region29: #{darnn_forward.1} parent=1 // pred_fallthru
      _
    // Predicated region
    $region30: #{darnn_forward.1} parent=1 // pred_check
      _
    $region31: #{darnn_forward.1} parent=1 // pred_check_branch
      %141 = sbr.rel (0) target = $region33
    $region32: #{darnn_forward.1} parent=1 // pred_region
      _
    $region33: #{darnn_forward.1} parent=1 // pred_fallthru
      _
    // Predicated region
    $region34: #{darnn_forward.1} parent=1 // pred_check
      _
    $region35: #{darnn_forward.1} parent=1 // pred_check_branch
      %143 = sbr.rel (0) target = $region37
    $region36: #{darnn_forward.1} parent=1 // pred_region
      _
    $region37: #{darnn_forward.1} parent=1 // pred_fallthru
      _
    // Predicated region
    $region38: #{darnn_forward.1} parent=1 // pred_check
      _
    $region39: #{darnn_forward.1} parent=1 // pred_check_branch
      %145 = sbr.rel (0) target = $region41
    $region40: #{darnn_forward.1} parent=1 // pred_region
      _
    $region41: #{darnn_forward.1} parent=1 // pred_fallthru
      _
    // Predicated region
    $region42: #{darnn_forward.1} parent=1 // pred_check
      _
    $region43: #{darnn_forward.1} parent=1 // pred_check_branch
      %147 = sbr.rel (0) target = $region45
    $region44: #{darnn_forward.1} parent=1 // pred_region
      %149 = vsyncadd [#allocation16], 0
      %s151 = sshll.u32 %s21, 4
      %s152 = int_to_ptr.hbm [resolvable:$true] %s151
      %s153 = sshll.u32 [#allocation15], 4
      %s154 = int_to_ptr.vmem [resolvable:$true] %s153
      %156 = dma.hbm_to_vmem [thread:$0]  %s152, 128, %s154, [#allocation16]
    $region45: #{darnn_forward.1} parent=1 // pred_fallthru
      _
    // Predicated region
    $region46: #{darnn_forward.1} parent=1 // pred_check
      _
    $region47: #{darnn_forward.1} parent=1 // pred_check_branch
      %158 = sbr.rel (0) target = $region49
    $region48: #{darnn_forward.1} parent=1 // pred_region
      %160 = vsyncadd [#allocation16], 0
      %s162 = sshll.u32 %s23, 4
      %s163 = int_to_ptr.hbm [resolvable:$true] %s162
      %s164 = sshll.u32 [#allocation17], 4
      %s165 = int_to_ptr.vmem [resolvable:$true] %s164
      %167 = dma.hbm_to_vmem [thread:$0]  %s163, 16, %s165, [#allocation16]
    $region49: #{darnn_forward.1} parent=1 // pred_fallthru
      _
    // Predicated region
    $region50: #{darnn_forward.1} parent=1 // pred_check
      _
    $region51: #{darnn_forward.1} parent=1 // pred_check_branch
      %169 = sbr.rel (0) target = $region53
    $region52: #{darnn_forward.1} parent=1 // pred_region
      _
    $region53: #{darnn_forward.1} parent=1 // pred_fallthru
      _
    // Predicated region
    $region54: #{darnn_forward.1} parent=1 // pred_check
      _
    $region55: #{darnn_forward.1} parent=1 // pred_check_branch
      %171 = sbr.rel (0) target = $region57
    $region56: #{darnn_forward.1} parent=1 // pred_region
      _
    $region57: #{darnn_forward.1} parent=1 // pred_fallthru
      _
    // Predicated region
    $region58: #{darnn_forward.1} parent=1 // pred_check
      _
    $region59: #{darnn_forward.1} parent=1 // pred_check_branch
      %173 = sbr.rel (0) target = $region61
    $region60: #{darnn_forward.1} parent=1 // pred_region
      _
    $region61: #{darnn_forward.1} parent=1 // pred_fallthru
      _
    // Predicated region
    $region62: #{darnn_forward.1} parent=1 // pred_check
      _
    $region63: #{darnn_forward.1} parent=1 // pred_check_branch
      %175 = sbr.rel (0) target = $region65
    $region64: #{darnn_forward.1} parent=1 // pred_region
      _
    $region65: #{darnn_forward.1} parent=1 // pred_fallthru
      _
    // Predicated region
    $region66: #{darnn_forward.1} parent=1 // pred_check
      _
    $region67: #{darnn_forward.1} parent=1 // pred_check_branch
      %177 = sbr.rel (0) target = $region69
    $region68: #{darnn_forward.1} parent=1 // pred_region
      %179 = vsyncadd [#allocation19], 0
      %s181 = sshll.u32 %s33, 4
      %s182 = int_to_ptr.hbm [resolvable:$true] %s181
      %s183 = sshll.u32 [#allocation18], 4
      %s184 = int_to_ptr.vmem [resolvable:$true] %s183
      %186 = dma.hbm_to_vmem [thread:$0]  %s182, 16, %s184, [#allocation19]
    $region69: #{darnn_forward.1} parent=1 // pred_fallthru
      _
    // Predicated region
    $region70: #{darnn_forward.1} parent=1 // pred_check
      _
    $region71: #{darnn_forward.1} parent=1 // pred_check_branch
      %188 = sbr.rel (0) target = $region73
    $region72: #{darnn_forward.1} parent=1 // pred_region
      %190 = vsyncadd [#allocation19], 0
      %s191 = sshll.u32 %s35, 4
      %s192 = int_to_ptr.hbm [resolvable:$true] %s191
      %s193 = sshll.u32 [#allocation20], 4
      %s194 = int_to_ptr.vmem [resolvable:$true] %s193
      %199 = dma.hbm_to_vmem [thread:$0]  %s192, 512, %s194, [#allocation19], 128, 128, 8
    $region73: #{darnn_forward.1} parent=1 // pred_fallthru
      _
    // Predicated region
    $region74: #{darnn_forward.1} parent=1 // pred_check
      _
    $region75: #{darnn_forward.1} parent=1 // pred_check_branch
      %201 = sbr.rel (0) target = $region77
    $region76: #{darnn_forward.1} parent=1 // pred_region
      %203 = vsyncadd [#allocation22], 0
      %s204 = sshll.u32 %s37, 4
      %s205 = int_to_ptr.hbm [resolvable:$true] %s204
      %s206 = sshll.u32 [#allocation21], 4
      %s207 = int_to_ptr.vmem [resolvable:$true] %s206
      %212 = dma.hbm_to_vmem [thread:$0]  %s205, 512, %s207, [#allocation22], 128, 128, 8
    $region77: #{darnn_forward.1} parent=1 // pred_fallthru
      _
    // Predicated region
    $region78: #{darnn_forward.1} parent=1 // pred_check
      _
    $region79: #{darnn_forward.1} parent=1 // pred_check_branch
      %214 = sbr.rel (0) target = $region81
    $region80: #{darnn_forward.1} parent=1 // pred_region
      %216 = vsyncadd [#allocation22], 0
      %s217 = sshll.u32 %s39, 4
      %s218 = int_to_ptr.hbm [resolvable:$true] %s217
      %s219 = sshll.u32 [#allocation23], 4
      %s220 = int_to_ptr.vmem [resolvable:$true] %s219
      %225 = dma.hbm_to_vmem [thread:$0]  %s218, 512, %s220, [#allocation22], 128, 128, 8
    $region81: #{darnn_forward.1} parent=1 // pred_fallthru
      _
    // Predicated region
    $region82: #{darnn_forward.1} parent=1 // pred_check
      _
    $region83: #{darnn_forward.1} parent=1 // pred_check_branch
      %227 = sbr.rel (0) target = $region85
    $region84: #{darnn_forward.1} parent=1 // pred_region
      %229 = vsyncadd [#allocation25], 0
      %s231 = sshll.u32 %s41, 4
      %s232 = int_to_ptr.hbm [resolvable:$true] %s231
      %s233 = sshll.u32 [#allocation24], 4
      %s234 = int_to_ptr.vmem [resolvable:$true] %s233
      %236 = dma.hbm_to_vmem [thread:$0]  %s232, 16, %s234, [#allocation25]
    $region85: #{darnn_forward.1} parent=1 // pred_fallthru
      _
    // Predicated region
    $region86: #{darnn_forward.1} parent=1 // pred_check
      _
    $region87: #{darnn_forward.1} parent=1 // pred_check_branch
      %238 = sbr.rel (0) target = $region89
    $region88: #{darnn_forward.1} parent=1 // pred_region
      %240 = vsyncadd [#allocation25], 0
      %s242 = sshll.u32 %s43, 4
      %s243 = int_to_ptr.hbm [resolvable:$true] %s242
      %s244 = sshll.u32 [#allocation26], 4
      %s245 = int_to_ptr.vmem [resolvable:$true] %s244
      %247 = dma.hbm_to_vmem [thread:$0]  %s243, 16, %s245, [#allocation25]
    $region89: #{darnn_forward.1} parent=1 // pred_fallthru
      _
    // Predicated region
    $region90: #{darnn_forward.1} parent=1 // pred_check
      _
    $region91: #{darnn_forward.1} parent=1 // pred_check_branch
      %249 = sbr.rel (0) target = $region93
    $region92: #{darnn_forward.1} parent=1 // pred_region
      _
    $region93: #{darnn_forward.1} parent=1 // pred_fallthru
      _
    // Predicated region
    $region94: #{darnn_forward.1} parent=1 // pred_check
      _
    $region95: #{darnn_forward.1} parent=1 // pred_check_branch
      %251 = sbr.rel (0) target = $region97
    $region96: #{darnn_forward.1} parent=1 // pred_region
      %253 = vsyncadd [#allocation28], 0
      %s255 = sshll.u32 %s47, 4
      %s256 = int_to_ptr.hbm [resolvable:$true] %s255
      %s257 = sshll.u32 [#allocation27], 4
      %s258 = int_to_ptr.vmem [resolvable:$true] %s257
      %260 = dma.hbm_to_vmem [thread:$0]  %s256, 16, %s258, [#allocation28]
    $region97: #{darnn_forward.1} parent=1 // pred_fallthru
      _
    // Predicated region
    $region98: #{darnn_forward.1} parent=1 // pred_check
      _
    $region99: #{darnn_forward.1} parent=1 // pred_check_branch
      %262 = sbr.rel (0) target = $region101
    $region100: #{darnn_forward.1} parent=1 // pred_region
      _
    $region101: #{darnn_forward.1} parent=1 // pred_fallthru
      _
    // Predicated region
    $region102: #{darnn_forward.1} parent=1 // pred_check
      _
    $region103: #{darnn_forward.1} parent=1 // pred_check_branch
      %264 = sbr.rel (0) target = $region105
    $region104: #{darnn_forward.1} parent=1 // pred_region
      _
    $region105: #{darnn_forward.1} parent=1 // pred_fallthru
      _
    // Predicated region
    $region106: #{darnn_forward.1} parent=1 // pred_check
      _
    $region107: #{darnn_forward.1} parent=1 // pred_check_branch
      %266 = sbr.rel (0) target = $region109
    $region108: #{darnn_forward.1} parent=1 // pred_region
      %268 = vsyncadd [#allocation28], 0
      %s270 = sshll.u32 %s53, 4
      %s271 = int_to_ptr.hbm [resolvable:$true] %s270
      %s272 = sshll.u32 [#allocation29], 4
      %s273 = int_to_ptr.vmem [resolvable:$true] %s272
      %275 = dma.hbm_to_vmem [thread:$0]  %s271, 16, %s273, [#allocation28]
    $region109: #{darnn_forward.1} parent=1 // pred_fallthru
      _
    // Predicated region
    $region110: #{darnn_forward.1} parent=1 // pred_check
      _
    $region111: #{darnn_forward.1} parent=1 // pred_check_branch
      %277 = sbr.rel (0) target = $region113
    $region112: #{darnn_forward.1} parent=1 // pred_region
      %279 = vsyncadd [#allocation31], 0
      %s280 = sshll.u32 %s55, 4
      %s281 = int_to_ptr.hbm [resolvable:$true] %s280
      %s282 = sshll.u32 [#allocation30], 4
      %s283 = int_to_ptr.vmem [resolvable:$true] %s282
      %288 = dma.hbm_to_vmem [thread:$0]  %s281, 512, %s283, [#allocation31], 128, 128, 8
    $region113: #{darnn_forward.1} parent=1 // pred_fallthru
      _
    // Predicated region
    $region114: #{darnn_forward.1} parent=1 // pred_check
      _
    $region115: #{darnn_forward.1} parent=1 // pred_check_branch
      %290 = sbr.rel (0) target = $region117
    $region116: #{darnn_forward.1} parent=1 // pred_region
      %292 = vsyncadd [#allocation31], 0
      %s294 = sshll.u32 %s57, 4
      %s295 = int_to_ptr.hbm [resolvable:$true] %s294
      %s296 = sshll.u32 [#allocation32], 4
      %s297 = int_to_ptr.vmem [resolvable:$true] %s296
      %299 = dma.hbm_to_vmem [thread:$0]  %s295, 16, %s297, [#allocation31]
    $region117: #{darnn_forward.1} parent=1 // pred_fallthru
      _
    // Predicated region
    $region118: #{darnn_forward.1} parent=1 // pred_check
      _
    $region119: #{darnn_forward.1} parent=1 // pred_check_branch
      %301 = sbr.rel (0) target = $region121
    $region120: #{darnn_forward.1} parent=1 // pred_region
      _
    $region121: #{darnn_forward.1} parent=1 // pred_fallthru
      _
    // Predicated region
    $region122: #{darnn_forward.1} parent=1 // pred_check
      _
    $region123: #{darnn_forward.1} parent=1 // pred_check_branch
      %303 = sbr.rel (0) target = $region125
    $region124: #{darnn_forward.1} parent=1 // pred_region
      _
    $region125: #{darnn_forward.1} parent=1 // pred_fallthru
      _
    // Predicated region
    $region126: #{darnn_forward.1} parent=1 // pred_check
      _
    $region127: #{darnn_forward.1} parent=1 // pred_check_branch
      %305 = sbr.rel (0) target = $region129
    $region128: #{darnn_forward.1} parent=1 // pred_region
      %307 = vsyncadd [#allocation34], 0
      %s308 = sshll.u32 %s63, 4
      %s309 = int_to_ptr.hbm [resolvable:$true] %s308
      %s310 = sshll.u32 [#allocation33], 4
      %s311 = int_to_ptr.vmem [resolvable:$true] %s310
      %316 = dma.hbm_to_vmem [thread:$0]  %s309, 512, %s311, [#allocation34], 128, 128, 8
    $region129: #{darnn_forward.1} parent=1 // pred_fallthru
      _
    // Predicated region
    $region130: #{darnn_forward.1} parent=1 // pred_check
      _
    $region131: #{darnn_forward.1} parent=1 // pred_check_branch
      %318 = sbr.rel (0) target = $region133
    $region132: #{darnn_forward.1} parent=1 // pred_region
      _
    $region133: #{darnn_forward.1} parent=1 // pred_fallthru
      _
    // Predicated region
    $region134: #{darnn_forward.1} parent=1 // pred_check
      _
    $region135: #{darnn_forward.1} parent=1 // pred_check_branch
      %320 = sbr.rel (0) target = $region137
    $region136: #{darnn_forward.1} parent=1 // pred_region
      _
    $region137: #{darnn_forward.1} parent=1 // pred_fallthru
      _
    // Predicated region
    $region138: #{darnn_forward.1} parent=1 // pred_check
      _
    $region139: #{darnn_forward.1} parent=1 // pred_check_branch
      %322 = sbr.rel (0) target = $region141
    $region140: #{darnn_forward.1} parent=1 // pred_region
      _
    $region141: #{darnn_forward.1} parent=1 // pred_fallthru
      _
    // Predicated region
    $region142: #{darnn_forward.1} parent=1 // pred_check
      _
    $region143: #{darnn_forward.1} parent=1 // pred_check_branch
      %324 = sbr.rel (0) target = $region145
    $region144: #{darnn_forward.1} parent=1 // pred_region
      %326 = dma.done [#allocation11], 128
    $region145: #{darnn_forward.1} parent=1 // pred_fallthru
      _
    // Predicated region
    $region146: #{darnn_forward.1} parent=1 // pred_check
      _
    $region147: #{darnn_forward.1} parent=1 // pred_check_branch
      %328 = sbr.rel (0) target = $region149
    $region148: #{darnn_forward.1} parent=1 // pred_region
      %330 = dma.done [#allocation13], 32
    $region149: #{darnn_forward.1} parent=1 // pred_fallthru
      _
    // Predicated region
    $region150: #{darnn_forward.1} parent=1 // pred_check
      _
    $region151: #{darnn_forward.1} parent=1 // pred_check_branch
      %332 = sbr.rel (0) target = $region153
    $region152: #{darnn_forward.1} parent=1 // pred_region
      %334 = dma.done [#allocation13], 16
    $region153: #{darnn_forward.1} parent=1 // pred_fallthru
      _
    // Predicated region
    $region154: #{darnn_forward.1} parent=1 // pred_check
      _
    $region155: #{darnn_forward.1} parent=1 // pred_check_branch
      %336 = sbr.rel (0) target = $region157
    $region156: #{darnn_forward.1} parent=1 // pred_region
      %338 = dma.done [#allocation16], 128
    $region157: #{darnn_forward.1} parent=1 // pred_fallthru
      _
    // Predicated region
    $region158: #{darnn_forward.1} parent=1 // pred_check
      _
    $region159: #{darnn_forward.1} parent=1 // pred_check_branch
      %340 = sbr.rel (0) target = $region161
    $region160: #{darnn_forward.1} parent=1 // pred_region
      %342 = dma.done [#allocation16], 16
    $region161: #{darnn_forward.1} parent=1 // pred_fallthru
      _
    // Predicated region
    $region162: #{darnn_forward.1} parent=1 // pred_check
      _
    $region163: #{darnn_forward.1} parent=1 // pred_check_branch
      %344 = sbr.rel (0) target = $region165
    $region164: #{darnn_forward.1} parent=1 // pred_region
      %346 = dma.done [#allocation19], 16
    $region165: #{darnn_forward.1} parent=1 // pred_fallthru
      _
    // Predicated region
    $region166: #{darnn_forward.1} parent=1 // pred_check
      _
    $region167: #{darnn_forward.1} parent=1 // pred_check_branch
      %348 = sbr.rel (0) target = $region169
    $region168: #{darnn_forward.1} parent=1 // pred_region
      %350 = dma.done [#allocation19], 512
    $region169: #{darnn_forward.1} parent=1 // pred_fallthru
      _
    // Predicated region
    $region170: #{darnn_forward.1} parent=1 // pred_check
      _
    $region171: #{darnn_forward.1} parent=1 // pred_check_branch
      %352 = sbr.rel (0) target = $region173
    $region172: #{darnn_forward.1} parent=1 // pred_region
      %354 = dma.done [#allocation22], 512
    $region173: #{darnn_forward.1} parent=1 // pred_fallthru
      _
    // Predicated region
    $region174: #{darnn_forward.1} parent=1 // pred_check
      _
    $region175: #{darnn_forward.1} parent=1 // pred_check_branch
      %356 = sbr.rel (0) target = $region177
    $region176: #{darnn_forward.1} parent=1 // pred_region
      %358 = dma.done [#allocation22], 512
    $region177: #{darnn_forward.1} parent=1 // pred_fallthru
      _
    // Predicated region
    $region178: #{darnn_forward.1} parent=1 // pred_check
      _
    $region179: #{darnn_forward.1} parent=1 // pred_check_branch
      %360 = sbr.rel (0) target = $region181
    $region180: #{darnn_forward.1} parent=1 // pred_region
      %362 = dma.done [#allocation25], 16
    $region181: #{darnn_forward.1} parent=1 // pred_fallthru
      _
    // Predicated region
    $region182: #{darnn_forward.1} parent=1 // pred_check
      _
    $region183: #{darnn_forward.1} parent=1 // pred_check_branch
      %364 = sbr.rel (0) target = $region185
    $region184: #{darnn_forward.1} parent=1 // pred_region
      %366 = dma.done [#allocation25], 16
    $region185: #{darnn_forward.1} parent=1 // pred_fallthru
      _
    // Predicated region
    $region186: #{darnn_forward.1} parent=1 // pred_check
      _
    $region187: #{darnn_forward.1} parent=1 // pred_check_branch
      %368 = sbr.rel (0) target = $region189
    $region188: #{darnn_forward.1} parent=1 // pred_region
      %370 = dma.done [#allocation28], 16
    $region189: #{darnn_forward.1} parent=1 // pred_fallthru
      _
    // Predicated region
    $region190: #{darnn_forward.1} parent=1 // pred_check
      _
    $region191: #{darnn_forward.1} parent=1 // pred_check_branch
      %372 = sbr.rel (0) target = $region193
    $region192: #{darnn_forward.1} parent=1 // pred_region
      %374 = dma.done [#allocation28], 16
    $region193: #{darnn_forward.1} parent=1 // pred_fallthru
      _
    // Predicated region
    $region194: #{darnn_forward.1} parent=1 // pred_check
      _
    $region195: #{darnn_forward.1} parent=1 // pred_check_branch
      %376 = sbr.rel (0) target = $region197
    $region196: #{darnn_forward.1} parent=1 // pred_region
      %378 = dma.done [#allocation31], 512
    $region197: #{darnn_forward.1} parent=1 // pred_fallthru
      _
    // Predicated region
    $region198: #{darnn_forward.1} parent=1 // pred_check
      _
    $region199: #{darnn_forward.1} parent=1 // pred_check_branch
      %380 = sbr.rel (0) target = $region201
    $region200: #{darnn_forward.1} parent=1 // pred_region
      %382 = dma.done [#allocation31], 16
    $region201: #{darnn_forward.1} parent=1 // pred_fallthru
      _
    // Predicated region
    $region202: #{darnn_forward.1} parent=1 // pred_check
      _
    $region203: #{darnn_forward.1} parent=1 // pred_check_branch
      %384 = sbr.rel (0) target = $region205
    $region204: #{darnn_forward.1} parent=1 // pred_region
      %386 = dma.done [#allocation34], 512
    $region205: #{darnn_forward.1} parent=1 // pred_fallthru
      _
    %v387 = vld [vmem:[#allocation10] sm:$0xf]
    %v388 = vld [vmem:[#allocation10 + $0x4] sm:$0xf]
    %v389 = vld [vmem:[%s5] sm:$0xff]
    %v390 = vld [vmem:[%s7] sm:$0x1]
    %v392 = vperm.slane %v390, 0
    %396 = vst [vmem:[#allocation1] ss:$2 sm:$0xff] %v387
    %s397 = scalar_lea.vmem [#allocation1], 1
    %398 = vst [vmem:[%s397] ss:$2 sm:$0xff] %v388
    %v399 = vld.sshfl [vmem:[#allocation1] sm:$0xff pattern:$0x75316420]
    %vm400 = vcmask 64512
    %v401 = vsel %vm400, %v399, 0
    %403 = vmatpush.msra.mxu0 0.0
    %404 = vmatpush.msra.mxu0 0.0
    %405 = vmatpush.msra.mxu0 0.0
    %406 = vmatpush.msra.mxu0 0.0
    %407 = vmatpush.msra.mxu0 0.0
    %408 = vmatpush.msra.mxu0 0.0
    %409 = vmatpush.msra.mxu0 0.0
    %410 = vmatpush.msra.mxu0 0.0
    %411 = vmatpush.msra.mxu0 0.0
    %412 = vmatpush.msra.mxu0 0.0
    %413 = vmatpush.msra.mxu0 0.0
    %414 = vmatpush.msra.mxu0 0.0
    %415 = vmatpush.msra.mxu0 0.0
    %416 = vmatpush.msra.mxu0 0.0
    %417 = vmatpush.msra.mxu0 0.0
    %418 = vmatpush.msra.mxu0 %v389
    %419 = vmatmul.f32.gmra.mxu0 %v401
    %v420 = vpop.f32.mrf.mxu0
    %v421 = vadd.f32 %v392, %v420
    %422 = vdwg.mxu0
    %v424 = vrot.slane %v421, 4
    %425 = vst [vmem:[#allocation1] ss:$2 sm:$0xff] %v421
    %v426 = vld.sshfl [vmem:[#allocation1] sm:$0xff pattern:$0x75316420]
    %427 = vrot.lane.b32.xlu0 %v426, 120
    %v428 = vpop.permute.xlu0 %427
    %v429 = vsel %vm400, %v421, 0
    %v431 = vsel %vm400, %v428, 0
    %433 = vmatpush.xpose.msra.mxu0 0.0
    %434 = vmatpush.xpose.msra.mxu0 0.0
    %435 = vmatpush.xpose.msra.mxu0 0.0
    %436 = vmatpush.xpose.msra.mxu0 0.0
    %437 = vmatpush.xpose.msra.mxu0 0.0
    %438 = vmatpush.xpose.msra.mxu0 0.0
    %439 = vmatpush.xpose.msra.mxu0 0.0
    %440 = vmatpush.xpose.msra.mxu0 0.0
    %441 = vmatpush.xpose.msra.mxu0 0.0
    %442 = vmatpush.xpose.msra.mxu0 0.0
    %443 = vmatpush.xpose.msra.mxu0 0.0
    %444 = vmatpush.xpose.msra.mxu0 0.0
    %445 = vmatpush.xpose.msra.mxu0 0.0
    %446 = vmatpush.xpose.msra.mxu0 0.0
    %447 = vmatpush.xpose.msra.mxu0 0.0
    %448 = vmatpush.xpose.msra.mxu0 %v431
    %449 = vmatmul.f32.gmra.mxu0 %v429
    %v450 = vpop.f32.mrf.mxu0
    %v451 = vadd.f32 0.0, %v450
    %452 = vdwg.mxu0
    %453 = vst [vmem:[#allocation1] ss:$2 sm:$0xff] %v424
    %v454 = vld.sshfl [vmem:[#allocation1] sm:$0xff pattern:$0x75316420]
    %455 = vrot.lane.b32.xlu0 %v454, 120
    %v456 = vpop.permute.xlu0 %455
    %v457 = vsel %vm400, %v424, 0
    %v459 = vsel %vm400, %v456, 0
    %461 = vmatpush.xpose.msra.mxu0 0.0
    %462 = vmatpush.xpose.msra.mxu0 0.0
    %463 = vmatpush.xpose.msra.mxu0 0.0
    %464 = vmatpush.xpose.msra.mxu0 0.0
    %465 = vmatpush.xpose.msra.mxu0 0.0
    %466 = vmatpush.xpose.msra.mxu0 0.0
    %467 = vmatpush.xpose.msra.mxu0 0.0
    %468 = vmatpush.xpose.msra.mxu0 0.0
    %469 = vmatpush.xpose.msra.mxu0 0.0
    %470 = vmatpush.xpose.msra.mxu0 0.0
    %471 = vmatpush.xpose.msra.mxu0 0.0
    %472 = vmatpush.xpose.msra.mxu0 0.0
    %473 = vmatpush.xpose.msra.mxu0 0.0
    %474 = vmatpush.xpose.msra.mxu0 0.0
    %475 = vmatpush.xpose.msra.mxu0 0.0
    %476 = vmatpush.xpose.msra.mxu0 %v459
    %477 = vmatmul.f32.gmra.mxu0 %v457
    %v478 = vpop.f32.mrf.mxu0
    %v479 = vadd.f32 0.0, %v478
    %480 = vdwg.mxu0
    %v481 = vmul.f32 %v451, 0.35355338
    %v482 = vmul.f32 %v479, 0.35355338
    %vm483 = vcmask 27648
    %v484 = vsel %vm483, %v481, -inf
    %485 = vmax.xlane.f32.xlu0 %v484
    %v486 = vpop.xlane.xlu0 %485
    %v487 = vsel %vm483, %v482, -inf
    %488 = vmax.xlane.f32.xlu0 %v487
    %v489 = vpop.xlane.xlu0 %488
    %v490 = vsub.f32 %v481, %v486
    %v491 = vsub.f32 %v482, %v489
    %v492 = vmul.f32 %v490, 1.442695
    %v493 = vpow.pop %v492
    %v494 = vmul.f32 %v491, 1.442695
    %v495 = vpow.pop %v494
    %v496 = vsel %vm483, %v493, 0.0
    %497 = vadd.xlane.f32.xlu0 %v496
    %v498 = vpop.xlane.xlu0 %497
    %v499 = vsel %vm483, %v495, 0.0
    %500 = vadd.xlane.f32.xlu0 %v499
    %v501 = vpop.xlane.xlu0 %500
    %v502 = vrcp.pop %v498
    %v503 = vmul.f32 %v498, %v502
    %v504 = vsub.f32 1.0, %v503
    %v505 = vmul.f32 %v502, %v504
    %v506 = vadd.f32 %v502, %v505
    %vm507 = vweird.f32 %v498
    %vm508 = vweird.f32 %v502
    %vm509 = vmor %vm507, %vm508
    %v510 = vsel %vm509, %v502, %v506
    %v511 = vand.u32 2147483647, %v498
    %vm512 = vcmp.eq.f32.partialorder %v511, 8.507059e+37
    %v513 = vand.u32 %v498, 2147483648
    %v514 = vor.u32 1.1754944e-38, %v513
    %v515 = vsel %vm512, %v514, %v510
    %v516 = vmul.f32 %v493, %v515
    %v517 = vrcp.pop %v501
    %v518 = vmul.f32 %v501, %v517
    %v519 = vsub.f32 1.0, %v518
    %v520 = vmul.f32 %v517, %v519
    %v521 = vadd.f32 %v517, %v520
    %vm522 = vweird.f32 %v501
    %vm523 = vweird.f32 %v517
    %vm524 = vmor %vm522, %vm523
    %v525 = vsel %vm524, %v517, %v521
    %v526 = vand.u32 2147483647, %v501
    %vm527 = vcmp.eq.f32.partialorder %v526, 8.507059e+37
    %v528 = vand.u32 %v501, 2147483648
    %v529 = vor.u32 1.1754944e-38, %v528
    %v530 = vsel %vm527, %v529, %v525
    %v531 = vmul.f32 %v495, %v530
    %532 = vst [vmem:[#allocation1] ss:$2 sm:$0xff] %v421
    %v533 = vld.sshfl [vmem:[#allocation1] sm:$0xff pattern:$0x75316420]
    %534 = vrot.lane.b32.xlu0 %v533, 112
    %v535 = vpop.permute.xlu0 %534
    %vm536 = vcmask 31744
    %v538 = vsel %vm536, %v516, 0
    %vm540 = vcmask 1043456
    %v541 = vsel %vm540, %v535, 0
    %543 = vmatpush.msra.mxu0 0.0
    %544 = vmatpush.msra.mxu0 0.0
    %545 = vmatpush.msra.mxu0 0.0
    %546 = vmatpush.msra.mxu0 0.0
    %547 = vmatpush.msra.mxu0 0.0
    %548 = vmatpush.msra.mxu0 0.0
    %549 = vmatpush.msra.mxu0 0.0
    %550 = vmatpush.msra.mxu0 0.0
    %551 = vmatpush.msra.mxu0 0.0
    %552 = vmatpush.msra.mxu0 0.0
    %553 = vmatpush.msra.mxu0 0.0
    %554 = vmatpush.msra.mxu0 0.0
    %555 = vmatpush.msra.mxu0 0.0
    %556 = vmatpush.msra.mxu0 0.0
    %557 = vmatpush.msra.mxu0 0.0
    %558 = vmatpush.msra.mxu0 %v541
    %559 = vmatmul.f32.gmra.mxu0 %v538
    %v560 = vpop.f32.mrf.mxu0
    %v561 = vadd.f32 0.0, %v560
    %562 = vdwg.mxu0
    %563 = vst [vmem:[#allocation1] ss:$2 sm:$0xff] %v424
    %v564 = vld.sshfl [vmem:[#allocation1] sm:$0xff pattern:$0x75316420]
    %565 = vrot.lane.b32.xlu0 %v564, 112
    %v566 = vpop.permute.xlu0 %565
    %v568 = vsel %vm536, %v531, 0
    %v570 = vsel %vm540, %v566, 0
    %572 = vmatpush.msra.mxu0 0.0
    %573 = vmatpush.msra.mxu0 0.0
    %574 = vmatpush.msra.mxu0 0.0
    %575 = vmatpush.msra.mxu0 0.0
    %576 = vmatpush.msra.mxu0 0.0
    %577 = vmatpush.msra.mxu0 0.0
    %578 = vmatpush.msra.mxu0 0.0
    %579 = vmatpush.msra.mxu0 0.0
    %580 = vmatpush.msra.mxu0 0.0
    %581 = vmatpush.msra.mxu0 0.0
    %582 = vmatpush.msra.mxu0 0.0
    %583 = vmatpush.msra.mxu0 0.0
    %584 = vmatpush.msra.mxu0 0.0
    %585 = vmatpush.msra.mxu0 0.0
    %586 = vmatpush.msra.mxu0 0.0
    %587 = vmatpush.msra.mxu0 %v570
    %588 = vmatmul.f32.gmra.mxu0 %v568
    %v589 = vpop.f32.mrf.mxu0
    %v590 = vadd.f32 0.0, %v589
    %591 = vdwg.mxu0
    %v592 = vld [vmem:[#allocation15] sm:$0xff]
    %595 = vst [vmem:[#allocation1] ss:$2 sm:$0xff] %v561
    %s596 = scalar_lea.vmem [#allocation1], 1
    %597 = vst [vmem:[%s596] ss:$2 sm:$0xff] %v590
    %v598 = vld.sshfl [vmem:[#allocation1] sm:$0xff pattern:$0x75316420]
    %v599 = vsel %vm400, %v598, 0
    %601 = vmatpush.msra.mxu0 0.0
    %602 = vmatpush.msra.mxu0 0.0
    %603 = vmatpush.msra.mxu0 0.0
    %604 = vmatpush.msra.mxu0 0.0
    %605 = vmatpush.msra.mxu0 0.0
    %606 = vmatpush.msra.mxu0 0.0
    %607 = vmatpush.msra.mxu0 0.0
    %608 = vmatpush.msra.mxu0 0.0
    %609 = vmatpush.msra.mxu0 0.0
    %610 = vmatpush.msra.mxu0 0.0
    %611 = vmatpush.msra.mxu0 0.0
    %612 = vmatpush.msra.mxu0 0.0
    %613 = vmatpush.msra.mxu0 0.0
    %614 = vmatpush.msra.mxu0 0.0
    %615 = vmatpush.msra.mxu0 0.0
    %616 = vmatpush.msra.mxu0 %v592
    %617 = vmatmul.f32.gmra.mxu0 %v599
    %v618 = vpop.f32.mrf.mxu0
    %v619 = vadd.f32 0.0, %v618
    %620 = vdwg.mxu0
    %v622 = vrot.slane %v619, 4
    %v624 = vld [vmem:[#allocation17] sm:$0x1]
    %v626 = vperm.slane %v624, 0
    %v628 = vadd.f32 %v619, %v626
    %v629 = vadd.f32 %v622, %v626
    %v630 = vld [vmem:[%s17] sm:$0xff]
    %v631 = vld [vmem:[%s17 + $0x8] sm:$0xff]
    %v632 = vld [vmem:[%s17 + $0x10] sm:$0xff]
    %v633 = vld [vmem:[%s17 + $0x18] sm:$0xff]
    %v634 = vld [vmem:[%s19] sm:$0xff]
    %v635 = vld [vmem:[%s19 + $0x8] sm:$0xff]
    %v636 = vld [vmem:[%s19 + $0x10] sm:$0xff]
    %v637 = vld [vmem:[%s19 + $0x18] sm:$0xff]
    %v638 = vld [vmem:[%s25] sm:$0x1]
    %v639 = vld [vmem:[#allocation3] sm:$0x1]
    %v640 = vld [vmem:[%s29] sm:$0xf]
    %v641 = vld [vmem:[%s31] sm:$0xff]
    %v642 = vld [vmem:[%s31 + $0x8] sm:$0xff]
    %v643 = vld [vmem:[%s31 + $0x10] sm:$0xff]
    %v644 = vld [vmem:[%s31 + $0x18] sm:$0xff]
    %v645 = vld [vmem:[#allocation18] sm:$0x1]
    %v646 = vlaneseq
    %v647 = vand.u32 %v646, 127
    %vm648 = vcmask 261120
    %v650 = vsel %vm648, 0.0, 0
    %652 = vmatpush.msra.mxu0 0.0
    %653 = vmatpush.msra.mxu0 0.0
    %654 = vmatpush.msra.mxu0 0.0
    %655 = vmatpush.msra.mxu0 0.0
    %656 = vmatpush.msra.mxu0 0.0
    %657 = vmatpush.msra.mxu0 0.0
    %658 = vmatpush.msra.mxu0 0.0
    %659 = vmatpush.msra.mxu0 0.0
    %660 = vmatpush.msra.mxu0 0.0
    %661 = vmatpush.msra.mxu0 0.0
    %662 = vmatpush.msra.mxu0 0.0
    %663 = vmatpush.msra.mxu0 0.0
    %664 = vmatpush.msra.mxu0 %v633
    %665 = vmatpush.msra.mxu0 %v632
    %666 = vmatpush.msra.mxu0 %v631
    %667 = vmatpush.msra.mxu0 %v630
    %668 = vmatmul.f32.gmra.mxu0 %v650
    %v669 = vpop.f32.mrf.mxu0
    %v670 = vadd.f32 0.0, %v669
    %671 = vdwg.mxu0
    %672 = vmatpush.msra.mxu0 0.0
    %673 = vmatpush.msra.mxu0 0.0
    %674 = vmatpush.msra.mxu0 0.0
    %675 = vmatpush.msra.mxu0 0.0
    %676 = vmatpush.msra.mxu0 0.0
    %677 = vmatpush.msra.mxu0 0.0
    %678 = vmatpush.msra.mxu0 0.0
    %679 = vmatpush.msra.mxu0 0.0
    %680 = vmatpush.msra.mxu0 0.0
    %681 = vmatpush.msra.mxu0 0.0
    %682 = vmatpush.msra.mxu0 0.0
    %683 = vmatpush.msra.mxu0 0.0
    %684 = vmatpush.msra.mxu0 %v637
    %685 = vmatpush.msra.mxu0 %v636
    %686 = vmatpush.msra.mxu0 %v635
    %687 = vmatpush.msra.mxu0 %v634
    %688 = vmatmul.f32.gmra.mxu0 %v650
    %v689 = vpop.f32.mrf.mxu0
    %v690 = vadd.f32 0.0, %v689
    %691 = vdwg.mxu0
    %v693 = vrot.slane %v670, 1
    %v696 = vrot.slane %v690, 1
    %v698 = vadd.f32 %v670, %v690
    %v699 = vadd.f32 %v693, %v696
    %v702 = vperm.slane %v698, 0
    %v703 = vperm.slane %v699, 0
    %v706 = vadd.f32 %v702, %v628
    %v707 = vadd.f32 %v703, %v629
    %v708 = vtanh.pop %v706
    %v709 = vtanh.pop %v707
    %v711 = vperm.slane %v638, 0
    %v713 = vmul.f32 %v708, %v711
    %v714 = vmul.f32 %v709, %v711
    %vm715 = vcmask 60416
    %v716 = vsel %vm715, %v713, 0.0
    %717 = vadd.xlane.f32.xlu0 %v716
    %v718 = vpop.xlane.xlu0 %717
    %v719 = vsel %vm715, %v714, 0.0
    %720 = vadd.xlane.f32.xlu0 %v719
    %v721 = vpop.xlane.xlu0 %720
    %v723 = vperm.slane %v639, 0
    %724 = vset.pattern.permute.xlu0 0
    %725 = vperm.xlu0 %724, %v723
    %v726 = vpop.permute.xlu0 %725
    %v728 = vadd.f32 %v718, %v726
    %v729 = vadd.f32 %v721, %v726
    %v732 = vperm.slane %v728, %v647
    %v733 = vperm.slane %v729, %v647
    %vm734 = vcmask 1041409
    %v735 = vsel %vm734, %v733, %v732
    %vm737 = vcmask 25600
    %v738 = vsel %vm737, %v735, -inf
    %739 = vmax.xlane.f32.xlu0 %v738
    %v740 = vpop.xlane.xlu0 %739
    %v742 = vperm.slane %v740, 0
    %v743 = vperm.slane %v740, 1
    %v746 = vsub.f32 %v728, %v742
    %v747 = vsub.f32 %v729, %v743
    %v748 = vmul.f32 %v746, 1.442695
    %v749 = vpow.pop %v748
    %v750 = vmul.f32 %v747, 1.442695
    %v751 = vpow.pop %v750
    %754 = vset.pattern.permute.xlu0 0
    %755 = vperm.xlu0 %754, %v749
    %v756 = vpop.permute.xlu0 %755
    %757 = vset.pattern.permute.xlu0 0
    %758 = vperm.xlu0 %757, %v751
    %v759 = vpop.permute.xlu0 %758
    %v760 = vperm.slane %v756, %v647
    %v761 = vperm.slane %v759, %v647
    %v762 = vsel %vm734, %v761, %v760
    %v764 = vsel %vm737, %v762, 0.0
    %765 = vadd.xlane.f32.xlu0 %v764
    %v766 = vpop.xlane.xlu0 %765
    %v768 = vperm.slane %v766, 0
    %v769 = vperm.slane %v766, 1
    %v772 = vrcp.pop %v768
    %v773 = vmul.f32 %v768, %v772
    %v774 = vsub.f32 1.0, %v773
    %v775 = vmul.f32 %v772, %v774
    %v776 = vadd.f32 %v772, %v775
    %vm777 = vweird.f32 %v768
    %vm778 = vweird.f32 %v772
    %vm779 = vmor %vm777, %vm778
    %v780 = vsel %vm779, %v772, %v776
    %v781 = vand.u32 2147483647, %v768
    %vm782 = vcmp.eq.f32.partialorder %v781, 8.507059e+37
    %v783 = vand.u32 %v768, 2147483648
    %v784 = vor.u32 1.1754944e-38, %v783
    %v785 = vsel %vm782, %v784, %v780
    %v786 = vmul.f32 %v749, %v785
    %v787 = vrcp.pop %v769
    %v788 = vmul.f32 %v769, %v787
    %v789 = vsub.f32 1.0, %v788
    %v790 = vmul.f32 %v787, %v789
    %v791 = vadd.f32 %v787, %v790
    %vm792 = vweird.f32 %v769
    %vm793 = vweird.f32 %v787
    %vm794 = vmor %vm792, %vm793
    %v795 = vsel %vm794, %v787, %v791
    %v796 = vand.u32 2147483647, %v769
    %vm797 = vcmp.eq.f32.partialorder %v796, 8.507059e+37
    %v798 = vand.u32 %v769, 2147483648
    %v799 = vor.u32 1.1754944e-38, %v798
    %v800 = vsel %vm797, %v799, %v795
    %v801 = vmul.f32 %v751, %v800
    %vm802 = vcmp.eq.s32.totalorder %v647, 0
    %v803 = vsel %vm802, %v561, 0.0
    %v804 = vsel %vm802, %v590, 0.0
    %v805 = vsel %vm715, %v803, 0.0
    %806 = vadd.xlane.f32.xlu0 %v805
    %v807 = vpop.xlane.xlu0 %806
    %v808 = vsel %vm715, %v804, 0.0
    %809 = vadd.xlane.f32.xlu0 %v808
    %v810 = vpop.xlane.xlu0 %809
    %v811 = vmul.f32 %v786, %v807
    %v812 = vmul.f32 %v801, %v810
    %813 = vmatpush.msra.mxu0 0.0
    %814 = vmatpush.msra.mxu0 0.0
    %815 = vmatpush.msra.mxu0 0.0
    %816 = vmatpush.msra.mxu0 0.0
    %817 = vmatpush.msra.mxu0 0.0
    %818 = vmatpush.msra.mxu0 0.0
    %819 = vmatpush.msra.mxu0 0.0
    %820 = vmatpush.msra.mxu0 0.0
    %821 = vmatpush.msra.mxu0 0.0
    %822 = vmatpush.msra.mxu0 0.0
    %823 = vmatpush.msra.mxu0 0.0
    %824 = vmatpush.msra.mxu0 0.0
    %825 = vmatpush.msra.mxu0 %v644
    %826 = vmatpush.msra.mxu0 %v643
    %827 = vmatpush.msra.mxu0 %v642
    %828 = vmatpush.msra.mxu0 %v641
    %829 = vmatmul.f32.gmra.mxu0 %v650
    %v830 = vpop.f32.mrf.mxu0
    %v831 = vadd.f32 0.0, %v830
    %832 = vdwg.mxu0
    %835 = vset.pattern.permute.xlu0 0
    %836 = vperm.xlu0 %835, %v811
    %v837 = vpop.permute.xlu0 %836
    %838 = vset.pattern.permute.xlu0 0
    %839 = vperm.xlu0 %838, %v812
    %v840 = vpop.permute.xlu0 %839
    %v841 = vperm.slane %v837, %v647
    %v842 = vperm.slane %v840, %v647
    %v843 = vsel %vm734, %v842, %v841
    %v844 = vsel %vm536, %v843, 0
    %v847 = vsel %vm540, %v640, 0
    %849 = vmatpush.msra.mxu0 0.0
    %850 = vmatpush.msra.mxu0 0.0
    %851 = vmatpush.msra.mxu0 0.0
    %852 = vmatpush.msra.mxu0 0.0
    %853 = vmatpush.msra.mxu0 0.0
    %854 = vmatpush.msra.mxu0 0.0
    %855 = vmatpush.msra.mxu0 0.0
    %856 = vmatpush.msra.mxu0 0.0
    %857 = vmatpush.msra.mxu0 0.0
    %858 = vmatpush.msra.mxu0 0.0
    %859 = vmatpush.msra.mxu0 0.0
    %860 = vmatpush.msra.mxu0 0.0
    %861 = vmatpush.msra.mxu0 0.0
    %862 = vmatpush.msra.mxu0 0.0
    %863 = vmatpush.msra.mxu0 0.0
    %864 = vmatpush.msra.mxu0 %v847
    %865 = vmatmul.f32.gmra.mxu0 %v844
    %v866 = vpop.f32.mrf.mxu0
    %v867 = vadd.f32 %v831, %v866
    %868 = vdwg.mxu0
    %v870 = vperm.slane %v645, 0
    %v872 = vadd.f32 %v867, %v870
    %v873 = vsub.f32 0.0, %v872
    %v874 = vmul.f32 %v873, 1.442695
    %v875 = vpow.pop %v874
    %v876 = vadd.f32 %v875, 1.0
    %v877 = vrcp.pop %v876
    %v878 = vmul.f32 %v876, %v877
    %v879 = vsub.f32 1.0, %v878
    %v880 = vmul.f32 %v877, %v879
    %v881 = vadd.f32 %v877, %v880
    %vm882 = vweird.f32 %v876
    %vm883 = vweird.f32 %v877
    %vm884 = vmor %vm882, %vm883
    %v885 = vsel %vm884, %v877, %v881
    %v886 = vand.u32 2147483647, %v876
    %vm887 = vcmp.eq.f32.partialorder %v886, 8.507059e+37
    %v888 = vand.u32 %v876, 2147483648
    %v889 = vor.u32 1.1754944e-38, %v888
    %v890 = vsel %vm887, %v889, %v885
    %v891 = vmul.f32 1.0, %v890
    %v892 = vtanh.pop %v872
    %v893 = vmul.f32 %v891, 0.0
    %895 = vrot.lane.b32.xlu0 %v892, 64
    %v896 = vpop.permute.xlu0 %895
    %v898 = vmul.f32 %v891, %v896
    %900 = vrot.lane.b32.xlu0 %v898, 32
    %v901 = vpop.permute.xlu0 %900
    %v903 = vadd.f32 %v893, %v901
    %v904 = vtanh.pop %v903
    %906 = vrot.lane.b32.xlu0 %v904, 64
    %v907 = vpop.permute.xlu0 %906
    %v909 = vmul.f32 %v891, %v907
    %v911 = vrot.slane %v909, 1
    %v912 = vperm.slane %v909, 0
    %v913 = vperm.slane %v911, 0
    %914 = vrot.lane.b32.xlu0 %v912, 32
    %v915 = vpop.permute.xlu0 %914
    %916 = vrot.lane.b32.xlu0 %v913, 32
    %v917 = vpop.permute.xlu0 %916
    %vm920 = vcmask 253952
    %921 = vst.msk [vmem:[#allocation2] sm:$0x1] %vm920, %v915
    %922 = vst.msk [vmem:[#allocation2 + $0x8] sm:$0x1] %vm920, %v917
    %923 = vrot.lane.b32.xlu0 %v909, 32
    %v924 = vpop.permute.xlu0 %923
    %v925 = vsel %vm648, %v924, 0
    %927 = vmatpush.msra.mxu0 0.0
    %928 = vmatpush.msra.mxu0 0.0
    %929 = vmatpush.msra.mxu0 0.0
    %930 = vmatpush.msra.mxu0 0.0
    %931 = vmatpush.msra.mxu0 0.0
    %932 = vmatpush.msra.mxu0 0.0
    %933 = vmatpush.msra.mxu0 0.0
    %934 = vmatpush.msra.mxu0 0.0
    %935 = vmatpush.msra.mxu0 0.0
    %936 = vmatpush.msra.mxu0 0.0
    %937 = vmatpush.msra.mxu0 0.0
    %938 = vmatpush.msra.mxu0 0.0
    %939 = vmatpush.msra.mxu0 %v633
    %940 = vmatpush.msra.mxu0 %v632
    %941 = vmatpush.msra.mxu0 %v631
    %942 = vmatpush.msra.mxu0 %v630
    %943 = vmatmul.f32.gmra.mxu0 %v925
    %v944 = vpop.f32.mrf.mxu0
    %v945 = vadd.f32 0.0, %v944
    %946 = vdwg.mxu0
    %948 = vrot.lane.b32.xlu0 %v903, 96
    %v949 = vpop.permute.xlu0 %948
    %v950 = vsel %vm648, %v949, 0
    %952 = vmatpush.msra.mxu0 0.0
    %953 = vmatpush.msra.mxu0 0.0
    %954 = vmatpush.msra.mxu0 0.0
    %955 = vmatpush.msra.mxu0 0.0
    %956 = vmatpush.msra.mxu0 0.0
    %957 = vmatpush.msra.mxu0 0.0
    %958 = vmatpush.msra.mxu0 0.0
    %959 = vmatpush.msra.mxu0 0.0
    %960 = vmatpush.msra.mxu0 0.0
    %961 = vmatpush.msra.mxu0 0.0
    %962 = vmatpush.msra.mxu0 0.0
    %963 = vmatpush.msra.mxu0 0.0
    %964 = vmatpush.msra.mxu0 %v637
    %965 = vmatpush.msra.mxu0 %v636
    %966 = vmatpush.msra.mxu0 %v635
    %967 = vmatpush.msra.mxu0 %v634
    %968 = vmatmul.f32.gmra.mxu0 %v950
    %v969 = vpop.f32.mrf.mxu0
    %v970 = vadd.f32 0.0, %v969
    %971 = vdwg.mxu0
    %v973 = vrot.slane %v945, 1
    %v976 = vrot.slane %v970, 1
    %v978 = vadd.f32 %v945, %v970
    %v979 = vadd.f32 %v973, %v976
    %v982 = vperm.slane %v978, 0
    %v983 = vperm.slane %v979, 0
    %v986 = vadd.f32 %v982, %v628
    %v987 = vadd.f32 %v983, %v629
    %v988 = vtanh.pop %v986
    %v989 = vtanh.pop %v987
    %v990 = vmul.f32 %v988, %v711
    %v991 = vmul.f32 %v989, %v711
    %v992 = vsel %vm715, %v990, 0.0
    %993 = vadd.xlane.f32.xlu0 %v992
    %v994 = vpop.xlane.xlu0 %993
    %v995 = vsel %vm715, %v991, 0.0
    %996 = vadd.xlane.f32.xlu0 %v995
    %v997 = vpop.xlane.xlu0 %996
    %v998 = vadd.f32 %v994, %v726
    %v999 = vadd.f32 %v997, %v726
    %v1002 = vperm.slane %v998, %v647
    %v1003 = vperm.slane %v999, %v647
    %v1004 = vsel %vm734, %v1003, %v1002
    %v1006 = vsel %vm737, %v1004, -inf
    %1007 = vmax.xlane.f32.xlu0 %v1006
    %v1008 = vpop.xlane.xlu0 %1007
    %v1010 = vperm.slane %v1008, 0
    %v1011 = vperm.slane %v1008, 1
    %v1014 = vsub.f32 %v998, %v1010
    %v1015 = vsub.f32 %v999, %v1011
    %v1016 = vmul.f32 %v1014, 1.442695
    %v1017 = vpow.pop %v1016
    %v1018 = vmul.f32 %v1015, 1.442695
    %v1019 = vpow.pop %v1018
    %1022 = vset.pattern.permute.xlu0 0
    %1023 = vperm.xlu0 %1022, %v1017
    %v1024 = vpop.permute.xlu0 %1023
    %1025 = vset.pattern.permute.xlu0 0
    %1026 = vperm.xlu0 %1025, %v1019
    %v1027 = vpop.permute.xlu0 %1026
    %v1028 = vperm.slane %v1024, %v647
    %v1029 = vperm.slane %v1027, %v647
    %v1030 = vsel %vm734, %v1029, %v1028
    %v1032 = vsel %vm737, %v1030, 0.0
    %1033 = vadd.xlane.f32.xlu0 %v1032
    %v1034 = vpop.xlane.xlu0 %1033
    %v1036 = vperm.slane %v1034, 0
    %v1037 = vperm.slane %v1034, 1
    %v1040 = vrcp.pop %v1036
    %v1041 = vmul.f32 %v1036, %v1040
    %v1042 = vsub.f32 1.0, %v1041
    %v1043 = vmul.f32 %v1040, %v1042
    %v1044 = vadd.f32 %v1040, %v1043
    %vm1045 = vweird.f32 %v1036
    %vm1046 = vweird.f32 %v1040
    %vm1047 = vmor %vm1045, %vm1046
    %v1048 = vsel %vm1047, %v1040, %v1044
    %v1049 = vand.u32 2147483647, %v1036
    %vm1050 = vcmp.eq.f32.partialorder %v1049, 8.507059e+37
    %v1051 = vand.u32 %v1036, 2147483648
    %v1052 = vor.u32 1.1754944e-38, %v1051
    %v1053 = vsel %vm1050, %v1052, %v1048
    %v1054 = vmul.f32 %v1017, %v1053
    %v1055 = vrcp.pop %v1037
    %v1056 = vmul.f32 %v1037, %v1055
    %v1057 = vsub.f32 1.0, %v1056
    %v1058 = vmul.f32 %v1055, %v1057
    %v1059 = vadd.f32 %v1055, %v1058
    %vm1060 = vweird.f32 %v1037
    %vm1061 = vweird.f32 %v1055
    %vm1062 = vmor %vm1060, %vm1061
    %v1063 = vsel %vm1062, %v1055, %v1059
    %v1064 = vand.u32 2147483647, %v1037
    %vm1065 = vcmp.eq.f32.partialorder %v1064, 8.507059e+37
    %v1066 = vand.u32 %v1037, 2147483648
    %v1067 = vor.u32 1.1754944e-38, %v1066
    %v1068 = vsel %vm1065, %v1067, %v1063
    %v1069 = vmul.f32 %v1019, %v1068
    %vm1070 = vcmp.eq.s32.totalorder %v647, 1
    %v1071 = vsel %vm1070, %v561, 0.0
    %v1072 = vsel %vm1070, %v590, 0.0
    %v1073 = vsel %vm715, %v1071, 0.0
    %1074 = vadd.xlane.f32.xlu0 %v1073
    %v1075 = vpop.xlane.xlu0 %1074
    %v1076 = vsel %vm715, %v1072, 0.0
    %1077 = vadd.xlane.f32.xlu0 %v1076
    %v1078 = vpop.xlane.xlu0 %1077
    %v1079 = vmul.f32 %v1054, %v1075
    %v1080 = vmul.f32 %v1069, %v1078
    %1081 = vmatpush.msra.mxu0 0.0
    %1082 = vmatpush.msra.mxu0 0.0
    %1083 = vmatpush.msra.mxu0 0.0
    %1084 = vmatpush.msra.mxu0 0.0
    %1085 = vmatpush.msra.mxu0 0.0
    %1086 = vmatpush.msra.mxu0 0.0
    %1087 = vmatpush.msra.mxu0 0.0
    %1088 = vmatpush.msra.mxu0 0.0
    %1089 = vmatpush.msra.mxu0 0.0
    %1090 = vmatpush.msra.mxu0 0.0
    %1091 = vmatpush.msra.mxu0 0.0
    %1092 = vmatpush.msra.mxu0 0.0
    %1093 = vmatpush.msra.mxu0 %v644
    %1094 = vmatpush.msra.mxu0 %v643
    %1095 = vmatpush.msra.mxu0 %v642
    %1096 = vmatpush.msra.mxu0 %v641
    %1097 = vmatmul.f32.gmra.mxu0 %v925
    %v1098 = vpop.f32.mrf.mxu0
    %v1099 = vadd.f32 0.0, %v1098
    %1100 = vdwg.mxu0
    %1103 = vset.pattern.permute.xlu0 0
    %1104 = vperm.xlu0 %1103, %v1079
    %v1105 = vpop.permute.xlu0 %1104
    %1106 = vset.pattern.permute.xlu0 0
    %1107 = vperm.xlu0 %1106, %v1080
    %v1108 = vpop.permute.xlu0 %1107
    %v1109 = vperm.slane %v1105, %v647
    %v1110 = vperm.slane %v1108, %v647
    %v1111 = vsel %vm734, %v1110, %v1109
    %v1112 = vsel %vm536, %v1111, 0
    %1114 = vmatpush.msra.mxu0 0.0
    %1115 = vmatpush.msra.mxu0 0.0
    %1116 = vmatpush.msra.mxu0 0.0
    %1117 = vmatpush.msra.mxu0 0.0
    %1118 = vmatpush.msra.mxu0 0.0
    %1119 = vmatpush.msra.mxu0 0.0
    %1120 = vmatpush.msra.mxu0 0.0
    %1121 = vmatpush.msra.mxu0 0.0
    %1122 = vmatpush.msra.mxu0 0.0
    %1123 = vmatpush.msra.mxu0 0.0
    %1124 = vmatpush.msra.mxu0 0.0
    %1125 = vmatpush.msra.mxu0 0.0
    %1126 = vmatpush.msra.mxu0 0.0
    %1127 = vmatpush.msra.mxu0 0.0
    %1128 = vmatpush.msra.mxu0 0.0
    %1129 = vmatpush.msra.mxu0 %v847
    %1130 = vmatmul.f32.gmra.mxu0 %v1112
    %v1131 = vpop.f32.mrf.mxu0
    %v1132 = vadd.f32 %v1099, %v1131
    %1133 = vdwg.mxu0
    %v1134 = vadd.f32 %v1132, %v870
    %v1135 = vsub.f32 0.0, %v1134
    %v1136 = vmul.f32 %v1135, 1.442695
    %v1137 = vpow.pop %v1136
    %v1138 = vadd.f32 %v1137, 1.0
    %v1139 = vrcp.pop %v1138
    %v1140 = vmul.f32 %v1138, %v1139
    %v1141 = vsub.f32 1.0, %v1140
    %v1142 = vmul.f32 %v1139, %v1141
    %v1143 = vadd.f32 %v1139, %v1142
    %vm1144 = vweird.f32 %v1138
    %vm1145 = vweird.f32 %v1139
    %vm1146 = vmor %vm1144, %vm1145
    %v1147 = vsel %vm1146, %v1139, %v1143
    %v1148 = vand.u32 2147483647, %v1138
    %vm1149 = vcmp.eq.f32.partialorder %v1148, 8.507059e+37
    %v1150 = vand.u32 %v1138, 2147483648
    %v1151 = vor.u32 1.1754944e-38, %v1150
    %v1152 = vsel %vm1149, %v1151, %v1147
    %v1153 = vmul.f32 1.0, %v1152
    %v1154 = vtanh.pop %v1134
    %v1155 = vmul.f32 %v1153, %v903
    %1157 = vrot.lane.b32.xlu0 %v1154, 64
    %v1158 = vpop.permute.xlu0 %1157
    %v1160 = vmul.f32 %v1153, %v1158
    %1162 = vrot.lane.b32.xlu0 %v1160, 32
    %v1163 = vpop.permute.xlu0 %1162
    %v1165 = vadd.f32 %v1155, %v1163
    %v1166 = vtanh.pop %v1165
    %1168 = vrot.lane.b32.xlu0 %v1166, 64
    %v1169 = vpop.permute.xlu0 %1168
    %v1171 = vmul.f32 %v1153, %v1169
    %v1173 = vrot.slane %v1171, 1
    %v1174 = vperm.slane %v1171, 0
    %v1175 = vperm.slane %v1173, 0
    %1176 = vrot.lane.b32.xlu0 %v1174, 32
    %v1177 = vpop.permute.xlu0 %1176
    %1178 = vrot.lane.b32.xlu0 %v1175, 32
    %v1179 = vpop.permute.xlu0 %1178
    %1182 = vst.msk [vmem:[#allocation2 + $0x1] sm:$0x1] %vm920, %v1177
    %1183 = vst.msk [vmem:[#allocation2 + $0x9] sm:$0x1] %vm920, %v1179
    %1184 = vrot.lane.b32.xlu0 %v1171, 32
    %v1185 = vpop.permute.xlu0 %1184
    %v1186 = vsel %vm648, %v1185, 0
    %1188 = vmatpush.msra.mxu0 0.0
    %1189 = vmatpush.msra.mxu0 0.0
    %1190 = vmatpush.msra.mxu0 0.0
    %1191 = vmatpush.msra.mxu0 0.0
    %1192 = vmatpush.msra.mxu0 0.0
    %1193 = vmatpush.msra.mxu0 0.0
    %1194 = vmatpush.msra.mxu0 0.0
    %1195 = vmatpush.msra.mxu0 0.0
    %1196 = vmatpush.msra.mxu0 0.0
    %1197 = vmatpush.msra.mxu0 0.0
    %1198 = vmatpush.msra.mxu0 0.0
    %1199 = vmatpush.msra.mxu0 0.0
    %1200 = vmatpush.msra.mxu0 %v633
    %1201 = vmatpush.msra.mxu0 %v632
    %1202 = vmatpush.msra.mxu0 %v631
    %1203 = vmatpush.msra.mxu0 %v630
    %1204 = vmatmul.f32.gmra.mxu0 %v1186
    %v1205 = vpop.f32.mrf.mxu0
    %v1206 = vadd.f32 0.0, %v1205
    %1207 = vdwg.mxu0
    %1209 = vrot.lane.b32.xlu0 %v1165, 96
    %v1210 = vpop.permute.xlu0 %1209
    %v1211 = vsel %vm648, %v1210, 0
    %1213 = vmatpush.msra.mxu0 0.0
    %1214 = vmatpush.msra.mxu0 0.0
    %1215 = vmatpush.msra.mxu0 0.0
    %1216 = vmatpush.msra.mxu0 0.0
    %1217 = vmatpush.msra.mxu0 0.0
    %1218 = vmatpush.msra.mxu0 0.0
    %1219 = vmatpush.msra.mxu0 0.0
    %1220 = vmatpush.msra.mxu0 0.0
    %1221 = vmatpush.msra.mxu0 0.0
    %1222 = vmatpush.msra.mxu0 0.0
    %1223 = vmatpush.msra.mxu0 0.0
    %1224 = vmatpush.msra.mxu0 0.0
    %1225 = vmatpush.msra.mxu0 %v637
    %1226 = vmatpush.msra.mxu0 %v636
    %1227 = vmatpush.msra.mxu0 %v635
    %1228 = vmatpush.msra.mxu0 %v634
    %1229 = vmatmul.f32.gmra.mxu0 %v1211
    %v1230 = vpop.f32.mrf.mxu0
    %v1231 = vadd.f32 0.0, %v1230
    %1232 = vdwg.mxu0
    %v1234 = vrot.slane %v1206, 1
    %v1237 = vrot.slane %v1231, 1
    %v1239 = vadd.f32 %v1206, %v1231
    %v1240 = vadd.f32 %v1234, %v1237
    %v1243 = vperm.slane %v1239, 0
    %v1244 = vperm.slane %v1240, 0
    %v1247 = vadd.f32 %v1243, %v628
    %v1248 = vadd.f32 %v1244, %v629
    %v1249 = vtanh.pop %v1247
    %v1250 = vtanh.pop %v1248
    %v1251 = vmul.f32 %v1249, %v711
    %v1252 = vmul.f32 %v1250, %v711
    %v1253 = vsel %vm715, %v1251, 0.0
    %1254 = vadd.xlane.f32.xlu0 %v1253
    %v1255 = vpop.xlane.xlu0 %1254
    %v1256 = vsel %vm715, %v1252, 0.0
    %1257 = vadd.xlane.f32.xlu0 %v1256
    %v1258 = vpop.xlane.xlu0 %1257
    %v1259 = vadd.f32 %v1255, %v726
    %v1260 = vadd.f32 %v1258, %v726
    %v1263 = vperm.slane %v1259, %v647
    %v1264 = vperm.slane %v1260, %v647
    %v1265 = vsel %vm734, %v1264, %v1263
    %v1267 = vsel %vm737, %v1265, -inf
    %1268 = vmax.xlane.f32.xlu0 %v1267
    %v1269 = vpop.xlane.xlu0 %1268
    %v1271 = vperm.slane %v1269, 0
    %v1272 = vperm.slane %v1269, 1
    %v1275 = vsub.f32 %v1259, %v1271
    %v1276 = vsub.f32 %v1260, %v1272
    %v1277 = vmul.f32 %v1275, 1.442695
    %v1278 = vpow.pop %v1277
    %v1279 = vmul.f32 %v1276, 1.442695
    %v1280 = vpow.pop %v1279
    %1283 = vset.pattern.permute.xlu0 0
    %1284 = vperm.xlu0 %1283, %v1278
    %v1285 = vpop.permute.xlu0 %1284
    %1286 = vset.pattern.permute.xlu0 0
    %1287 = vperm.xlu0 %1286, %v1280
    %v1288 = vpop.permute.xlu0 %1287
    %v1289 = vperm.slane %v1285, %v647
    %v1290 = vperm.slane %v1288, %v647
    %v1291 = vsel %vm734, %v1290, %v1289
    %v1293 = vsel %vm737, %v1291, 0.0
    %1294 = vadd.xlane.f32.xlu0 %v1293
    %v1295 = vpop.xlane.xlu0 %1294
    %v1297 = vperm.slane %v1295, 0
    %v1298 = vperm.slane %v1295, 1
    %v1301 = vrcp.pop %v1297
    %v1302 = vmul.f32 %v1297, %v1301
    %v1303 = vsub.f32 1.0, %v1302
    %v1304 = vmul.f32 %v1301, %v1303
    %v1305 = vadd.f32 %v1301, %v1304
    %vm1306 = vweird.f32 %v1297
    %vm1307 = vweird.f32 %v1301
    %vm1308 = vmor %vm1306, %vm1307
    %v1309 = vsel %vm1308, %v1301, %v1305
    %v1310 = vand.u32 2147483647, %v1297
    %vm1311 = vcmp.eq.f32.partialorder %v1310, 8.507059e+37
    %v1312 = vand.u32 %v1297, 2147483648
    %v1313 = vor.u32 1.1754944e-38, %v1312
    %v1314 = vsel %vm1311, %v1313, %v1309
    %v1315 = vmul.f32 %v1278, %v1314
    %v1316 = vrcp.pop %v1298
    %v1317 = vmul.f32 %v1298, %v1316
    %v1318 = vsub.f32 1.0, %v1317
    %v1319 = vmul.f32 %v1316, %v1318
    %v1320 = vadd.f32 %v1316, %v1319
    %vm1321 = vweird.f32 %v1298
    %vm1322 = vweird.f32 %v1316
    %vm1323 = vmor %vm1321, %vm1322
    %v1324 = vsel %vm1323, %v1316, %v1320
    %v1325 = vand.u32 2147483647, %v1298
    %vm1326 = vcmp.eq.f32.partialorder %v1325, 8.507059e+37
    %v1327 = vand.u32 %v1298, 2147483648
    %v1328 = vor.u32 1.1754944e-38, %v1327
    %v1329 = vsel %vm1326, %v1328, %v1324
    %v1330 = vmul.f32 %v1280, %v1329
    %vm1331 = vcmp.eq.s32.totalorder %v647, 2
    %v1332 = vsel %vm1331, %v561, 0.0
    %v1333 = vsel %vm1331, %v590, 0.0
    %v1334 = vsel %vm715, %v1332, 0.0
    %1335 = vadd.xlane.f32.xlu0 %v1334
    %v1336 = vpop.xlane.xlu0 %1335
    %v1337 = vsel %vm715, %v1333, 0.0
    %1338 = vadd.xlane.f32.xlu0 %v1337
    %v1339 = vpop.xlane.xlu0 %1338
    %v1340 = vmul.f32 %v1315, %v1336
    %v1341 = vmul.f32 %v1330, %v1339
    %1342 = vmatpush.msra.mxu0 0.0
    %1343 = vmatpush.msra.mxu0 0.0
    %1344 = vmatpush.msra.mxu0 0.0
    %1345 = vmatpush.msra.mxu0 0.0
    %1346 = vmatpush.msra.mxu0 0.0
    %1347 = vmatpush.msra.mxu0 0.0
    %1348 = vmatpush.msra.mxu0 0.0
    %1349 = vmatpush.msra.mxu0 0.0
    %1350 = vmatpush.msra.mxu0 0.0
    %1351 = vmatpush.msra.mxu0 0.0
    %1352 = vmatpush.msra.mxu0 0.0
    %1353 = vmatpush.msra.mxu0 0.0
    %1354 = vmatpush.msra.mxu0 %v644
    %1355 = vmatpush.msra.mxu0 %v643
    %1356 = vmatpush.msra.mxu0 %v642
    %1357 = vmatpush.msra.mxu0 %v641
    %1358 = vmatmul.f32.gmra.mxu0 %v1186
    %v1359 = vpop.f32.mrf.mxu0
    %v1360 = vadd.f32 0.0, %v1359
    %1361 = vdwg.mxu0
    %1364 = vset.pattern.permute.xlu0 0
    %1365 = vperm.xlu0 %1364, %v1340
    %v1366 = vpop.permute.xlu0 %1365
    %1367 = vset.pattern.permute.xlu0 0
    %1368 = vperm.xlu0 %1367, %v1341
    %v1369 = vpop.permute.xlu0 %1368
    %v1370 = vperm.slane %v1366, %v647
    %v1371 = vperm.slane %v1369, %v647
    %v1372 = vsel %vm734, %v1371, %v1370
    %v1373 = vsel %vm536, %v1372, 0
    %1375 = vmatpush.msra.mxu0 0.0
    %1376 = vmatpush.msra.mxu0 0.0
    %1377 = vmatpush.msra.mxu0 0.0
    %1378 = vmatpush.msra.mxu0 0.0
    %1379 = vmatpush.msra.mxu0 0.0
    %1380 = vmatpush.msra.mxu0 0.0
    %1381 = vmatpush.msra.mxu0 0.0
    %1382 = vmatpush.msra.mxu0 0.0
    %1383 = vmatpush.msra.mxu0 0.0
    %1384 = vmatpush.msra.mxu0 0.0
    %1385 = vmatpush.msra.mxu0 0.0
    %1386 = vmatpush.msra.mxu0 0.0
    %1387 = vmatpush.msra.mxu0 0.0
    %1388 = vmatpush.msra.mxu0 0.0
    %1389 = vmatpush.msra.mxu0 0.0
    %1390 = vmatpush.msra.mxu0 %v847
    %1391 = vmatmul.f32.gmra.mxu0 %v1373
    %v1392 = vpop.f32.mrf.mxu0
    %v1393 = vadd.f32 %v1360, %v1392
    %1394 = vdwg.mxu0
    %v1395 = vadd.f32 %v1393, %v870
    %v1396 = vsub.f32 0.0, %v1395
    %v1397 = vmul.f32 %v1396, 1.442695
    %v1398 = vpow.pop %v1397
    %v1399 = vadd.f32 %v1398, 1.0
    %v1400 = vrcp.pop %v1399
    %v1401 = vmul.f32 %v1399, %v1400
    %v1402 = vsub.f32 1.0, %v1401
    %v1403 = vmul.f32 %v1400, %v1402
    %v1404 = vadd.f32 %v1400, %v1403
    %vm1405 = vweird.f32 %v1399
    %vm1406 = vweird.f32 %v1400
    %vm1407 = vmor %vm1405, %vm1406
    %v1408 = vsel %vm1407, %v1400, %v1404
    %v1409 = vand.u32 2147483647, %v1399
    %vm1410 = vcmp.eq.f32.partialorder %v1409, 8.507059e+37
    %v1411 = vand.u32 %v1399, 2147483648
    %v1412 = vor.u32 1.1754944e-38, %v1411
    %v1413 = vsel %vm1410, %v1412, %v1408
    %v1414 = vmul.f32 1.0, %v1413
    %v1415 = vtanh.pop %v1395
    %v1416 = vmul.f32 %v1414, %v1165
    %1418 = vrot.lane.b32.xlu0 %v1415, 64
    %v1419 = vpop.permute.xlu0 %1418
    %v1421 = vmul.f32 %v1414, %v1419
    %1423 = vrot.lane.b32.xlu0 %v1421, 32
    %v1424 = vpop.permute.xlu0 %1423
    %v1426 = vadd.f32 %v1416, %v1424
    %v1427 = vtanh.pop %v1426
    %1429 = vrot.lane.b32.xlu0 %v1427, 64
    %v1430 = vpop.permute.xlu0 %1429
    %v1432 = vmul.f32 %v1414, %v1430
    %v1434 = vrot.slane %v1432, 1
    %v1435 = vperm.slane %v1432, 0
    %v1436 = vperm.slane %v1434, 0
    %1437 = vrot.lane.b32.xlu0 %v1435, 32
    %v1438 = vpop.permute.xlu0 %1437
    %1439 = vrot.lane.b32.xlu0 %v1436, 32
    %v1440 = vpop.permute.xlu0 %1439
    %1443 = vst.msk [vmem:[#allocation2 + $0x2] sm:$0x1] %vm920, %v1438
    %1444 = vst.msk [vmem:[#allocation2 + $0xa] sm:$0x1] %vm920, %v1440
    %1445 = vrot.lane.b32.xlu0 %v1432, 32
    %v1446 = vpop.permute.xlu0 %1445
    %v1447 = vsel %vm648, %v1446, 0
    %1449 = vmatpush.msra.mxu0 0.0
    %1450 = vmatpush.msra.mxu0 0.0
    %1451 = vmatpush.msra.mxu0 0.0
    %1452 = vmatpush.msra.mxu0 0.0
    %1453 = vmatpush.msra.mxu0 0.0
    %1454 = vmatpush.msra.mxu0 0.0
    %1455 = vmatpush.msra.mxu0 0.0
    %1456 = vmatpush.msra.mxu0 0.0
    %1457 = vmatpush.msra.mxu0 0.0
    %1458 = vmatpush.msra.mxu0 0.0
    %1459 = vmatpush.msra.mxu0 0.0
    %1460 = vmatpush.msra.mxu0 0.0
    %1461 = vmatpush.msra.mxu0 %v633
    %1462 = vmatpush.msra.mxu0 %v632
    %1463 = vmatpush.msra.mxu0 %v631
    %1464 = vmatpush.msra.mxu0 %v630
    %1465 = vmatmul.f32.gmra.mxu0 %v1447
    %v1466 = vpop.f32.mrf.mxu0
    %v1467 = vadd.f32 0.0, %v1466
    %1468 = vdwg.mxu0
    %1470 = vrot.lane.b32.xlu0 %v1426, 96
    %v1471 = vpop.permute.xlu0 %1470
    %v1472 = vsel %vm648, %v1471, 0
    %1474 = vmatpush.msra.mxu0 0.0
    %1475 = vmatpush.msra.mxu0 0.0
    %1476 = vmatpush.msra.mxu0 0.0
    %1477 = vmatpush.msra.mxu0 0.0
    %1478 = vmatpush.msra.mxu0 0.0
    %1479 = vmatpush.msra.mxu0 0.0
    %1480 = vmatpush.msra.mxu0 0.0
    %1481 = vmatpush.msra.mxu0 0.0
    %1482 = vmatpush.msra.mxu0 0.0
    %1483 = vmatpush.msra.mxu0 0.0
    %1484 = vmatpush.msra.mxu0 0.0
    %1485 = vmatpush.msra.mxu0 0.0
    %1486 = vmatpush.msra.mxu0 %v637
    %1487 = vmatpush.msra.mxu0 %v636
    %1488 = vmatpush.msra.mxu0 %v635
    %1489 = vmatpush.msra.mxu0 %v634
    %1490 = vmatmul.f32.gmra.mxu0 %v1472
    %v1491 = vpop.f32.mrf.mxu0
    %v1492 = vadd.f32 0.0, %v1491
    %1493 = vdwg.mxu0
    %v1495 = vrot.slane %v1467, 1
    %v1498 = vrot.slane %v1492, 1
    %v1500 = vadd.f32 %v1467, %v1492
    %v1501 = vadd.f32 %v1495, %v1498
    %v1504 = vperm.slane %v1500, 0
    %v1505 = vperm.slane %v1501, 0
    %v1508 = vadd.f32 %v1504, %v628
    %v1509 = vadd.f32 %v1505, %v629
    %v1510 = vtanh.pop %v1508
    %v1511 = vtanh.pop %v1509
    %v1512 = vmul.f32 %v1510, %v711
    %v1513 = vmul.f32 %v1511, %v711
    %v1514 = vsel %vm715, %v1512, 0.0
    %1515 = vadd.xlane.f32.xlu0 %v1514
    %v1516 = vpop.xlane.xlu0 %1515
    %v1517 = vsel %vm715, %v1513, 0.0
    %1518 = vadd.xlane.f32.xlu0 %v1517
    %v1519 = vpop.xlane.xlu0 %1518
    %v1520 = vadd.f32 %v1516, %v726
    %v1521 = vadd.f32 %v1519, %v726
    %v1524 = vperm.slane %v1520, %v647
    %v1525 = vperm.slane %v1521, %v647
    %v1526 = vsel %vm734, %v1525, %v1524
    %v1528 = vsel %vm737, %v1526, -inf
    %1529 = vmax.xlane.f32.xlu0 %v1528
    %v1530 = vpop.xlane.xlu0 %1529
    %v1532 = vperm.slane %v1530, 0
    %v1533 = vperm.slane %v1530, 1
    %v1536 = vsub.f32 %v1520, %v1532
    %v1537 = vsub.f32 %v1521, %v1533
    %v1538 = vmul.f32 %v1536, 1.442695
    %v1539 = vpow.pop %v1538
    %v1540 = vmul.f32 %v1537, 1.442695
    %v1541 = vpow.pop %v1540
    %1544 = vset.pattern.permute.xlu0 0
    %1545 = vperm.xlu0 %1544, %v1539
    %v1546 = vpop.permute.xlu0 %1545
    %1547 = vset.pattern.permute.xlu0 0
    %1548 = vperm.xlu0 %1547, %v1541
    %v1549 = vpop.permute.xlu0 %1548
    %v1550 = vperm.slane %v1546, %v647
    %v1551 = vperm.slane %v1549, %v647
    %v1552 = vsel %vm734, %v1551, %v1550
    %v1554 = vsel %vm737, %v1552, 0.0
    %1555 = vadd.xlane.f32.xlu0 %v1554
    %v1556 = vpop.xlane.xlu0 %1555
    %v1558 = vperm.slane %v1556, 0
    %v1559 = vperm.slane %v1556, 1
    %v1562 = vrcp.pop %v1558
    %v1563 = vmul.f32 %v1558, %v1562
    %v1564 = vsub.f32 1.0, %v1563
    %v1565 = vmul.f32 %v1562, %v1564
    %v1566 = vadd.f32 %v1562, %v1565
    %vm1567 = vweird.f32 %v1558
    %vm1568 = vweird.f32 %v1562
    %vm1569 = vmor %vm1567, %vm1568
    %v1570 = vsel %vm1569, %v1562, %v1566
    %v1571 = vand.u32 2147483647, %v1558
    %vm1572 = vcmp.eq.f32.partialorder %v1571, 8.507059e+37
    %v1573 = vand.u32 %v1558, 2147483648
    %v1574 = vor.u32 1.1754944e-38, %v1573
    %v1575 = vsel %vm1572, %v1574, %v1570
    %v1576 = vmul.f32 %v1539, %v1575
    %v1577 = vrcp.pop %v1559
    %v1578 = vmul.f32 %v1559, %v1577
    %v1579 = vsub.f32 1.0, %v1578
    %v1580 = vmul.f32 %v1577, %v1579
    %v1581 = vadd.f32 %v1577, %v1580
    %vm1582 = vweird.f32 %v1559
    %vm1583 = vweird.f32 %v1577
    %vm1584 = vmor %vm1582, %vm1583
    %v1585 = vsel %vm1584, %v1577, %v1581
    %v1586 = vand.u32 2147483647, %v1559
    %vm1587 = vcmp.eq.f32.partialorder %v1586, 8.507059e+37
    %v1588 = vand.u32 %v1559, 2147483648
    %v1589 = vor.u32 1.1754944e-38, %v1588
    %v1590 = vsel %vm1587, %v1589, %v1585
    %v1591 = vmul.f32 %v1541, %v1590
    %vm1592 = vcmp.eq.s32.totalorder %v647, 3
    %v1593 = vsel %vm1592, %v561, 0.0
    %v1594 = vsel %vm1592, %v590, 0.0
    %v1595 = vsel %vm715, %v1593, 0.0
    %1596 = vadd.xlane.f32.xlu0 %v1595
    %v1597 = vpop.xlane.xlu0 %1596
    %v1598 = vsel %vm715, %v1594, 0.0
    %1599 = vadd.xlane.f32.xlu0 %v1598
    %v1600 = vpop.xlane.xlu0 %1599
    %v1601 = vmul.f32 %v1576, %v1597
    %v1602 = vmul.f32 %v1591, %v1600
    %1603 = vmatpush.msra.mxu0 0.0
    %1604 = vmatpush.msra.mxu0 0.0
    %1605 = vmatpush.msra.mxu0 0.0
    %1606 = vmatpush.msra.mxu0 0.0
    %1607 = vmatpush.msra.mxu0 0.0
    %1608 = vmatpush.msra.mxu0 0.0
    %1609 = vmatpush.msra.mxu0 0.0
    %1610 = vmatpush.msra.mxu0 0.0
    %1611 = vmatpush.msra.mxu0 0.0
    %1612 = vmatpush.msra.mxu0 0.0
    %1613 = vmatpush.msra.mxu0 0.0
    %1614 = vmatpush.msra.mxu0 0.0
    %1615 = vmatpush.msra.mxu0 %v644
    %1616 = vmatpush.msra.mxu0 %v643
    %1617 = vmatpush.msra.mxu0 %v642
    %1618 = vmatpush.msra.mxu0 %v641
    %1619 = vmatmul.f32.gmra.mxu0 %v1447
    %v1620 = vpop.f32.mrf.mxu0
    %v1621 = vadd.f32 0.0, %v1620
    %1622 = vdwg.mxu0
    %1625 = vset.pattern.permute.xlu0 0
    %1626 = vperm.xlu0 %1625, %v1601
    %v1627 = vpop.permute.xlu0 %1626
    %1628 = vset.pattern.permute.xlu0 0
    %1629 = vperm.xlu0 %1628, %v1602
    %v1630 = vpop.permute.xlu0 %1629
    %v1631 = vperm.slane %v1627, %v647
    %v1632 = vperm.slane %v1630, %v647
    %v1633 = vsel %vm734, %v1632, %v1631
    %v1634 = vsel %vm536, %v1633, 0
    %1636 = vmatpush.msra.mxu0 0.0
    %1637 = vmatpush.msra.mxu0 0.0
    %1638 = vmatpush.msra.mxu0 0.0
    %1639 = vmatpush.msra.mxu0 0.0
    %1640 = vmatpush.msra.mxu0 0.0
    %1641 = vmatpush.msra.mxu0 0.0
    %1642 = vmatpush.msra.mxu0 0.0
    %1643 = vmatpush.msra.mxu0 0.0
    %1644 = vmatpush.msra.mxu0 0.0
    %1645 = vmatpush.msra.mxu0 0.0
    %1646 = vmatpush.msra.mxu0 0.0
    %1647 = vmatpush.msra.mxu0 0.0
    %1648 = vmatpush.msra.mxu0 0.0
    %1649 = vmatpush.msra.mxu0 0.0
    %1650 = vmatpush.msra.mxu0 0.0
    %1651 = vmatpush.msra.mxu0 %v847
    %1652 = vmatmul.f32.gmra.mxu0 %v1634
    %v1653 = vpop.f32.mrf.mxu0
    %v1654 = vadd.f32 %v1621, %v1653
    %1655 = vdwg.mxu0
    %v1656 = vadd.f32 %v1654, %v870
    %v1657 = vsub.f32 0.0, %v1656
    %v1658 = vmul.f32 %v1657, 1.442695
    %v1659 = vpow.pop %v1658
    %v1660 = vadd.f32 %v1659, 1.0
    %v1661 = vrcp.pop %v1660
    %v1662 = vmul.f32 %v1660, %v1661
    %v1663 = vsub.f32 1.0, %v1662
    %v1664 = vmul.f32 %v1661, %v1663
    %v1665 = vadd.f32 %v1661, %v1664
    %vm1666 = vweird.f32 %v1660
    %vm1667 = vweird.f32 %v1661
    %vm1668 = vmor %vm1666, %vm1667
    %v1669 = vsel %vm1668, %v1661, %v1665
    %v1670 = vand.u32 2147483647, %v1660
    %vm1671 = vcmp.eq.f32.partialorder %v1670, 8.507059e+37
    %v1672 = vand.u32 %v1660, 2147483648
    %v1673 = vor.u32 1.1754944e-38, %v1672
    %v1674 = vsel %vm1671, %v1673, %v1669
    %v1675 = vmul.f32 1.0, %v1674
    %v1676 = vtanh.pop %v1656
    %v1677 = vmul.f32 %v1675, %v1426
    %1679 = vrot.lane.b32.xlu0 %v1676, 64
    %v1680 = vpop.permute.xlu0 %1679
    %v1682 = vmul.f32 %v1675, %v1680
    %1684 = vrot.lane.b32.xlu0 %v1682, 32
    %v1685 = vpop.permute.xlu0 %1684
    %v1687 = vadd.f32 %v1677, %v1685
    %v1688 = vtanh.pop %v1687
    %1690 = vrot.lane.b32.xlu0 %v1688, 64
    %v1691 = vpop.permute.xlu0 %1690
    %v1693 = vmul.f32 %v1675, %v1691
    %v1695 = vrot.slane %v1693, 1
    %v1696 = vperm.slane %v1693, 0
    %v1697 = vperm.slane %v1695, 0
    %1698 = vrot.lane.b32.xlu0 %v1696, 32
    %v1699 = vpop.permute.xlu0 %1698
    %1700 = vrot.lane.b32.xlu0 %v1697, 32
    %v1701 = vpop.permute.xlu0 %1700
    %1704 = vst.msk [vmem:[#allocation2 + $0x3] sm:$0x1] %vm920, %v1699
    %1705 = vst.msk [vmem:[#allocation2 + $0xb] sm:$0x1] %vm920, %v1701
    %1706 = vrot.lane.b32.xlu0 %v1693, 32
    %v1707 = vpop.permute.xlu0 %1706
    %v1708 = vsel %vm648, %v1707, 0
    %1710 = vmatpush.msra.mxu0 0.0
    %1711 = vmatpush.msra.mxu0 0.0
    %1712 = vmatpush.msra.mxu0 0.0
    %1713 = vmatpush.msra.mxu0 0.0
    %1714 = vmatpush.msra.mxu0 0.0
    %1715 = vmatpush.msra.mxu0 0.0
    %1716 = vmatpush.msra.mxu0 0.0
    %1717 = vmatpush.msra.mxu0 0.0
    %1718 = vmatpush.msra.mxu0 0.0
    %1719 = vmatpush.msra.mxu0 0.0
    %1720 = vmatpush.msra.mxu0 0.0
    %1721 = vmatpush.msra.mxu0 0.0
    %1722 = vmatpush.msra.mxu0 %v633
    %1723 = vmatpush.msra.mxu0 %v632
    %1724 = vmatpush.msra.mxu0 %v631
    %1725 = vmatpush.msra.mxu0 %v630
    %1726 = vmatmul.f32.gmra.mxu0 %v1708
    %v1727 = vpop.f32.mrf.mxu0
    %v1728 = vadd.f32 0.0, %v1727
    %1729 = vdwg.mxu0
    %1731 = vrot.lane.b32.xlu0 %v1687, 96
    %v1732 = vpop.permute.xlu0 %1731
    %v1733 = vsel %vm648, %v1732, 0
    %1735 = vmatpush.msra.mxu0 0.0
    %1736 = vmatpush.msra.mxu0 0.0
    %1737 = vmatpush.msra.mxu0 0.0
    %1738 = vmatpush.msra.mxu0 0.0
    %1739 = vmatpush.msra.mxu0 0.0
    %1740 = vmatpush.msra.mxu0 0.0
    %1741 = vmatpush.msra.mxu0 0.0
    %1742 = vmatpush.msra.mxu0 0.0
    %1743 = vmatpush.msra.mxu0 0.0
    %1744 = vmatpush.msra.mxu0 0.0
    %1745 = vmatpush.msra.mxu0 0.0
    %1746 = vmatpush.msra.mxu0 0.0
    %1747 = vmatpush.msra.mxu0 %v637
    %1748 = vmatpush.msra.mxu0 %v636
    %1749 = vmatpush.msra.mxu0 %v635
    %1750 = vmatpush.msra.mxu0 %v634
    %1751 = vmatmul.f32.gmra.mxu0 %v1733
    %v1752 = vpop.f32.mrf.mxu0
    %v1753 = vadd.f32 0.0, %v1752
    %1754 = vdwg.mxu0
    %v1756 = vrot.slane %v1728, 1
    %v1759 = vrot.slane %v1753, 1
    %v1761 = vadd.f32 %v1728, %v1753
    %v1762 = vadd.f32 %v1756, %v1759
    %v1765 = vperm.slane %v1761, 0
    %v1766 = vperm.slane %v1762, 0
    %v1769 = vadd.f32 %v1765, %v628
    %v1770 = vadd.f32 %v1766, %v629
    %v1771 = vtanh.pop %v1769
    %v1772 = vtanh.pop %v1770
    %v1773 = vmul.f32 %v1771, %v711
    %v1774 = vmul.f32 %v1772, %v711
    %v1775 = vsel %vm715, %v1773, 0.0
    %1776 = vadd.xlane.f32.xlu0 %v1775
    %v1777 = vpop.xlane.xlu0 %1776
    %v1778 = vsel %vm715, %v1774, 0.0
    %1779 = vadd.xlane.f32.xlu0 %v1778
    %v1780 = vpop.xlane.xlu0 %1779
    %v1781 = vadd.f32 %v1777, %v726
    %v1782 = vadd.f32 %v1780, %v726
    %v1785 = vperm.slane %v1781, %v647
    %v1786 = vperm.slane %v1782, %v647
    %v1787 = vsel %vm734, %v1786, %v1785
    %v1789 = vsel %vm737, %v1787, -inf
    %1790 = vmax.xlane.f32.xlu0 %v1789
    %v1791 = vpop.xlane.xlu0 %1790
    %v1793 = vperm.slane %v1791, 0
    %v1794 = vperm.slane %v1791, 1
    %v1797 = vsub.f32 %v1781, %v1793
    %v1798 = vsub.f32 %v1782, %v1794
    %v1799 = vmul.f32 %v1797, 1.442695
    %v1800 = vpow.pop %v1799
    %v1801 = vmul.f32 %v1798, 1.442695
    %v1802 = vpow.pop %v1801
    %1805 = vset.pattern.permute.xlu0 0
    %1806 = vperm.xlu0 %1805, %v1800
    %v1807 = vpop.permute.xlu0 %1806
    %1808 = vset.pattern.permute.xlu0 0
    %1809 = vperm.xlu0 %1808, %v1802
    %v1810 = vpop.permute.xlu0 %1809
    %v1811 = vperm.slane %v1807, %v647
    %v1812 = vperm.slane %v1810, %v647
    %v1813 = vsel %vm734, %v1812, %v1811
    %v1815 = vsel %vm737, %v1813, 0.0
    %1816 = vadd.xlane.f32.xlu0 %v1815
    %v1817 = vpop.xlane.xlu0 %1816
    %v1819 = vperm.slane %v1817, 0
    %v1820 = vperm.slane %v1817, 1
    %v1823 = vrcp.pop %v1819
    %v1824 = vmul.f32 %v1819, %v1823
    %v1825 = vsub.f32 1.0, %v1824
    %v1826 = vmul.f32 %v1823, %v1825
    %v1827 = vadd.f32 %v1823, %v1826
    %vm1828 = vweird.f32 %v1819
    %vm1829 = vweird.f32 %v1823
    %vm1830 = vmor %vm1828, %vm1829
    %v1831 = vsel %vm1830, %v1823, %v1827
    %v1832 = vand.u32 2147483647, %v1819
    %vm1833 = vcmp.eq.f32.partialorder %v1832, 8.507059e+37
    %v1834 = vand.u32 %v1819, 2147483648
    %v1835 = vor.u32 1.1754944e-38, %v1834
    %v1836 = vsel %vm1833, %v1835, %v1831
    %v1837 = vmul.f32 %v1800, %v1836
    %v1838 = vrcp.pop %v1820
    %v1839 = vmul.f32 %v1820, %v1838
    %v1840 = vsub.f32 1.0, %v1839
    %v1841 = vmul.f32 %v1838, %v1840
    %v1842 = vadd.f32 %v1838, %v1841
    %vm1843 = vweird.f32 %v1820
    %vm1844 = vweird.f32 %v1838
    %vm1845 = vmor %vm1843, %vm1844
    %v1846 = vsel %vm1845, %v1838, %v1842
    %v1847 = vand.u32 2147483647, %v1820
    %vm1848 = vcmp.eq.f32.partialorder %v1847, 8.507059e+37
    %v1849 = vand.u32 %v1820, 2147483648
    %v1850 = vor.u32 1.1754944e-38, %v1849
    %v1851 = vsel %vm1848, %v1850, %v1846
    %v1852 = vmul.f32 %v1802, %v1851
    %vm1853 = vcmp.eq.s32.totalorder %v647, 4
    %v1854 = vsel %vm1853, %v561, 0.0
    %v1855 = vsel %vm1853, %v590, 0.0
    %v1856 = vsel %vm715, %v1854, 0.0
    %1857 = vadd.xlane.f32.xlu0 %v1856
    %v1858 = vpop.xlane.xlu0 %1857
    %v1859 = vsel %vm715, %v1855, 0.0
    %1860 = vadd.xlane.f32.xlu0 %v1859
    %v1861 = vpop.xlane.xlu0 %1860
    %v1862 = vmul.f32 %v1837, %v1858
    %v1863 = vmul.f32 %v1852, %v1861
    %1864 = vmatpush.msra.mxu0 0.0
    %1865 = vmatpush.msra.mxu0 0.0
    %1866 = vmatpush.msra.mxu0 0.0
    %1867 = vmatpush.msra.mxu0 0.0
    %1868 = vmatpush.msra.mxu0 0.0
    %1869 = vmatpush.msra.mxu0 0.0
    %1870 = vmatpush.msra.mxu0 0.0
    %1871 = vmatpush.msra.mxu0 0.0
    %1872 = vmatpush.msra.mxu0 0.0
    %1873 = vmatpush.msra.mxu0 0.0
    %1874 = vmatpush.msra.mxu0 0.0
    %1875 = vmatpush.msra.mxu0 0.0
    %1876 = vmatpush.msra.mxu0 %v644
    %1877 = vmatpush.msra.mxu0 %v643
    %1878 = vmatpush.msra.mxu0 %v642
    %1879 = vmatpush.msra.mxu0 %v641
    %1880 = vmatmul.f32.gmra.mxu0 %v1708
    %v1881 = vpop.f32.mrf.mxu0
    %v1882 = vadd.f32 0.0, %v1881
    %1883 = vdwg.mxu0
    %1886 = vset.pattern.permute.xlu0 0
    %1887 = vperm.xlu0 %1886, %v1862
    %v1888 = vpop.permute.xlu0 %1887
    %1889 = vset.pattern.permute.xlu0 0
    %1890 = vperm.xlu0 %1889, %v1863
    %v1891 = vpop.permute.xlu0 %1890
    %v1892 = vperm.slane %v1888, %v647
    %v1893 = vperm.slane %v1891, %v647
    %v1894 = vsel %vm734, %v1893, %v1892
    %v1895 = vsel %vm536, %v1894, 0
    %1897 = vmatpush.msra.mxu0 0.0
    %1898 = vmatpush.msra.mxu0 0.0
    %1899 = vmatpush.msra.mxu0 0.0
    %1900 = vmatpush.msra.mxu0 0.0
    %1901 = vmatpush.msra.mxu0 0.0
    %1902 = vmatpush.msra.mxu0 0.0
    %1903 = vmatpush.msra.mxu0 0.0
    %1904 = vmatpush.msra.mxu0 0.0
    %1905 = vmatpush.msra.mxu0 0.0
    %1906 = vmatpush.msra.mxu0 0.0
    %1907 = vmatpush.msra.mxu0 0.0
    %1908 = vmatpush.msra.mxu0 0.0
    %1909 = vmatpush.msra.mxu0 0.0
    %1910 = vmatpush.msra.mxu0 0.0
    %1911 = vmatpush.msra.mxu0 0.0
    %1912 = vmatpush.msra.mxu0 %v847
    %1913 = vmatmul.f32.gmra.mxu0 %v1895
    %v1914 = vpop.f32.mrf.mxu0
    %v1915 = vadd.f32 %v1882, %v1914
    %1916 = vdwg.mxu0
    %v1917 = vadd.f32 %v1915, %v870
    %v1918 = vsub.f32 0.0, %v1917
    %v1919 = vmul.f32 %v1918, 1.442695
    %v1920 = vpow.pop %v1919
    %v1921 = vadd.f32 %v1920, 1.0
    %v1922 = vrcp.pop %v1921
    %v1923 = vmul.f32 %v1921, %v1922
    %v1924 = vsub.f32 1.0, %v1923
    %v1925 = vmul.f32 %v1922, %v1924
    %v1926 = vadd.f32 %v1922, %v1925
    %vm1927 = vweird.f32 %v1921
    %vm1928 = vweird.f32 %v1922
    %vm1929 = vmor %vm1927, %vm1928
    %v1930 = vsel %vm1929, %v1922, %v1926
    %v1931 = vand.u32 2147483647, %v1921
    %vm1932 = vcmp.eq.f32.partialorder %v1931, 8.507059e+37
    %v1933 = vand.u32 %v1921, 2147483648
    %v1934 = vor.u32 1.1754944e-38, %v1933
    %v1935 = vsel %vm1932, %v1934, %v1930
    %v1936 = vmul.f32 1.0, %v1935
    %v1937 = vtanh.pop %v1917
    %v1938 = vmul.f32 %v1936, %v1687
    %1940 = vrot.lane.b32.xlu0 %v1937, 64
    %v1941 = vpop.permute.xlu0 %1940
    %v1943 = vmul.f32 %v1936, %v1941
    %1945 = vrot.lane.b32.xlu0 %v1943, 32
    %v1946 = vpop.permute.xlu0 %1945
    %v1948 = vadd.f32 %v1938, %v1946
    %v1949 = vtanh.pop %v1948
    %1951 = vrot.lane.b32.xlu0 %v1949, 64
    %v1952 = vpop.permute.xlu0 %1951
    %v1954 = vmul.f32 %v1936, %v1952
    %v1956 = vrot.slane %v1954, 1
    %v1957 = vperm.slane %v1954, 0
    %v1958 = vperm.slane %v1956, 0
    %1959 = vrot.lane.b32.xlu0 %v1957, 32
    %v1960 = vpop.permute.xlu0 %1959
    %1961 = vrot.lane.b32.xlu0 %v1958, 32
    %v1962 = vpop.permute.xlu0 %1961
    %1965 = vst.msk [vmem:[#allocation2 + $0x4] sm:$0x1] %vm920, %v1960
    %1966 = vst.msk [vmem:[#allocation2 + $0xc] sm:$0x1] %vm920, %v1962
    %1967 = vrot.lane.b32.xlu0 %v1954, 32
    %v1968 = vpop.permute.xlu0 %1967
    %v1969 = vsel %vm648, %v1968, 0
    %1971 = vmatpush.msra.mxu0 0.0
    %1972 = vmatpush.msra.mxu0 0.0
    %1973 = vmatpush.msra.mxu0 0.0
    %1974 = vmatpush.msra.mxu0 0.0
    %1975 = vmatpush.msra.mxu0 0.0
    %1976 = vmatpush.msra.mxu0 0.0
    %1977 = vmatpush.msra.mxu0 0.0
    %1978 = vmatpush.msra.mxu0 0.0
    %1979 = vmatpush.msra.mxu0 0.0
    %1980 = vmatpush.msra.mxu0 0.0
    %1981 = vmatpush.msra.mxu0 0.0
    %1982 = vmatpush.msra.mxu0 0.0
    %1983 = vmatpush.msra.mxu0 %v633
    %1984 = vmatpush.msra.mxu0 %v632
    %1985 = vmatpush.msra.mxu0 %v631
    %1986 = vmatpush.msra.mxu0 %v630
    %1987 = vmatmul.f32.gmra.mxu0 %v1969
    %v1988 = vpop.f32.mrf.mxu0
    %v1989 = vadd.f32 0.0, %v1988
    %1990 = vdwg.mxu0
    %1992 = vrot.lane.b32.xlu0 %v1948, 96
    %v1993 = vpop.permute.xlu0 %1992
    %v1994 = vsel %vm648, %v1993, 0
    %1996 = vmatpush.msra.mxu0 0.0
    %1997 = vmatpush.msra.mxu0 0.0
    %1998 = vmatpush.msra.mxu0 0.0
    %1999 = vmatpush.msra.mxu0 0.0
    %2000 = vmatpush.msra.mxu0 0.0
    %2001 = vmatpush.msra.mxu0 0.0
    %2002 = vmatpush.msra.mxu0 0.0
    %2003 = vmatpush.msra.mxu0 0.0
    %2004 = vmatpush.msra.mxu0 0.0
    %2005 = vmatpush.msra.mxu0 0.0
    %2006 = vmatpush.msra.mxu0 0.0
    %2007 = vmatpush.msra.mxu0 0.0
    %2008 = vmatpush.msra.mxu0 %v637
    %2009 = vmatpush.msra.mxu0 %v636
    %2010 = vmatpush.msra.mxu0 %v635
    %2011 = vmatpush.msra.mxu0 %v634
    %2012 = vmatmul.f32.gmra.mxu0 %v1994
    %v2013 = vpop.f32.mrf.mxu0
    %v2014 = vadd.f32 0.0, %v2013
    %2015 = vdwg.mxu0
    %v2017 = vrot.slane %v1989, 1
    %v2020 = vrot.slane %v2014, 1
    %v2022 = vadd.f32 %v1989, %v2014
    %v2023 = vadd.f32 %v2017, %v2020
    %v2026 = vperm.slane %v2022, 0
    %v2027 = vperm.slane %v2023, 0
    %v2030 = vadd.f32 %v2026, %v628
    %v2031 = vadd.f32 %v2027, %v629
    %v2032 = vtanh.pop %v2030
    %v2033 = vtanh.pop %v2031
    %v2034 = vmul.f32 %v2032, %v711
    %v2035 = vmul.f32 %v2033, %v711
    %v2036 = vsel %vm715, %v2034, 0.0
    %2037 = vadd.xlane.f32.xlu0 %v2036
    %v2038 = vpop.xlane.xlu0 %2037
    %v2039 = vsel %vm715, %v2035, 0.0
    %2040 = vadd.xlane.f32.xlu0 %v2039
    %v2041 = vpop.xlane.xlu0 %2040
    %v2042 = vadd.f32 %v2038, %v726
    %v2043 = vadd.f32 %v2041, %v726
    %v2046 = vperm.slane %v2042, %v647
    %v2047 = vperm.slane %v2043, %v647
    %v2048 = vsel %vm734, %v2047, %v2046
    %v2050 = vsel %vm737, %v2048, -inf
    %2051 = vmax.xlane.f32.xlu0 %v2050
    %v2052 = vpop.xlane.xlu0 %2051
    %v2054 = vperm.slane %v2052, 0
    %v2055 = vperm.slane %v2052, 1
    %v2058 = vsub.f32 %v2042, %v2054
    %v2059 = vsub.f32 %v2043, %v2055
    %v2060 = vmul.f32 %v2058, 1.442695
    %v2061 = vpow.pop %v2060
    %v2062 = vmul.f32 %v2059, 1.442695
    %v2063 = vpow.pop %v2062
    %2066 = vset.pattern.permute.xlu0 0
    %2067 = vperm.xlu0 %2066, %v2061
    %v2068 = vpop.permute.xlu0 %2067
    %2069 = vset.pattern.permute.xlu0 0
    %2070 = vperm.xlu0 %2069, %v2063
    %v2071 = vpop.permute.xlu0 %2070
    %v2072 = vperm.slane %v2068, %v647
    %v2073 = vperm.slane %v2071, %v647
    %v2074 = vsel %vm734, %v2073, %v2072
    %v2076 = vsel %vm737, %v2074, 0.0
    %2077 = vadd.xlane.f32.xlu0 %v2076
    %v2078 = vpop.xlane.xlu0 %2077
    %v2080 = vperm.slane %v2078, 0
    %v2081 = vperm.slane %v2078, 1
    %v2084 = vrcp.pop %v2080
    %v2085 = vmul.f32 %v2080, %v2084
    %v2086 = vsub.f32 1.0, %v2085
    %v2087 = vmul.f32 %v2084, %v2086
    %v2088 = vadd.f32 %v2084, %v2087
    %vm2089 = vweird.f32 %v2080
    %vm2090 = vweird.f32 %v2084
    %vm2091 = vmor %vm2089, %vm2090
    %v2092 = vsel %vm2091, %v2084, %v2088
    %v2093 = vand.u32 2147483647, %v2080
    %vm2094 = vcmp.eq.f32.partialorder %v2093, 8.507059e+37
    %v2095 = vand.u32 %v2080, 2147483648
    %v2096 = vor.u32 1.1754944e-38, %v2095
    %v2097 = vsel %vm2094, %v2096, %v2092
    %v2098 = vmul.f32 %v2061, %v2097
    %v2099 = vrcp.pop %v2081
    %v2100 = vmul.f32 %v2081, %v2099
    %v2101 = vsub.f32 1.0, %v2100
    %v2102 = vmul.f32 %v2099, %v2101
    %v2103 = vadd.f32 %v2099, %v2102
    %vm2104 = vweird.f32 %v2081
    %vm2105 = vweird.f32 %v2099
    %vm2106 = vmor %vm2104, %vm2105
    %v2107 = vsel %vm2106, %v2099, %v2103
    %v2108 = vand.u32 2147483647, %v2081
    %vm2109 = vcmp.eq.f32.partialorder %v2108, 8.507059e+37
    %v2110 = vand.u32 %v2081, 2147483648
    %v2111 = vor.u32 1.1754944e-38, %v2110
    %v2112 = vsel %vm2109, %v2111, %v2107
    %v2113 = vmul.f32 %v2063, %v2112
    %vm2114 = vcmp.eq.s32.totalorder %v647, 5
    %v2115 = vsel %vm2114, %v561, 0.0
    %v2116 = vsel %vm2114, %v590, 0.0
    %v2117 = vsel %vm715, %v2115, 0.0
    %2118 = vadd.xlane.f32.xlu0 %v2117
    %v2119 = vpop.xlane.xlu0 %2118
    %v2120 = vsel %vm715, %v2116, 0.0
    %2121 = vadd.xlane.f32.xlu0 %v2120
    %v2122 = vpop.xlane.xlu0 %2121
    %v2123 = vmul.f32 %v2098, %v2119
    %v2124 = vmul.f32 %v2113, %v2122
    %2125 = vmatpush.msra.mxu0 0.0
    %2126 = vmatpush.msra.mxu0 0.0
    %2127 = vmatpush.msra.mxu0 0.0
    %2128 = vmatpush.msra.mxu0 0.0
    %2129 = vmatpush.msra.mxu0 0.0
    %2130 = vmatpush.msra.mxu0 0.0
    %2131 = vmatpush.msra.mxu0 0.0
    %2132 = vmatpush.msra.mxu0 0.0
    %2133 = vmatpush.msra.mxu0 0.0
    %2134 = vmatpush.msra.mxu0 0.0
    %2135 = vmatpush.msra.mxu0 0.0
    %2136 = vmatpush.msra.mxu0 0.0
    %2137 = vmatpush.msra.mxu0 %v644
    %2138 = vmatpush.msra.mxu0 %v643
    %2139 = vmatpush.msra.mxu0 %v642
    %2140 = vmatpush.msra.mxu0 %v641
    %2141 = vmatmul.f32.gmra.mxu0 %v1969
    %v2142 = vpop.f32.mrf.mxu0
    %v2143 = vadd.f32 0.0, %v2142
    %2144 = vdwg.mxu0
    %2147 = vset.pattern.permute.xlu0 0
    %2148 = vperm.xlu0 %2147, %v2123
    %v2149 = vpop.permute.xlu0 %2148
    %2150 = vset.pattern.permute.xlu0 0
    %2151 = vperm.xlu0 %2150, %v2124
    %v2152 = vpop.permute.xlu0 %2151
    %v2153 = vperm.slane %v2149, %v647
    %v2154 = vperm.slane %v2152, %v647
    %v2155 = vsel %vm734, %v2154, %v2153
    %v2156 = vsel %vm536, %v2155, 0
    %2158 = vmatpush.msra.mxu0 0.0
    %2159 = vmatpush.msra.mxu0 0.0
    %2160 = vmatpush.msra.mxu0 0.0
    %2161 = vmatpush.msra.mxu0 0.0
    %2162 = vmatpush.msra.mxu0 0.0
    %2163 = vmatpush.msra.mxu0 0.0
    %2164 = vmatpush.msra.mxu0 0.0
    %2165 = vmatpush.msra.mxu0 0.0
    %2166 = vmatpush.msra.mxu0 0.0
    %2167 = vmatpush.msra.mxu0 0.0
    %2168 = vmatpush.msra.mxu0 0.0
    %2169 = vmatpush.msra.mxu0 0.0
    %2170 = vmatpush.msra.mxu0 0.0
    %2171 = vmatpush.msra.mxu0 0.0
    %2172 = vmatpush.msra.mxu0 0.0
    %2173 = vmatpush.msra.mxu0 %v847
    %2174 = vmatmul.f32.gmra.mxu0 %v2156
    %v2175 = vpop.f32.mrf.mxu0
    %v2176 = vadd.f32 %v2143, %v2175
    %2177 = vdwg.mxu0
    %v2178 = vadd.f32 %v2176, %v870
    %v2179 = vsub.f32 0.0, %v2178
    %v2180 = vmul.f32 %v2179, 1.442695
    %v2181 = vpow.pop %v2180
    %v2182 = vadd.f32 %v2181, 1.0
    %v2183 = vrcp.pop %v2182
    %v2184 = vmul.f32 %v2182, %v2183
    %v2185 = vsub.f32 1.0, %v2184
    %v2186 = vmul.f32 %v2183, %v2185
    %v2187 = vadd.f32 %v2183, %v2186
    %vm2188 = vweird.f32 %v2182
    %vm2189 = vweird.f32 %v2183
    %vm2190 = vmor %vm2188, %vm2189
    %v2191 = vsel %vm2190, %v2183, %v2187
    %v2192 = vand.u32 2147483647, %v2182
    %vm2193 = vcmp.eq.f32.partialorder %v2192, 8.507059e+37
    %v2194 = vand.u32 %v2182, 2147483648
    %v2195 = vor.u32 1.1754944e-38, %v2194
    %v2196 = vsel %vm2193, %v2195, %v2191
    %v2197 = vmul.f32 1.0, %v2196
    %v2198 = vtanh.pop %v2178
    %v2199 = vmul.f32 %v2197, %v1948
    %2201 = vrot.lane.b32.xlu0 %v2198, 64
    %v2202 = vpop.permute.xlu0 %2201
    %v2204 = vmul.f32 %v2197, %v2202
    %2206 = vrot.lane.b32.xlu0 %v2204, 32
    %v2207 = vpop.permute.xlu0 %2206
    %v2209 = vadd.f32 %v2199, %v2207
    %v2210 = vtanh.pop %v2209
    %2212 = vrot.lane.b32.xlu0 %v2210, 64
    %v2213 = vpop.permute.xlu0 %2212
    %v2215 = vmul.f32 %v2197, %v2213
    %v2217 = vrot.slane %v2215, 1
    %v2218 = vperm.slane %v2215, 0
    %v2219 = vperm.slane %v2217, 0
    %2220 = vrot.lane.b32.xlu0 %v2218, 32
    %v2221 = vpop.permute.xlu0 %2220
    %2222 = vrot.lane.b32.xlu0 %v2219, 32
    %v2223 = vpop.permute.xlu0 %2222
    %2226 = vst.msk [vmem:[#allocation2 + $0x5] sm:$0x1] %vm920, %v2221
    %2227 = vst.msk [vmem:[#allocation2 + $0xd] sm:$0x1] %vm920, %v2223
    %2228 = vrot.lane.b32.xlu0 %v2215, 32
    %v2229 = vpop.permute.xlu0 %2228
    %v2230 = vsel %vm648, %v2229, 0
    %2232 = vmatpush.msra.mxu0 0.0
    %2233 = vmatpush.msra.mxu0 0.0
    %2234 = vmatpush.msra.mxu0 0.0
    %2235 = vmatpush.msra.mxu0 0.0
    %2236 = vmatpush.msra.mxu0 0.0
    %2237 = vmatpush.msra.mxu0 0.0
    %2238 = vmatpush.msra.mxu0 0.0
    %2239 = vmatpush.msra.mxu0 0.0
    %2240 = vmatpush.msra.mxu0 0.0
    %2241 = vmatpush.msra.mxu0 0.0
    %2242 = vmatpush.msra.mxu0 0.0
    %2243 = vmatpush.msra.mxu0 0.0
    %2244 = vmatpush.msra.mxu0 %v633
    %2245 = vmatpush.msra.mxu0 %v632
    %2246 = vmatpush.msra.mxu0 %v631
    %2247 = vmatpush.msra.mxu0 %v630
    %2248 = vmatmul.f32.gmra.mxu0 %v2230
    %v2249 = vpop.f32.mrf.mxu0
    %v2250 = vadd.f32 0.0, %v2249
    %2251 = vdwg.mxu0
    %2253 = vrot.lane.b32.xlu0 %v2209, 96
    %v2254 = vpop.permute.xlu0 %2253
    %v2255 = vsel %vm648, %v2254, 0
    %2257 = vmatpush.msra.mxu0 0.0
    %2258 = vmatpush.msra.mxu0 0.0
    %2259 = vmatpush.msra.mxu0 0.0
    %2260 = vmatpush.msra.mxu0 0.0
    %2261 = vmatpush.msra.mxu0 0.0
    %2262 = vmatpush.msra.mxu0 0.0
    %2263 = vmatpush.msra.mxu0 0.0
    %2264 = vmatpush.msra.mxu0 0.0
    %2265 = vmatpush.msra.mxu0 0.0
    %2266 = vmatpush.msra.mxu0 0.0
    %2267 = vmatpush.msra.mxu0 0.0
    %2268 = vmatpush.msra.mxu0 0.0
    %2269 = vmatpush.msra.mxu0 %v637
    %2270 = vmatpush.msra.mxu0 %v636
    %2271 = vmatpush.msra.mxu0 %v635
    %2272 = vmatpush.msra.mxu0 %v634
    %2273 = vmatmul.f32.gmra.mxu0 %v2255
    %v2274 = vpop.f32.mrf.mxu0
    %v2275 = vadd.f32 0.0, %v2274
    %2276 = vdwg.mxu0
    %v2278 = vrot.slane %v2250, 1
    %v2281 = vrot.slane %v2275, 1
    %v2283 = vadd.f32 %v2250, %v2275
    %v2284 = vadd.f32 %v2278, %v2281
    %v2287 = vperm.slane %v2283, 0
    %v2288 = vperm.slane %v2284, 0
    %v2291 = vadd.f32 %v2287, %v628
    %v2292 = vadd.f32 %v2288, %v629
    %v2293 = vtanh.pop %v2291
    %v2294 = vtanh.pop %v2292
    %v2295 = vmul.f32 %v2293, %v711
    %v2296 = vmul.f32 %v2294, %v711
    %v2297 = vsel %vm715, %v2295, 0.0
    %2298 = vadd.xlane.f32.xlu0 %v2297
    %v2299 = vpop.xlane.xlu0 %2298
    %v2300 = vsel %vm715, %v2296, 0.0
    %2301 = vadd.xlane.f32.xlu0 %v2300
    %v2302 = vpop.xlane.xlu0 %2301
    %v2303 = vadd.f32 %v2299, %v726
    %v2304 = vadd.f32 %v2302, %v726
    %v2307 = vperm.slane %v2303, %v647
    %v2308 = vperm.slane %v2304, %v647
    %v2309 = vsel %vm734, %v2308, %v2307
    %v2311 = vsel %vm737, %v2309, -inf
    %2312 = vmax.xlane.f32.xlu0 %v2311
    %v2313 = vpop.xlane.xlu0 %2312
    %v2315 = vperm.slane %v2313, 0
    %v2316 = vperm.slane %v2313, 1
    %v2319 = vsub.f32 %v2303, %v2315
    %v2320 = vsub.f32 %v2304, %v2316
    %v2321 = vmul.f32 %v2319, 1.442695
    %v2322 = vpow.pop %v2321
    %v2323 = vmul.f32 %v2320, 1.442695
    %v2324 = vpow.pop %v2323
    %2327 = vset.pattern.permute.xlu0 0
    %2328 = vperm.xlu0 %2327, %v2322
    %v2329 = vpop.permute.xlu0 %2328
    %2330 = vset.pattern.permute.xlu0 0
    %2331 = vperm.xlu0 %2330, %v2324
    %v2332 = vpop.permute.xlu0 %2331
    %v2333 = vperm.slane %v2329, %v647
    %v2334 = vperm.slane %v2332, %v647
    %v2335 = vsel %vm734, %v2334, %v2333
    %v2337 = vsel %vm737, %v2335, 0.0
    %2338 = vadd.xlane.f32.xlu0 %v2337
    %v2339 = vpop.xlane.xlu0 %2338
    %v2341 = vperm.slane %v2339, 0
    %v2342 = vperm.slane %v2339, 1
    %v2345 = vrcp.pop %v2341
    %v2346 = vmul.f32 %v2341, %v2345
    %v2347 = vsub.f32 1.0, %v2346
    %v2348 = vmul.f32 %v2345, %v2347
    %v2349 = vadd.f32 %v2345, %v2348
    %vm2350 = vweird.f32 %v2341
    %vm2351 = vweird.f32 %v2345
    %vm2352 = vmor %vm2350, %vm2351
    %v2353 = vsel %vm2352, %v2345, %v2349
    %v2354 = vand.u32 2147483647, %v2341
    %vm2355 = vcmp.eq.f32.partialorder %v2354, 8.507059e+37
    %v2356 = vand.u32 %v2341, 2147483648
    %v2357 = vor.u32 1.1754944e-38, %v2356
    %v2358 = vsel %vm2355, %v2357, %v2353
    %v2359 = vmul.f32 %v2322, %v2358
    %v2360 = vrcp.pop %v2342
    %v2361 = vmul.f32 %v2342, %v2360
    %v2362 = vsub.f32 1.0, %v2361
    %v2363 = vmul.f32 %v2360, %v2362
    %v2364 = vadd.f32 %v2360, %v2363
    %vm2365 = vweird.f32 %v2342
    %vm2366 = vweird.f32 %v2360
    %vm2367 = vmor %vm2365, %vm2366
    %v2368 = vsel %vm2367, %v2360, %v2364
    %v2369 = vand.u32 2147483647, %v2342
    %vm2370 = vcmp.eq.f32.partialorder %v2369, 8.507059e+37
    %v2371 = vand.u32 %v2342, 2147483648
    %v2372 = vor.u32 1.1754944e-38, %v2371
    %v2373 = vsel %vm2370, %v2372, %v2368
    %v2374 = vmul.f32 %v2324, %v2373
    %vm2375 = vcmp.eq.s32.totalorder %v647, 6
    %v2376 = vsel %vm2375, %v561, 0.0
    %v2377 = vsel %vm2375, %v590, 0.0
    %v2378 = vsel %vm715, %v2376, 0.0
    %2379 = vadd.xlane.f32.xlu0 %v2378
    %v2380 = vpop.xlane.xlu0 %2379
    %v2381 = vsel %vm715, %v2377, 0.0
    %2382 = vadd.xlane.f32.xlu0 %v2381
    %v2383 = vpop.xlane.xlu0 %2382
    %v2384 = vmul.f32 %v2359, %v2380
    %v2385 = vmul.f32 %v2374, %v2383
    %2386 = vmatpush.msra.mxu0 0.0
    %2387 = vmatpush.msra.mxu0 0.0
    %2388 = vmatpush.msra.mxu0 0.0
    %2389 = vmatpush.msra.mxu0 0.0
    %2390 = vmatpush.msra.mxu0 0.0
    %2391 = vmatpush.msra.mxu0 0.0
    %2392 = vmatpush.msra.mxu0 0.0
    %2393 = vmatpush.msra.mxu0 0.0
    %2394 = vmatpush.msra.mxu0 0.0
    %2395 = vmatpush.msra.mxu0 0.0
    %2396 = vmatpush.msra.mxu0 0.0
    %2397 = vmatpush.msra.mxu0 0.0
    %2398 = vmatpush.msra.mxu0 %v644
    %2399 = vmatpush.msra.mxu0 %v643
    %2400 = vmatpush.msra.mxu0 %v642
    %2401 = vmatpush.msra.mxu0 %v641
    %2402 = vmatmul.f32.gmra.mxu0 %v2230
    %v2403 = vpop.f32.mrf.mxu0
    %v2404 = vadd.f32 0.0, %v2403
    %2405 = vdwg.mxu0
    %2408 = vset.pattern.permute.xlu0 0
    %2409 = vperm.xlu0 %2408, %v2384
    %v2410 = vpop.permute.xlu0 %2409
    %2411 = vset.pattern.permute.xlu0 0
    %2412 = vperm.xlu0 %2411, %v2385
    %v2413 = vpop.permute.xlu0 %2412
    %v2414 = vperm.slane %v2410, %v647
    %v2415 = vperm.slane %v2413, %v647
    %v2416 = vsel %vm734, %v2415, %v2414
    %v2417 = vsel %vm536, %v2416, 0
    %2419 = vmatpush.msra.mxu0 0.0
    %2420 = vmatpush.msra.mxu0 0.0
    %2421 = vmatpush.msra.mxu0 0.0
    %2422 = vmatpush.msra.mxu0 0.0
    %2423 = vmatpush.msra.mxu0 0.0
    %2424 = vmatpush.msra.mxu0 0.0
    %2425 = vmatpush.msra.mxu0 0.0
    %2426 = vmatpush.msra.mxu0 0.0
    %2427 = vmatpush.msra.mxu0 0.0
    %2428 = vmatpush.msra.mxu0 0.0
    %2429 = vmatpush.msra.mxu0 0.0
    %2430 = vmatpush.msra.mxu0 0.0
    %2431 = vmatpush.msra.mxu0 0.0
    %2432 = vmatpush.msra.mxu0 0.0
    %2433 = vmatpush.msra.mxu0 0.0
    %2434 = vmatpush.msra.mxu0 %v847
    %2435 = vmatmul.f32.gmra.mxu0 %v2417
    %v2436 = vpop.f32.mrf.mxu0
    %v2437 = vadd.f32 %v2404, %v2436
    %2438 = vdwg.mxu0
    %v2439 = vadd.f32 %v2437, %v870
    %v2440 = vsub.f32 0.0, %v2439
    %v2441 = vmul.f32 %v2440, 1.442695
    %v2442 = vpow.pop %v2441
    %v2443 = vadd.f32 %v2442, 1.0
    %v2444 = vrcp.pop %v2443
    %v2445 = vmul.f32 %v2443, %v2444
    %v2446 = vsub.f32 1.0, %v2445
    %v2447 = vmul.f32 %v2444, %v2446
    %v2448 = vadd.f32 %v2444, %v2447
    %vm2449 = vweird.f32 %v2443
    %vm2450 = vweird.f32 %v2444
    %vm2451 = vmor %vm2449, %vm2450
    %v2452 = vsel %vm2451, %v2444, %v2448
    %v2453 = vand.u32 2147483647, %v2443
    %vm2454 = vcmp.eq.f32.partialorder %v2453, 8.507059e+37
    %v2455 = vand.u32 %v2443, 2147483648
    %v2456 = vor.u32 1.1754944e-38, %v2455
    %v2457 = vsel %vm2454, %v2456, %v2452
    %v2458 = vmul.f32 1.0, %v2457
    %v2459 = vtanh.pop %v2439
    %v2460 = vmul.f32 %v2458, %v2209
    %2462 = vrot.lane.b32.xlu0 %v2459, 64
    %v2463 = vpop.permute.xlu0 %2462
    %v2465 = vmul.f32 %v2458, %v2463
    %2467 = vrot.lane.b32.xlu0 %v2465, 32
    %v2468 = vpop.permute.xlu0 %2467
    %v2470 = vadd.f32 %v2460, %v2468
    %v2471 = vtanh.pop %v2470
    %2473 = vrot.lane.b32.xlu0 %v2471, 64
    %v2474 = vpop.permute.xlu0 %2473
    %v2476 = vmul.f32 %v2458, %v2474
    %v2478 = vrot.slane %v2476, 1
    %v2479 = vperm.slane %v2476, 0
    %v2480 = vperm.slane %v2478, 0
    %2481 = vrot.lane.b32.xlu0 %v2479, 32
    %v2482 = vpop.permute.xlu0 %2481
    %2483 = vrot.lane.b32.xlu0 %v2480, 32
    %v2484 = vpop.permute.xlu0 %2483
    %2487 = vst.msk [vmem:[#allocation2 + $0x6] sm:$0x1] %vm920, %v2482
    %2488 = vst.msk [vmem:[#allocation2 + $0xe] sm:$0x1] %vm920, %v2484
    %2489 = vrot.lane.b32.xlu0 %v2476, 32
    %v2490 = vpop.permute.xlu0 %2489
    %v2491 = vsel %vm648, %v2490, 0
    %2493 = vmatpush.msra.mxu0 0.0
    %2494 = vmatpush.msra.mxu0 0.0
    %2495 = vmatpush.msra.mxu0 0.0
    %2496 = vmatpush.msra.mxu0 0.0
    %2497 = vmatpush.msra.mxu0 0.0
    %2498 = vmatpush.msra.mxu0 0.0
    %2499 = vmatpush.msra.mxu0 0.0
    %2500 = vmatpush.msra.mxu0 0.0
    %2501 = vmatpush.msra.mxu0 0.0
    %2502 = vmatpush.msra.mxu0 0.0
    %2503 = vmatpush.msra.mxu0 0.0
    %2504 = vmatpush.msra.mxu0 0.0
    %2505 = vmatpush.msra.mxu0 %v633
    %2506 = vmatpush.msra.mxu0 %v632
    %2507 = vmatpush.msra.mxu0 %v631
    %2508 = vmatpush.msra.mxu0 %v630
    %2509 = vmatmul.f32.gmra.mxu0 %v2491
    %v2510 = vpop.f32.mrf.mxu0
    %v2511 = vadd.f32 0.0, %v2510
    %2512 = vdwg.mxu0
    %2514 = vrot.lane.b32.xlu0 %v2470, 96
    %v2515 = vpop.permute.xlu0 %2514
    %v2516 = vsel %vm648, %v2515, 0
    %2518 = vmatpush.msra.mxu0 0.0
    %2519 = vmatpush.msra.mxu0 0.0
    %2520 = vmatpush.msra.mxu0 0.0
    %2521 = vmatpush.msra.mxu0 0.0
    %2522 = vmatpush.msra.mxu0 0.0
    %2523 = vmatpush.msra.mxu0 0.0
    %2524 = vmatpush.msra.mxu0 0.0
    %2525 = vmatpush.msra.mxu0 0.0
    %2526 = vmatpush.msra.mxu0 0.0
    %2527 = vmatpush.msra.mxu0 0.0
    %2528 = vmatpush.msra.mxu0 0.0
    %2529 = vmatpush.msra.mxu0 0.0
    %2530 = vmatpush.msra.mxu0 %v637
    %2531 = vmatpush.msra.mxu0 %v636
    %2532 = vmatpush.msra.mxu0 %v635
    %2533 = vmatpush.msra.mxu0 %v634
    %2534 = vmatmul.f32.gmra.mxu0 %v2516
    %v2535 = vpop.f32.mrf.mxu0
    %v2536 = vadd.f32 0.0, %v2535
    %2537 = vdwg.mxu0
    %v2539 = vrot.slane %v2511, 1
    %v2542 = vrot.slane %v2536, 1
    %v2544 = vadd.f32 %v2511, %v2536
    %v2545 = vadd.f32 %v2539, %v2542
    %v2548 = vperm.slane %v2544, 0
    %v2549 = vperm.slane %v2545, 0
    %v2552 = vadd.f32 %v2548, %v628
    %v2553 = vadd.f32 %v2549, %v629
    %v2554 = vtanh.pop %v2552
    %v2555 = vtanh.pop %v2553
    %v2556 = vmul.f32 %v2554, %v711
    %v2557 = vmul.f32 %v2555, %v711
    %v2558 = vsel %vm715, %v2556, 0.0
    %2559 = vadd.xlane.f32.xlu0 %v2558
    %v2560 = vpop.xlane.xlu0 %2559
    %v2561 = vsel %vm715, %v2557, 0.0
    %2562 = vadd.xlane.f32.xlu0 %v2561
    %v2563 = vpop.xlane.xlu0 %2562
    %v2564 = vadd.f32 %v2560, %v726
    %v2565 = vadd.f32 %v2563, %v726
    %v2568 = vperm.slane %v2564, %v647
    %v2569 = vperm.slane %v2565, %v647
    %v2570 = vsel %vm734, %v2569, %v2568
    %v2572 = vsel %vm737, %v2570, -inf
    %2573 = vmax.xlane.f32.xlu0 %v2572
    %v2574 = vpop.xlane.xlu0 %2573
    %v2576 = vperm.slane %v2574, 0
    %v2577 = vperm.slane %v2574, 1
    %v2580 = vsub.f32 %v2564, %v2576
    %v2581 = vsub.f32 %v2565, %v2577
    %v2582 = vmul.f32 %v2580, 1.442695
    %v2583 = vpow.pop %v2582
    %v2584 = vmul.f32 %v2581, 1.442695
    %v2585 = vpow.pop %v2584
    %2588 = vset.pattern.permute.xlu0 0
    %2589 = vperm.xlu0 %2588, %v2583
    %v2590 = vpop.permute.xlu0 %2589
    %2591 = vset.pattern.permute.xlu0 0
    %2592 = vperm.xlu0 %2591, %v2585
    %v2593 = vpop.permute.xlu0 %2592
    %v2594 = vperm.slane %v2590, %v647
    %v2595 = vperm.slane %v2593, %v647
    %v2596 = vsel %vm734, %v2595, %v2594
    %v2598 = vsel %vm737, %v2596, 0.0
    %2599 = vadd.xlane.f32.xlu0 %v2598
    %v2600 = vpop.xlane.xlu0 %2599
    %v2602 = vperm.slane %v2600, 0
    %v2603 = vperm.slane %v2600, 1
    %v2606 = vrcp.pop %v2602
    %v2607 = vmul.f32 %v2602, %v2606
    %v2608 = vsub.f32 1.0, %v2607
    %v2609 = vmul.f32 %v2606, %v2608
    %v2610 = vadd.f32 %v2606, %v2609
    %vm2611 = vweird.f32 %v2602
    %vm2612 = vweird.f32 %v2606
    %vm2613 = vmor %vm2611, %vm2612
    %v2614 = vsel %vm2613, %v2606, %v2610
    %v2615 = vand.u32 2147483647, %v2602
    %vm2616 = vcmp.eq.f32.partialorder %v2615, 8.507059e+37
    %v2617 = vand.u32 %v2602, 2147483648
    %v2618 = vor.u32 1.1754944e-38, %v2617
    %v2619 = vsel %vm2616, %v2618, %v2614
    %v2620 = vmul.f32 %v2583, %v2619
    %v2621 = vrcp.pop %v2603
    %v2622 = vmul.f32 %v2603, %v2621
    %v2623 = vsub.f32 1.0, %v2622
    %v2624 = vmul.f32 %v2621, %v2623
    %v2625 = vadd.f32 %v2621, %v2624
    %vm2626 = vweird.f32 %v2603
    %vm2627 = vweird.f32 %v2621
    %vm2628 = vmor %vm2626, %vm2627
    %v2629 = vsel %vm2628, %v2621, %v2625
    %v2630 = vand.u32 2147483647, %v2603
    %vm2631 = vcmp.eq.f32.partialorder %v2630, 8.507059e+37
    %v2632 = vand.u32 %v2603, 2147483648
    %v2633 = vor.u32 1.1754944e-38, %v2632
    %v2634 = vsel %vm2631, %v2633, %v2629
    %v2635 = vmul.f32 %v2585, %v2634
    %vm2636 = vcmp.eq.s32.totalorder %v647, 7
    %v2637 = vsel %vm2636, %v561, 0.0
    %v2638 = vsel %vm2636, %v590, 0.0
    %v2639 = vsel %vm715, %v2637, 0.0
    %2640 = vadd.xlane.f32.xlu0 %v2639
    %v2641 = vpop.xlane.xlu0 %2640
    %v2642 = vsel %vm715, %v2638, 0.0
    %2643 = vadd.xlane.f32.xlu0 %v2642
    %v2644 = vpop.xlane.xlu0 %2643
    %v2645 = vmul.f32 %v2620, %v2641
    %v2646 = vmul.f32 %v2635, %v2644
    %2647 = vmatpush.msra.mxu0 0.0
    %2648 = vmatpush.msra.mxu0 0.0
    %2649 = vmatpush.msra.mxu0 0.0
    %2650 = vmatpush.msra.mxu0 0.0
    %2651 = vmatpush.msra.mxu0 0.0
    %2652 = vmatpush.msra.mxu0 0.0
    %2653 = vmatpush.msra.mxu0 0.0
    %2654 = vmatpush.msra.mxu0 0.0
    %2655 = vmatpush.msra.mxu0 0.0
    %2656 = vmatpush.msra.mxu0 0.0
    %2657 = vmatpush.msra.mxu0 0.0
    %2658 = vmatpush.msra.mxu0 0.0
    %2659 = vmatpush.msra.mxu0 %v644
    %2660 = vmatpush.msra.mxu0 %v643
    %2661 = vmatpush.msra.mxu0 %v642
    %2662 = vmatpush.msra.mxu0 %v641
    %2663 = vmatmul.f32.gmra.mxu0 %v2491
    %v2664 = vpop.f32.mrf.mxu0
    %v2665 = vadd.f32 0.0, %v2664
    %2666 = vdwg.mxu0
    %2669 = vset.pattern.permute.xlu0 0
    %2670 = vperm.xlu0 %2669, %v2645
    %v2671 = vpop.permute.xlu0 %2670
    %2672 = vset.pattern.permute.xlu0 0
    %2673 = vperm.xlu0 %2672, %v2646
    %v2674 = vpop.permute.xlu0 %2673
    %v2675 = vperm.slane %v2671, %v647
    %v2676 = vperm.slane %v2674, %v647
    %v2677 = vsel %vm734, %v2676, %v2675
    %v2678 = vsel %vm536, %v2677, 0
    %2680 = vmatpush.msra.mxu0 0.0
    %2681 = vmatpush.msra.mxu0 0.0
    %2682 = vmatpush.msra.mxu0 0.0
    %2683 = vmatpush.msra.mxu0 0.0
    %2684 = vmatpush.msra.mxu0 0.0
    %2685 = vmatpush.msra.mxu0 0.0
    %2686 = vmatpush.msra.mxu0 0.0
    %2687 = vmatpush.msra.mxu0 0.0
    %2688 = vmatpush.msra.mxu0 0.0
    %2689 = vmatpush.msra.mxu0 0.0
    %2690 = vmatpush.msra.mxu0 0.0
    %2691 = vmatpush.msra.mxu0 0.0
    %2692 = vmatpush.msra.mxu0 0.0
    %2693 = vmatpush.msra.mxu0 0.0
    %2694 = vmatpush.msra.mxu0 0.0
    %2695 = vmatpush.msra.mxu0 %v847
    %2696 = vmatmul.f32.gmra.mxu0 %v2678
    %v2697 = vpop.f32.mrf.mxu0
    %v2698 = vadd.f32 %v2665, %v2697
    %2699 = vdwg.mxu0
    %v2700 = vadd.f32 %v2698, %v870
    %v2701 = vsub.f32 0.0, %v2700
    %v2702 = vmul.f32 %v2701, 1.442695
    %v2703 = vpow.pop %v2702
    %v2704 = vadd.f32 %v2703, 1.0
    %v2705 = vrcp.pop %v2704
    %v2706 = vmul.f32 %v2704, %v2705
    %v2707 = vsub.f32 1.0, %v2706
    %v2708 = vmul.f32 %v2705, %v2707
    %v2709 = vadd.f32 %v2705, %v2708
    %vm2710 = vweird.f32 %v2704
    %vm2711 = vweird.f32 %v2705
    %vm2712 = vmor %vm2710, %vm2711
    %v2713 = vsel %vm2712, %v2705, %v2709
    %v2714 = vand.u32 2147483647, %v2704
    %vm2715 = vcmp.eq.f32.partialorder %v2714, 8.507059e+37
    %v2716 = vand.u32 %v2704, 2147483648
    %v2717 = vor.u32 1.1754944e-38, %v2716
    %v2718 = vsel %vm2715, %v2717, %v2713
    %v2719 = vmul.f32 1.0, %v2718
    %v2720 = vtanh.pop %v2700
    %v2721 = vmul.f32 %v2719, %v2470
    %2723 = vrot.lane.b32.xlu0 %v2720, 64
    %v2724 = vpop.permute.xlu0 %2723
    %v2726 = vmul.f32 %v2719, %v2724
    %2728 = vrot.lane.b32.xlu0 %v2726, 32
    %v2729 = vpop.permute.xlu0 %2728
    %v2731 = vadd.f32 %v2721, %v2729
    %v2732 = vtanh.pop %v2731
    %2734 = vrot.lane.b32.xlu0 %v2732, 64
    %v2735 = vpop.permute.xlu0 %2734
    %v2737 = vmul.f32 %v2719, %v2735
    %v2739 = vrot.slane %v2737, 1
    %v2740 = vperm.slane %v2737, 0
    %v2741 = vperm.slane %v2739, 0
    %2742 = vrot.lane.b32.xlu0 %v2740, 32
    %v2743 = vpop.permute.xlu0 %2742
    %2744 = vrot.lane.b32.xlu0 %v2741, 32
    %v2745 = vpop.permute.xlu0 %2744
    %2748 = vst.msk [vmem:[#allocation2 + $0x7] sm:$0x1] %vm920, %v2743
    %2749 = vst.msk [vmem:[#allocation2 + $0xf] sm:$0x1] %vm920, %v2745
    %v2750 = vld [vmem:[#allocation2] sm:$0xff]
    %v2751 = vld [vmem:[#allocation2 + $0x8] sm:$0xff]
    %v2752 = vld [vmem:[%s9] sm:$0xff]
    %v2753 = vld [vmem:[%s9 + $0x8] sm:$0xff]
    %v2754 = vld [vmem:[%s9 + $0x10] sm:$0xff]
    %v2755 = vld [vmem:[%s9 + $0x18] sm:$0xff]
    %v2756 = vld [vmem:[#allocation14] sm:$0x1]
    %v2758 = vperm.slane %v2756, 0
    %v2761 = vsel %vm648, %v2750, 0
    %v2764 = vsel %vm648, %v2751, 0
    %2766 = vmatpush.msra.mxu0 0.0
    %2767 = vmatpush.msra.mxu0 0.0
    %2768 = vmatpush.msra.mxu0 0.0
    %2769 = vmatpush.msra.mxu0 0.0
    %2770 = vmatpush.msra.mxu0 0.0
    %2771 = vmatpush.msra.mxu0 0.0
    %2772 = vmatpush.msra.mxu0 0.0
    %2773 = vmatpush.msra.mxu0 0.0
    %2774 = vmatpush.msra.mxu0 0.0
    %2775 = vmatpush.msra.mxu0 0.0
    %2776 = vmatpush.msra.mxu0 0.0
    %2777 = vmatpush.msra.mxu0 0.0
    %2778 = vmatpush.msra.mxu0 %v2755
    %2779 = vmatpush.msra.mxu0 %v2754
    %2780 = vmatpush.msra.mxu0 %v2753
    %2781 = vmatpush.msra.mxu0 %v2752
    %2782 = vmatmul.f32.gmra.mxu0 %v2761
    %v2783 = vpop.f32.mrf.mxu0
    %v2784 = vadd.f32 %v2758, %v2783
    %2785 = vmatmul.f32.gmra.mxu0 %v2764
    %v2786 = vpop.f32.mrf.mxu0
    %v2787 = vadd.f32 %v2758, %v2786
    %2788 = vdwg.mxu0
    %2790 = vrot.lane.b32.xlu0 %v2784, 96
    %v2791 = vpop.permute.xlu0 %2790
    %v2792 = vsel %vm648, %v2784, 0
    %v2794 = vsel %vm648, %v2791, 0
    %2796 = vmatpush.xpose.msra.mxu0 0.0
    %2797 = vmatpush.xpose.msra.mxu0 0.0
    %2798 = vmatpush.xpose.msra.mxu0 0.0
    %2799 = vmatpush.xpose.msra.mxu0 0.0
    %2800 = vmatpush.xpose.msra.mxu0 0.0
    %2801 = vmatpush.xpose.msra.mxu0 0.0
    %2802 = vmatpush.xpose.msra.mxu0 0.0
    %2803 = vmatpush.xpose.msra.mxu0 0.0
    %2804 = vmatpush.xpose.msra.mxu0 0.0
    %2805 = vmatpush.xpose.msra.mxu0 0.0
    %2806 = vmatpush.xpose.msra.mxu0 0.0
    %2807 = vmatpush.xpose.msra.mxu0 0.0
    %2808 = vmatpush.xpose.msra.mxu0 0.0
    %2809 = vmatpush.xpose.msra.mxu0 0.0
    %2810 = vmatpush.xpose.msra.mxu0 0.0
    %2811 = vmatpush.xpose.msra.mxu0 %v2794
    %2812 = vmatmul.f32.gmra.mxu0 %v2792
    %v2813 = vpop.f32.mrf.mxu0
    %v2814 = vadd.f32 0.0, %v2813
    %2815 = vdwg.mxu0
    %2817 = vrot.lane.b32.xlu0 %v2787, 96
    %v2818 = vpop.permute.xlu0 %2817
    %v2819 = vsel %vm648, %v2787, 0
    %v2821 = vsel %vm648, %v2818, 0
    %2823 = vmatpush.xpose.msra.mxu0 0.0
    %2824 = vmatpush.xpose.msra.mxu0 0.0
    %2825 = vmatpush.xpose.msra.mxu0 0.0
    %2826 = vmatpush.xpose.msra.mxu0 0.0
    %2827 = vmatpush.xpose.msra.mxu0 0.0
    %2828 = vmatpush.xpose.msra.mxu0 0.0
    %2829 = vmatpush.xpose.msra.mxu0 0.0
    %2830 = vmatpush.xpose.msra.mxu0 0.0
    %2831 = vmatpush.xpose.msra.mxu0 0.0
    %2832 = vmatpush.xpose.msra.mxu0 0.0
    %2833 = vmatpush.xpose.msra.mxu0 0.0
    %2834 = vmatpush.xpose.msra.mxu0 0.0
    %2835 = vmatpush.xpose.msra.mxu0 0.0
    %2836 = vmatpush.xpose.msra.mxu0 0.0
    %2837 = vmatpush.xpose.msra.mxu0 0.0
    %2838 = vmatpush.xpose.msra.mxu0 %v2821
    %2839 = vmatmul.f32.gmra.mxu0 %v2819
    %v2840 = vpop.f32.mrf.mxu0
    %v2841 = vadd.f32 0.0, %v2840
    %2842 = vdwg.mxu0
    %v2843 = vmul.f32 %v2814, 0.17677669
    %v2844 = vmul.f32 %v2841, 0.17677669
    %v2845 = vsel %vm400, %v2843, -inf
    %2846 = vmax.xlane.f32.xlu0 %v2845
    %v2847 = vpop.xlane.xlu0 %2846
    %v2848 = vsel %vm400, %v2844, -inf
    %2849 = vmax.xlane.f32.xlu0 %v2848
    %v2850 = vpop.xlane.xlu0 %2849
    %v2851 = vsub.f32 %v2843, %v2847
    %v2852 = vsub.f32 %v2844, %v2850
    %v2853 = vmul.f32 %v2851, 1.442695
    %v2854 = vpow.pop %v2853
    %v2855 = vmul.f32 %v2852, 1.442695
    %v2856 = vpow.pop %v2855
    %v2857 = vsel %vm400, %v2854, 0.0
    %2858 = vadd.xlane.f32.xlu0 %v2857
    %v2859 = vpop.xlane.xlu0 %2858
    %v2860 = vsel %vm400, %v2856, 0.0
    %2861 = vadd.xlane.f32.xlu0 %v2860
    %v2862 = vpop.xlane.xlu0 %2861
    %v2863 = vrcp.pop %v2859
    %v2864 = vmul.f32 %v2859, %v2863
    %v2865 = vsub.f32 1.0, %v2864
    %v2866 = vmul.f32 %v2863, %v2865
    %v2867 = vadd.f32 %v2863, %v2866
    %vm2868 = vweird.f32 %v2859
    %vm2869 = vweird.f32 %v2863
    %vm2870 = vmor %vm2868, %vm2869
    %v2871 = vsel %vm2870, %v2863, %v2867
    %v2872 = vand.u32 2147483647, %v2859
    %vm2873 = vcmp.eq.f32.partialorder %v2872, 8.507059e+37
    %v2874 = vand.u32 %v2859, 2147483648
    %v2875 = vor.u32 1.1754944e-38, %v2874
    %v2876 = vsel %vm2873, %v2875, %v2871
    %v2877 = vmul.f32 %v2854, %v2876
    %v2878 = vrcp.pop %v2862
    %v2879 = vmul.f32 %v2862, %v2878
    %v2880 = vsub.f32 1.0, %v2879
    %v2881 = vmul.f32 %v2878, %v2880
    %v2882 = vadd.f32 %v2878, %v2881
    %vm2883 = vweird.f32 %v2862
    %vm2884 = vweird.f32 %v2878
    %vm2885 = vmor %vm2883, %vm2884
    %v2886 = vsel %vm2885, %v2878, %v2882
    %v2887 = vand.u32 2147483647, %v2862
    %vm2888 = vcmp.eq.f32.partialorder %v2887, 8.507059e+37
    %v2889 = vand.u32 %v2862, 2147483648
    %v2890 = vor.u32 1.1754944e-38, %v2889
    %v2891 = vsel %vm2888, %v2890, %v2886
    %v2892 = vmul.f32 %v2856, %v2891
    %2893 = vrot.lane.b32.xlu0 %v2784, 64
    %v2894 = vpop.permute.xlu0 %2893
    %v2897 = vsel %vm400, %v2877, 0
    %2899 = vmatpush.msra.mxu0 0.0
    %2900 = vmatpush.msra.mxu0 0.0
    %2901 = vmatpush.msra.mxu0 0.0
    %2902 = vmatpush.msra.mxu0 0.0
    %2903 = vmatpush.msra.mxu0 0.0
    %2904 = vmatpush.msra.mxu0 0.0
    %2905 = vmatpush.msra.mxu0 0.0
    %2906 = vmatpush.msra.mxu0 0.0
    %2907 = vmatpush.msra.mxu0 0.0
    %2908 = vmatpush.msra.mxu0 0.0
    %2909 = vmatpush.msra.mxu0 0.0
    %2910 = vmatpush.msra.mxu0 0.0
    %2911 = vmatpush.msra.mxu0 0.0
    %2912 = vmatpush.msra.mxu0 0.0
    %2913 = vmatpush.msra.mxu0 0.0
    %2914 = vmatpush.msra.mxu0 %v2894
    %2915 = vmatmul.f32.gmra.mxu0 %v2897
    %v2916 = vpop.f32.mrf.mxu0
    %v2917 = vadd.f32 0.0, %v2916
    %2918 = vdwg.mxu0
    %2919 = vrot.lane.b32.xlu0 %v2787, 64
    %v2920 = vpop.permute.xlu0 %2919
    %v2923 = vsel %vm400, %v2892, 0
    %2925 = vmatpush.msra.mxu0 0.0
    %2926 = vmatpush.msra.mxu0 0.0
    %2927 = vmatpush.msra.mxu0 0.0
    %2928 = vmatpush.msra.mxu0 0.0
    %2929 = vmatpush.msra.mxu0 0.0
    %2930 = vmatpush.msra.mxu0 0.0
    %2931 = vmatpush.msra.mxu0 0.0
    %2932 = vmatpush.msra.mxu0 0.0
    %2933 = vmatpush.msra.mxu0 0.0
    %2934 = vmatpush.msra.mxu0 0.0
    %2935 = vmatpush.msra.mxu0 0.0
    %2936 = vmatpush.msra.mxu0 0.0
    %2937 = vmatpush.msra.mxu0 0.0
    %2938 = vmatpush.msra.mxu0 0.0
    %2939 = vmatpush.msra.mxu0 0.0
    %2940 = vmatpush.msra.mxu0 %v2920
    %2941 = vmatmul.f32.gmra.mxu0 %v2923
    %v2942 = vpop.f32.mrf.mxu0
    %v2943 = vadd.f32 0.0, %v2942
    %2944 = vdwg.mxu0
    %v2945 = vld [vmem:[#allocation23] sm:$0xff]
    %v2946 = vld [vmem:[#allocation23 + $0x8] sm:$0xff]
    %v2947 = vld [vmem:[#allocation23 + $0x10] sm:$0xff]
    %v2948 = vld [vmem:[#allocation23 + $0x18] sm:$0xff]
    %v2950 = vsel %vm648, %v2917, 0
    %v2953 = vsel %vm648, %v2943, 0
    %2955 = vmatpush.msra.mxu0 0.0
    %2956 = vmatpush.msra.mxu0 0.0
    %2957 = vmatpush.msra.mxu0 0.0
    %2958 = vmatpush.msra.mxu0 0.0
    %2959 = vmatpush.msra.mxu0 0.0
    %2960 = vmatpush.msra.mxu0 0.0
    %2961 = vmatpush.msra.mxu0 0.0
    %2962 = vmatpush.msra.mxu0 0.0
    %2963 = vmatpush.msra.mxu0 0.0
    %2964 = vmatpush.msra.mxu0 0.0
    %2965 = vmatpush.msra.mxu0 0.0
    %2966 = vmatpush.msra.mxu0 0.0
    %2967 = vmatpush.msra.mxu0 %v2948
    %2968 = vmatpush.msra.mxu0 %v2947
    %2969 = vmatpush.msra.mxu0 %v2946
    %2970 = vmatpush.msra.mxu0 %v2945
    %2971 = vmatmul.f32.gmra.mxu0 %v2950
    %v2972 = vpop.f32.mrf.mxu0
    %v2973 = vadd.f32 0.0, %v2972
    %2974 = vmatmul.f32.gmra.mxu0 %v2953
    %v2975 = vpop.f32.mrf.mxu0
    %v2976 = vadd.f32 0.0, %v2975
    %2977 = vdwg.mxu0
    %v2978 = vld [vmem:[#allocation24] sm:$0x1]
    %v2980 = vperm.slane %v2978, 0
    %v2982 = vadd.f32 %v2973, %v2980
    %v2983 = vadd.f32 %v2976, %v2980
    %v2984 = vld [vmem:[#allocation20] sm:$0xff]
    %v2985 = vld [vmem:[#allocation20 + $0x8] sm:$0xff]
    %v2986 = vld [vmem:[#allocation20 + $0x10] sm:$0xff]
    %v2987 = vld [vmem:[#allocation20 + $0x18] sm:$0xff]
    %v2988 = vld [vmem:[#allocation21] sm:$0xff]
    %v2989 = vld [vmem:[#allocation21 + $0x8] sm:$0xff]
    %v2990 = vld [vmem:[#allocation21 + $0x10] sm:$0xff]
    %v2991 = vld [vmem:[#allocation21 + $0x18] sm:$0xff]
    %v2992 = vld [vmem:[#allocation26] sm:$0x1]
    %v2993 = vld [vmem:[#allocation4] sm:$0x1]
    %v2994 = vld [vmem:[#allocation27] sm:$0x1]
    %v2995 = vld [vmem:[#allocation5] sm:$0x1]
    %v2996 = vld [vmem:[#allocation6] sm:$0x1]
    %v2997 = vld [vmem:[#allocation29] sm:$0x1]
    %v2998 = vld [vmem:[#allocation30] sm:$0xff]
    %v2999 = vld [vmem:[#allocation30 + $0x8] sm:$0xff]
    %v3000 = vld [vmem:[#allocation30 + $0x10] sm:$0xff]
    %v3001 = vld [vmem:[#allocation30 + $0x18] sm:$0xff]
    %v3002 = vld [vmem:[#allocation32] sm:$0x1]
    %v3003 = vld [vmem:[#allocation12] sm:$0x3]
    %3004 = vmatpush.msra.mxu0 0.0
    %3005 = vmatpush.msra.mxu0 0.0
    %3006 = vmatpush.msra.mxu0 0.0
    %3007 = vmatpush.msra.mxu0 0.0
    %3008 = vmatpush.msra.mxu0 0.0
    %3009 = vmatpush.msra.mxu0 0.0
    %3010 = vmatpush.msra.mxu0 0.0
    %3011 = vmatpush.msra.mxu0 0.0
    %3012 = vmatpush.msra.mxu0 0.0
    %3013 = vmatpush.msra.mxu0 0.0
    %3014 = vmatpush.msra.mxu0 0.0
    %3015 = vmatpush.msra.mxu0 0.0
    %3016 = vmatpush.msra.mxu0 %v2987
    %3017 = vmatpush.msra.mxu0 %v2986
    %3018 = vmatpush.msra.mxu0 %v2985
    %3019 = vmatpush.msra.mxu0 %v2984
    %3020 = vmatmul.f32.gmra.mxu0 %v650
    %v3021 = vpop.f32.mrf.mxu0
    %v3022 = vadd.f32 0.0, %v3021
    %3023 = vdwg.mxu0
    %3024 = vmatpush.msra.mxu0 0.0
    %3025 = vmatpush.msra.mxu0 0.0
    %3026 = vmatpush.msra.mxu0 0.0
    %3027 = vmatpush.msra.mxu0 0.0
    %3028 = vmatpush.msra.mxu0 0.0
    %3029 = vmatpush.msra.mxu0 0.0
    %3030 = vmatpush.msra.mxu0 0.0
    %3031 = vmatpush.msra.mxu0 0.0
    %3032 = vmatpush.msra.mxu0 0.0
    %3033 = vmatpush.msra.mxu0 0.0
    %3034 = vmatpush.msra.mxu0 0.0
    %3035 = vmatpush.msra.mxu0 0.0
    %3036 = vmatpush.msra.mxu0 %v2991
    %3037 = vmatpush.msra.mxu0 %v2990
    %3038 = vmatpush.msra.mxu0 %v2989
    %3039 = vmatpush.msra.mxu0 %v2988
    %3040 = vmatmul.f32.gmra.mxu0 %v650
    %v3041 = vpop.f32.mrf.mxu0
    %v3042 = vadd.f32 0.0, %v3041
    %3043 = vdwg.mxu0
    %v3045 = vrot.slane %v3022, 1
    %v3048 = vrot.slane %v3042, 1
    %v3050 = vadd.f32 %v3022, %v3042
    %v3051 = vadd.f32 %v3045, %v3048
    %v3054 = vperm.slane %v3050, 0
    %v3055 = vperm.slane %v3051, 0
    %v3058 = vadd.f32 %v3054, %v2982
    %v3059 = vadd.f32 %v3055, %v2983
    %v3060 = vtanh.pop %v3058
    %v3061 = vtanh.pop %v3059
    %v3063 = vperm.slane %v2992, 0
    %v3065 = vmul.f32 %v3060, %v3063
    %v3066 = vmul.f32 %v3061, %v3063
    %v3067 = vsel %vm648, %v3065, 0.0
    %3068 = vadd.xlane.f32.xlu0 %v3067
    %v3069 = vpop.xlane.xlu0 %3068
    %v3070 = vsel %vm648, %v3066, 0.0
    %3071 = vadd.xlane.f32.xlu0 %v3070
    %v3072 = vpop.xlane.xlu0 %3071
    %v3074 = vperm.slane %v2993, 0
    %3075 = vset.pattern.permute.xlu0 0
    %3076 = vperm.xlu0 %3075, %v3074
    %v3077 = vpop.permute.xlu0 %3076
    %v3079 = vadd.f32 %v3069, %v3077
    %v3080 = vadd.f32 %v3072, %v3077
    %v3083 = vperm.slane %v3079, %v647
    %v3084 = vperm.slane %v3080, %v647
    %v3085 = vsel %vm734, %v3084, %v3083
    %vm3087 = vcmask 58368
    %v3088 = vsel %vm3087, %v3085, -inf
    %3089 = vmax.xlane.f32.xlu0 %v3088
    %v3090 = vpop.xlane.xlu0 %3089
    %v3092 = vperm.slane %v3090, 0
    %v3093 = vperm.slane %v3090, 1
    %v3096 = vsub.f32 %v3079, %v3092
    %v3097 = vsub.f32 %v3080, %v3093
    %v3098 = vmul.f32 %v3096, 1.442695
    %v3099 = vpow.pop %v3098
    %v3100 = vmul.f32 %v3097, 1.442695
    %v3101 = vpow.pop %v3100
    %3104 = vset.pattern.permute.xlu0 0
    %3105 = vperm.xlu0 %3104, %v3099
    %v3106 = vpop.permute.xlu0 %3105
    %3107 = vset.pattern.permute.xlu0 0
    %3108 = vperm.xlu0 %3107, %v3101
    %v3109 = vpop.permute.xlu0 %3108
    %v3110 = vperm.slane %v3106, %v647
    %v3111 = vperm.slane %v3109, %v647
    %v3112 = vsel %vm734, %v3111, %v3110
    %v3114 = vsel %vm3087, %v3112, 0.0
    %3115 = vadd.xlane.f32.xlu0 %v3114
    %v3116 = vpop.xlane.xlu0 %3115
    %v3118 = vperm.slane %v3116, 0
    %v3119 = vperm.slane %v3116, 1
    %v3122 = vrcp.pop %v3118
    %v3123 = vmul.f32 %v3118, %v3122
    %v3124 = vsub.f32 1.0, %v3123
    %v3125 = vmul.f32 %v3122, %v3124
    %v3126 = vadd.f32 %v3122, %v3125
    %vm3127 = vweird.f32 %v3118
    %vm3128 = vweird.f32 %v3122
    %vm3129 = vmor %vm3127, %vm3128
    %v3130 = vsel %vm3129, %v3122, %v3126
    %v3131 = vand.u32 2147483647, %v3118
    %vm3132 = vcmp.eq.f32.partialorder %v3131, 8.507059e+37
    %v3133 = vand.u32 %v3118, 2147483648
    %v3134 = vor.u32 1.1754944e-38, %v3133
    %v3135 = vsel %vm3132, %v3134, %v3130
    %v3136 = vmul.f32 %v3099, %v3135
    %v3137 = vrcp.pop %v3119
    %v3138 = vmul.f32 %v3119, %v3137
    %v3139 = vsub.f32 1.0, %v3138
    %v3140 = vmul.f32 %v3137, %v3139
    %v3141 = vadd.f32 %v3137, %v3140
    %vm3142 = vweird.f32 %v3119
    %vm3143 = vweird.f32 %v3137
    %vm3144 = vmor %vm3142, %vm3143
    %v3145 = vsel %vm3144, %v3137, %v3141
    %v3146 = vand.u32 2147483647, %v3119
    %vm3147 = vcmp.eq.f32.partialorder %v3146, 8.507059e+37
    %v3148 = vand.u32 %v3119, 2147483648
    %v3149 = vor.u32 1.1754944e-38, %v3148
    %v3150 = vsel %vm3147, %v3149, %v3145
    %v3151 = vmul.f32 %v3101, %v3150
    %3153 = vset.pattern.permute.xlu0 0
    %3154 = vperm.xlu0 %3153, %v3136
    %v3155 = vpop.permute.xlu0 %3154
    %3158 = vset.pattern.permute.xlu0 0
    %3159 = vperm.xlu0 %3158, %v3151
    %v3160 = vpop.permute.xlu0 %3159
    %v3162 = vmul.f32 %v3155, %v2917
    %v3163 = vmul.f32 %v3160, %v2943
    %v3164 = vsel %vm648, %v3162, 0.0
    %v3165 = vrot.slane %v3164, 4
    %v3166 = vadd.f32 %v3164, %v3165
    %v3167 = vrot.slane %v3166, 2
    %v3168 = vadd.f32 %v3166, %v3167
    %v3169 = vrot.slane %v3168, 1
    %v3170 = vadd.f32 %v3168, %v3169
    %v3171 = vsel %vm648, %v3163, 0.0
    %v3172 = vrot.slane %v3171, 4
    %v3173 = vadd.f32 %v3171, %v3172
    %v3174 = vrot.slane %v3173, 2
    %v3175 = vadd.f32 %v3173, %v3174
    %v3176 = vrot.slane %v3175, 1
    %v3177 = vadd.f32 %v3175, %v3176
    %v3179 = vperm.slane %v2994, 0
    %v3181 = vmul.f32 %v3170, %v3179
    %v3182 = vmul.f32 %v3177, %v3179
    %v3185 = vrot.slane %v3182, 7
    %v3186 = vsel %vm734, %v3185, %v3181
    %vm3188 = vcmask 254976
    %v3189 = vsel %vm3188, %v3186, 0.0
    %3190 = vadd.xlane.f32.xlu0 %v3189
    %v3191 = vpop.xlane.xlu0 %3190
    %v3193 = vperm.slane %v2995, 0
    %v3195 = vmul.f32 %v3003, %v3193
    %v3196 = vadd.f32 %v3191, %v3195
    %v3198 = vperm.slane %v2996, 0
    %v3200 = vadd.f32 %v3196, %v3198
    %3202 = vset.pattern.permute.xlu0 0
    %3203 = vperm.xlu0 %3202, %v3200
    %v3204 = vpop.permute.xlu0 %3203
    %v3207 = vperm.slane %v2997, 0
    %v3209 = vmul.f32 %v3204, %v3207
    %3210 = vmatpush.msra.mxu0 0.0
    %3211 = vmatpush.msra.mxu0 0.0
    %3212 = vmatpush.msra.mxu0 0.0
    %3213 = vmatpush.msra.mxu0 0.0
    %3214 = vmatpush.msra.mxu0 0.0
    %3215 = vmatpush.msra.mxu0 0.0
    %3216 = vmatpush.msra.mxu0 0.0
    %3217 = vmatpush.msra.mxu0 0.0
    %3218 = vmatpush.msra.mxu0 0.0
    %3219 = vmatpush.msra.mxu0 0.0
    %3220 = vmatpush.msra.mxu0 0.0
    %3221 = vmatpush.msra.mxu0 0.0
    %3222 = vmatpush.msra.mxu0 %v3001
    %3223 = vmatpush.msra.mxu0 %v3000
    %3224 = vmatpush.msra.mxu0 %v2999
    %3225 = vmatpush.msra.mxu0 %v2998
    %3226 = vmatmul.f32.gmra.mxu0 %v650
    %v3227 = vpop.f32.mrf.mxu0
    %v3228 = vadd.f32 0.0, %v3227
    %3229 = vdwg.mxu0
    %v3230 = vadd.f32 %v3209, %v3228
    %v3232 = vperm.slane %v3002, 0
    %v3234 = vadd.f32 %v3230, %v3232
    %v3235 = vsub.f32 0.0, %v3234
    %v3236 = vmul.f32 %v3235, 1.442695
    %v3237 = vpow.pop %v3236
    %v3238 = vadd.f32 %v3237, 1.0
    %v3239 = vrcp.pop %v3238
    %v3240 = vmul.f32 %v3238, %v3239
    %v3241 = vsub.f32 1.0, %v3240
    %v3242 = vmul.f32 %v3239, %v3241
    %v3243 = vadd.f32 %v3239, %v3242
    %vm3244 = vweird.f32 %v3238
    %vm3245 = vweird.f32 %v3239
    %vm3246 = vmor %vm3244, %vm3245
    %v3247 = vsel %vm3246, %v3239, %v3243
    %v3248 = vand.u32 2147483647, %v3238
    %vm3249 = vcmp.eq.f32.partialorder %v3248, 8.507059e+37
    %v3250 = vand.u32 %v3238, 2147483648
    %v3251 = vor.u32 1.1754944e-38, %v3250
    %v3252 = vsel %vm3249, %v3251, %v3247
    %v3253 = vmul.f32 1.0, %v3252
    %v3254 = vtanh.pop %v3234
    %v3255 = vmul.f32 %v3253, 0.0
    %3257 = vrot.lane.b32.xlu0 %v3254, 64
    %v3258 = vpop.permute.xlu0 %3257
    %v3260 = vmul.f32 %v3253, %v3258
    %3262 = vrot.lane.b32.xlu0 %v3260, 32
    %v3263 = vpop.permute.xlu0 %3262
    %v3265 = vadd.f32 %v3255, %v3263
    %v3266 = vtanh.pop %v3265
    %3268 = vrot.lane.b32.xlu0 %v3266, 64
    %v3269 = vpop.permute.xlu0 %3268
    %v3271 = vmul.f32 %v3253, %v3269
    %3273 = vrot.lane.b32.xlu0 %v3271, 32
    %v3274 = vpop.permute.xlu0 %3273
    %v3275 = vsel %vm648, %v3274, 0
    %3277 = vmatpush.msra.mxu0 0.0
    %3278 = vmatpush.msra.mxu0 0.0
    %3279 = vmatpush.msra.mxu0 0.0
    %3280 = vmatpush.msra.mxu0 0.0
    %3281 = vmatpush.msra.mxu0 0.0
    %3282 = vmatpush.msra.mxu0 0.0
    %3283 = vmatpush.msra.mxu0 0.0
    %3284 = vmatpush.msra.mxu0 0.0
    %3285 = vmatpush.msra.mxu0 0.0
    %3286 = vmatpush.msra.mxu0 0.0
    %3287 = vmatpush.msra.mxu0 0.0
    %3288 = vmatpush.msra.mxu0 0.0
    %3289 = vmatpush.msra.mxu0 %v2987
    %3290 = vmatpush.msra.mxu0 %v2986
    %3291 = vmatpush.msra.mxu0 %v2985
    %3292 = vmatpush.msra.mxu0 %v2984
    %3293 = vmatmul.f32.gmra.mxu0 %v3275
    %v3294 = vpop.f32.mrf.mxu0
    %v3295 = vadd.f32 0.0, %v3294
    %3296 = vdwg.mxu0
    %3298 = vrot.lane.b32.xlu0 %v3265, 96
    %v3299 = vpop.permute.xlu0 %3298
    %v3300 = vsel %vm648, %v3299, 0
    %3302 = vmatpush.msra.mxu0 0.0
    %3303 = vmatpush.msra.mxu0 0.0
    %3304 = vmatpush.msra.mxu0 0.0
    %3305 = vmatpush.msra.mxu0 0.0
    %3306 = vmatpush.msra.mxu0 0.0
    %3307 = vmatpush.msra.mxu0 0.0
    %3308 = vmatpush.msra.mxu0 0.0
    %3309 = vmatpush.msra.mxu0 0.0
    %3310 = vmatpush.msra.mxu0 0.0
    %3311 = vmatpush.msra.mxu0 0.0
    %3312 = vmatpush.msra.mxu0 0.0
    %3313 = vmatpush.msra.mxu0 0.0
    %3314 = vmatpush.msra.mxu0 %v2991
    %3315 = vmatpush.msra.mxu0 %v2990
    %3316 = vmatpush.msra.mxu0 %v2989
    %3317 = vmatpush.msra.mxu0 %v2988
    %3318 = vmatmul.f32.gmra.mxu0 %v3300
    %v3319 = vpop.f32.mrf.mxu0
    %v3320 = vadd.f32 0.0, %v3319
    %3321 = vdwg.mxu0
    %v3323 = vrot.slane %v3295, 1
    %v3326 = vrot.slane %v3320, 1
    %v3328 = vadd.f32 %v3295, %v3320
    %v3329 = vadd.f32 %v3323, %v3326
    %v3332 = vperm.slane %v3328, 0
    %v3333 = vperm.slane %v3329, 0
    %v3336 = vadd.f32 %v3332, %v2982
    %v3337 = vadd.f32 %v3333, %v2983
    %v3338 = vtanh.pop %v3336
    %v3339 = vtanh.pop %v3337
    %v3340 = vmul.f32 %v3338, %v3063
    %v3341 = vmul.f32 %v3339, %v3063
    %v3342 = vsel %vm648, %v3340, 0.0
    %3343 = vadd.xlane.f32.xlu0 %v3342
    %v3344 = vpop.xlane.xlu0 %3343
    %v3345 = vsel %vm648, %v3341, 0.0
    %3346 = vadd.xlane.f32.xlu0 %v3345
    %v3347 = vpop.xlane.xlu0 %3346
    %v3348 = vadd.f32 %v3344, %v3077
    %v3349 = vadd.f32 %v3347, %v3077
    %v3352 = vperm.slane %v3348, %v647
    %v3353 = vperm.slane %v3349, %v647
    %v3354 = vsel %vm734, %v3353, %v3352
    %v3356 = vsel %vm3087, %v3354, -inf
    %3357 = vmax.xlane.f32.xlu0 %v3356
    %v3358 = vpop.xlane.xlu0 %3357
    %v3360 = vperm.slane %v3358, 0
    %v3361 = vperm.slane %v3358, 1
    %v3364 = vsub.f32 %v3348, %v3360
    %v3365 = vsub.f32 %v3349, %v3361
    %v3366 = vmul.f32 %v3364, 1.442695
    %v3367 = vpow.pop %v3366
    %v3368 = vmul.f32 %v3365, 1.442695
    %v3369 = vpow.pop %v3368
    %3372 = vset.pattern.permute.xlu0 0
    %3373 = vperm.xlu0 %3372, %v3367
    %v3374 = vpop.permute.xlu0 %3373
    %3375 = vset.pattern.permute.xlu0 0
    %3376 = vperm.xlu0 %3375, %v3369
    %v3377 = vpop.permute.xlu0 %3376
    %v3378 = vperm.slane %v3374, %v647
    %v3379 = vperm.slane %v3377, %v647
    %v3380 = vsel %vm734, %v3379, %v3378
    %v3382 = vsel %vm3087, %v3380, 0.0
    %3383 = vadd.xlane.f32.xlu0 %v3382
    %v3384 = vpop.xlane.xlu0 %3383
    %v3386 = vperm.slane %v3384, 0
    %v3387 = vperm.slane %v3384, 1
    %v3390 = vrcp.pop %v3386
    %v3391 = vmul.f32 %v3386, %v3390
    %v3392 = vsub.f32 1.0, %v3391
    %v3393 = vmul.f32 %v3390, %v3392
    %v3394 = vadd.f32 %v3390, %v3393
    %vm3395 = vweird.f32 %v3386
    %vm3396 = vweird.f32 %v3390
    %vm3397 = vmor %vm3395, %vm3396
    %v3398 = vsel %vm3397, %v3390, %v3394
    %v3399 = vand.u32 2147483647, %v3386
    %vm3400 = vcmp.eq.f32.partialorder %v3399, 8.507059e+37
    %v3401 = vand.u32 %v3386, 2147483648
    %v3402 = vor.u32 1.1754944e-38, %v3401
    %v3403 = vsel %vm3400, %v3402, %v3398
    %v3404 = vmul.f32 %v3367, %v3403
    %v3405 = vrcp.pop %v3387
    %v3406 = vmul.f32 %v3387, %v3405
    %v3407 = vsub.f32 1.0, %v3406
    %v3408 = vmul.f32 %v3405, %v3407
    %v3409 = vadd.f32 %v3405, %v3408
    %vm3410 = vweird.f32 %v3387
    %vm3411 = vweird.f32 %v3405
    %vm3412 = vmor %vm3410, %vm3411
    %v3413 = vsel %vm3412, %v3405, %v3409
    %v3414 = vand.u32 2147483647, %v3387
    %vm3415 = vcmp.eq.f32.partialorder %v3414, 8.507059e+37
    %v3416 = vand.u32 %v3387, 2147483648
    %v3417 = vor.u32 1.1754944e-38, %v3416
    %v3418 = vsel %vm3415, %v3417, %v3413
    %v3419 = vmul.f32 %v3369, %v3418
    %3421 = vset.pattern.permute.xlu0 0
    %3422 = vperm.xlu0 %3421, %v3404
    %v3423 = vpop.permute.xlu0 %3422
    %3426 = vset.pattern.permute.xlu0 0
    %3427 = vperm.xlu0 %3426, %v3419
    %v3428 = vpop.permute.xlu0 %3427
    %v3430 = vmul.f32 %v3423, %v2917
    %v3431 = vmul.f32 %v3428, %v2943
    %v3432 = vsel %vm648, %v3430, 0.0
    %v3433 = vrot.slane %v3432, 4
    %v3434 = vadd.f32 %v3432, %v3433
    %v3435 = vrot.slane %v3434, 2
    %v3436 = vadd.f32 %v3434, %v3435
    %v3437 = vrot.slane %v3436, 1
    %v3438 = vadd.f32 %v3436, %v3437
    %v3439 = vsel %vm648, %v3431, 0.0
    %v3440 = vrot.slane %v3439, 4
    %v3441 = vadd.f32 %v3439, %v3440
    %v3442 = vrot.slane %v3441, 2
    %v3443 = vadd.f32 %v3441, %v3442
    %v3444 = vrot.slane %v3443, 1
    %v3445 = vadd.f32 %v3443, %v3444
    %v3446 = vmul.f32 %v3438, %v3179
    %v3447 = vmul.f32 %v3445, %v3179
    %v3450 = vrot.slane %v3447, 7
    %v3451 = vsel %vm734, %v3450, %v3446
    %v3453 = vsel %vm3188, %v3451, 0.0
    %3454 = vadd.xlane.f32.xlu0 %v3453
    %v3455 = vpop.xlane.xlu0 %3454
    %3456 = vrot.lane.b32.xlu0 %v3193, 1
    %v3457 = vpop.permute.xlu0 %3456
    %v3459 = vmul.f32 %v3003, %v3457
    %v3460 = vadd.f32 %v3455, %v3459
    %3461 = vrot.lane.b32.xlu0 %v3198, 1
    %v3462 = vpop.permute.xlu0 %3461
    %v3464 = vadd.f32 %v3460, %v3462
    %3466 = vset.pattern.permute.xlu0 1
    %3467 = vperm.xlu0 %3466, %v3464
    %v3468 = vpop.permute.xlu0 %3467
    %v3470 = vmul.f32 %v3468, %v3207
    %3471 = vmatpush.msra.mxu0 0.0
    %3472 = vmatpush.msra.mxu0 0.0
    %3473 = vmatpush.msra.mxu0 0.0
    %3474 = vmatpush.msra.mxu0 0.0
    %3475 = vmatpush.msra.mxu0 0.0
    %3476 = vmatpush.msra.mxu0 0.0
    %3477 = vmatpush.msra.mxu0 0.0
    %3478 = vmatpush.msra.mxu0 0.0
    %3479 = vmatpush.msra.mxu0 0.0
    %3480 = vmatpush.msra.mxu0 0.0
    %3481 = vmatpush.msra.mxu0 0.0
    %3482 = vmatpush.msra.mxu0 0.0
    %3483 = vmatpush.msra.mxu0 %v3001
    %3484 = vmatpush.msra.mxu0 %v3000
    %3485 = vmatpush.msra.mxu0 %v2999
    %3486 = vmatpush.msra.mxu0 %v2998
    %3487 = vmatmul.f32.gmra.mxu0 %v3275
    %v3488 = vpop.f32.mrf.mxu0
    %v3489 = vadd.f32 0.0, %v3488
    %3490 = vdwg.mxu0
    %v3491 = vadd.f32 %v3470, %v3489
    %v3492 = vadd.f32 %v3491, %v3232
    %v3493 = vsub.f32 0.0, %v3492
    %v3494 = vmul.f32 %v3493, 1.442695
    %v3495 = vpow.pop %v3494
    %v3496 = vadd.f32 %v3495, 1.0
    %v3497 = vrcp.pop %v3496
    %v3498 = vmul.f32 %v3496, %v3497
    %v3499 = vsub.f32 1.0, %v3498
    %v3500 = vmul.f32 %v3497, %v3499
    %v3501 = vadd.f32 %v3497, %v3500
    %vm3502 = vweird.f32 %v3496
    %vm3503 = vweird.f32 %v3497
    %vm3504 = vmor %vm3502, %vm3503
    %v3505 = vsel %vm3504, %v3497, %v3501
    %v3506 = vand.u32 2147483647, %v3496
    %vm3507 = vcmp.eq.f32.partialorder %v3506, 8.507059e+37
    %v3508 = vand.u32 %v3496, 2147483648
    %v3509 = vor.u32 1.1754944e-38, %v3508
    %v3510 = vsel %vm3507, %v3509, %v3505
    %v3511 = vmul.f32 1.0, %v3510
    %v3512 = vtanh.pop %v3492
    %v3513 = vmul.f32 %v3511, %v3265
    %3515 = vrot.lane.b32.xlu0 %v3512, 64
    %v3516 = vpop.permute.xlu0 %3515
    %v3518 = vmul.f32 %v3511, %v3516
    %3520 = vrot.lane.b32.xlu0 %v3518, 32
    %v3521 = vpop.permute.xlu0 %3520
    %v3523 = vadd.f32 %v3513, %v3521
    %v3524 = vtanh.pop %v3523
    %3526 = vrot.lane.b32.xlu0 %v3524, 64
    %v3527 = vpop.permute.xlu0 %3526
    %v3529 = vmul.f32 %v3511, %v3527
    %3531 = vrot.lane.b32.xlu0 %v3529, 32
    %v3532 = vpop.permute.xlu0 %3531
    %v3533 = vsel %vm648, %v3532, 0
    %3535 = vmatpush.msra.mxu0 0.0
    %3536 = vmatpush.msra.mxu0 0.0
    %3537 = vmatpush.msra.mxu0 0.0
    %3538 = vmatpush.msra.mxu0 0.0
    %3539 = vmatpush.msra.mxu0 0.0
    %3540 = vmatpush.msra.mxu0 0.0
    %3541 = vmatpush.msra.mxu0 0.0
    %3542 = vmatpush.msra.mxu0 0.0
    %3543 = vmatpush.msra.mxu0 0.0
    %3544 = vmatpush.msra.mxu0 0.0
    %3545 = vmatpush.msra.mxu0 0.0
    %3546 = vmatpush.msra.mxu0 0.0
    %3547 = vmatpush.msra.mxu0 %v2987
    %3548 = vmatpush.msra.mxu0 %v2986
    %3549 = vmatpush.msra.mxu0 %v2985
    %3550 = vmatpush.msra.mxu0 %v2984
    %3551 = vmatmul.f32.gmra.mxu0 %v3533
    %v3552 = vpop.f32.mrf.mxu0
    %v3553 = vadd.f32 0.0, %v3552
    %3554 = vdwg.mxu0
    %3556 = vrot.lane.b32.xlu0 %v3523, 96
    %v3557 = vpop.permute.xlu0 %3556
    %v3558 = vsel %vm648, %v3557, 0
    %3560 = vmatpush.msra.mxu0 0.0
    %3561 = vmatpush.msra.mxu0 0.0
    %3562 = vmatpush.msra.mxu0 0.0
    %3563 = vmatpush.msra.mxu0 0.0
    %3564 = vmatpush.msra.mxu0 0.0
    %3565 = vmatpush.msra.mxu0 0.0
    %3566 = vmatpush.msra.mxu0 0.0
    %3567 = vmatpush.msra.mxu0 0.0
    %3568 = vmatpush.msra.mxu0 0.0
    %3569 = vmatpush.msra.mxu0 0.0
    %3570 = vmatpush.msra.mxu0 0.0
    %3571 = vmatpush.msra.mxu0 0.0
    %3572 = vmatpush.msra.mxu0 %v2991
    %3573 = vmatpush.msra.mxu0 %v2990
    %3574 = vmatpush.msra.mxu0 %v2989
    %3575 = vmatpush.msra.mxu0 %v2988
    %3576 = vmatmul.f32.gmra.mxu0 %v3558
    %v3577 = vpop.f32.mrf.mxu0
    %v3578 = vadd.f32 0.0, %v3577
    %3579 = vdwg.mxu0
    %v3581 = vrot.slane %v3553, 1
    %v3584 = vrot.slane %v3578, 1
    %v3586 = vadd.f32 %v3553, %v3578
    %v3587 = vadd.f32 %v3581, %v3584
    %v3590 = vperm.slane %v3586, 0
    %v3591 = vperm.slane %v3587, 0
    %v3594 = vadd.f32 %v3590, %v2982
    %v3595 = vadd.f32 %v3591, %v2983
    %v3596 = vtanh.pop %v3594
    %v3597 = vtanh.pop %v3595
    %v3598 = vmul.f32 %v3596, %v3063
    %v3599 = vmul.f32 %v3597, %v3063
    %v3600 = vsel %vm648, %v3598, 0.0
    %3601 = vadd.xlane.f32.xlu0 %v3600
    %v3602 = vpop.xlane.xlu0 %3601
    %v3603 = vsel %vm648, %v3599, 0.0
    %3604 = vadd.xlane.f32.xlu0 %v3603
    %v3605 = vpop.xlane.xlu0 %3604
    %v3606 = vadd.f32 %v3602, %v3077
    %v3607 = vadd.f32 %v3605, %v3077
    %v3610 = vperm.slane %v3606, %v647
    %v3611 = vperm.slane %v3607, %v647
    %v3612 = vsel %vm734, %v3611, %v3610
    %v3614 = vsel %vm3087, %v3612, -inf
    %3615 = vmax.xlane.f32.xlu0 %v3614
    %v3616 = vpop.xlane.xlu0 %3615
    %v3618 = vperm.slane %v3616, 0
    %v3619 = vperm.slane %v3616, 1
    %v3622 = vsub.f32 %v3606, %v3618
    %v3623 = vsub.f32 %v3607, %v3619
    %v3624 = vmul.f32 %v3622, 1.442695
    %v3625 = vpow.pop %v3624
    %v3626 = vmul.f32 %v3623, 1.442695
    %v3627 = vpow.pop %v3626
    %3630 = vset.pattern.permute.xlu0 0
    %3631 = vperm.xlu0 %3630, %v3625
    %v3632 = vpop.permute.xlu0 %3631
    %3633 = vset.pattern.permute.xlu0 0
    %3634 = vperm.xlu0 %3633, %v3627
    %v3635 = vpop.permute.xlu0 %3634
    %v3636 = vperm.slane %v3632, %v647
    %v3637 = vperm.slane %v3635, %v647
    %v3638 = vsel %vm734, %v3637, %v3636
    %v3640 = vsel %vm3087, %v3638, 0.0
    %3641 = vadd.xlane.f32.xlu0 %v3640
    %v3642 = vpop.xlane.xlu0 %3641
    %v3644 = vperm.slane %v3642, 0
    %v3645 = vperm.slane %v3642, 1
    %v3648 = vrcp.pop %v3644
    %v3649 = vmul.f32 %v3644, %v3648
    %v3650 = vsub.f32 1.0, %v3649
    %v3651 = vmul.f32 %v3648, %v3650
    %v3652 = vadd.f32 %v3648, %v3651
    %vm3653 = vweird.f32 %v3644
    %vm3654 = vweird.f32 %v3648
    %vm3655 = vmor %vm3653, %vm3654
    %v3656 = vsel %vm3655, %v3648, %v3652
    %v3657 = vand.u32 2147483647, %v3644
    %vm3658 = vcmp.eq.f32.partialorder %v3657, 8.507059e+37
    %v3659 = vand.u32 %v3644, 2147483648
    %v3660 = vor.u32 1.1754944e-38, %v3659
    %v3661 = vsel %vm3658, %v3660, %v3656
    %v3662 = vmul.f32 %v3625, %v3661
    %v3663 = vrcp.pop %v3645
    %v3664 = vmul.f32 %v3645, %v3663
    %v3665 = vsub.f32 1.0, %v3664
    %v3666 = vmul.f32 %v3663, %v3665
    %v3667 = vadd.f32 %v3663, %v3666
    %vm3668 = vweird.f32 %v3645
    %vm3669 = vweird.f32 %v3663
    %vm3670 = vmor %vm3668, %vm3669
    %v3671 = vsel %vm3670, %v3663, %v3667
    %v3672 = vand.u32 2147483647, %v3645
    %vm3673 = vcmp.eq.f32.partialorder %v3672, 8.507059e+37
    %v3674 = vand.u32 %v3645, 2147483648
    %v3675 = vor.u32 1.1754944e-38, %v3674
    %v3676 = vsel %vm3673, %v3675, %v3671
    %v3677 = vmul.f32 %v3627, %v3676
    %3679 = vset.pattern.permute.xlu0 0
    %3680 = vperm.xlu0 %3679, %v3662
    %v3681 = vpop.permute.xlu0 %3680
    %3684 = vset.pattern.permute.xlu0 0
    %3685 = vperm.xlu0 %3684, %v3677
    %v3686 = vpop.permute.xlu0 %3685
    %v3688 = vmul.f32 %v3681, %v2917
    %v3689 = vmul.f32 %v3686, %v2943
    %v3690 = vsel %vm648, %v3688, 0.0
    %v3691 = vrot.slane %v3690, 4
    %v3692 = vadd.f32 %v3690, %v3691
    %v3693 = vrot.slane %v3692, 2
    %v3694 = vadd.f32 %v3692, %v3693
    %v3695 = vrot.slane %v3694, 1
    %v3696 = vadd.f32 %v3694, %v3695
    %v3697 = vsel %vm648, %v3689, 0.0
    %v3698 = vrot.slane %v3697, 4
    %v3699 = vadd.f32 %v3697, %v3698
    %v3700 = vrot.slane %v3699, 2
    %v3701 = vadd.f32 %v3699, %v3700
    %v3702 = vrot.slane %v3701, 1
    %v3703 = vadd.f32 %v3701, %v3702
    %v3704 = vmul.f32 %v3696, %v3179
    %v3705 = vmul.f32 %v3703, %v3179
    %v3708 = vrot.slane %v3705, 7
    %v3709 = vsel %vm734, %v3708, %v3704
    %v3711 = vsel %vm3188, %v3709, 0.0
    %3712 = vadd.xlane.f32.xlu0 %v3711
    %v3713 = vpop.xlane.xlu0 %3712
    %3714 = vrot.lane.b32.xlu0 %v3193, 2
    %v3715 = vpop.permute.xlu0 %3714
    %v3717 = vmul.f32 %v3003, %v3715
    %v3718 = vadd.f32 %v3713, %v3717
    %3719 = vrot.lane.b32.xlu0 %v3198, 2
    %v3720 = vpop.permute.xlu0 %3719
    %v3722 = vadd.f32 %v3718, %v3720
    %3724 = vset.pattern.permute.xlu0 2
    %3725 = vperm.xlu0 %3724, %v3722
    %v3726 = vpop.permute.xlu0 %3725
    %v3728 = vmul.f32 %v3726, %v3207
    %3729 = vmatpush.msra.mxu0 0.0
    %3730 = vmatpush.msra.mxu0 0.0
    %3731 = vmatpush.msra.mxu0 0.0
    %3732 = vmatpush.msra.mxu0 0.0
    %3733 = vmatpush.msra.mxu0 0.0
    %3734 = vmatpush.msra.mxu0 0.0
    %3735 = vmatpush.msra.mxu0 0.0
    %3736 = vmatpush.msra.mxu0 0.0
    %3737 = vmatpush.msra.mxu0 0.0
    %3738 = vmatpush.msra.mxu0 0.0
    %3739 = vmatpush.msra.mxu0 0.0
    %3740 = vmatpush.msra.mxu0 0.0
    %3741 = vmatpush.msra.mxu0 %v3001
    %3742 = vmatpush.msra.mxu0 %v3000
    %3743 = vmatpush.msra.mxu0 %v2999
    %3744 = vmatpush.msra.mxu0 %v2998
    %3745 = vmatmul.f32.gmra.mxu0 %v3533
    %v3746 = vpop.f32.mrf.mxu0
    %v3747 = vadd.f32 0.0, %v3746
    %3748 = vdwg.mxu0
    %v3749 = vadd.f32 %v3728, %v3747
    %v3750 = vadd.f32 %v3749, %v3232
    %v3751 = vsub.f32 0.0, %v3750
    %v3752 = vmul.f32 %v3751, 1.442695
    %v3753 = vpow.pop %v3752
    %v3754 = vadd.f32 %v3753, 1.0
    %v3755 = vrcp.pop %v3754
    %v3756 = vmul.f32 %v3754, %v3755
    %v3757 = vsub.f32 1.0, %v3756
    %v3758 = vmul.f32 %v3755, %v3757
    %v3759 = vadd.f32 %v3755, %v3758
    %vm3760 = vweird.f32 %v3754
    %vm3761 = vweird.f32 %v3755
    %vm3762 = vmor %vm3760, %vm3761
    %v3763 = vsel %vm3762, %v3755, %v3759
    %v3764 = vand.u32 2147483647, %v3754
    %vm3765 = vcmp.eq.f32.partialorder %v3764, 8.507059e+37
    %v3766 = vand.u32 %v3754, 2147483648
    %v3767 = vor.u32 1.1754944e-38, %v3766
    %v3768 = vsel %vm3765, %v3767, %v3763
    %v3769 = vmul.f32 1.0, %v3768
    %v3770 = vtanh.pop %v3750
    %v3771 = vmul.f32 %v3769, %v3523
    %3773 = vrot.lane.b32.xlu0 %v3770, 64
    %v3774 = vpop.permute.xlu0 %3773
    %v3776 = vmul.f32 %v3769, %v3774
    %3778 = vrot.lane.b32.xlu0 %v3776, 32
    %v3779 = vpop.permute.xlu0 %3778
    %v3781 = vadd.f32 %v3771, %v3779
    %v3782 = vtanh.pop %v3781
    %3784 = vrot.lane.b32.xlu0 %v3782, 64
    %v3785 = vpop.permute.xlu0 %3784
    %v3787 = vmul.f32 %v3769, %v3785
    %3789 = vrot.lane.b32.xlu0 %v3787, 32
    %v3790 = vpop.permute.xlu0 %3789
    %v3791 = vsel %vm648, %v3790, 0
    %3793 = vmatpush.msra.mxu0 0.0
    %3794 = vmatpush.msra.mxu0 0.0
    %3795 = vmatpush.msra.mxu0 0.0
    %3796 = vmatpush.msra.mxu0 0.0
    %3797 = vmatpush.msra.mxu0 0.0
    %3798 = vmatpush.msra.mxu0 0.0
    %3799 = vmatpush.msra.mxu0 0.0
    %3800 = vmatpush.msra.mxu0 0.0
    %3801 = vmatpush.msra.mxu0 0.0
    %3802 = vmatpush.msra.mxu0 0.0
    %3803 = vmatpush.msra.mxu0 0.0
    %3804 = vmatpush.msra.mxu0 0.0
    %3805 = vmatpush.msra.mxu0 %v2987
    %3806 = vmatpush.msra.mxu0 %v2986
    %3807 = vmatpush.msra.mxu0 %v2985
    %3808 = vmatpush.msra.mxu0 %v2984
    %3809 = vmatmul.f32.gmra.mxu0 %v3791
    %v3810 = vpop.f32.mrf.mxu0
    %v3811 = vadd.f32 0.0, %v3810
    %3812 = vdwg.mxu0
    %3814 = vrot.lane.b32.xlu0 %v3781, 96
    %v3815 = vpop.permute.xlu0 %3814
    %v3816 = vsel %vm648, %v3815, 0
    %3818 = vmatpush.msra.mxu0 0.0
    %3819 = vmatpush.msra.mxu0 0.0
    %3820 = vmatpush.msra.mxu0 0.0
    %3821 = vmatpush.msra.mxu0 0.0
    %3822 = vmatpush.msra.mxu0 0.0
    %3823 = vmatpush.msra.mxu0 0.0
    %3824 = vmatpush.msra.mxu0 0.0
    %3825 = vmatpush.msra.mxu0 0.0
    %3826 = vmatpush.msra.mxu0 0.0
    %3827 = vmatpush.msra.mxu0 0.0
    %3828 = vmatpush.msra.mxu0 0.0
    %3829 = vmatpush.msra.mxu0 0.0
    %3830 = vmatpush.msra.mxu0 %v2991
    %3831 = vmatpush.msra.mxu0 %v2990
    %3832 = vmatpush.msra.mxu0 %v2989
    %3833 = vmatpush.msra.mxu0 %v2988
    %3834 = vmatmul.f32.gmra.mxu0 %v3816
    %v3835 = vpop.f32.mrf.mxu0
    %v3836 = vadd.f32 0.0, %v3835
    %3837 = vdwg.mxu0
    %v3839 = vrot.slane %v3811, 1
    %v3842 = vrot.slane %v3836, 1
    %v3844 = vadd.f32 %v3811, %v3836
    %v3845 = vadd.f32 %v3839, %v3842
    %v3848 = vperm.slane %v3844, 0
    %v3849 = vperm.slane %v3845, 0
    %v3852 = vadd.f32 %v3848, %v2982
    %v3853 = vadd.f32 %v3849, %v2983
    %v3854 = vtanh.pop %v3852
    %v3855 = vtanh.pop %v3853
    %v3856 = vmul.f32 %v3854, %v3063
    %v3857 = vmul.f32 %v3855, %v3063
    %v3858 = vsel %vm648, %v3856, 0.0
    %3859 = vadd.xlane.f32.xlu0 %v3858
    %v3860 = vpop.xlane.xlu0 %3859
    %v3861 = vsel %vm648, %v3857, 0.0
    %3862 = vadd.xlane.f32.xlu0 %v3861
    %v3863 = vpop.xlane.xlu0 %3862
    %v3864 = vadd.f32 %v3860, %v3077
    %v3865 = vadd.f32 %v3863, %v3077
    %v3868 = vperm.slane %v3864, %v647
    %v3869 = vperm.slane %v3865, %v647
    %v3870 = vsel %vm734, %v3869, %v3868
    %v3872 = vsel %vm3087, %v3870, -inf
    %3873 = vmax.xlane.f32.xlu0 %v3872
    %v3874 = vpop.xlane.xlu0 %3873
    %v3876 = vperm.slane %v3874, 0
    %v3877 = vperm.slane %v3874, 1
    %v3880 = vsub.f32 %v3864, %v3876
    %v3881 = vsub.f32 %v3865, %v3877
    %v3882 = vmul.f32 %v3880, 1.442695
    %v3883 = vpow.pop %v3882
    %v3884 = vmul.f32 %v3881, 1.442695
    %v3885 = vpow.pop %v3884
    %3888 = vset.pattern.permute.xlu0 0
    %3889 = vperm.xlu0 %3888, %v3883
    %v3890 = vpop.permute.xlu0 %3889
    %3891 = vset.pattern.permute.xlu0 0
    %3892 = vperm.xlu0 %3891, %v3885
    %v3893 = vpop.permute.xlu0 %3892
    %v3894 = vperm.slane %v3890, %v647
    %v3895 = vperm.slane %v3893, %v647
    %v3896 = vsel %vm734, %v3895, %v3894
    %v3898 = vsel %vm3087, %v3896, 0.0
    %3899 = vadd.xlane.f32.xlu0 %v3898
    %v3900 = vpop.xlane.xlu0 %3899
    %v3902 = vperm.slane %v3900, 0
    %v3903 = vperm.slane %v3900, 1
    %v3906 = vrcp.pop %v3902
    %v3907 = vmul.f32 %v3902, %v3906
    %v3908 = vsub.f32 1.0, %v3907
    %v3909 = vmul.f32 %v3906, %v3908
    %v3910 = vadd.f32 %v3906, %v3909
    %vm3911 = vweird.f32 %v3902
    %vm3912 = vweird.f32 %v3906
    %vm3913 = vmor %vm3911, %vm3912
    %v3914 = vsel %vm3913, %v3906, %v3910
    %v3915 = vand.u32 2147483647, %v3902
    %vm3916 = vcmp.eq.f32.partialorder %v3915, 8.507059e+37
    %v3917 = vand.u32 %v3902, 2147483648
    %v3918 = vor.u32 1.1754944e-38, %v3917
    %v3919 = vsel %vm3916, %v3918, %v3914
    %v3920 = vmul.f32 %v3883, %v3919
    %v3921 = vrcp.pop %v3903
    %v3922 = vmul.f32 %v3903, %v3921
    %v3923 = vsub.f32 1.0, %v3922
    %v3924 = vmul.f32 %v3921, %v3923
    %v3925 = vadd.f32 %v3921, %v3924
    %vm3926 = vweird.f32 %v3903
    %vm3927 = vweird.f32 %v3921
    %vm3928 = vmor %vm3926, %vm3927
    %v3929 = vsel %vm3928, %v3921, %v3925
    %v3930 = vand.u32 2147483647, %v3903
    %vm3931 = vcmp.eq.f32.partialorder %v3930, 8.507059e+37
    %v3932 = vand.u32 %v3903, 2147483648
    %v3933 = vor.u32 1.1754944e-38, %v3932
    %v3934 = vsel %vm3931, %v3933, %v3929
    %v3935 = vmul.f32 %v3885, %v3934
    %3937 = vset.pattern.permute.xlu0 0
    %3938 = vperm.xlu0 %3937, %v3920
    %v3939 = vpop.permute.xlu0 %3938
    %3942 = vset.pattern.permute.xlu0 0
    %3943 = vperm.xlu0 %3942, %v3935
    %v3944 = vpop.permute.xlu0 %3943
    %v3946 = vmul.f32 %v3939, %v2917
    %v3947 = vmul.f32 %v3944, %v2943
    %v3948 = vsel %vm648, %v3946, 0.0
    %v3949 = vrot.slane %v3948, 4
    %v3950 = vadd.f32 %v3948, %v3949
    %v3951 = vrot.slane %v3950, 2
    %v3952 = vadd.f32 %v3950, %v3951
    %v3953 = vrot.slane %v3952, 1
    %v3954 = vadd.f32 %v3952, %v3953
    %v3955 = vsel %vm648, %v3947, 0.0
    %v3956 = vrot.slane %v3955, 4
    %v3957 = vadd.f32 %v3955, %v3956
    %v3958 = vrot.slane %v3957, 2
    %v3959 = vadd.f32 %v3957, %v3958
    %v3960 = vrot.slane %v3959, 1
    %v3961 = vadd.f32 %v3959, %v3960
    %v3962 = vmul.f32 %v3954, %v3179
    %v3963 = vmul.f32 %v3961, %v3179
    %v3966 = vrot.slane %v3963, 7
    %v3967 = vsel %vm734, %v3966, %v3962
    %v3969 = vsel %vm3188, %v3967, 0.0
    %3970 = vadd.xlane.f32.xlu0 %v3969
    %v3971 = vpop.xlane.xlu0 %3970
    %3972 = vrot.lane.b32.xlu0 %v3193, 3
    %v3973 = vpop.permute.xlu0 %3972
    %v3975 = vmul.f32 %v3003, %v3973
    %v3976 = vadd.f32 %v3971, %v3975
    %3977 = vrot.lane.b32.xlu0 %v3198, 3
    %v3978 = vpop.permute.xlu0 %3977
    %v3980 = vadd.f32 %v3976, %v3978
    %3982 = vset.pattern.permute.xlu0 3
    %3983 = vperm.xlu0 %3982, %v3980
    %v3984 = vpop.permute.xlu0 %3983
    %v3986 = vmul.f32 %v3984, %v3207
    %3987 = vmatpush.msra.mxu0 0.0
    %3988 = vmatpush.msra.mxu0 0.0
    %3989 = vmatpush.msra.mxu0 0.0
    %3990 = vmatpush.msra.mxu0 0.0
    %3991 = vmatpush.msra.mxu0 0.0
    %3992 = vmatpush.msra.mxu0 0.0
    %3993 = vmatpush.msra.mxu0 0.0
    %3994 = vmatpush.msra.mxu0 0.0
    %3995 = vmatpush.msra.mxu0 0.0
    %3996 = vmatpush.msra.mxu0 0.0
    %3997 = vmatpush.msra.mxu0 0.0
    %3998 = vmatpush.msra.mxu0 0.0
    %3999 = vmatpush.msra.mxu0 %v3001
    %4000 = vmatpush.msra.mxu0 %v3000
    %4001 = vmatpush.msra.mxu0 %v2999
    %4002 = vmatpush.msra.mxu0 %v2998
    %4003 = vmatmul.f32.gmra.mxu0 %v3791
    %v4004 = vpop.f32.mrf.mxu0
    %v4005 = vadd.f32 0.0, %v4004
    %4006 = vdwg.mxu0
    %v4007 = vadd.f32 %v3986, %v4005
    %v4008 = vadd.f32 %v4007, %v3232
    %v4009 = vsub.f32 0.0, %v4008
    %v4010 = vmul.f32 %v4009, 1.442695
    %v4011 = vpow.pop %v4010
    %v4012 = vadd.f32 %v4011, 1.0
    %v4013 = vrcp.pop %v4012
    %v4014 = vmul.f32 %v4012, %v4013
    %v4015 = vsub.f32 1.0, %v4014
    %v4016 = vmul.f32 %v4013, %v4015
    %v4017 = vadd.f32 %v4013, %v4016
    %vm4018 = vweird.f32 %v4012
    %vm4019 = vweird.f32 %v4013
    %vm4020 = vmor %vm4018, %vm4019
    %v4021 = vsel %vm4020, %v4013, %v4017
    %v4022 = vand.u32 2147483647, %v4012
    %vm4023 = vcmp.eq.f32.partialorder %v4022, 8.507059e+37
    %v4024 = vand.u32 %v4012, 2147483648
    %v4025 = vor.u32 1.1754944e-38, %v4024
    %v4026 = vsel %vm4023, %v4025, %v4021
    %v4027 = vmul.f32 1.0, %v4026
    %v4028 = vtanh.pop %v4008
    %v4029 = vmul.f32 %v4027, %v3781
    %4031 = vrot.lane.b32.xlu0 %v4028, 64
    %v4032 = vpop.permute.xlu0 %4031
    %v4034 = vmul.f32 %v4027, %v4032
    %4036 = vrot.lane.b32.xlu0 %v4034, 32
    %v4037 = vpop.permute.xlu0 %4036
    %v4039 = vadd.f32 %v4029, %v4037
    %v4040 = vtanh.pop %v4039
    %4042 = vrot.lane.b32.xlu0 %v4040, 64
    %v4043 = vpop.permute.xlu0 %4042
    %v4045 = vmul.f32 %v4027, %v4043
    %4047 = vrot.lane.b32.xlu0 %v4045, 32
    %v4048 = vpop.permute.xlu0 %4047
    %v4049 = vsel %vm648, %v4048, 0
    %4051 = vmatpush.msra.mxu0 0.0
    %4052 = vmatpush.msra.mxu0 0.0
    %4053 = vmatpush.msra.mxu0 0.0
    %4054 = vmatpush.msra.mxu0 0.0
    %4055 = vmatpush.msra.mxu0 0.0
    %4056 = vmatpush.msra.mxu0 0.0
    %4057 = vmatpush.msra.mxu0 0.0
    %4058 = vmatpush.msra.mxu0 0.0
    %4059 = vmatpush.msra.mxu0 0.0
    %4060 = vmatpush.msra.mxu0 0.0
    %4061 = vmatpush.msra.mxu0 0.0
    %4062 = vmatpush.msra.mxu0 0.0
    %4063 = vmatpush.msra.mxu0 %v2987
    %4064 = vmatpush.msra.mxu0 %v2986
    %4065 = vmatpush.msra.mxu0 %v2985
    %4066 = vmatpush.msra.mxu0 %v2984
    %4067 = vmatmul.f32.gmra.mxu0 %v4049
    %v4068 = vpop.f32.mrf.mxu0
    %v4069 = vadd.f32 0.0, %v4068
    %4070 = vdwg.mxu0
    %4072 = vrot.lane.b32.xlu0 %v4039, 96
    %v4073 = vpop.permute.xlu0 %4072
    %v4074 = vsel %vm648, %v4073, 0
    %4076 = vmatpush.msra.mxu0 0.0
    %4077 = vmatpush.msra.mxu0 0.0
    %4078 = vmatpush.msra.mxu0 0.0
    %4079 = vmatpush.msra.mxu0 0.0
    %4080 = vmatpush.msra.mxu0 0.0
    %4081 = vmatpush.msra.mxu0 0.0
    %4082 = vmatpush.msra.mxu0 0.0
    %4083 = vmatpush.msra.mxu0 0.0
    %4084 = vmatpush.msra.mxu0 0.0
    %4085 = vmatpush.msra.mxu0 0.0
    %4086 = vmatpush.msra.mxu0 0.0
    %4087 = vmatpush.msra.mxu0 0.0
    %4088 = vmatpush.msra.mxu0 %v2991
    %4089 = vmatpush.msra.mxu0 %v2990
    %4090 = vmatpush.msra.mxu0 %v2989
    %4091 = vmatpush.msra.mxu0 %v2988
    %4092 = vmatmul.f32.gmra.mxu0 %v4074
    %v4093 = vpop.f32.mrf.mxu0
    %v4094 = vadd.f32 0.0, %v4093
    %4095 = vdwg.mxu0
    %v4097 = vrot.slane %v4069, 1
    %v4100 = vrot.slane %v4094, 1
    %v4102 = vadd.f32 %v4069, %v4094
    %v4103 = vadd.f32 %v4097, %v4100
    %v4106 = vperm.slane %v4102, 0
    %v4107 = vperm.slane %v4103, 0
    %v4110 = vadd.f32 %v4106, %v2982
    %v4111 = vadd.f32 %v4107, %v2983
    %v4112 = vtanh.pop %v4110
    %v4113 = vtanh.pop %v4111
    %v4114 = vmul.f32 %v4112, %v3063
    %v4115 = vmul.f32 %v4113, %v3063
    %v4116 = vsel %vm648, %v4114, 0.0
    %4117 = vadd.xlane.f32.xlu0 %v4116
    %v4118 = vpop.xlane.xlu0 %4117
    %v4119 = vsel %vm648, %v4115, 0.0
    %4120 = vadd.xlane.f32.xlu0 %v4119
    %v4121 = vpop.xlane.xlu0 %4120
    %v4122 = vadd.f32 %v4118, %v3077
    %v4123 = vadd.f32 %v4121, %v3077
    %v4126 = vperm.slane %v4122, %v647
    %v4127 = vperm.slane %v4123, %v647
    %v4128 = vsel %vm734, %v4127, %v4126
    %v4130 = vsel %vm3087, %v4128, -inf
    %4131 = vmax.xlane.f32.xlu0 %v4130
    %v4132 = vpop.xlane.xlu0 %4131
    %v4134 = vperm.slane %v4132, 0
    %v4135 = vperm.slane %v4132, 1
    %v4138 = vsub.f32 %v4122, %v4134
    %v4139 = vsub.f32 %v4123, %v4135
    %v4140 = vmul.f32 %v4138, 1.442695
    %v4141 = vpow.pop %v4140
    %v4142 = vmul.f32 %v4139, 1.442695
    %v4143 = vpow.pop %v4142
    %4146 = vset.pattern.permute.xlu0 0
    %4147 = vperm.xlu0 %4146, %v4141
    %v4148 = vpop.permute.xlu0 %4147
    %4149 = vset.pattern.permute.xlu0 0
    %4150 = vperm.xlu0 %4149, %v4143
    %v4151 = vpop.permute.xlu0 %4150
    %v4152 = vperm.slane %v4148, %v647
    %v4153 = vperm.slane %v4151, %v647
    %v4154 = vsel %vm734, %v4153, %v4152
    %v4156 = vsel %vm3087, %v4154, 0.0
    %4157 = vadd.xlane.f32.xlu0 %v4156
    %v4158 = vpop.xlane.xlu0 %4157
    %v4160 = vperm.slane %v4158, 0
    %v4161 = vperm.slane %v4158, 1
    %v4164 = vrcp.pop %v4160
    %v4165 = vmul.f32 %v4160, %v4164
    %v4166 = vsub.f32 1.0, %v4165
    %v4167 = vmul.f32 %v4164, %v4166
    %v4168 = vadd.f32 %v4164, %v4167
    %vm4169 = vweird.f32 %v4160
    %vm4170 = vweird.f32 %v4164
    %vm4171 = vmor %vm4169, %vm4170
    %v4172 = vsel %vm4171, %v4164, %v4168
    %v4173 = vand.u32 2147483647, %v4160
    %vm4174 = vcmp.eq.f32.partialorder %v4173, 8.507059e+37
    %v4175 = vand.u32 %v4160, 2147483648
    %v4176 = vor.u32 1.1754944e-38, %v4175
    %v4177 = vsel %vm4174, %v4176, %v4172
    %v4178 = vmul.f32 %v4141, %v4177
    %v4179 = vrcp.pop %v4161
    %v4180 = vmul.f32 %v4161, %v4179
    %v4181 = vsub.f32 1.0, %v4180
    %v4182 = vmul.f32 %v4179, %v4181
    %v4183 = vadd.f32 %v4179, %v4182
    %vm4184 = vweird.f32 %v4161
    %vm4185 = vweird.f32 %v4179
    %vm4186 = vmor %vm4184, %vm4185
    %v4187 = vsel %vm4186, %v4179, %v4183
    %v4188 = vand.u32 2147483647, %v4161
    %vm4189 = vcmp.eq.f32.partialorder %v4188, 8.507059e+37
    %v4190 = vand.u32 %v4161, 2147483648
    %v4191 = vor.u32 1.1754944e-38, %v4190
    %v4192 = vsel %vm4189, %v4191, %v4187
    %v4193 = vmul.f32 %v4143, %v4192
    %4195 = vset.pattern.permute.xlu0 0
    %4196 = vperm.xlu0 %4195, %v4178
    %v4197 = vpop.permute.xlu0 %4196
    %4200 = vset.pattern.permute.xlu0 0
    %4201 = vperm.xlu0 %4200, %v4193
    %v4202 = vpop.permute.xlu0 %4201
    %v4204 = vmul.f32 %v4197, %v2917
    %v4205 = vmul.f32 %v4202, %v2943
    %v4206 = vsel %vm648, %v4204, 0.0
    %v4207 = vrot.slane %v4206, 4
    %v4208 = vadd.f32 %v4206, %v4207
    %v4209 = vrot.slane %v4208, 2
    %v4210 = vadd.f32 %v4208, %v4209
    %v4211 = vrot.slane %v4210, 1
    %v4212 = vadd.f32 %v4210, %v4211
    %v4213 = vsel %vm648, %v4205, 0.0
    %v4214 = vrot.slane %v4213, 4
    %v4215 = vadd.f32 %v4213, %v4214
    %v4216 = vrot.slane %v4215, 2
    %v4217 = vadd.f32 %v4215, %v4216
    %v4218 = vrot.slane %v4217, 1
    %v4219 = vadd.f32 %v4217, %v4218
    %v4220 = vmul.f32 %v4212, %v3179
    %v4221 = vmul.f32 %v4219, %v3179
    %v4224 = vrot.slane %v4221, 7
    %v4225 = vsel %vm734, %v4224, %v4220
    %v4227 = vsel %vm3188, %v4225, 0.0
    %4228 = vadd.xlane.f32.xlu0 %v4227
    %v4229 = vpop.xlane.xlu0 %4228
    %4230 = vrot.lane.b32.xlu0 %v3193, 4
    %v4231 = vpop.permute.xlu0 %4230
    %v4233 = vmul.f32 %v3003, %v4231
    %v4234 = vadd.f32 %v4229, %v4233
    %4235 = vrot.lane.b32.xlu0 %v3198, 4
    %v4236 = vpop.permute.xlu0 %4235
    %v4238 = vadd.f32 %v4234, %v4236
    %4240 = vset.pattern.permute.xlu0 4
    %4241 = vperm.xlu0 %4240, %v4238
    %v4242 = vpop.permute.xlu0 %4241
    %v4244 = vmul.f32 %v4242, %v3207
    %4245 = vmatpush.msra.mxu0 0.0
    %4246 = vmatpush.msra.mxu0 0.0
    %4247 = vmatpush.msra.mxu0 0.0
    %4248 = vmatpush.msra.mxu0 0.0
    %4249 = vmatpush.msra.mxu0 0.0
    %4250 = vmatpush.msra.mxu0 0.0
    %4251 = vmatpush.msra.mxu0 0.0
    %4252 = vmatpush.msra.mxu0 0.0
    %4253 = vmatpush.msra.mxu0 0.0
    %4254 = vmatpush.msra.mxu0 0.0
    %4255 = vmatpush.msra.mxu0 0.0
    %4256 = vmatpush.msra.mxu0 0.0
    %4257 = vmatpush.msra.mxu0 %v3001
    %4258 = vmatpush.msra.mxu0 %v3000
    %4259 = vmatpush.msra.mxu0 %v2999
    %4260 = vmatpush.msra.mxu0 %v2998
    %4261 = vmatmul.f32.gmra.mxu0 %v4049
    %v4262 = vpop.f32.mrf.mxu0
    %v4263 = vadd.f32 0.0, %v4262
    %4264 = vdwg.mxu0
    %v4265 = vadd.f32 %v4244, %v4263
    %v4266 = vadd.f32 %v4265, %v3232
    %v4267 = vsub.f32 0.0, %v4266
    %v4268 = vmul.f32 %v4267, 1.442695
    %v4269 = vpow.pop %v4268
    %v4270 = vadd.f32 %v4269, 1.0
    %v4271 = vrcp.pop %v4270
    %v4272 = vmul.f32 %v4270, %v4271
    %v4273 = vsub.f32 1.0, %v4272
    %v4274 = vmul.f32 %v4271, %v4273
    %v4275 = vadd.f32 %v4271, %v4274
    %vm4276 = vweird.f32 %v4270
    %vm4277 = vweird.f32 %v4271
    %vm4278 = vmor %vm4276, %vm4277
    %v4279 = vsel %vm4278, %v4271, %v4275
    %v4280 = vand.u32 2147483647, %v4270
    %vm4281 = vcmp.eq.f32.partialorder %v4280, 8.507059e+37
    %v4282 = vand.u32 %v4270, 2147483648
    %v4283 = vor.u32 1.1754944e-38, %v4282
    %v4284 = vsel %vm4281, %v4283, %v4279
    %v4285 = vmul.f32 1.0, %v4284
    %v4286 = vtanh.pop %v4266
    %v4287 = vmul.f32 %v4285, %v4039
    %4289 = vrot.lane.b32.xlu0 %v4286, 64
    %v4290 = vpop.permute.xlu0 %4289
    %v4292 = vmul.f32 %v4285, %v4290
    %4294 = vrot.lane.b32.xlu0 %v4292, 32
    %v4295 = vpop.permute.xlu0 %4294
    %v4297 = vadd.f32 %v4287, %v4295
    %v4298 = vtanh.pop %v4297
    %4300 = vrot.lane.b32.xlu0 %v4298, 64
    %v4301 = vpop.permute.xlu0 %4300
    %v4303 = vmul.f32 %v4285, %v4301
    %4305 = vrot.lane.b32.xlu0 %v4303, 32
    %v4306 = vpop.permute.xlu0 %4305
    %v4307 = vsel %vm648, %v4306, 0
    %4309 = vmatpush.msra.mxu0 0.0
    %4310 = vmatpush.msra.mxu0 0.0
    %4311 = vmatpush.msra.mxu0 0.0
    %4312 = vmatpush.msra.mxu0 0.0
    %4313 = vmatpush.msra.mxu0 0.0
    %4314 = vmatpush.msra.mxu0 0.0
    %4315 = vmatpush.msra.mxu0 0.0
    %4316 = vmatpush.msra.mxu0 0.0
    %4317 = vmatpush.msra.mxu0 0.0
    %4318 = vmatpush.msra.mxu0 0.0
    %4319 = vmatpush.msra.mxu0 0.0
    %4320 = vmatpush.msra.mxu0 0.0
    %4321 = vmatpush.msra.mxu0 %v2987
    %4322 = vmatpush.msra.mxu0 %v2986
    %4323 = vmatpush.msra.mxu0 %v2985
    %4324 = vmatpush.msra.mxu0 %v2984
    %4325 = vmatmul.f32.gmra.mxu0 %v4307
    %v4326 = vpop.f32.mrf.mxu0
    %v4327 = vadd.f32 0.0, %v4326
    %4328 = vdwg.mxu0
    %4330 = vrot.lane.b32.xlu0 %v4297, 96
    %v4331 = vpop.permute.xlu0 %4330
    %v4332 = vsel %vm648, %v4331, 0
    %4334 = vmatpush.msra.mxu0 0.0
    %4335 = vmatpush.msra.mxu0 0.0
    %4336 = vmatpush.msra.mxu0 0.0
    %4337 = vmatpush.msra.mxu0 0.0
    %4338 = vmatpush.msra.mxu0 0.0
    %4339 = vmatpush.msra.mxu0 0.0
    %4340 = vmatpush.msra.mxu0 0.0
    %4341 = vmatpush.msra.mxu0 0.0
    %4342 = vmatpush.msra.mxu0 0.0
    %4343 = vmatpush.msra.mxu0 0.0
    %4344 = vmatpush.msra.mxu0 0.0
    %4345 = vmatpush.msra.mxu0 0.0
    %4346 = vmatpush.msra.mxu0 %v2991
    %4347 = vmatpush.msra.mxu0 %v2990
    %4348 = vmatpush.msra.mxu0 %v2989
    %4349 = vmatpush.msra.mxu0 %v2988
    %4350 = vmatmul.f32.gmra.mxu0 %v4332
    %v4351 = vpop.f32.mrf.mxu0
    %v4352 = vadd.f32 0.0, %v4351
    %4353 = vdwg.mxu0
    %v4355 = vrot.slane %v4327, 1
    %v4358 = vrot.slane %v4352, 1
    %v4360 = vadd.f32 %v4327, %v4352
    %v4361 = vadd.f32 %v4355, %v4358
    %v4364 = vperm.slane %v4360, 0
    %v4365 = vperm.slane %v4361, 0
    %v4368 = vadd.f32 %v4364, %v2982
    %v4369 = vadd.f32 %v4365, %v2983
    %v4370 = vtanh.pop %v4368
    %v4371 = vtanh.pop %v4369
    %v4372 = vmul.f32 %v4370, %v3063
    %v4373 = vmul.f32 %v4371, %v3063
    %v4374 = vsel %vm648, %v4372, 0.0
    %4375 = vadd.xlane.f32.xlu0 %v4374
    %v4376 = vpop.xlane.xlu0 %4375
    %v4377 = vsel %vm648, %v4373, 0.0
    %4378 = vadd.xlane.f32.xlu0 %v4377
    %v4379 = vpop.xlane.xlu0 %4378
    %v4380 = vadd.f32 %v4376, %v3077
    %v4381 = vadd.f32 %v4379, %v3077
    %v4384 = vperm.slane %v4380, %v647
    %v4385 = vperm.slane %v4381, %v647
    %v4386 = vsel %vm734, %v4385, %v4384
    %v4388 = vsel %vm3087, %v4386, -inf
    %4389 = vmax.xlane.f32.xlu0 %v4388
    %v4390 = vpop.xlane.xlu0 %4389
    %v4392 = vperm.slane %v4390, 0
    %v4393 = vperm.slane %v4390, 1
    %v4396 = vsub.f32 %v4380, %v4392
    %v4397 = vsub.f32 %v4381, %v4393
    %v4398 = vmul.f32 %v4396, 1.442695
    %v4399 = vpow.pop %v4398
    %v4400 = vmul.f32 %v4397, 1.442695
    %v4401 = vpow.pop %v4400
    %4404 = vset.pattern.permute.xlu0 0
    %4405 = vperm.xlu0 %4404, %v4399
    %v4406 = vpop.permute.xlu0 %4405
    %4407 = vset.pattern.permute.xlu0 0
    %4408 = vperm.xlu0 %4407, %v4401
    %v4409 = vpop.permute.xlu0 %4408
    %v4410 = vperm.slane %v4406, %v647
    %v4411 = vperm.slane %v4409, %v647
    %v4412 = vsel %vm734, %v4411, %v4410
    %v4414 = vsel %vm3087, %v4412, 0.0
    %4415 = vadd.xlane.f32.xlu0 %v4414
    %v4416 = vpop.xlane.xlu0 %4415
    %v4418 = vperm.slane %v4416, 0
    %v4419 = vperm.slane %v4416, 1
    %v4422 = vrcp.pop %v4418
    %v4423 = vmul.f32 %v4418, %v4422
    %v4424 = vsub.f32 1.0, %v4423
    %v4425 = vmul.f32 %v4422, %v4424
    %v4426 = vadd.f32 %v4422, %v4425
    %vm4427 = vweird.f32 %v4418
    %vm4428 = vweird.f32 %v4422
    %vm4429 = vmor %vm4427, %vm4428
    %v4430 = vsel %vm4429, %v4422, %v4426
    %v4431 = vand.u32 2147483647, %v4418
    %vm4432 = vcmp.eq.f32.partialorder %v4431, 8.507059e+37
    %v4433 = vand.u32 %v4418, 2147483648
    %v4434 = vor.u32 1.1754944e-38, %v4433
    %v4435 = vsel %vm4432, %v4434, %v4430
    %v4436 = vmul.f32 %v4399, %v4435
    %v4437 = vrcp.pop %v4419
    %v4438 = vmul.f32 %v4419, %v4437
    %v4439 = vsub.f32 1.0, %v4438
    %v4440 = vmul.f32 %v4437, %v4439
    %v4441 = vadd.f32 %v4437, %v4440
    %vm4442 = vweird.f32 %v4419
    %vm4443 = vweird.f32 %v4437
    %vm4444 = vmor %vm4442, %vm4443
    %v4445 = vsel %vm4444, %v4437, %v4441
    %v4446 = vand.u32 2147483647, %v4419
    %vm4447 = vcmp.eq.f32.partialorder %v4446, 8.507059e+37
    %v4448 = vand.u32 %v4419, 2147483648
    %v4449 = vor.u32 1.1754944e-38, %v4448
    %v4450 = vsel %vm4447, %v4449, %v4445
    %v4451 = vmul.f32 %v4401, %v4450
    %4453 = vset.pattern.permute.xlu0 0
    %4454 = vperm.xlu0 %4453, %v4436
    %v4455 = vpop.permute.xlu0 %4454
    %4458 = vset.pattern.permute.xlu0 0
    %4459 = vperm.xlu0 %4458, %v4451
    %v4460 = vpop.permute.xlu0 %4459
    %v4462 = vmul.f32 %v4455, %v2917
    %v4463 = vmul.f32 %v4460, %v2943
    %v4464 = vsel %vm648, %v4462, 0.0
    %v4465 = vrot.slane %v4464, 4
    %v4466 = vadd.f32 %v4464, %v4465
    %v4467 = vrot.slane %v4466, 2
    %v4468 = vadd.f32 %v4466, %v4467
    %v4469 = vrot.slane %v4468, 1
    %v4470 = vadd.f32 %v4468, %v4469
    %v4471 = vsel %vm648, %v4463, 0.0
    %v4472 = vrot.slane %v4471, 4
    %v4473 = vadd.f32 %v4471, %v4472
    %v4474 = vrot.slane %v4473, 2
    %v4475 = vadd.f32 %v4473, %v4474
    %v4476 = vrot.slane %v4475, 1
    %v4477 = vadd.f32 %v4475, %v4476
    %v4478 = vmul.f32 %v4470, %v3179
    %v4479 = vmul.f32 %v4477, %v3179
    %v4482 = vrot.slane %v4479, 7
    %v4483 = vsel %vm734, %v4482, %v4478
    %v4485 = vsel %vm3188, %v4483, 0.0
    %4486 = vadd.xlane.f32.xlu0 %v4485
    %v4487 = vpop.xlane.xlu0 %4486
    %4488 = vrot.lane.b32.xlu0 %v3193, 5
    %v4489 = vpop.permute.xlu0 %4488
    %v4491 = vmul.f32 %v3003, %v4489
    %v4492 = vadd.f32 %v4487, %v4491
    %4493 = vrot.lane.b32.xlu0 %v3198, 5
    %v4494 = vpop.permute.xlu0 %4493
    %v4496 = vadd.f32 %v4492, %v4494
    %4498 = vset.pattern.permute.xlu0 5
    %4499 = vperm.xlu0 %4498, %v4496
    %v4500 = vpop.permute.xlu0 %4499
    %v4502 = vmul.f32 %v4500, %v3207
    %4503 = vmatpush.msra.mxu0 0.0
    %4504 = vmatpush.msra.mxu0 0.0
    %4505 = vmatpush.msra.mxu0 0.0
    %4506 = vmatpush.msra.mxu0 0.0
    %4507 = vmatpush.msra.mxu0 0.0
    %4508 = vmatpush.msra.mxu0 0.0
    %4509 = vmatpush.msra.mxu0 0.0
    %4510 = vmatpush.msra.mxu0 0.0
    %4511 = vmatpush.msra.mxu0 0.0
    %4512 = vmatpush.msra.mxu0 0.0
    %4513 = vmatpush.msra.mxu0 0.0
    %4514 = vmatpush.msra.mxu0 0.0
    %4515 = vmatpush.msra.mxu0 %v3001
    %4516 = vmatpush.msra.mxu0 %v3000
    %4517 = vmatpush.msra.mxu0 %v2999
    %4518 = vmatpush.msra.mxu0 %v2998
    %4519 = vmatmul.f32.gmra.mxu0 %v4307
    %v4520 = vpop.f32.mrf.mxu0
    %v4521 = vadd.f32 0.0, %v4520
    %4522 = vdwg.mxu0
    %v4523 = vadd.f32 %v4502, %v4521
    %v4524 = vadd.f32 %v4523, %v3232
    %v4525 = vsub.f32 0.0, %v4524
    %v4526 = vmul.f32 %v4525, 1.442695
    %v4527 = vpow.pop %v4526
    %v4528 = vadd.f32 %v4527, 1.0
    %v4529 = vrcp.pop %v4528
    %v4530 = vmul.f32 %v4528, %v4529
    %v4531 = vsub.f32 1.0, %v4530
    %v4532 = vmul.f32 %v4529, %v4531
    %v4533 = vadd.f32 %v4529, %v4532
    %vm4534 = vweird.f32 %v4528
    %vm4535 = vweird.f32 %v4529
    %vm4536 = vmor %vm4534, %vm4535
    %v4537 = vsel %vm4536, %v4529, %v4533
    %v4538 = vand.u32 2147483647, %v4528
    %vm4539 = vcmp.eq.f32.partialorder %v4538, 8.507059e+37
    %v4540 = vand.u32 %v4528, 2147483648
    %v4541 = vor.u32 1.1754944e-38, %v4540
    %v4542 = vsel %vm4539, %v4541, %v4537
    %v4543 = vmul.f32 1.0, %v4542
    %v4544 = vtanh.pop %v4524
    %v4545 = vmul.f32 %v4543, %v4297
    %4547 = vrot.lane.b32.xlu0 %v4544, 64
    %v4548 = vpop.permute.xlu0 %4547
    %v4550 = vmul.f32 %v4543, %v4548
    %4552 = vrot.lane.b32.xlu0 %v4550, 32
    %v4553 = vpop.permute.xlu0 %4552
    %v4555 = vadd.f32 %v4545, %v4553
    %v4556 = vtanh.pop %v4555
    %4558 = vrot.lane.b32.xlu0 %v4556, 64
    %v4559 = vpop.permute.xlu0 %4558
    %v4561 = vmul.f32 %v4543, %v4559
    %4563 = vrot.lane.b32.xlu0 %v4561, 32
    %v4564 = vpop.permute.xlu0 %4563
    %v4565 = vsel %vm648, %v4564, 0
    %4567 = vmatpush.msra.mxu0 0.0
    %4568 = vmatpush.msra.mxu0 0.0
    %4569 = vmatpush.msra.mxu0 0.0
    %4570 = vmatpush.msra.mxu0 0.0
    %4571 = vmatpush.msra.mxu0 0.0
    %4572 = vmatpush.msra.mxu0 0.0
    %4573 = vmatpush.msra.mxu0 0.0
    %4574 = vmatpush.msra.mxu0 0.0
    %4575 = vmatpush.msra.mxu0 0.0
    %4576 = vmatpush.msra.mxu0 0.0
    %4577 = vmatpush.msra.mxu0 0.0
    %4578 = vmatpush.msra.mxu0 0.0
    %4579 = vmatpush.msra.mxu0 %v2987
    %4580 = vmatpush.msra.mxu0 %v2986
    %4581 = vmatpush.msra.mxu0 %v2985
    %4582 = vmatpush.msra.mxu0 %v2984
    %4583 = vmatmul.f32.gmra.mxu0 %v4565
    %v4584 = vpop.f32.mrf.mxu0
    %v4585 = vadd.f32 0.0, %v4584
    %4586 = vdwg.mxu0
    %4588 = vrot.lane.b32.xlu0 %v4555, 96
    %v4589 = vpop.permute.xlu0 %4588
    %v4590 = vsel %vm648, %v4589, 0
    %4592 = vmatpush.msra.mxu0 0.0
    %4593 = vmatpush.msra.mxu0 0.0
    %4594 = vmatpush.msra.mxu0 0.0
    %4595 = vmatpush.msra.mxu0 0.0
    %4596 = vmatpush.msra.mxu0 0.0
    %4597 = vmatpush.msra.mxu0 0.0
    %4598 = vmatpush.msra.mxu0 0.0
    %4599 = vmatpush.msra.mxu0 0.0
    %4600 = vmatpush.msra.mxu0 0.0
    %4601 = vmatpush.msra.mxu0 0.0
    %4602 = vmatpush.msra.mxu0 0.0
    %4603 = vmatpush.msra.mxu0 0.0
    %4604 = vmatpush.msra.mxu0 %v2991
    %4605 = vmatpush.msra.mxu0 %v2990
    %4606 = vmatpush.msra.mxu0 %v2989
    %4607 = vmatpush.msra.mxu0 %v2988
    %4608 = vmatmul.f32.gmra.mxu0 %v4590
    %v4609 = vpop.f32.mrf.mxu0
    %v4610 = vadd.f32 0.0, %v4609
    %4611 = vdwg.mxu0
    %v4613 = vrot.slane %v4585, 1
    %v4616 = vrot.slane %v4610, 1
    %v4618 = vadd.f32 %v4585, %v4610
    %v4619 = vadd.f32 %v4613, %v4616
    %v4622 = vperm.slane %v4618, 0
    %v4623 = vperm.slane %v4619, 0
    %v4626 = vadd.f32 %v4622, %v2982
    %v4627 = vadd.f32 %v4623, %v2983
    %v4628 = vtanh.pop %v4626
    %v4629 = vtanh.pop %v4627
    %v4630 = vmul.f32 %v4628, %v3063
    %v4631 = vmul.f32 %v4629, %v3063
    %v4632 = vsel %vm648, %v4630, 0.0
    %4633 = vadd.xlane.f32.xlu0 %v4632
    %v4634 = vpop.xlane.xlu0 %4633
    %v4635 = vsel %vm648, %v4631, 0.0
    %4636 = vadd.xlane.f32.xlu0 %v4635
    %v4637 = vpop.xlane.xlu0 %4636
    %v4638 = vadd.f32 %v4634, %v3077
    %v4639 = vadd.f32 %v4637, %v3077
    %v4642 = vperm.slane %v4638, %v647
    %v4643 = vperm.slane %v4639, %v647
    %v4644 = vsel %vm734, %v4643, %v4642
    %v4646 = vsel %vm3087, %v4644, -inf
    %4647 = vmax.xlane.f32.xlu0 %v4646
    %v4648 = vpop.xlane.xlu0 %4647
    %v4650 = vperm.slane %v4648, 0
    %v4651 = vperm.slane %v4648, 1
    %v4654 = vsub.f32 %v4638, %v4650
    %v4655 = vsub.f32 %v4639, %v4651
    %v4656 = vmul.f32 %v4654, 1.442695
    %v4657 = vpow.pop %v4656
    %v4658 = vmul.f32 %v4655, 1.442695
    %v4659 = vpow.pop %v4658
    %4662 = vset.pattern.permute.xlu0 0
    %4663 = vperm.xlu0 %4662, %v4657
    %v4664 = vpop.permute.xlu0 %4663
    %4665 = vset.pattern.permute.xlu0 0
    %4666 = vperm.xlu0 %4665, %v4659
    %v4667 = vpop.permute.xlu0 %4666
    %v4668 = vperm.slane %v4664, %v647
    %v4669 = vperm.slane %v4667, %v647
    %v4670 = vsel %vm734, %v4669, %v4668
    %v4672 = vsel %vm3087, %v4670, 0.0
    %4673 = vadd.xlane.f32.xlu0 %v4672
    %v4674 = vpop.xlane.xlu0 %4673
    %v4676 = vperm.slane %v4674, 0
    %v4677 = vperm.slane %v4674, 1
    %v4680 = vrcp.pop %v4676
    %v4681 = vmul.f32 %v4676, %v4680
    %v4682 = vsub.f32 1.0, %v4681
    %v4683 = vmul.f32 %v4680, %v4682
    %v4684 = vadd.f32 %v4680, %v4683
    %vm4685 = vweird.f32 %v4676
    %vm4686 = vweird.f32 %v4680
    %vm4687 = vmor %vm4685, %vm4686
    %v4688 = vsel %vm4687, %v4680, %v4684
    %v4689 = vand.u32 2147483647, %v4676
    %vm4690 = vcmp.eq.f32.partialorder %v4689, 8.507059e+37
    %v4691 = vand.u32 %v4676, 2147483648
    %v4692 = vor.u32 1.1754944e-38, %v4691
    %v4693 = vsel %vm4690, %v4692, %v4688
    %v4694 = vmul.f32 %v4657, %v4693
    %v4695 = vrcp.pop %v4677
    %v4696 = vmul.f32 %v4677, %v4695
    %v4697 = vsub.f32 1.0, %v4696
    %v4698 = vmul.f32 %v4695, %v4697
    %v4699 = vadd.f32 %v4695, %v4698
    %vm4700 = vweird.f32 %v4677
    %vm4701 = vweird.f32 %v4695
    %vm4702 = vmor %vm4700, %vm4701
    %v4703 = vsel %vm4702, %v4695, %v4699
    %v4704 = vand.u32 2147483647, %v4677
    %vm4705 = vcmp.eq.f32.partialorder %v4704, 8.507059e+37
    %v4706 = vand.u32 %v4677, 2147483648
    %v4707 = vor.u32 1.1754944e-38, %v4706
    %v4708 = vsel %vm4705, %v4707, %v4703
    %v4709 = vmul.f32 %v4659, %v4708
    %4711 = vset.pattern.permute.xlu0 0
    %4712 = vperm.xlu0 %4711, %v4694
    %v4713 = vpop.permute.xlu0 %4712
    %4716 = vset.pattern.permute.xlu0 0
    %4717 = vperm.xlu0 %4716, %v4709
    %v4718 = vpop.permute.xlu0 %4717
    %v4720 = vmul.f32 %v4713, %v2917
    %v4721 = vmul.f32 %v4718, %v2943
    %v4722 = vsel %vm648, %v4720, 0.0
    %v4723 = vrot.slane %v4722, 4
    %v4724 = vadd.f32 %v4722, %v4723
    %v4725 = vrot.slane %v4724, 2
    %v4726 = vadd.f32 %v4724, %v4725
    %v4727 = vrot.slane %v4726, 1
    %v4728 = vadd.f32 %v4726, %v4727
    %v4729 = vsel %vm648, %v4721, 0.0
    %v4730 = vrot.slane %v4729, 4
    %v4731 = vadd.f32 %v4729, %v4730
    %v4732 = vrot.slane %v4731, 2
    %v4733 = vadd.f32 %v4731, %v4732
    %v4734 = vrot.slane %v4733, 1
    %v4735 = vadd.f32 %v4733, %v4734
    %v4736 = vmul.f32 %v4728, %v3179
    %v4737 = vmul.f32 %v4735, %v3179
    %v4740 = vrot.slane %v4737, 7
    %v4741 = vsel %vm734, %v4740, %v4736
    %v4743 = vsel %vm3188, %v4741, 0.0
    %4744 = vadd.xlane.f32.xlu0 %v4743
    %v4745 = vpop.xlane.xlu0 %4744
    %4746 = vrot.lane.b32.xlu0 %v3193, 6
    %v4747 = vpop.permute.xlu0 %4746
    %v4749 = vmul.f32 %v3003, %v4747
    %v4750 = vadd.f32 %v4745, %v4749
    %4751 = vrot.lane.b32.xlu0 %v3198, 6
    %v4752 = vpop.permute.xlu0 %4751
    %v4754 = vadd.f32 %v4750, %v4752
    %4756 = vset.pattern.permute.xlu0 6
    %4757 = vperm.xlu0 %4756, %v4754
    %v4758 = vpop.permute.xlu0 %4757
    %v4760 = vmul.f32 %v4758, %v3207
    %4761 = vmatpush.msra.mxu0 0.0
    %4762 = vmatpush.msra.mxu0 0.0
    %4763 = vmatpush.msra.mxu0 0.0
    %4764 = vmatpush.msra.mxu0 0.0
    %4765 = vmatpush.msra.mxu0 0.0
    %4766 = vmatpush.msra.mxu0 0.0
    %4767 = vmatpush.msra.mxu0 0.0
    %4768 = vmatpush.msra.mxu0 0.0
    %4769 = vmatpush.msra.mxu0 0.0
    %4770 = vmatpush.msra.mxu0 0.0
    %4771 = vmatpush.msra.mxu0 0.0
    %4772 = vmatpush.msra.mxu0 0.0
    %4773 = vmatpush.msra.mxu0 %v3001
    %4774 = vmatpush.msra.mxu0 %v3000
    %4775 = vmatpush.msra.mxu0 %v2999
    %4776 = vmatpush.msra.mxu0 %v2998
    %4777 = vmatmul.f32.gmra.mxu0 %v4565
    %v4778 = vpop.f32.mrf.mxu0
    %v4779 = vadd.f32 0.0, %v4778
    %4780 = vdwg.mxu0
    %v4781 = vadd.f32 %v4760, %v4779
    %v4782 = vadd.f32 %v4781, %v3232
    %v4783 = vsub.f32 0.0, %v4782
    %v4784 = vmul.f32 %v4783, 1.442695
    %v4785 = vpow.pop %v4784
    %v4786 = vadd.f32 %v4785, 1.0
    %v4787 = vrcp.pop %v4786
    %v4788 = vmul.f32 %v4786, %v4787
    %v4789 = vsub.f32 1.0, %v4788
    %v4790 = vmul.f32 %v4787, %v4789
    %v4791 = vadd.f32 %v4787, %v4790
    %vm4792 = vweird.f32 %v4786
    %vm4793 = vweird.f32 %v4787
    %vm4794 = vmor %vm4792, %vm4793
    %v4795 = vsel %vm4794, %v4787, %v4791
    %v4796 = vand.u32 2147483647, %v4786
    %vm4797 = vcmp.eq.f32.partialorder %v4796, 8.507059e+37
    %v4798 = vand.u32 %v4786, 2147483648
    %v4799 = vor.u32 1.1754944e-38, %v4798
    %v4800 = vsel %vm4797, %v4799, %v4795
    %v4801 = vmul.f32 1.0, %v4800
    %v4802 = vtanh.pop %v4782
    %v4803 = vmul.f32 %v4801, %v4555
    %4805 = vrot.lane.b32.xlu0 %v4802, 64
    %v4806 = vpop.permute.xlu0 %4805
    %v4808 = vmul.f32 %v4801, %v4806
    %4810 = vrot.lane.b32.xlu0 %v4808, 32
    %v4811 = vpop.permute.xlu0 %4810
    %v4813 = vadd.f32 %v4803, %v4811
    %v4814 = vtanh.pop %v4813
    %4816 = vrot.lane.b32.xlu0 %v4814, 64
    %v4817 = vpop.permute.xlu0 %4816
    %v4819 = vmul.f32 %v4801, %v4817
    %4821 = vrot.lane.b32.xlu0 %v4819, 32
    %v4822 = vpop.permute.xlu0 %4821
    %v4823 = vsel %vm648, %v4822, 0
    %4825 = vmatpush.msra.mxu0 0.0
    %4826 = vmatpush.msra.mxu0 0.0
    %4827 = vmatpush.msra.mxu0 0.0
    %4828 = vmatpush.msra.mxu0 0.0
    %4829 = vmatpush.msra.mxu0 0.0
    %4830 = vmatpush.msra.mxu0 0.0
    %4831 = vmatpush.msra.mxu0 0.0
    %4832 = vmatpush.msra.mxu0 0.0
    %4833 = vmatpush.msra.mxu0 0.0
    %4834 = vmatpush.msra.mxu0 0.0
    %4835 = vmatpush.msra.mxu0 0.0
    %4836 = vmatpush.msra.mxu0 0.0
    %4837 = vmatpush.msra.mxu0 %v2987
    %4838 = vmatpush.msra.mxu0 %v2986
    %4839 = vmatpush.msra.mxu0 %v2985
    %4840 = vmatpush.msra.mxu0 %v2984
    %4841 = vmatmul.f32.gmra.mxu0 %v4823
    %v4842 = vpop.f32.mrf.mxu0
    %v4843 = vadd.f32 0.0, %v4842
    %4844 = vdwg.mxu0
    %4846 = vrot.lane.b32.xlu0 %v4813, 96
    %v4847 = vpop.permute.xlu0 %4846
    %v4848 = vsel %vm648, %v4847, 0
    %4850 = vmatpush.msra.mxu0 0.0
    %4851 = vmatpush.msra.mxu0 0.0
    %4852 = vmatpush.msra.mxu0 0.0
    %4853 = vmatpush.msra.mxu0 0.0
    %4854 = vmatpush.msra.mxu0 0.0
    %4855 = vmatpush.msra.mxu0 0.0
    %4856 = vmatpush.msra.mxu0 0.0
    %4857 = vmatpush.msra.mxu0 0.0
    %4858 = vmatpush.msra.mxu0 0.0
    %4859 = vmatpush.msra.mxu0 0.0
    %4860 = vmatpush.msra.mxu0 0.0
    %4861 = vmatpush.msra.mxu0 0.0
    %4862 = vmatpush.msra.mxu0 %v2991
    %4863 = vmatpush.msra.mxu0 %v2990
    %4864 = vmatpush.msra.mxu0 %v2989
    %4865 = vmatpush.msra.mxu0 %v2988
    %4866 = vmatmul.f32.gmra.mxu0 %v4848
    %v4867 = vpop.f32.mrf.mxu0
    %v4868 = vadd.f32 0.0, %v4867
    %4869 = vdwg.mxu0
    %v4871 = vrot.slane %v4843, 1
    %v4874 = vrot.slane %v4868, 1
    %v4876 = vadd.f32 %v4843, %v4868
    %v4877 = vadd.f32 %v4871, %v4874
    %v4880 = vperm.slane %v4876, 0
    %v4881 = vperm.slane %v4877, 0
    %v4884 = vadd.f32 %v4880, %v2982
    %v4885 = vadd.f32 %v4881, %v2983
    %v4886 = vtanh.pop %v4884
    %v4887 = vtanh.pop %v4885
    %v4888 = vmul.f32 %v4886, %v3063
    %v4889 = vmul.f32 %v4887, %v3063
    %v4890 = vsel %vm648, %v4888, 0.0
    %4891 = vadd.xlane.f32.xlu0 %v4890
    %v4892 = vpop.xlane.xlu0 %4891
    %v4893 = vsel %vm648, %v4889, 0.0
    %4894 = vadd.xlane.f32.xlu0 %v4893
    %v4895 = vpop.xlane.xlu0 %4894
    %v4896 = vadd.f32 %v4892, %v3077
    %v4897 = vadd.f32 %v4895, %v3077
    %v4900 = vperm.slane %v4896, %v647
    %v4901 = vperm.slane %v4897, %v647
    %v4902 = vsel %vm734, %v4901, %v4900
    %v4904 = vsel %vm3087, %v4902, -inf
    %4905 = vmax.xlane.f32.xlu0 %v4904
    %v4906 = vpop.xlane.xlu0 %4905
    %v4908 = vperm.slane %v4906, 0
    %v4909 = vperm.slane %v4906, 1
    %v4912 = vsub.f32 %v4896, %v4908
    %v4913 = vsub.f32 %v4897, %v4909
    %v4914 = vmul.f32 %v4912, 1.442695
    %v4915 = vpow.pop %v4914
    %v4916 = vmul.f32 %v4913, 1.442695
    %v4917 = vpow.pop %v4916
    %4920 = vset.pattern.permute.xlu0 0
    %4921 = vperm.xlu0 %4920, %v4915
    %v4922 = vpop.permute.xlu0 %4921
    %4923 = vset.pattern.permute.xlu0 0
    %4924 = vperm.xlu0 %4923, %v4917
    %v4925 = vpop.permute.xlu0 %4924
    %v4926 = vperm.slane %v4922, %v647
    %v4927 = vperm.slane %v4925, %v647
    %v4928 = vsel %vm734, %v4927, %v4926
    %v4930 = vsel %vm3087, %v4928, 0.0
    %4931 = vadd.xlane.f32.xlu0 %v4930
    %v4932 = vpop.xlane.xlu0 %4931
    %v4934 = vperm.slane %v4932, 0
    %v4935 = vperm.slane %v4932, 1
    %v4938 = vrcp.pop %v4934
    %v4939 = vmul.f32 %v4934, %v4938
    %v4940 = vsub.f32 1.0, %v4939
    %v4941 = vmul.f32 %v4938, %v4940
    %v4942 = vadd.f32 %v4938, %v4941
    %vm4943 = vweird.f32 %v4934
    %vm4944 = vweird.f32 %v4938
    %vm4945 = vmor %vm4943, %vm4944
    %v4946 = vsel %vm4945, %v4938, %v4942
    %v4947 = vand.u32 2147483647, %v4934
    %vm4948 = vcmp.eq.f32.partialorder %v4947, 8.507059e+37
    %v4949 = vand.u32 %v4934, 2147483648
    %v4950 = vor.u32 1.1754944e-38, %v4949
    %v4951 = vsel %vm4948, %v4950, %v4946
    %v4952 = vmul.f32 %v4915, %v4951
    %v4953 = vrcp.pop %v4935
    %v4954 = vmul.f32 %v4935, %v4953
    %v4955 = vsub.f32 1.0, %v4954
    %v4956 = vmul.f32 %v4953, %v4955
    %v4957 = vadd.f32 %v4953, %v4956
    %vm4958 = vweird.f32 %v4935
    %vm4959 = vweird.f32 %v4953
    %vm4960 = vmor %vm4958, %vm4959
    %v4961 = vsel %vm4960, %v4953, %v4957
    %v4962 = vand.u32 2147483647, %v4935
    %vm4963 = vcmp.eq.f32.partialorder %v4962, 8.507059e+37
    %v4964 = vand.u32 %v4935, 2147483648
    %v4965 = vor.u32 1.1754944e-38, %v4964
    %v4966 = vsel %vm4963, %v4965, %v4961
    %v4967 = vmul.f32 %v4917, %v4966
    %4969 = vset.pattern.permute.xlu0 0
    %4970 = vperm.xlu0 %4969, %v4952
    %v4971 = vpop.permute.xlu0 %4970
    %4974 = vset.pattern.permute.xlu0 0
    %4975 = vperm.xlu0 %4974, %v4967
    %v4976 = vpop.permute.xlu0 %4975
    %v4978 = vmul.f32 %v4971, %v2917
    %v4979 = vmul.f32 %v4976, %v2943
    %v4980 = vsel %vm648, %v4978, 0.0
    %v4981 = vrot.slane %v4980, 4
    %v4982 = vadd.f32 %v4980, %v4981
    %v4983 = vrot.slane %v4982, 2
    %v4984 = vadd.f32 %v4982, %v4983
    %v4985 = vrot.slane %v4984, 1
    %v4986 = vadd.f32 %v4984, %v4985
    %v4987 = vsel %vm648, %v4979, 0.0
    %v4988 = vrot.slane %v4987, 4
    %v4989 = vadd.f32 %v4987, %v4988
    %v4990 = vrot.slane %v4989, 2
    %v4991 = vadd.f32 %v4989, %v4990
    %v4992 = vrot.slane %v4991, 1
    %v4993 = vadd.f32 %v4991, %v4992
    %v4994 = vmul.f32 %v4986, %v3179
    %v4995 = vmul.f32 %v4993, %v3179
    %v4998 = vrot.slane %v4995, 7
    %v4999 = vsel %vm734, %v4998, %v4994
    %v5001 = vsel %vm3188, %v4999, 0.0
    %5002 = vadd.xlane.f32.xlu0 %v5001
    %v5003 = vpop.xlane.xlu0 %5002
    %5004 = vrot.lane.b32.xlu0 %v3193, 7
    %v5005 = vpop.permute.xlu0 %5004
    %v5007 = vmul.f32 %v3003, %v5005
    %v5008 = vadd.f32 %v5003, %v5007
    %5009 = vrot.lane.b32.xlu0 %v3198, 7
    %v5010 = vpop.permute.xlu0 %5009
    %v5012 = vadd.f32 %v5008, %v5010
    %5014 = vset.pattern.permute.xlu0 7
    %5015 = vperm.xlu0 %5014, %v5012
    %v5016 = vpop.permute.xlu0 %5015
    %v5018 = vmul.f32 %v5016, %v3207
    %5019 = vmatpush.msra.mxu0 0.0
    %5020 = vmatpush.msra.mxu0 0.0
    %5021 = vmatpush.msra.mxu0 0.0
    %5022 = vmatpush.msra.mxu0 0.0
    %5023 = vmatpush.msra.mxu0 0.0
    %5024 = vmatpush.msra.mxu0 0.0
    %5025 = vmatpush.msra.mxu0 0.0
    %5026 = vmatpush.msra.mxu0 0.0
    %5027 = vmatpush.msra.mxu0 0.0
    %5028 = vmatpush.msra.mxu0 0.0
    %5029 = vmatpush.msra.mxu0 0.0
    %5030 = vmatpush.msra.mxu0 0.0
    %5031 = vmatpush.msra.mxu0 %v3001
    %5032 = vmatpush.msra.mxu0 %v3000
    %5033 = vmatpush.msra.mxu0 %v2999
    %5034 = vmatpush.msra.mxu0 %v2998
    %5035 = vmatmul.f32.gmra.mxu0 %v4823
    %v5036 = vpop.f32.mrf.mxu0
    %v5037 = vadd.f32 0.0, %v5036
    %5038 = vdwg.mxu0
    %v5039 = vadd.f32 %v5018, %v5037
    %v5040 = vadd.f32 %v5039, %v3232
    %v5041 = vsub.f32 0.0, %v5040
    %v5042 = vmul.f32 %v5041, 1.442695
    %v5043 = vpow.pop %v5042
    %v5044 = vadd.f32 %v5043, 1.0
    %v5045 = vrcp.pop %v5044
    %v5046 = vmul.f32 %v5044, %v5045
    %v5047 = vsub.f32 1.0, %v5046
    %v5048 = vmul.f32 %v5045, %v5047
    %v5049 = vadd.f32 %v5045, %v5048
    %vm5050 = vweird.f32 %v5044
    %vm5051 = vweird.f32 %v5045
    %vm5052 = vmor %vm5050, %vm5051
    %v5053 = vsel %vm5052, %v5045, %v5049
    %v5054 = vand.u32 2147483647, %v5044
    %vm5055 = vcmp.eq.f32.partialorder %v5054, 8.507059e+37
    %v5056 = vand.u32 %v5044, 2147483648
    %v5057 = vor.u32 1.1754944e-38, %v5056
    %v5058 = vsel %vm5055, %v5057, %v5053
    %v5059 = vmul.f32 1.0, %v5058
    %v5060 = vtanh.pop %v5040
    %v5061 = vmul.f32 %v5059, %v4813
    %5063 = vrot.lane.b32.xlu0 %v5060, 64
    %v5064 = vpop.permute.xlu0 %5063
    %v5066 = vmul.f32 %v5059, %v5064
    %5068 = vrot.lane.b32.xlu0 %v5066, 32
    %v5069 = vpop.permute.xlu0 %5068
    %v5071 = vadd.f32 %v5061, %v5069
    %v5072 = vtanh.pop %v5071
    %5074 = vrot.lane.b32.xlu0 %v5072, 64
    %v5075 = vpop.permute.xlu0 %5074
    %v5077 = vmul.f32 %v5059, %v5075
    %v5078 = vld [vmem:[%s13] sm:$0xff]
    %v5079 = vld [vmem:[%s13 + $0x8] sm:$0xff]
    %v5080 = vld [vmem:[%s13 + $0x10] sm:$0xff]
    %v5081 = vld [vmem:[%s13 + $0x18] sm:$0xff]
    %v5082 = vld [vmem:[%s15] sm:$0x1]
    %v5084 = vperm.slane %v5082, 0
    %5087 = vrot.lane.b32.xlu0 %v5077, 32
    %v5088 = vpop.permute.xlu0 %5087
    %v5089 = vsel %vm648, %v5088, 0
    %5091 = vmatpush.msra.mxu0 0.0
    %5092 = vmatpush.msra.mxu0 0.0
    %5093 = vmatpush.msra.mxu0 0.0
    %5094 = vmatpush.msra.mxu0 0.0
    %5095 = vmatpush.msra.mxu0 0.0
    %5096 = vmatpush.msra.mxu0 0.0
    %5097 = vmatpush.msra.mxu0 0.0
    %5098 = vmatpush.msra.mxu0 0.0
    %5099 = vmatpush.msra.mxu0 0.0
    %5100 = vmatpush.msra.mxu0 0.0
    %5101 = vmatpush.msra.mxu0 0.0
    %5102 = vmatpush.msra.mxu0 0.0
    %5103 = vmatpush.msra.mxu0 %v5081
    %5104 = vmatpush.msra.mxu0 %v5080
    %5105 = vmatpush.msra.mxu0 %v5079
    %5106 = vmatpush.msra.mxu0 %v5078
    %5107 = vmatmul.f32.gmra.mxu0 %v5089
    %v5108 = vpop.f32.mrf.mxu0
    %v5109 = vadd.f32 %v5084, %v5108
    %5110 = vdwg.mxu0
    %5112 = vrot.lane.b32.xlu0 %v5109, 96
    %v5113 = vpop.permute.xlu0 %5112
    %v5114 = vsel %vm648, %v5109, 0
    %v5116 = vsel %vm648, %v5113, 0
    %5118 = vmatpush.xpose.msra.mxu0 0.0
    %5119 = vmatpush.xpose.msra.mxu0 0.0
    %5120 = vmatpush.xpose.msra.mxu0 0.0
    %5121 = vmatpush.xpose.msra.mxu0 0.0
    %5122 = vmatpush.xpose.msra.mxu0 0.0
    %5123 = vmatpush.xpose.msra.mxu0 0.0
    %5124 = vmatpush.xpose.msra.mxu0 0.0
    %5125 = vmatpush.xpose.msra.mxu0 0.0
    %5126 = vmatpush.xpose.msra.mxu0 0.0
    %5127 = vmatpush.xpose.msra.mxu0 0.0
    %5128 = vmatpush.xpose.msra.mxu0 0.0
    %5129 = vmatpush.xpose.msra.mxu0 0.0
    %5130 = vmatpush.xpose.msra.mxu0 0.0
    %5131 = vmatpush.xpose.msra.mxu0 0.0
    %5132 = vmatpush.xpose.msra.mxu0 0.0
    %5133 = vmatpush.xpose.msra.mxu0 %v5116
    %5134 = vmatmul.f32.gmra.mxu0 %v5114
    %v5135 = vpop.f32.mrf.mxu0
    %v5136 = vadd.f32 0.0, %v5135
    %5137 = vdwg.mxu0
    %v5138 = vmul.f32 %v5136, 0.17677669
    %vm5139 = vcmask 9216
    %v5140 = vsel %vm5139, %v5138, -inf
    %5141 = vmax.xlane.f32.xlu0 %v5140
    %v5142 = vpop.xlane.xlu0 %5141
    %v5143 = vsub.f32 %v5138, %v5142
    %v5144 = vmul.f32 %v5143, 1.442695
    %v5145 = vpow.pop %v5144
    %v5146 = vsel %vm5139, %v5145, 0.0
    %5147 = vadd.xlane.f32.xlu0 %v5146
    %v5148 = vpop.xlane.xlu0 %5147
    %v5149 = vrcp.pop %v5148
    %v5150 = vmul.f32 %v5148, %v5149
    %v5151 = vsub.f32 1.0, %v5150
    %v5152 = vmul.f32 %v5149, %v5151
    %v5153 = vadd.f32 %v5149, %v5152
    %vm5154 = vweird.f32 %v5148
    %vm5155 = vweird.f32 %v5149
    %vm5156 = vmor %vm5154, %vm5155
    %v5157 = vsel %vm5156, %v5149, %v5153
    %v5158 = vand.u32 2147483647, %v5148
    %vm5159 = vcmp.eq.f32.partialorder %v5158, 8.507059e+37
    %v5160 = vand.u32 %v5148, 2147483648
    %v5161 = vor.u32 1.1754944e-38, %v5160
    %v5162 = vsel %vm5159, %v5161, %v5157
    %v5163 = vmul.f32 %v5145, %v5162
    %5164 = vrot.lane.b32.xlu0 %v5109, 64
    %v5165 = vpop.permute.xlu0 %5164
    %vm5166 = vcmask 15360
    %v5168 = vsel %vm5166, %v5163, 0
    %vm5170 = vcmask 1041408
    %v5171 = vsel %vm5170, %v5165, 0
    %5173 = vmatpush.msra.mxu0 0.0
    %5174 = vmatpush.msra.mxu0 0.0
    %5175 = vmatpush.msra.mxu0 0.0
    %5176 = vmatpush.msra.mxu0 0.0
    %5177 = vmatpush.msra.mxu0 0.0
    %5178 = vmatpush.msra.mxu0 0.0
    %5179 = vmatpush.msra.mxu0 0.0
    %5180 = vmatpush.msra.mxu0 0.0
    %5181 = vmatpush.msra.mxu0 0.0
    %5182 = vmatpush.msra.mxu0 0.0
    %5183 = vmatpush.msra.mxu0 0.0
    %5184 = vmatpush.msra.mxu0 0.0
    %5185 = vmatpush.msra.mxu0 0.0
    %5186 = vmatpush.msra.mxu0 0.0
    %5187 = vmatpush.msra.mxu0 0.0
    %5188 = vmatpush.msra.mxu0 %v5171
    %5189 = vmatmul.f32.gmra.mxu0 %v5168
    %v5190 = vpop.f32.mrf.mxu0
    %v5191 = vadd.f32 0.0, %v5190
    %5192 = vdwg.mxu0
    %s5193 = sld [smem:[#allocation7]]
    %v5194 = vstv %s5193
    %v5195 = vmul.f32 %v5194, %v5191
    %s5196 = sld [smem:[#allocation8]]
    %v5197 = vstv %s5196
    %v5198 = vmul.f32 %v5197, %v5077
    %5200 = vrot.lane.b32.xlu0 %v5198, 32
    %v5201 = vpop.permute.xlu0 %5200
    %v5203 = vadd.f32 %v5195, %v5201
    %v5204 = vld [vmem:[#allocation33] sm:$0xff]
    %v5205 = vld [vmem:[#allocation33 + $0x8] sm:$0xff]
    %v5206 = vld [vmem:[#allocation33 + $0x10] sm:$0xff]
    %v5207 = vld [vmem:[#allocation33 + $0x18] sm:$0xff]
    %v5208 = vld [vmem:[%s65] sm:$0x1]
    %v5210 = vperm.slane %v5208, 0
    %v5213 = vsel %vm648, %v5203, 0
    %5215 = vmatpush.msra.mxu0 0.0
    %5216 = vmatpush.msra.mxu0 0.0
    %5217 = vmatpush.msra.mxu0 0.0
    %5218 = vmatpush.msra.mxu0 0.0
    %5219 = vmatpush.msra.mxu0 0.0
    %5220 = vmatpush.msra.mxu0 0.0
    %5221 = vmatpush.msra.mxu0 0.0
    %5222 = vmatpush.msra.mxu0 0.0
    %5223 = vmatpush.msra.mxu0 0.0
    %5224 = vmatpush.msra.mxu0 0.0
    %5225 = vmatpush.msra.mxu0 0.0
    %5226 = vmatpush.msra.mxu0 0.0
    %5227 = vmatpush.msra.mxu0 %v5207
    %5228 = vmatpush.msra.mxu0 %v5206
    %5229 = vmatpush.msra.mxu0 %v5205
    %5230 = vmatpush.msra.mxu0 %v5204
    %5231 = vmatmul.f32.gmra.mxu0 %v5213
    %v5232 = vpop.f32.mrf.mxu0
    %v5233 = vadd.f32 %v5210, %v5232
    %5234 = vdwg.mxu0
    %v5235 = vld [vmem:[%s67] sm:$0x1]
    %v5237 = vperm.slane %v5235, 0
    %v5239 = vmul.f32 %v5233, %v5237
    %v5240 = vsel %vm3188, %v5239, 0.0
    %5241 = vadd.xlane.f32.xlu0 %v5240
    %v5242 = vpop.xlane.xlu0 %5241
    %v5243 = vld [vmem:[#allocation9] sm:$0x1]
    %v5245 = vperm.slane %v5243, 0
    %v5247 = vadd.f32 %v5242, %v5245
    %v5248 = vsub.f32 0.0, %v5247
    %v5249 = vmul.f32 %v5248, 1.442695
    %v5250 = vpow.pop %v5249
    %v5251 = vadd.f32 %v5250, 1.0
    %v5252 = vrcp.pop %v5251
    %v5253 = vmul.f32 %v5251, %v5252
    %v5254 = vsub.f32 1.0, %v5253
    %v5255 = vmul.f32 %v5252, %v5254
    %v5256 = vadd.f32 %v5252, %v5255
    %vm5257 = vweird.f32 %v5251
    %vm5258 = vweird.f32 %v5252
    %vm5259 = vmor %vm5257, %vm5258
    %v5260 = vsel %vm5259, %v5252, %v5256
    %v5261 = vand.u32 2147483647, %v5251
    %vm5262 = vcmp.eq.f32.partialorder %v5261, 8.507059e+37
    %v5263 = vand.u32 %v5251, 2147483648
    %v5264 = vor.u32 1.1754944e-38, %v5263
    %v5265 = vsel %vm5262, %v5264, %v5260
    %v5266 = vmul.f32 1.0, %v5265
    %vm5267 = vcmask 1024
    %5268 = vst.msk [vmem:[%s71] sm:$0x3] %vm5267, %v5266
    // Predicated region
    $region206: #{darnn_forward.1} parent=1 // pred_check
      _
    $region207: #{darnn_forward.1} parent=1 // pred_check_branch
      %5270 = sbr.rel (0) target = $region209
    $region208: #{darnn_forward.1} parent=1 // pred_region
      _
    $region209: #{darnn_forward.1} parent=1 // pred_fallthru
      _
    // Predicated region
    $region210: #{darnn_forward.1} parent=1 // pred_check
      _
    $region211: #{darnn_forward.1} parent=1 // pred_check_branch
      %5272 = sbr.rel (0) target = $region213
    $region212: #{darnn_forward.1} parent=1 // pred_region
      _
    $region213: #{darnn_forward.1} parent=1 // pred_fallthru
      _
    %5273 = vsyncpa [#allocation11], 1
    %5274 = vsyncpa [#allocation13], 1
    %5275 = vsyncpa [#allocation16], 1
    %5276 = vsyncpa [#allocation19], 1
    %5277 = vsyncpa [#allocation22], 1
    %5278 = vsyncpa [#allocation25], 1
    %5279 = vsyncpa [#allocation28], 1
    %5280 = vsyncpa [#allocation31], 1
    %5281 = vsyncpa [#allocation34], 1

</llo_original>
